<compile_context>
chip_gen: v7x
topology: tpu7x:2x2x1
jax: 0.10.0
libtpu: 0.0.40
codegen_flags: <defaults>
</compile_context>

<pallas_src>
import jax
import jax.numpy as jnp
from jax.experimental import pallas as pl
from jax.experimental.pallas import tpu as pltpu

BN_EPS = 1e-5
LANE = 128


def _zero_halo(ref):
    """Zero only the 1-pixel spatial halo of a (TB, H+2, W+2, C) VMEM scratch."""
    tb, hp, wp, c = ref.shape
    zrow = jnp.zeros((tb, 1, wp, c), ref.dtype)
    zcol = jnp.zeros((tb, hp, 1, c), ref.dtype)
    ref[:, 0:1, :, :] = zrow
    ref[:, hp - 1:hp, :, :] = zrow
    ref[:, :, 0:1, :] = zcol
    ref[:, :, wp - 1:wp, :] = zcol


def _resblock_kernel(x_ref, w1_ref, b1_ref, w2_ref, b2_ref, out_ref,
                     xpad_ref, hpad_ref, col_ref):
    """One batch tile. x_ref: (TB, H, W, Cp) bf16 (channel-padded, unpadded space)."""
    tb, H, W, Cp = x_ref.shape
    K = 9 * Cp
    rows = tb * H * W

    # Constant zero halos (interiors are fully overwritten every grid step).
    _zero_halo(xpad_ref)
    _zero_halo(hpad_ref)

    # Stage the unpadded input tile into the spatially padded scratch.
    xpad_ref[:, 1:H + 1, 1:W + 1, :] = x_ref[...]

    # ---- conv1 (3x3, BN1 folded) -> ReLU ------------------------------------
    # im2col: col[..., t*Cp:(t+1)*Cp] = tap t; then one big-K matmul.
    for t in range(9):
        dy, dx = divmod(t, 3)
        col_ref[:, :, :, t * Cp:(t + 1) * Cp] = xpad_ref[:, dy:dy + H, dx:dx + W, :]
    h = jnp.dot(col_ref[...].reshape(rows, K), w1_ref[...],
                preferred_element_type=jnp.float32)
    h = jnp.maximum(h + b1_ref[...], 0.0)
    hpad_ref[:, 1:H + 1, 1:W + 1, :] = h.reshape(tb, H, W, Cp).astype(hpad_ref.dtype)

    # ---- conv2 (3x3, BN2 folded) + residual -> ReLU -------------------------
    for t in range(9):
        dy, dx = divmod(t, 3)
        col_ref[:, :, :, t * Cp:(t + 1) * Cp] = hpad_ref[:, dy:dy + H, dx:dx + W, :]
    y = jnp.dot(col_ref[...].reshape(rows, K), w2_ref[...],
                preferred_element_type=jnp.float32)
    residual = x_ref[...].astype(jnp.float32).reshape(rows, Cp)
    y = jnp.maximum(y + b2_ref[...] + residual, 0.0)
    out_ref[...] = y.reshape(tb, H, W, Cp).astype(out_ref.dtype)


# ------------------------------ host-side prep -------------------------------

def _fold_bn_into_conv(w_oihw, b, gamma, beta, mean, var, eps=BN_EPS):
    """Fold eval-mode BN into a conv. Returns (w_hwio f32, bias f32)."""
    scale = gamma * jax.lax.rsqrt(var + eps)                 # (Cout,)
    w_hwio = jnp.transpose(w_oihw, (2, 3, 1, 0)) * scale     # (3,3,Cin,Cout)
    bias = (b - mean) * scale + beta                         # (Cout,)
    return w_hwio.astype(jnp.float32), bias.astype(jnp.float32)


def _pack_for_kernel(w_hwio, bias, cp):
    """Channel-pad to cp and lay out as the (9*cp, cp) im2col weight matrix."""
    kh, kw, cin, cout = w_hwio.shape
    w = jnp.pad(w_hwio, ((0, 0), (0, 0), (0, cp - cin), (0, cp - cout)))
    w = w.reshape(kh * kw * cp, cp).astype(jnp.bfloat16)
    b = jnp.pad(bias, (0, cp - cout)).reshape(1, cp).astype(jnp.float32)
    return w, b


def _round_up(n, m):
    return (n + m - 1) // m * m


def residual_block_forward(x_nchw, params, *, batch_tile=8, eps=BN_EPS):
    """x_nchw: (B, C, H, W) float32 -> (B, C, H, W) float32."""
    B, Cin, H, W = x_nchw.shape
    Cout = params["conv1_w"].shape[0]
    assert Cin == Cout, "residual add requires in_channels == out_channels"
    Cp = _round_up(Cout, LANE)   # lane-dense channels: unmasked stores, full MXU N

    # NCHW -> NHWC, channel pad to Cp, bf16 for DMA + MXU (no spatial pre-pad;
    # the halo is built inside the kernel in VMEM).
    x_nhwc = jnp.transpose(x_nchw, (0, 2, 3, 1))
    x_in = jnp.pad(x_nhwc, ((0, 0), (0, 0), (0, 0), (0, Cp - Cin))).astype(jnp.bfloat16)

    w1f, b1f = _fold_bn_into_conv(params["conv1_w"], params["conv1_b"],
                                  params["bn1_gamma"], params["bn1_beta"],
                                  params["bn1_mean"], params["bn1_var"], eps)
    w2f, b2f = _fold_bn_into_conv(params["conv2_w"], params["conv2_b"],
                                  params["bn2_gamma"], params["bn2_beta"],
                                  params["bn2_mean"], params["bn2_var"], eps)
    w1, b1 = _pack_for_kernel(w1f, b1f, Cp)
    w2, b2 = _pack_for_kernel(w2f, b2f, Cp)

    # Batch tile: cap at B//2 so the 'parallel' grid has >= 2 iterations
    # (keeps both TensorCores busy on megacore parts).
    tb = max(1, min(batch_tile, B // 2)) if B > 1 else 1
    while B % tb:
        tb -= 1
    grid = (B // tb,)

    out_nhwc = pl.pallas_call(
        _resblock_kernel,
        out_shape=jax.ShapeDtypeStruct((B, H, W, Cp), jnp.bfloat16),
        grid_spec=pltpu.PrefetchScalarGridSpec(
            num_scalar_prefetch=0,
            grid=grid,
            in_specs=[
                pl.BlockSpec((tb, H, W, Cp), lambda i: (i, 0, 0, 0)),
                pl.BlockSpec((9 * Cp, Cp), lambda i: (0, 0)),   # resident weights
                pl.BlockSpec((1, Cp), lambda i: (0, 0)),        # resident bias
                pl.BlockSpec((9 * Cp, Cp), lambda i: (0, 0)),   # resident weights
                pl.BlockSpec((1, Cp), lambda i: (0, 0)),        # resident bias
            ],
            out_specs=pl.BlockSpec((tb, H, W, Cp), lambda i: (i, 0, 0, 0)),
            scratch_shapes=[
                pltpu.VMEM((tb, H + 2, W + 2, Cp), jnp.bfloat16),   # padded x
                pltpu.VMEM((tb, H + 2, W + 2, Cp), jnp.bfloat16),   # padded h
                pltpu.VMEM((tb, H, W, 9 * Cp), jnp.bfloat16),       # im2col staging
            ],
        ),
        compiler_params=pltpu.CompilerParams(
            dimension_semantics=("parallel",),
            vmem_limit_bytes=48 * 1024 * 1024,
        ),
    )(x_in, w1, b1, w2, b2)

    out = out_nhwc[..., :Cout]
    return jnp.transpose(out, (0, 3, 1, 2)).astype(x_nchw.dtype)


# ----------------------------- references & init -----------------------------

def residual_block_reference(x, p, eps=BN_EPS):
    """Pure-JAX f32 replica of the PyTorch forward (eval-mode BN)."""
    def conv(h, w, b):
        y = jax.lax.conv_general_dilated(
            h, w, window_strides=(1, 1), padding=((1, 1), (1, 1)),
            dimension_numbers=("NCHW", "OIHW", "NCHW"),
            precision=jax.lax.Precision.HIGHEST)
        return y + b[None, :, None, None]

    def bn(h, g, bta, m, v):
        scale = (g * jax.lax.rsqrt(v + eps))[None, :, None, None]
        return (h - m[None, :, None, None]) * scale + bta[None, :, None, None]

    out = jax.nn.relu(bn(conv(x, p["conv1_w"], p["conv1_b"]),
                         p["bn1_gamma"], p["bn1_beta"], p["bn1_mean"], p["bn1_var"]))
    out = bn(conv(out, p["conv2_w"], p["conv2_b"]),
             p["bn2_gamma"], p["bn2_beta"], p["bn2_mean"], p["bn2_var"])
    return jax.nn.relu(out + x)


def residual_block_reference_matched(x_nchw, p, eps=BN_EPS):
    """JAX replica of the kernel's numerics (folded BN, bf16 operands, f32 acc)."""
    x = jnp.transpose(x_nchw, (0, 2, 3, 1)).astype(jnp.bfloat16)
    w1, b1 = _fold_bn_into_conv(p["conv1_w"], p["conv1_b"], p["bn1_gamma"],
                                p["bn1_beta"], p["bn1_mean"], p["bn1_var"], eps)
    w2, b2 = _fold_bn_into_conv(p["conv2_w"], p["conv2_b"], p["bn2_gamma"],
                                p["bn2_beta"], p["bn2_mean"], p["bn2_var"], eps)

    def conv(a, w, b):
        y = jax.lax.conv_general_dilated(
            a, w.astype(jnp.bfloat16), (1, 1), ((1, 1), (1, 1)),
            dimension_numbers=("NHWC", "HWIO", "NHWC"),
            preferred_element_type=jnp.float32)
        return y + b[None, None, None, :]

    h = jax.nn.relu(conv(x, w1, b1)).astype(jnp.bfloat16)
    y = jax.nn.relu(conv(h, w2, b2) + x.astype(jnp.float32)).astype(jnp.bfloat16)
    return jnp.transpose(y, (0, 3, 1, 2)).astype(jnp.float32)


def init_params(key, in_channels, out_channels):
    ks = jax.random.split(key, 6)

    def conv_init(kw, kb, cin, cout):
        bound = 1.0 / float(cin * 9) ** 0.5   # PyTorch-style uniform(+-1/sqrt(fan_in))
        w = jax.random.uniform(kw, (cout, cin, 3, 3), jnp.float32, -bound, bound)
        b = jax.random.uniform(kb, (cout,), jnp.float32, -bound, bound)
        return w, b

    def bn_init(k, n):
        kg, kb, km, kv = jax.random.split(k, 4)
        return dict(
            gamma=jax.random.uniform(kg, (n,), jnp.float32, 0.5, 1.5),
            beta=0.1 * jax.random.normal(kb, (n,), jnp.float32),
            mean=0.1 * jax.random.normal(km, (n,), jnp.float32),
            var=jax.random.uniform(kv, (n,), jnp.float32, 0.5, 1.5),
        )

    w1, b1 = conv_init(ks[0], ks[1], in_channels, out_channels)
    w2, b2 = conv_init(ks[2], ks[3], out_channels, out_channels)
    bn1 = bn_init(ks[4], out_channels)
    bn2 = bn_init(ks[5], out_channels)
    return dict(
        conv1_w=w1, conv1_b=b1,
        bn1_gamma=bn1["gamma"], bn1_beta=bn1["beta"],
        bn1_mean=bn1["mean"], bn1_var=bn1["var"],
        conv2_w=w2, conv2_b=b2,
        bn2_gamma=bn2["gamma"], bn2_beta=bn2["beta"],
        bn2_mean=bn2["mean"], bn2_var=bn2["var"],
    )


def _max_scaled_err(a, b):
    return float(jnp.max(jnp.abs(a - b) / (jnp.abs(b) + 1.0)))


if __name__ == "__main__":
    B, C, H, W = 2, 4, 16, 16
    key = jax.random.PRNGKey(0)
    kx, kp = jax.random.split(key)
    x = jax.random.normal(kx, (B, C, H, W), jnp.float32)
    params = init_params(kp, C, C)

    out = residual_block_forward(x, params)
    out = jax.block_until_ready(out)
    assert out.shape == (B, C, H, W), out.shape

    # Tight check vs a JAX replica of the kernel's exact numerics (bf16 path).
    ref_m = residual_block_reference_matched(x, params)
    err_m = _max_scaled_err(out, ref_m)
    assert err_m < 5e-2, f"matched-precision error {err_m}"

    # Sanity check vs the full-f32 eval-mode PyTorch semantics.
    ref = residual_block_reference(x, params)
    err_f = _max_scaled_err(out, ref)
    assert err_f < 2e-1, f"f32-reference error {err_f}"

    print("KERNEL_OK")
</pallas_src>

<mosaic_0001>
module attributes {stable_mosaic.version = 11 : i64} {
  func.func @_resblock_kernel(%arg0: i32, %arg1: memref<1x16x16x128xbf16, #tpu.memory_space<vmem>>, %arg2: memref<1152x128xbf16, #tpu.memory_space<vmem>>, %arg3: memref<1x128xf32, #tpu.memory_space<vmem>>, %arg4: memref<1152x128xbf16, #tpu.memory_space<vmem>>, %arg5: memref<1x128xf32, #tpu.memory_space<vmem>>, %arg6: memref<1x16x16x128xbf16, #tpu.memory_space<vmem>>, %arg7: memref<1x18x18x128xbf16, #tpu.memory_space<vmem>>, %arg8: memref<1x18x18x128xbf16, #tpu.memory_space<vmem>>, %arg9: memref<1x16x16x1152xbf16, #tpu.memory_space<vmem>>) attributes {dimension_semantics = [#tpu.dimension_semantics<parallel>], iteration_bounds = array<i64: 2>, scalar_prefetch = 0 : i64, scratch_operands = 3 : i64, tpu.core_type = #tpu.core_type<tc>, window_params = [{transform_indices = @transform_0, window_bounds = array<i64: 1, 16, 16, 128>}, {pipeline_mode = #tpu.pipeline_mode<synchronous>, transform_indices = @transform_1, window_bounds = array<i64: 1152, 128>}, {pipeline_mode = #tpu.pipeline_mode<synchronous>, transform_indices = @transform_2, window_bounds = array<i64: 1, 128>}, {pipeline_mode = #tpu.pipeline_mode<synchronous>, transform_indices = @transform_3, window_bounds = array<i64: 1152, 128>}, {pipeline_mode = #tpu.pipeline_mode<synchronous>, transform_indices = @transform_4, window_bounds = array<i64: 1, 128>}, {transform_indices = @transform_5, window_bounds = array<i64: 1, 16, 16, 128>}]} {
    %cst = arith.constant 0.000000e+00 : bf16
    %0 = vector.broadcast %cst : bf16 to vector<1x1x18x128xbf16>
    %cst_0 = arith.constant 0.000000e+00 : bf16
    %1 = vector.broadcast %cst_0 : bf16 to vector<1x18x1x128xbf16>
    %c0 = arith.constant 0 : index
    %c0_1 = arith.constant 0 : index
    %c0_2 = arith.constant 0 : index
    %c0_3 = arith.constant 0 : index
    %2 = vector.load %arg7[%c0, %c0_1, %c0_2, %c0_3] : memref<1x18x18x128xbf16, #tpu.memory_space<vmem>>, vector<1x1x18x128xbf16>
    tpu.vector_store %arg7[%c0, %c0_1, %c0_2, %c0_3], %0 {strides = array<i32>} : memref<1x18x18x128xbf16, #tpu.memory_space<vmem>>, vector<1x1x18x128xbf16>,
    %c0_4 = arith.constant 0 : index
    %c17 = arith.constant 17 : index
    %c0_5 = arith.constant 0 : index
    %c0_6 = arith.constant 0 : index
    %3 = vector.load %arg7[%c0_4, %c17, %c0_5, %c0_6] : memref<1x18x18x128xbf16, #tpu.memory_space<vmem>>, vector<1x1x18x128xbf16>
    tpu.vector_store %arg7[%c0_4, %c17, %c0_5, %c0_6], %0 {strides = array<i32>} : memref<1x18x18x128xbf16, #tpu.memory_space<vmem>>, vector<1x1x18x128xbf16>,
    %c0_7 = arith.constant 0 : index
    %c0_8 = arith.constant 0 : index
    %c0_9 = arith.constant 0 : index
    %c0_10 = arith.constant 0 : index
    %4 = vector.load %arg7[%c0_7, %c0_8, %c0_9, %c0_10] : memref<1x18x18x128xbf16, #tpu.memory_space<vmem>>, vector<1x18x1x128xbf16>
    tpu.vector_store %arg7[%c0_7, %c0_8, %c0_9, %c0_10], %1 {strides = array<i32>} : memref<1x18x18x128xbf16, #tpu.memory_space<vmem>>, vector<1x18x1x128xbf16>,
    %c0_11 = arith.constant 0 : index
    %c0_12 = arith.constant 0 : index
    %c17_13 = arith.constant 17 : index
    %c0_14 = arith.constant 0 : index
    %5 = vector.load %arg7[%c0_11, %c0_12, %c17_13, %c0_14] : memref<1x18x18x128xbf16, #tpu.memory_space<vmem>>, vector<1x18x1x128xbf16>
    tpu.vector_store %arg7[%c0_11, %c0_12, %c17_13, %c0_14], %1 {strides = array<i32>} : memref<1x18x18x128xbf16, #tpu.memory_space<vmem>>, vector<1x18x1x128xbf16>,
    %cst_15 = arith.constant 0.000000e+00 : bf16
    %6 = vector.broadcast %cst_15 : bf16 to vector<1x1x18x128xbf16>
    %cst_16 = arith.constant 0.000000e+00 : bf16
    %7 = vector.broadcast %cst_16 : bf16 to vector<1x18x1x128xbf16>
    %c0_17 = arith.constant 0 : index
    %c0_18 = arith.constant 0 : index
    %c0_19 = arith.constant 0 : index
    %c0_20 = arith.constant 0 : index
    %8 = vector.load %arg8[%c0_17, %c0_18, %c0_19, %c0_20] : memref<1x18x18x128xbf16, #tpu.memory_space<vmem>>, vector<1x1x18x128xbf16>
    tpu.vector_store %arg8[%c0_17, %c0_18, %c0_19, %c0_20], %6 {strides = array<i32>} : memref<1x18x18x128xbf16, #tpu.memory_space<vmem>>, vector<1x1x18x128xbf16>,
    %c0_21 = arith.constant 0 : index
    %c17_22 = arith.constant 17 : index
    %c0_23 = arith.constant 0 : index
    %c0_24 = arith.constant 0 : index
    %9 = vector.load %arg8[%c0_21, %c17_22, %c0_23, %c0_24] : memref<1x18x18x128xbf16, #tpu.memory_space<vmem>>, vector<1x1x18x128xbf16>
    tpu.vector_store %arg8[%c0_21, %c17_22, %c0_23, %c0_24], %6 {strides = array<i32>} : memref<1x18x18x128xbf16, #tpu.memory_space<vmem>>, vector<1x1x18x128xbf16>,
    %c0_25 = arith.constant 0 : index
    %c0_26 = arith.constant 0 : index
    %c0_27 = arith.constant 0 : index
    %c0_28 = arith.constant 0 : index
    %10 = vector.load %arg8[%c0_25, %c0_26, %c0_27, %c0_28] : memref<1x18x18x128xbf16, #tpu.memory_space<vmem>>, vector<1x18x1x128xbf16>
    tpu.vector_store %arg8[%c0_25, %c0_26, %c0_27, %c0_28], %7 {strides = array<i32>} : memref<1x18x18x128xbf16, #tpu.memory_space<vmem>>, vector<1x18x1x128xbf16>,
    %c0_29 = arith.constant 0 : index
    %c0_30 = arith.constant 0 : index
    %c17_31 = arith.constant 17 : index
    %c0_32 = arith.constant 0 : index
    %11 = vector.load %arg8[%c0_29, %c0_30, %c17_31, %c0_32] : memref<1x18x18x128xbf16, #tpu.memory_space<vmem>>, vector<1x18x1x128xbf16>
    tpu.vector_store %arg8[%c0_29, %c0_30, %c17_31, %c0_32], %7 {strides = array<i32>} : memref<1x18x18x128xbf16, #tpu.memory_space<vmem>>, vector<1x18x1x128xbf16>,
    %c0_33 = arith.constant 0 : index
    %c0_34 = arith.constant 0 : index
    %c0_35 = arith.constant 0 : index
    %c0_36 = arith.constant 0 : index
    %12 = vector.load %arg1[%c0_33, %c0_34, %c0_35, %c0_36] : memref<1x16x16x128xbf16, #tpu.memory_space<vmem>>, vector<1x16x16x128xbf16>
    %c0_37 = arith.constant 0 : index
    %c1 = arith.constant 1 : index
    %c1_38 = arith.constant 1 : index
    %c0_39 = arith.constant 0 : index
    %13 = vector.load %arg7[%c0_37, %c1, %c1_38, %c0_39] : memref<1x18x18x128xbf16, #tpu.memory_space<vmem>>, vector<1x16x16x128xbf16>
    tpu.vector_store %arg7[%c0_37, %c1, %c1_38, %c0_39], %12 {strides = array<i32>} : memref<1x18x18x128xbf16, #tpu.memory_space<vmem>>, vector<1x16x16x128xbf16>,
    %c0_40 = arith.constant 0 : index
    %c0_41 = arith.constant 0 : index
    %c0_42 = arith.constant 0 : index
    %c0_43 = arith.constant 0 : index
    %14 = vector.load %arg7[%c0_40, %c0_41, %c0_42, %c0_43] : memref<1x18x18x128xbf16, #tpu.memory_space<vmem>>, vector<1x16x16x128xbf16>
    %c0_44 = arith.constant 0 : index
    %c0_45 = arith.constant 0 : index
    %c0_46 = arith.constant 0 : index
    %c0_47 = arith.constant 0 : index
    %15 = vector.load %arg9[%c0_44, %c0_45, %c0_46, %c0_47] : memref<1x16x16x1152xbf16, #tpu.memory_space<vmem>>, vector<1x16x16x128xbf16>
    tpu.vector_store %arg9[%c0_44, %c0_45, %c0_46, %c0_47], %14 {strides = array<i32>} : memref<1x16x16x1152xbf16, #tpu.memory_space<vmem>>, vector<1x16x16x128xbf16>,
    %c0_48 = arith.constant 0 : index
    %c0_49 = arith.constant 0 : index
    %c1_50 = arith.constant 1 : index
    %c0_51 = arith.constant 0 : index
    %16 = vector.load %arg7[%c0_48, %c0_49, %c1_50, %c0_51] : memref<1x18x18x128xbf16, #tpu.memory_space<vmem>>, vector<1x16x16x128xbf16>
    %c0_52 = arith.constant 0 : index
    %c0_53 = arith.constant 0 : index
    %c0_54 = arith.constant 0 : index
    %c128 = arith.constant 128 : index
    %17 = vector.load %arg9[%c0_52, %c0_53, %c0_54, %c128] : memref<1x16x16x1152xbf16, #tpu.memory_space<vmem>>, vector<1x16x16x128xbf16>
    tpu.vector_store %arg9[%c0_52, %c0_53, %c0_54, %c128], %16 {strides = array<i32>} : memref<1x16x16x1152xbf16, #tpu.memory_space<vmem>>, vector<1x16x16x128xbf16>,
    %c0_55 = arith.constant 0 : index
    %c0_56 = arith.constant 0 : index
    %c2 = arith.constant 2 : index
    %c0_57 = arith.constant 0 : index
    %18 = vector.load %arg7[%c0_55, %c0_56, %c2, %c0_57] : memref<1x18x18x128xbf16, #tpu.memory_space<vmem>>, vector<1x16x16x128xbf16>
    %c0_58 = arith.constant 0 : index
    %c0_59 = arith.constant 0 : index
    %c0_60 = arith.constant 0 : index
    %c256 = arith.constant 256 : index
    %19 = vector.load %arg9[%c0_58, %c0_59, %c0_60, %c256] : memref<1x16x16x1152xbf16, #tpu.memory_space<vmem>>, vector<1x16x16x128xbf16>
    tpu.vector_store %arg9[%c0_58, %c0_59, %c0_60, %c256], %18 {strides = array<i32>} : memref<1x16x16x1152xbf16, #tpu.memory_space<vmem>>, vector<1x16x16x128xbf16>,
    %c0_61 = arith.constant 0 : index
    %c1_62 = arith.constant 1 : index
    %c0_63 = arith.constant 0 : index
    %c0_64 = arith.constant 0 : index
    %20 = vector.load %arg7[%c0_61, %c1_62, %c0_63, %c0_64] : memref<1x18x18x128xbf16, #tpu.memory_space<vmem>>, vector<1x16x16x128xbf16>
    %c0_65 = arith.constant 0 : index
    %c0_66 = arith.constant 0 : index
    %c0_67 = arith.constant 0 : index
    %c384 = arith.constant 384 : index
    %21 = vector.load %arg9[%c0_65, %c0_66, %c0_67, %c384] : memref<1x16x16x1152xbf16, #tpu.memory_space<vmem>>, vector<1x16x16x128xbf16>
    tpu.vector_store %arg9[%c0_65, %c0_66, %c0_67, %c384], %20 {strides = array<i32>} : memref<1x16x16x1152xbf16, #tpu.memory_space<vmem>>, vector<1x16x16x128xbf16>,
    %c0_68 = arith.constant 0 : index
    %c1_69 = arith.constant 1 : index
    %c1_70 = arith.constant 1 : index
    %c0_71 = arith.constant 0 : index
    %22 = vector.load %arg7[%c0_68, %c1_69, %c1_70, %c0_71] : memref<1x18x18x128xbf16, #tpu.memory_space<vmem>>, vector<1x16x16x128xbf16>
    %c0_72 = arith.constant 0 : index
    %c0_73 = arith.constant 0 : index
    %c0_74 = arith.constant 0 : index
    %c512 = arith.constant 512 : index
    %23 = vector.load %arg9[%c0_72, %c0_73, %c0_74, %c512] : memref<1x16x16x1152xbf16, #tpu.memory_space<vmem>>, vector<1x16x16x128xbf16>
    tpu.vector_store %arg9[%c0_72, %c0_73, %c0_74, %c512], %22 {strides = array<i32>} : memref<1x16x16x1152xbf16, #tpu.memory_space<vmem>>, vector<1x16x16x128xbf16>,
    %c0_75 = arith.constant 0 : index
    %c1_76 = arith.constant 1 : index
    %c2_77 = arith.constant 2 : index
    %c0_78 = arith.constant 0 : index
    %24 = vector.load %arg7[%c0_75, %c1_76, %c2_77, %c0_78] : memref<1x18x18x128xbf16, #tpu.memory_space<vmem>>, vector<1x16x16x128xbf16>
    %c0_79 = arith.constant 0 : index
    %c0_80 = arith.constant 0 : index
    %c0_81 = arith.constant 0 : index
    %c640 = arith.constant 640 : index
    %25 = vector.load %arg9[%c0_79, %c0_80, %c0_81, %c640] : memref<1x16x16x1152xbf16, #tpu.memory_space<vmem>>, vector<1x16x16x128xbf16>
    tpu.vector_store %arg9[%c0_79, %c0_80, %c0_81, %c640], %24 {strides = array<i32>} : memref<1x16x16x1152xbf16, #tpu.memory_space<vmem>>, vector<1x16x16x128xbf16>,
    %c0_82 = arith.constant 0 : index
    %c2_83 = arith.constant 2 : index
    %c0_84 = arith.constant 0 : index
    %c0_85 = arith.constant 0 : index
    %26 = vector.load %arg7[%c0_82, %c2_83, %c0_84, %c0_85] : memref<1x18x18x128xbf16, #tpu.memory_space<vmem>>, vector<1x16x16x128xbf16>
    %c0_86 = arith.constant 0 : index
    %c0_87 = arith.constant 0 : index
    %c0_88 = arith.constant 0 : index
    %c768 = arith.constant 768 : index
    %27 = vector.load %arg9[%c0_86, %c0_87, %c0_88, %c768] : memref<1x16x16x1152xbf16, #tpu.memory_space<vmem>>, vector<1x16x16x128xbf16>
    tpu.vector_store %arg9[%c0_86, %c0_87, %c0_88, %c768], %26 {strides = array<i32>} : memref<1x16x16x1152xbf16, #tpu.memory_space<vmem>>, vector<1x16x16x128xbf16>,
    %c0_89 = arith.constant 0 : index
    %c2_90 = arith.constant 2 : index
    %c1_91 = arith.constant 1 : index
    %c0_92 = arith.constant 0 : index
    %28 = vector.load %arg7[%c0_89, %c2_90, %c1_91, %c0_92] : memref<1x18x18x128xbf16, #tpu.memory_space<vmem>>, vector<1x16x16x128xbf16>
    %c0_93 = arith.constant 0 : index
    %c0_94 = arith.constant 0 : index
    %c0_95 = arith.constant 0 : index
    %c896 = arith.constant 896 : index
    %29 = vector.load %arg9[%c0_93, %c0_94, %c0_95, %c896] : memref<1x16x16x1152xbf16, #tpu.memory_space<vmem>>, vector<1x16x16x128xbf16>
    tpu.vector_store %arg9[%c0_93, %c0_94, %c0_95, %c896], %28 {strides = array<i32>} : memref<1x16x16x1152xbf16, #tpu.memory_space<vmem>>, vector<1x16x16x128xbf16>,
    %c0_96 = arith.constant 0 : index
    %c2_97 = arith.constant 2 : index
    %c2_98 = arith.constant 2 : index
    %c0_99 = arith.constant 0 : index
    %30 = vector.load %arg7[%c0_96, %c2_97, %c2_98, %c0_99] : memref<1x18x18x128xbf16, #tpu.memory_space<vmem>>, vector<1x16x16x128xbf16>
    %c0_100 = arith.constant 0 : index
    %c0_101 = arith.constant 0 : index
    %c0_102 = arith.constant 0 : index
    %c1024 = arith.constant 1024 : index
    %31 = vector.load %arg9[%c0_100, %c0_101, %c0_102, %c1024] : memref<1x16x16x1152xbf16, #tpu.memory_space<vmem>>, vector<1x16x16x128xbf16>
    tpu.vector_store %arg9[%c0_100, %c0_101, %c0_102, %c1024], %30 {strides = array<i32>} : memref<1x16x16x1152xbf16, #tpu.memory_space<vmem>>, vector<1x16x16x128xbf16>,
    %c0_103 = arith.constant 0 : index
    %c0_104 = arith.constant 0 : index
    %c0_105 = arith.constant 0 : index
    %c0_106 = arith.constant 0 : index
    %32 = vector.load %arg9[%c0_103, %c0_104, %c0_105, %c0_106] : memref<1x16x16x1152xbf16, #tpu.memory_space<vmem>>, vector<1x16x16x1152xbf16>
    %33 = vector.shape_cast %32 : vector<1x16x16x1152xbf16> to vector<256x1152xbf16>
    %c0_107 = arith.constant 0 : index
    %c0_108 = arith.constant 0 : index
    %34 = vector.load %arg2[%c0_107, %c0_108] : memref<1152x128xbf16, #tpu.memory_space<vmem>>, vector<1152x128xbf16>
    %cst_109 = arith.constant dense<0.000000e+00> : vector<256x128xf32>
    %35 = tpu.matmul %33, %34, %cst_109 {dimension_numbers = #tpu.dot_dimension_numbers<[1], [0], [0], [1], [0, 0, 1, 1], [], []>} : vector<256x1152xbf16>, vector<1152x128xbf16>, vector<256x128xf32> -> vector<256x128xf32>
    %c0_110 = arith.constant 0 : index
    %c0_111 = arith.constant 0 : index
    %36 = vector.load %arg3[%c0_110, %c0_111] : memref<1x128xf32, #tpu.memory_space<vmem>>, vector<1x128xf32>
    %37 = vector.broadcast %36 : vector<1x128xf32> to vector<256x128xf32>
    %38 = arith.addf %35, %37 : vector<256x128xf32>
    %cst_112 = arith.constant 0.000000e+00 : f32
    %39 = vector.broadcast %cst_112 : f32 to vector<256x128xf32>
    %40 = arith.maximumf %38, %39 : vector<256x128xf32>
    %41 = vector.shape_cast %40 : vector<256x128xf32> to vector<1x16x16x128xf32>
    %42 = arith.truncf %41 : vector<1x16x16x128xf32> to vector<1x16x16x128xbf16>
    %c0_113 = arith.constant 0 : index
    %c1_114 = arith.constant 1 : index
    %c1_115 = arith.constant 1 : index
    %c0_116 = arith.constant 0 : index
    %43 = vector.load %arg8[%c0_113, %c1_114, %c1_115, %c0_116] : memref<1x18x18x128xbf16, #tpu.memory_space<vmem>>, vector<1x16x16x128xbf16>
    tpu.vector_store %arg8[%c0_113, %c1_114, %c1_115, %c0_116], %42 {strides = array<i32>} : memref<1x18x18x128xbf16, #tpu.memory_space<vmem>>, vector<1x16x16x128xbf16>,
    %c0_117 = arith.constant 0 : index
    %c0_118 = arith.constant 0 : index
    %c0_119 = arith.constant 0 : index
    %c0_120 = arith.constant 0 : index
    %44 = vector.load %arg8[%c0_117, %c0_118, %c0_119, %c0_120] : memref<1x18x18x128xbf16, #tpu.memory_space<vmem>>, vector<1x16x16x128xbf16>
    %c0_121 = arith.constant 0 : index
    %c0_122 = arith.constant 0 : index
    %c0_123 = arith.constant 0 : index
    %c0_124 = arith.constant 0 : index
    %45 = vector.load %arg9[%c0_121, %c0_122, %c0_123, %c0_124] : memref<1x16x16x1152xbf16, #tpu.memory_space<vmem>>, vector<1x16x16x128xbf16>
    tpu.vector_store %arg9[%c0_121, %c0_122, %c0_123, %c0_124], %44 {strides = array<i32>} : memref<1x16x16x1152xbf16, #tpu.memory_space<vmem>>, vector<1x16x16x128xbf16>,
    %c0_125 = arith.constant 0 : index
    %c0_126 = arith.constant 0 : index
    %c1_127 = arith.constant 1 : index
    %c0_128 = arith.constant 0 : index
    %46 = vector.load %arg8[%c0_125, %c0_126, %c1_127, %c0_128] : memref<1x18x18x128xbf16, #tpu.memory_space<vmem>>, vector<1x16x16x128xbf16>
    %c0_129 = arith.constant 0 : index
    %c0_130 = arith.constant 0 : index
    %c0_131 = arith.constant 0 : index
    %c128_132 = arith.constant 128 : index
    %47 = vector.load %arg9[%c0_129, %c0_130, %c0_131, %c128_132] : memref<1x16x16x1152xbf16, #tpu.memory_space<vmem>>, vector<1x16x16x128xbf16>
    tpu.vector_store %arg9[%c0_129, %c0_130, %c0_131, %c128_132], %46 {strides = array<i32>} : memref<1x16x16x1152xbf16, #tpu.memory_space<vmem>>, vector<1x16x16x128xbf16>,
    %c0_133 = arith.constant 0 : index
    %c0_134 = arith.constant 0 : index
    %c2_135 = arith.constant 2 : index
    %c0_136 = arith.constant 0 : index
    %48 = vector.load %arg8[%c0_133, %c0_134, %c2_135, %c0_136] : memref<1x18x18x128xbf16, #tpu.memory_space<vmem>>, vector<1x16x16x128xbf16>
    %c0_137 = arith.constant 0 : index
    %c0_138 = arith.constant 0 : index
    %c0_139 = arith.constant 0 : index
    %c256_140 = arith.constant 256 : index
    %49 = vector.load %arg9[%c0_137, %c0_138, %c0_139, %c256_140] : memref<1x16x16x1152xbf16, #tpu.memory_space<vmem>>, vector<1x16x16x128xbf16>
    tpu.vector_store %arg9[%c0_137, %c0_138, %c0_139, %c256_140], %48 {strides = array<i32>} : memref<1x16x16x1152xbf16, #tpu.memory_space<vmem>>, vector<1x16x16x128xbf16>,
    %c0_141 = arith.constant 0 : index
    %c1_142 = arith.constant 1 : index
    %c0_143 = arith.constant 0 : index
    %c0_144 = arith.constant 0 : index
    %50 = vector.load %arg8[%c0_141, %c1_142, %c0_143, %c0_144] : memref<1x18x18x128xbf16, #tpu.memory_space<vmem>>, vector<1x16x16x128xbf16>
    %c0_145 = arith.constant 0 : index
    %c0_146 = arith.constant 0 : index
    %c0_147 = arith.constant 0 : index
    %c384_148 = arith.constant 384 : index
    %51 = vector.load %arg9[%c0_145, %c0_146, %c0_147, %c384_148] : memref<1x16x16x1152xbf16, #tpu.memory_space<vmem>>, vector<1x16x16x128xbf16>
    tpu.vector_store %arg9[%c0_145, %c0_146, %c0_147, %c384_148], %50 {strides = array<i32>} : memref<1x16x16x1152xbf16, #tpu.memory_space<vmem>>, vector<1x16x16x128xbf16>,
    %c0_149 = arith.constant 0 : index
    %c1_150 = arith.constant 1 : index
    %c1_151 = arith.constant 1 : index
    %c0_152 = arith.constant 0 : index
    %52 = vector.load %arg8[%c0_149, %c1_150, %c1_151, %c0_152] : memref<1x18x18x128xbf16, #tpu.memory_space<vmem>>, vector<1x16x16x128xbf16>
    %c0_153 = arith.constant 0 : index
    %c0_154 = arith.constant 0 : index
    %c0_155 = arith.constant 0 : index
    %c512_156 = arith.constant 512 : index
    %53 = vector.load %arg9[%c0_153, %c0_154, %c0_155, %c512_156] : memref<1x16x16x1152xbf16, #tpu.memory_space<vmem>>, vector<1x16x16x128xbf16>
    tpu.vector_store %arg9[%c0_153, %c0_154, %c0_155, %c512_156], %52 {strides = array<i32>} : memref<1x16x16x1152xbf16, #tpu.memory_space<vmem>>, vector<1x16x16x128xbf16>,
    %c0_157 = arith.constant 0 : index
    %c1_158 = arith.constant 1 : index
    %c2_159 = arith.constant 2 : index
    %c0_160 = arith.constant 0 : index
    %54 = vector.load %arg8[%c0_157, %c1_158, %c2_159, %c0_160] : memref<1x18x18x128xbf16, #tpu.memory_space<vmem>>, vector<1x16x16x128xbf16>
    %c0_161 = arith.constant 0 : index
    %c0_162 = arith.constant 0 : index
    %c0_163 = arith.constant 0 : index
    %c640_164 = arith.constant 640 : index
    %55 = vector.load %arg9[%c0_161, %c0_162, %c0_163, %c640_164] : memref<1x16x16x1152xbf16, #tpu.memory_space<vmem>>, vector<1x16x16x128xbf16>
    tpu.vector_store %arg9[%c0_161, %c0_162, %c0_163, %c640_164], %54 {strides = array<i32>} : memref<1x16x16x1152xbf16, #tpu.memory_space<vmem>>, vector<1x16x16x128xbf16>,
    %c0_165 = arith.constant 0 : index
    %c2_166 = arith.constant 2 : index
    %c0_167 = arith.constant 0 : index
    %c0_168 = arith.constant 0 : index
    %56 = vector.load %arg8[%c0_165, %c2_166, %c0_167, %c0_168] : memref<1x18x18x128xbf16, #tpu.memory_space<vmem>>, vector<1x16x16x128xbf16>
    %c0_169 = arith.constant 0 : index
    %c0_170 = arith.constant 0 : index
    %c0_171 = arith.constant 0 : index
    %c768_172 = arith.constant 768 : index
    %57 = vector.load %arg9[%c0_169, %c0_170, %c0_171, %c768_172] : memref<1x16x16x1152xbf16, #tpu.memory_space<vmem>>, vector<1x16x16x128xbf16>
    tpu.vector_store %arg9[%c0_169, %c0_170, %c0_171, %c768_172], %56 {strides = array<i32>} : memref<1x16x16x1152xbf16, #tpu.memory_space<vmem>>, vector<1x16x16x128xbf16>,
    %c0_173 = arith.constant 0 : index
    %c2_174 = arith.constant 2 : index
    %c1_175 = arith.constant 1 : index
    %c0_176 = arith.constant 0 : index
    %58 = vector.load %arg8[%c0_173, %c2_174, %c1_175, %c0_176] : memref<1x18x18x128xbf16, #tpu.memory_space<vmem>>, vector<1x16x16x128xbf16>
    %c0_177 = arith.constant 0 : index
    %c0_178 = arith.constant 0 : index
    %c0_179 = arith.constant 0 : index
    %c896_180 = arith.constant 896 : index
    %59 = vector.load %arg9[%c0_177, %c0_178, %c0_179, %c896_180] : memref<1x16x16x1152xbf16, #tpu.memory_space<vmem>>, vector<1x16x16x128xbf16>
    tpu.vector_store %arg9[%c0_177, %c0_178, %c0_179, %c896_180], %58 {strides = array<i32>} : memref<1x16x16x1152xbf16, #tpu.memory_space<vmem>>, vector<1x16x16x128xbf16>,
    %c0_181 = arith.constant 0 : index
    %c2_182 = arith.constant 2 : index
    %c2_183 = arith.constant 2 : index
    %c0_184 = arith.constant 0 : index
    %60 = vector.load %arg8[%c0_181, %c2_182, %c2_183, %c0_184] : memref<1x18x18x128xbf16, #tpu.memory_space<vmem>>, vector<1x16x16x128xbf16>
    %c0_185 = arith.constant 0 : index
    %c0_186 = arith.constant 0 : index
    %c0_187 = arith.constant 0 : index
    %c1024_188 = arith.constant 1024 : index
    %61 = vector.load %arg9[%c0_185, %c0_186, %c0_187, %c1024_188] : memref<1x16x16x1152xbf16, #tpu.memory_space<vmem>>, vector<1x16x16x128xbf16>
    tpu.vector_store %arg9[%c0_185, %c0_186, %c0_187, %c1024_188], %60 {strides = array<i32>} : memref<1x16x16x1152xbf16, #tpu.memory_space<vmem>>, vector<1x16x16x128xbf16>,
    %c0_189 = arith.constant 0 : index
    %c0_190 = arith.constant 0 : index
    %c0_191 = arith.constant 0 : index
    %c0_192 = arith.constant 0 : index
    %62 = vector.load %arg9[%c0_189, %c0_190, %c0_191, %c0_192] : memref<1x16x16x1152xbf16, #tpu.memory_space<vmem>>, vector<1x16x16x1152xbf16>
    %63 = vector.shape_cast %62 : vector<1x16x16x1152xbf16> to vector<256x1152xbf16>
    %c0_193 = arith.constant 0 : index
    %c0_194 = arith.constant 0 : index
    %64 = vector.load %arg4[%c0_193, %c0_194] : memref<1152x128xbf16, #tpu.memory_space<vmem>>, vector<1152x128xbf16>
    %cst_195 = arith.constant dense<0.000000e+00> : vector<256x128xf32>
    %65 = tpu.matmul %63, %64, %cst_195 {dimension_numbers = #tpu.dot_dimension_numbers<[1], [0], [0], [1], [0, 0, 1, 1], [], []>} : vector<256x1152xbf16>, vector<1152x128xbf16>, vector<256x128xf32> -> vector<256x128xf32>
    %c0_196 = arith.constant 0 : index
    %c0_197 = arith.constant 0 : index
    %c0_198 = arith.constant 0 : index
    %c0_199 = arith.constant 0 : index
    %66 = vector.load %arg1[%c0_196, %c0_197, %c0_198, %c0_199] : memref<1x16x16x128xbf16, #tpu.memory_space<vmem>>, vector<1x16x16x128xbf16>
    %67 = arith.extf %66 : vector<1x16x16x128xbf16> to vector<1x16x16x128xf32>
    %68 = vector.shape_cast %67 : vector<1x16x16x128xf32> to vector<256x128xf32>
    %c0_200 = arith.constant 0 : index
    %c0_201 = arith.constant 0 : index
    %69 = vector.load %arg5[%c0_200, %c0_201] : memref<1x128xf32, #tpu.memory_space<vmem>>, vector<1x128xf32>
    %70 = vector.broadcast %69 : vector<1x128xf32> to vector<256x128xf32>
    %71 = arith.addf %65, %70 : vector<256x128xf32>
    %72 = arith.addf %71, %68 : vector<256x128xf32>
    %cst_202 = arith.constant 0.000000e+00 : f32
    %73 = vector.broadcast %cst_202 : f32 to vector<256x128xf32>
    %74 = arith.maximumf %72, %73 : vector<256x128xf32>
    %75 = vector.shape_cast %74 : vector<256x128xf32> to vector<1x16x16x128xf32>
    %76 = arith.truncf %75 : vector<1x16x16x128xf32> to vector<1x16x16x128xbf16>
    %c0_203 = arith.constant 0 : index
    %c0_204 = arith.constant 0 : index
    %c0_205 = arith.constant 0 : index
    %c0_206 = arith.constant 0 : index
    %77 = vector.load %arg6[%c0_203, %c0_204, %c0_205, %c0_206] : memref<1x16x16x128xbf16, #tpu.memory_space<vmem>>, vector<1x16x16x128xbf16>
    tpu.vector_store %arg6[%c0_203, %c0_204, %c0_205, %c0_206], %76 {strides = array<i32>} : memref<1x16x16x128xbf16, #tpu.memory_space<vmem>>, vector<1x16x16x128xbf16>,
    return
  }
  func.func @transform_0(%arg0: i32) -> (i32, i32, i32, i32) {
    %c0_i32 = arith.constant 0 : i32
    %c0_i32_0 = arith.constant 0 : i32
    %c0_i32_1 = arith.constant 0 : i32
    %c0_i32_2 = arith.constant 0 : i32
    return %arg0, %c0_i32, %c0_i32_0, %c0_i32_1 : i32, i32, i32, i32
  }
  func.func @transform_1(%arg0: i32) -> (i32, i32) {
    %c0_i32 = arith.constant 0 : i32
    %c0_i32_0 = arith.constant 0 : i32
    %c0_i32_1 = arith.constant 0 : i32
    return %c0_i32, %c0_i32_0 : i32, i32
  }
  func.func @transform_2(%arg0: i32) -> (i32, i32) {
    %c0_i32 = arith.constant 0 : i32
    %c0_i32_0 = arith.constant 0 : i32
    %c0_i32_1 = arith.constant 0 : i32
    return %c0_i32, %c0_i32_0 : i32, i32
  }
  func.func @transform_3(%arg0: i32) -> (i32, i32) {
    %c0_i32 = arith.constant 0 : i32
    %c0_i32_0 = arith.constant 0 : i32
    %c0_i32_1 = arith.constant 0 : i32
    return %c0_i32, %c0_i32_0 : i32, i32
  }
  func.func @transform_4(%arg0: i32) -> (i32, i32) {
    %c0_i32 = arith.constant 0 : i32
    %c0_i32_0 = arith.constant 0 : i32
    %c0_i32_1 = arith.constant 0 : i32
    return %c0_i32, %c0_i32_0 : i32, i32
  }
  func.func @transform_5(%arg0: i32) -> (i32, i32, i32, i32) {
    %c0_i32 = arith.constant 0 : i32
    %c0_i32_0 = arith.constant 0 : i32
    %c0_i32_1 = arith.constant 0 : i32
    %c0_i32_2 = arith.constant 0 : i32
    return %arg0, %c0_i32, %c0_i32_0, %c0_i32_1 : i32, i32, i32, i32
  }
}

</mosaic_0001>

<llo_original>
// kernel: tpu_custom_call.1
$region0: #{tpu_custom_call.1}
  #allocation0 [shape = 'u32[]', space=smem, size = 0x4, offset = 0x4, fixed_abs, tag = 'smem constant byte address 0x4 - core index']
  #allocation1 [shape = 'u32[144,128]{1,0:T(1,128)}', space=vmem, size = 0x12000, scoped, tag = 'internal scratch']
  #allocation2 [shape = 'bf16[1,18,18,128]{3,2,1,0:T(8,128)(2,1)}', space=vmem, size = 0x1b000, scoped, tag = 'scratch operand']
  #allocation3 [shape = 'bf16[1,18,18,128]{3,2,1,0:T(8,128)(2,1)}', space=vmem, size = 0x1b000, scoped, tag = 'scratch operand']
  #allocation4 [shape = 'bf16[1,16,16,1152]{3,2,1,0:T(16,128)(2,1)}', space=vmem, size = 0x90000, scoped, tag = 'scratch operand']
  %s0 = inlined_call_operand.hbm [shape: bf16[2,16,16,128], index: 0, kind: input, shape index: {}]
  %s1 = inlined_call_operand.hbm [shape: bf16[1152,128], index: 1, kind: input, shape index: {}]
  %s2 = inlined_call_operand.vmem [shape: f32[1,128], index: 2, kind: input, shape index: {}]
  %s3 = inlined_call_operand.hbm [shape: bf16[1152,128], index: 3, kind: input, shape index: {}]
  %s4 = inlined_call_operand.vmem [shape: f32[1,128], index: 4, kind: input, shape index: {}]
  %s5 = inlined_call_operand.hbm [shape: bf16[2,16,16,128], index: 5, kind: output, shape index: {}]
  %s6 = sld [smem:[#allocation0]]
  $region65: #{tpu_custom_call.1} parent=0
    _
  %s8 = ssub.s32 1, %s6
  %s9 = scalar_select 0, %s8, %s6
  $region1: #{tpu_custom_call.1} parent=0
    #allocation5 [shape = 'u8[131072]{0}', space=vmem, size = 0x20000, scoped, tag = 'input window, operand 0']
    #allocation6 [shape = 's32[2]{0}', space=sflag, size = 0x8, scoped, tag = 'scoped memory for tpu_custom_call.1']
    #allocation7 [shape = 's32[2]{0}', space=sflag, size = 0x8, scoped, tag = 'scoped memory for tpu_custom_call.1']
    #allocation8 [shape = 'u8[294912]{0}', space=vmem, size = 0x48000, scoped, tag = 'input window, operand 1, single buffered']
    #allocation9 [shape = 's32[1]{0}', space=sflag, size = 0x4, scoped, tag = 'scoped memory for tpu_custom_call.1']
    #allocation10 [shape = 'u8[294912]{0}', space=vmem, size = 0x48000, scoped, tag = 'input window, operand 3, single buffered']
    #allocation11 [shape = 'u8[131072]{0}', space=vmem, size = 0x20000, scoped, tag = 'output window, operand 0']
    %10 = vsyncpa [#allocation6], 0
    %s11 = scalar_lea.sflag [#allocation6], 1
    %12 = vsyncpa %s11, 0
    %13 = vsyncpa [#allocation9], 0
    %14 = vsyncpa [#allocation7], 0
    %s15 = scalar_lea.sflag [#allocation7], 1
    %16 = vsyncpa %s15, 0
    loop: start=0, step=1, limit=4
    $region2: #{tpu_custom_call.1} parent=1 // loop_pre_header
      _
    $region3: #{tpu_custom_call.1} parent=1 // loop_header
      %s18 = sphi 0, %s22
      %p19 = scmp.ge.s32.totalorder %s18, 4
      %s28 = sphi 0, %s30
      %s31 = sphi 0, %s28
      %s32 = sphi 0, %s31
      %s48 = sphi 0, %s32
      %s52 = sphi 0, %s52
      %s54 = sphi 0, %s52
      %s55 = sphi 0, %s54
      %s69 = sphi 0, %s55
      %s73 = sphi 0, %s73
      %s75 = sphi 0, %s73
      %s76 = sphi 0, %s75
      %s90 = sphi 0, %s76
      %s94 = sphi 0, %s94
      %s96 = sphi 0, %s94
      %s97 = sphi 0, %s96
      %s111 = sphi 0, %s97
      %s115 = sphi 0, %s115
      %s117 = sphi 0, %s115
      %s118 = sphi 0, %s117
      %s132 = sphi 0, %s118
      %s138 = sphi 0, %s140
      %s141 = sphi 0, %s138
      %s142 = sphi 0, %s141
      %s158 = sphi 0, %s142
    $region4: #{tpu_custom_call.1} parent=1 // loop_header_branch
      %21 = sbr.rel (%p19) target = $region8
    $region5: #{tpu_custom_call.1} parent=1 // loop_body
      %s23 = ssub.s32 %s18, 1
      %s24 = ssub.s32 %s18, 2
      %s25 = sadd.s32 %s18, 1
      %s26 = ssub.s32 %s18, %s25
      %p27 = scmp.eq.s32.totalorder %s26, 0
      %s29 = sadd.s32 %s28, 1
      %s30 = scalar_select %p27, %s28, %s29
      %p33 = pneg %p27
      %p34 = scmp.eq.s32.totalorder %s18, 1
      %p35 = por %p33, %p34
      %p36 = scmp.ne.s32.totalorder %s28, %s31
      %p37 = scmp.eq.s32.totalorder %s18, 0
      %p38 = por %p36, %p37
      %p39 = scmp.ne.s32.totalorder %s28, %s31
      %p40 = scmp.eq.s32.totalorder %s23, 1
      %p41 = por %p39, %p40
      %p42 = scmp.ne.s32.totalorder %s31, %s32
      %p43 = scmp.eq.s32.totalorder %s23, 0
      %p44 = por %p42, %p43
      %p45 = scmp.ne.s32.totalorder %s31, %s32
      %p46 = scmp.eq.s32.totalorder %s24, 1
      %p47 = por %p45, %p46
      %p49 = scmp.ne.s32.totalorder %s32, %s48
      %p50 = scmp.eq.s32.totalorder %s24, 0
      %p51 = por %p49, %p50
      %s53 = sadd.s32 %s52, 1
      %p56 = scmp.eq.s32.totalorder %s18, 1
      %p57 = scmp.ne.s32.totalorder %s52, %s54
      %p58 = scmp.eq.s32.totalorder %s18, 0
      %p59 = por %p57, %p58
      %p60 = scmp.ne.s32.totalorder %s52, %s54
      %p61 = scmp.eq.s32.totalorder %s23, 1
      %p62 = por %p60, %p61
      %p63 = scmp.ne.s32.totalorder %s54, %s55
      %p64 = scmp.eq.s32.totalorder %s23, 0
      %p65 = por %p63, %p64
      %p66 = scmp.ne.s32.totalorder %s54, %s55
      %p67 = scmp.eq.s32.totalorder %s24, 1
      %p68 = por %p66, %p67
      %p70 = scmp.ne.s32.totalorder %s55, %s69
      %p71 = scmp.eq.s32.totalorder %s24, 0
      %p72 = por %p70, %p71
      %s74 = sadd.s32 %s73, 1
      %p77 = scmp.eq.s32.totalorder %s18, 1
      %p78 = scmp.ne.s32.totalorder %s73, %s75
      %p79 = scmp.eq.s32.totalorder %s18, 0
      %p80 = por %p78, %p79
      %p81 = scmp.ne.s32.totalorder %s73, %s75
      %p82 = scmp.eq.s32.totalorder %s23, 1
      %p83 = por %p81, %p82
      %p84 = scmp.ne.s32.totalorder %s75, %s76
      %p85 = scmp.eq.s32.totalorder %s23, 0
      %p86 = por %p84, %p85
      %p87 = scmp.ne.s32.totalorder %s75, %s76
      %p88 = scmp.eq.s32.totalorder %s24, 1
      %p89 = por %p87, %p88
      %p91 = scmp.ne.s32.totalorder %s76, %s90
      %p92 = scmp.eq.s32.totalorder %s24, 0
      %p93 = por %p91, %p92
      %s95 = sadd.s32 %s94, 1
      %p98 = scmp.eq.s32.totalorder %s18, 1
      %p99 = scmp.ne.s32.totalorder %s94, %s96
      %p100 = scmp.eq.s32.totalorder %s18, 0
      %p101 = por %p99, %p100
      %p102 = scmp.ne.s32.totalorder %s94, %s96
      %p103 = scmp.eq.s32.totalorder %s23, 1
      %p104 = por %p102, %p103
      %p105 = scmp.ne.s32.totalorder %s96, %s97
      %p106 = scmp.eq.s32.totalorder %s23, 0
      %p107 = por %p105, %p106
      %p108 = scmp.ne.s32.totalorder %s96, %s97
      %p109 = scmp.eq.s32.totalorder %s24, 1
      %p110 = por %p108, %p109
      %p112 = scmp.ne.s32.totalorder %s97, %s111
      %p113 = scmp.eq.s32.totalorder %s24, 0
      %p114 = por %p112, %p113
      %s116 = sadd.s32 %s115, 1
      %p119 = scmp.eq.s32.totalorder %s18, 1
      %p120 = scmp.ne.s32.totalorder %s115, %s117
      %p121 = scmp.eq.s32.totalorder %s18, 0
      %p122 = por %p120, %p121
      %p123 = scmp.ne.s32.totalorder %s115, %s117
      %p124 = scmp.eq.s32.totalorder %s23, 1
      %p125 = por %p123, %p124
      %p126 = scmp.ne.s32.totalorder %s117, %s118
      %p127 = scmp.eq.s32.totalorder %s23, 0
      %p128 = por %p126, %p127
      %p129 = scmp.ne.s32.totalorder %s117, %s118
      %p130 = scmp.eq.s32.totalorder %s24, 1
      %p131 = por %p129, %p130
      %p133 = scmp.ne.s32.totalorder %s118, %s132
      %p134 = scmp.eq.s32.totalorder %s24, 0
      %p135 = por %p133, %p134
      %s136 = ssub.s32 %s18, %s25
      %p137 = scmp.eq.s32.totalorder %s136, 0
      %s139 = sadd.s32 %s138, 1
      %s140 = scalar_select %p137, %s138, %s139
      %p143 = pneg %p137
      %p144 = scmp.eq.s32.totalorder %s18, 1
      %p145 = por %p143, %p144
      %p146 = scmp.ne.s32.totalorder %s138, %s141
      %p147 = scmp.eq.s32.totalorder %s18, 0
      %p148 = por %p146, %p147
      %p149 = scmp.ne.s32.totalorder %s138, %s141
      %p150 = scmp.eq.s32.totalorder %s23, 1
      %p151 = por %p149, %p150
      %p152 = scmp.ne.s32.totalorder %s141, %s142
      %p153 = scmp.eq.s32.totalorder %s23, 0
      %p154 = por %p152, %p153
      %p155 = scmp.ne.s32.totalorder %s141, %s142
      %p156 = scmp.eq.s32.totalorder %s24, 1
      %p157 = por %p155, %p156
      %p159 = scmp.ne.s32.totalorder %s142, %s158
      %p160 = scmp.eq.s32.totalorder %s24, 0
      %p161 = por %p159, %p160
      %p162 = scmp.le.s32.totalorder 1, %s18
      %p163 = scmp.lt.s32.totalorder %s18, 3
      %p164 = pnand %p162, %p163
      %p165 = pneg %p164
      // Predicated region
      $region9: #{tpu_custom_call.1} parent=5 // pred_check
        _
      $region10: #{tpu_custom_call.1} parent=5 // pred_check_branch
        %167 = sbr.rel (%p164) target = $region12
      $region11: #{tpu_custom_call.1} parent=5 // pred_region
        %s168 = ssub.s32 %s18, 1
        // Predicated region
        $region13: #{tpu_custom_call.1} parent=11 // pred_check
          %p169 = pneg %p65
        $region14: #{tpu_custom_call.1} parent=11 // pred_check_branch
          %171 = sbr.rel (%p169) target = $region16
        $region15: #{tpu_custom_call.1} parent=11 // pred_region
          %s173 = ssub.s32 9216, 9216
          %174 = vsyncadd [#allocation9], %s173
          %s175 = sshll.u32 [#allocation8], 4
          %s176 = int_to_ptr.vmem [resolvable:$true] %s175
          %181 = dma.hbm_to_vmem [thread:$0]  %s1, 9216, %s176, [#allocation9], 64, 64, 4
        $region16: #{tpu_custom_call.1} parent=11 // pred_fallthru
          _
        // Predicated region
        $region17: #{tpu_custom_call.1} parent=11 // pred_check
          %p182 = pneg %p86
        $region18: #{tpu_custom_call.1} parent=11 // pred_check_branch
          %184 = sbr.rel (%p182) target = $region20
        $region19: #{tpu_custom_call.1} parent=11 // pred_region
          _
        $region20: #{tpu_custom_call.1} parent=11 // pred_fallthru
          _
        // Predicated region
        $region21: #{tpu_custom_call.1} parent=11 // pred_check
          %p185 = pneg %p107
        $region22: #{tpu_custom_call.1} parent=11 // pred_check_branch
          %187 = sbr.rel (%p185) target = $region24
        $region23: #{tpu_custom_call.1} parent=11 // pred_region
          %s189 = ssub.s32 9216, 9216
          %190 = vsyncadd [#allocation9], %s189
          %s191 = sshll.u32 [#allocation10], 4
          %s192 = int_to_ptr.vmem [resolvable:$true] %s191
          %197 = dma.hbm_to_vmem [thread:$0]  %s3, 9216, %s192, [#allocation9], 64, 64, 4
        $region24: #{tpu_custom_call.1} parent=11 // pred_fallthru
          _
        // Predicated region
        $region25: #{tpu_custom_call.1} parent=11 // pred_check
          %p198 = pneg %p128
        $region26: #{tpu_custom_call.1} parent=11 // pred_check_branch
          %200 = sbr.rel (%p198) target = $region28
        $region27: #{tpu_custom_call.1} parent=11 // pred_region
          _
        $region28: #{tpu_custom_call.1} parent=11 // pred_fallthru
          _
      $region12: #{tpu_custom_call.1} parent=5 // pred_fallthru
        _
      %p201 = scmp.lt.s32.totalorder %s18, 2
      // Predicated region
      $region29: #{tpu_custom_call.1} parent=5 // pred_check
        %p202 = pneg %p201
      $region30: #{tpu_custom_call.1} parent=5 // pred_check_branch
        %204 = sbr.rel (%p202) target = $region32
      $region31: #{tpu_custom_call.1} parent=5 // pred_region
        // Predicated region
        $region33: #{tpu_custom_call.1} parent=31 // pred_check
          %p205 = pneg %p38
        $region34: #{tpu_custom_call.1} parent=31 // pred_check_branch
          %207 = sbr.rel (%p205) target = $region36
        $region35: #{tpu_custom_call.1} parent=31 // pred_region
          %s208 = sand.u32 %s28, 1
          %s209 = scalar_lea.sflag [#allocation6], %s208
          %s210 = sand.u32 %s28, 1
          %s211 = smul.addr %s210, 128
          %s212 = scalar_lea.vmem [#allocation5], %s211
          %s214 = ssub.s32 2048, 2048
          %215 = vsyncadd %s209, %s214
          %s216 = smul.addr %s18, 32
          %s217 = smul.addr %s216, 64
          %s218 = scalar_lea.hbm %s0, %s217
          %s219 = sshll.u32 %s212, 4
          %s220 = int_to_ptr.vmem [resolvable:$true] %s219
          %225 = dma.hbm_to_vmem [thread:$0]  %s218, 2048, %s220, %s209, 64, 64, 4
        $region36: #{tpu_custom_call.1} parent=31 // pred_fallthru
          _
      $region32: #{tpu_custom_call.1} parent=5 // pred_fallthru
        _
      %p226 = scmp.le.s32.totalorder 1, %s18
      %p227 = scmp.lt.s32.totalorder %s18, 3
      %p228 = pnand %p226, %p227
      %p229 = pneg %p228
      // Predicated region
      $region37: #{tpu_custom_call.1} parent=5 // pred_check
        _
      $region38: #{tpu_custom_call.1} parent=5 // pred_check_branch
        %231 = sbr.rel (%p228) target = $region40
      $region39: #{tpu_custom_call.1} parent=5 // pred_region
        %s232 = ssub.s32 %s18, 1
        %s233 = sand.u32 %s31, 1
        %s234 = scalar_lea.sflag [#allocation6], %s233
        %s235 = sand.u32 %s31, 1
        %s236 = smul.addr %s235, 128
        %s237 = scalar_lea.vmem [#allocation5], %s236
        // Predicated region
        $region41: #{tpu_custom_call.1} parent=39 // pred_check
          %p238 = pneg %p44
        $region42: #{tpu_custom_call.1} parent=39 // pred_check_branch
          %240 = sbr.rel (%p238) target = $region44
        $region43: #{tpu_custom_call.1} parent=39 // pred_region
          %241 = dma.done %s234, 2048
        $region44: #{tpu_custom_call.1} parent=39 // pred_fallthru
          _
        // Predicated region
        $region45: #{tpu_custom_call.1} parent=39 // pred_check
          %p242 = pneg %p65
        $region46: #{tpu_custom_call.1} parent=39 // pred_check_branch
          %244 = sbr.rel (%p242) target = $region48
        $region47: #{tpu_custom_call.1} parent=39 // pred_region
          %245 = dma.done [#allocation9], 9216
        $region48: #{tpu_custom_call.1} parent=39 // pred_fallthru
          _
        // Predicated region
        $region49: #{tpu_custom_call.1} parent=39 // pred_check
          %p246 = pneg %p107
        $region50: #{tpu_custom_call.1} parent=39 // pred_check_branch
          %248 = sbr.rel (%p246) target = $region52
        $region51: #{tpu_custom_call.1} parent=39 // pred_region
          %249 = dma.done [#allocation9], 9216
        $region52: #{tpu_custom_call.1} parent=39 // pred_fallthru
          _
        %s250 = sand.u32 %s31, 1
        %s251 = scalar_lea.sflag [#allocation6], %s250
        %s252 = sand.u32 %s31, 1
        %s253 = smul.addr %s252, 128
        %s254 = scalar_lea.vmem [#allocation5], %s253
        %p255 = pneg %p44
        %p256 = pneg %p41
        %p257 = pneg %p65
        %p258 = pneg %p62
        %p259 = pneg %p86
        %p260 = pneg %p83
        %p261 = pneg %p107
        %p262 = pneg %p104
        %p263 = pneg %p128
        %p264 = pneg %p125
        %p265 = pneg %p154
        %p266 = pneg %p151
        %s267 = sand.u32 %s141, 1
        %s268 = scalar_lea.sflag [#allocation7], %s267
        %s269 = sand.u32 %s141, 1
        %s270 = smul.addr %s269, 128
        %s271 = scalar_lea.vmem [#allocation11], %s270
        %273 = vst [vmem:[#allocation2] sm:$0xf] 0
        %274 = vst [vmem:[#allocation2 + $0x4] sm:$0xf] 0
        %275 = vst [vmem:[#allocation2 + $0x8] sm:$0x1] 0
        %s276 = scalar_lea.vmem [#allocation2], 204
        %277 = vst [vmem:[%s276] sm:$0xf] 0
        %278 = vst [vmem:[%s276 + $0x4] sm:$0xf] 0
        %279 = vst [vmem:[%s276 + $0x8] sm:$0x1] 0
        %vm280 = vcmask 1040384
        %vm281 = vsmask.f32 256
        %vm282 = vmand %vm280, %vm281
        %v283 = vld [vmem:[#allocation2] sm:$0x1]
        %v284 = vsel %vm282, 0, %v283
        %285 = vst [vmem:[#allocation2] sm:$0x1] %v284
        %v286 = vld [vmem:[#allocation2 + $0xc] sm:$0x1]
        %v287 = vsel %vm282, 0, %v286
        %288 = vst [vmem:[#allocation2 + $0xc] sm:$0x1] %v287
        %v289 = vld [vmem:[#allocation2 + $0x18] sm:$0x1]
        %v290 = vsel %vm282, 0, %v289
        %291 = vst [vmem:[#allocation2 + $0x18] sm:$0x1] %v290
        %v292 = vld [vmem:[#allocation2 + $0x24] sm:$0x1]
        %v293 = vsel %vm282, 0, %v292
        %294 = vst [vmem:[#allocation2 + $0x24] sm:$0x1] %v293
        %v295 = vld [vmem:[#allocation2 + $0x30] sm:$0x1]
        %v296 = vsel %vm282, 0, %v295
        %297 = vst [vmem:[#allocation2 + $0x30] sm:$0x1] %v296
        %v298 = vld [vmem:[#allocation2 + $0x3c] sm:$0x1]
        %v299 = vsel %vm282, 0, %v298
        %300 = vst [vmem:[#allocation2 + $0x3c] sm:$0x1] %v299
        %v301 = vld [vmem:[#allocation2 + $0x48] sm:$0x1]
        %v302 = vsel %vm282, 0, %v301
        %303 = vst [vmem:[#allocation2 + $0x48] sm:$0x1] %v302
        %v304 = vld [vmem:[#allocation2 + $0x54] sm:$0x1]
        %v305 = vsel %vm282, 0, %v304
        %306 = vst [vmem:[#allocation2 + $0x54] sm:$0x1] %v305
        %v307 = vld [vmem:[#allocation2 + $0x60] sm:$0x1]
        %v308 = vsel %vm282, 0, %v307
        %309 = vst [vmem:[#allocation2 + $0x60] sm:$0x1] %v308
        %v310 = vld [vmem:[#allocation2 + $0x6c] sm:$0x1]
        %v311 = vsel %vm282, 0, %v310
        %312 = vst [vmem:[#allocation2 + $0x6c] sm:$0x1] %v311
        %v313 = vld [vmem:[#allocation2 + $0x78] sm:$0x1]
        %v314 = vsel %vm282, 0, %v313
        %315 = vst [vmem:[#allocation2 + $0x78] sm:$0x1] %v314
        %v316 = vld [vmem:[#allocation2 + $0x84] sm:$0x1]
        %v317 = vsel %vm282, 0, %v316
        %318 = vst [vmem:[#allocation2 + $0x84] sm:$0x1] %v317
        %v319 = vld [vmem:[#allocation2 + $0x90] sm:$0x1]
        %v320 = vsel %vm282, 0, %v319
        %321 = vst [vmem:[#allocation2 + $0x90] sm:$0x1] %v320
        %v322 = vld [vmem:[#allocation2 + $0x9c] sm:$0x1]
        %v323 = vsel %vm282, 0, %v322
        %324 = vst [vmem:[#allocation2 + $0x9c] sm:$0x1] %v323
        %v325 = vld [vmem:[#allocation2 + $0xa8] sm:$0x1]
        %v326 = vsel %vm282, 0, %v325
        %327 = vst [vmem:[#allocation2 + $0xa8] sm:$0x1] %v326
        %v328 = vld [vmem:[#allocation2 + $0xb4] sm:$0x1]
        %v329 = vsel %vm282, 0, %v328
        %330 = vst [vmem:[#allocation2 + $0xb4] sm:$0x1] %v329
        %v331 = vld [vmem:[#allocation2 + $0xc0] sm:$0x1]
        %v332 = vsel %vm282, 0, %v331
        %333 = vst [vmem:[#allocation2 + $0xc0] sm:$0x1] %v332
        %v334 = vld [vmem:[#allocation2 + $0xcc] sm:$0x1]
        %v335 = vsel %vm282, 0, %v334
        %336 = vst [vmem:[#allocation2 + $0xcc] sm:$0x1] %v335
        %vm337 = vsmask.f32 7938
        %vm338 = vmand %vm280, %vm337
        %v339 = vld [vmem:[#allocation2 + $0x8] sm:$0x1]
        %v340 = vsel %vm338, 0, %v339
        %341 = vst [vmem:[#allocation2 + $0x8] sm:$0x1] %v340
        %v342 = vld [vmem:[#allocation2 + $0x14] sm:$0x1]
        %v343 = vsel %vm338, 0, %v342
        %344 = vst [vmem:[#allocation2 + $0x14] sm:$0x1] %v343
        %v345 = vld [vmem:[#allocation2 + $0x20] sm:$0x1]
        %v346 = vsel %vm338, 0, %v345
        %347 = vst [vmem:[#allocation2 + $0x20] sm:$0x1] %v346
        %v348 = vld [vmem:[#allocation2 + $0x2c] sm:$0x1]
        %v349 = vsel %vm338, 0, %v348
        %350 = vst [vmem:[#allocation2 + $0x2c] sm:$0x1] %v349
        %v351 = vld [vmem:[#allocation2 + $0x38] sm:$0x1]
        %v352 = vsel %vm338, 0, %v351
        %353 = vst [vmem:[#allocation2 + $0x38] sm:$0x1] %v352
        %v354 = vld [vmem:[#allocation2 + $0x44] sm:$0x1]
        %v355 = vsel %vm338, 0, %v354
        %356 = vst [vmem:[#allocation2 + $0x44] sm:$0x1] %v355
        %v357 = vld [vmem:[#allocation2 + $0x50] sm:$0x1]
        %v358 = vsel %vm338, 0, %v357
        %359 = vst [vmem:[#allocation2 + $0x50] sm:$0x1] %v358
        %v360 = vld [vmem:[#allocation2 + $0x5c] sm:$0x1]
        %v361 = vsel %vm338, 0, %v360
        %362 = vst [vmem:[#allocation2 + $0x5c] sm:$0x1] %v361
        %v363 = vld [vmem:[#allocation2 + $0x68] sm:$0x1]
        %v364 = vsel %vm338, 0, %v363
        %365 = vst [vmem:[#allocation2 + $0x68] sm:$0x1] %v364
        %v366 = vld [vmem:[#allocation2 + $0x74] sm:$0x1]
        %v367 = vsel %vm338, 0, %v366
        %368 = vst [vmem:[#allocation2 + $0x74] sm:$0x1] %v367
        %v369 = vld [vmem:[#allocation2 + $0x80] sm:$0x1]
        %v370 = vsel %vm338, 0, %v369
        %371 = vst [vmem:[#allocation2 + $0x80] sm:$0x1] %v370
        %v372 = vld [vmem:[#allocation2 + $0x8c] sm:$0x1]
        %v373 = vsel %vm338, 0, %v372
        %374 = vst [vmem:[#allocation2 + $0x8c] sm:$0x1] %v373
        %v375 = vld [vmem:[#allocation2 + $0x98] sm:$0x1]
        %v376 = vsel %vm338, 0, %v375
        %377 = vst [vmem:[#allocation2 + $0x98] sm:$0x1] %v376
        %v378 = vld [vmem:[#allocation2 + $0xa4] sm:$0x1]
        %v379 = vsel %vm338, 0, %v378
        %380 = vst [vmem:[#allocation2 + $0xa4] sm:$0x1] %v379
        %v381 = vld [vmem:[#allocation2 + $0xb0] sm:$0x1]
        %v382 = vsel %vm338, 0, %v381
        %383 = vst [vmem:[#allocation2 + $0xb0] sm:$0x1] %v382
        %v384 = vld [vmem:[#allocation2 + $0xbc] sm:$0x1]
        %v385 = vsel %vm338, 0, %v384
        %386 = vst [vmem:[#allocation2 + $0xbc] sm:$0x1] %v385
        %v387 = vld [vmem:[#allocation2 + $0xc8] sm:$0x1]
        %v388 = vsel %vm338, 0, %v387
        %389 = vst [vmem:[#allocation2 + $0xc8] sm:$0x1] %v388
        %v390 = vld [vmem:[#allocation2 + $0xd4] sm:$0x1]
        %v391 = vsel %vm338, 0, %v390
        %392 = vst [vmem:[#allocation2 + $0xd4] sm:$0x1] %v391
        %393 = vst [vmem:[#allocation3] sm:$0xf] 0
        %394 = vst [vmem:[#allocation3 + $0x4] sm:$0xf] 0
        %395 = vst [vmem:[#allocation3 + $0x8] sm:$0x1] 0
        %s396 = scalar_lea.vmem [#allocation3], 204
        %397 = vst [vmem:[%s396] sm:$0xf] 0
        %398 = vst [vmem:[%s396 + $0x4] sm:$0xf] 0
        %399 = vst [vmem:[%s396 + $0x8] sm:$0x1] 0
        %v400 = vld [vmem:[#allocation3] sm:$0x1]
        %v401 = vsel %vm282, 0, %v400
        %402 = vst [vmem:[#allocation3] sm:$0x1] %v401
        %v403 = vld [vmem:[#allocation3 + $0xc] sm:$0x1]
        %v404 = vsel %vm282, 0, %v403
        %405 = vst [vmem:[#allocation3 + $0xc] sm:$0x1] %v404
        %v406 = vld [vmem:[#allocation3 + $0x18] sm:$0x1]
        %v407 = vsel %vm282, 0, %v406
        %408 = vst [vmem:[#allocation3 + $0x18] sm:$0x1] %v407
        %v409 = vld [vmem:[#allocation3 + $0x24] sm:$0x1]
        %v410 = vsel %vm282, 0, %v409
        %411 = vst [vmem:[#allocation3 + $0x24] sm:$0x1] %v410
        %v412 = vld [vmem:[#allocation3 + $0x30] sm:$0x1]
        %v413 = vsel %vm282, 0, %v412
        %414 = vst [vmem:[#allocation3 + $0x30] sm:$0x1] %v413
        %v415 = vld [vmem:[#allocation3 + $0x3c] sm:$0x1]
        %v416 = vsel %vm282, 0, %v415
        %417 = vst [vmem:[#allocation3 + $0x3c] sm:$0x1] %v416
        %v418 = vld [vmem:[#allocation3 + $0x48] sm:$0x1]
        %v419 = vsel %vm282, 0, %v418
        %420 = vst [vmem:[#allocation3 + $0x48] sm:$0x1] %v419
        %v421 = vld [vmem:[#allocation3 + $0x54] sm:$0x1]
        %v422 = vsel %vm282, 0, %v421
        %423 = vst [vmem:[#allocation3 + $0x54] sm:$0x1] %v422
        %v424 = vld [vmem:[#allocation3 + $0x60] sm:$0x1]
        %v425 = vsel %vm282, 0, %v424
        %426 = vst [vmem:[#allocation3 + $0x60] sm:$0x1] %v425
        %v427 = vld [vmem:[#allocation3 + $0x6c] sm:$0x1]
        %v428 = vsel %vm282, 0, %v427
        %429 = vst [vmem:[#allocation3 + $0x6c] sm:$0x1] %v428
        %v430 = vld [vmem:[#allocation3 + $0x78] sm:$0x1]
        %v431 = vsel %vm282, 0, %v430
        %432 = vst [vmem:[#allocation3 + $0x78] sm:$0x1] %v431
        %v433 = vld [vmem:[#allocation3 + $0x84] sm:$0x1]
        %v434 = vsel %vm282, 0, %v433
        %435 = vst [vmem:[#allocation3 + $0x84] sm:$0x1] %v434
        %v436 = vld [vmem:[#allocation3 + $0x90] sm:$0x1]
        %v437 = vsel %vm282, 0, %v436
        %438 = vst [vmem:[#allocation3 + $0x90] sm:$0x1] %v437
        %v439 = vld [vmem:[#allocation3 + $0x9c] sm:$0x1]
        %v440 = vsel %vm282, 0, %v439
        %441 = vst [vmem:[#allocation3 + $0x9c] sm:$0x1] %v440
        %v442 = vld [vmem:[#allocation3 + $0xa8] sm:$0x1]
        %v443 = vsel %vm282, 0, %v442
        %444 = vst [vmem:[#allocation3 + $0xa8] sm:$0x1] %v443
        %v445 = vld [vmem:[#allocation3 + $0xb4] sm:$0x1]
        %v446 = vsel %vm282, 0, %v445
        %447 = vst [vmem:[#allocation3 + $0xb4] sm:$0x1] %v446
        %v448 = vld [vmem:[#allocation3 + $0xc0] sm:$0x1]
        %v449 = vsel %vm282, 0, %v448
        %450 = vst [vmem:[#allocation3 + $0xc0] sm:$0x1] %v449
        %v451 = vld [vmem:[#allocation3 + $0xcc] sm:$0x1]
        %v452 = vsel %vm282, 0, %v451
        %453 = vst [vmem:[#allocation3 + $0xcc] sm:$0x1] %v452
        %v454 = vld [vmem:[#allocation3 + $0x8] sm:$0x1]
        %v455 = vsel %vm338, 0, %v454
        %456 = vst [vmem:[#allocation3 + $0x8] sm:$0x1] %v455
        %v457 = vld [vmem:[#allocation3 + $0x14] sm:$0x1]
        %v458 = vsel %vm338, 0, %v457
        %459 = vst [vmem:[#allocation3 + $0x14] sm:$0x1] %v458
        %v460 = vld [vmem:[#allocation3 + $0x20] sm:$0x1]
        %v461 = vsel %vm338, 0, %v460
        %462 = vst [vmem:[#allocation3 + $0x20] sm:$0x1] %v461
        %v463 = vld [vmem:[#allocation3 + $0x2c] sm:$0x1]
        %v464 = vsel %vm338, 0, %v463
        %465 = vst [vmem:[#allocation3 + $0x2c] sm:$0x1] %v464
        %v466 = vld [vmem:[#allocation3 + $0x38] sm:$0x1]
        %v467 = vsel %vm338, 0, %v466
        %468 = vst [vmem:[#allocation3 + $0x38] sm:$0x1] %v467
        %v469 = vld [vmem:[#allocation3 + $0x44] sm:$0x1]
        %v470 = vsel %vm338, 0, %v469
        %471 = vst [vmem:[#allocation3 + $0x44] sm:$0x1] %v470
        %v472 = vld [vmem:[#allocation3 + $0x50] sm:$0x1]
        %v473 = vsel %vm338, 0, %v472
        %474 = vst [vmem:[#allocation3 + $0x50] sm:$0x1] %v473
        %v475 = vld [vmem:[#allocation3 + $0x5c] sm:$0x1]
        %v476 = vsel %vm338, 0, %v475
        %477 = vst [vmem:[#allocation3 + $0x5c] sm:$0x1] %v476
        %v478 = vld [vmem:[#allocation3 + $0x68] sm:$0x1]
        %v479 = vsel %vm338, 0, %v478
        %480 = vst [vmem:[#allocation3 + $0x68] sm:$0x1] %v479
        %v481 = vld [vmem:[#allocation3 + $0x74] sm:$0x1]
        %v482 = vsel %vm338, 0, %v481
        %483 = vst [vmem:[#allocation3 + $0x74] sm:$0x1] %v482
        %v484 = vld [vmem:[#allocation3 + $0x80] sm:$0x1]
        %v485 = vsel %vm338, 0, %v484
        %486 = vst [vmem:[#allocation3 + $0x80] sm:$0x1] %v485
        %v487 = vld [vmem:[#allocation3 + $0x8c] sm:$0x1]
        %v488 = vsel %vm338, 0, %v487
        %489 = vst [vmem:[#allocation3 + $0x8c] sm:$0x1] %v488
        %v490 = vld [vmem:[#allocation3 + $0x98] sm:$0x1]
        %v491 = vsel %vm338, 0, %v490
        %492 = vst [vmem:[#allocation3 + $0x98] sm:$0x1] %v491
        %v493 = vld [vmem:[#allocation3 + $0xa4] sm:$0x1]
        %v494 = vsel %vm338, 0, %v493
        %495 = vst [vmem:[#allocation3 + $0xa4] sm:$0x1] %v494
        %v496 = vld [vmem:[#allocation3 + $0xb0] sm:$0x1]
        %v497 = vsel %vm338, 0, %v496
        %498 = vst [vmem:[#allocation3 + $0xb0] sm:$0x1] %v497
        %v499 = vld [vmem:[#allocation3 + $0xbc] sm:$0x1]
        %v500 = vsel %vm338, 0, %v499
        %501 = vst [vmem:[#allocation3 + $0xbc] sm:$0x1] %v500
        %v502 = vld [vmem:[#allocation3 + $0xc8] sm:$0x1]
        %v503 = vsel %vm338, 0, %v502
        %504 = vst [vmem:[#allocation3 + $0xc8] sm:$0x1] %v503
        %v505 = vld [vmem:[#allocation3 + $0xd4] sm:$0x1]
        %v506 = vsel %vm338, 0, %v505
        %507 = vst [vmem:[#allocation3 + $0xd4] sm:$0x1] %v506
        %v508 = vld [vmem:[%s237] sm:$0xf]
        %v509 = vld [vmem:[%s237 + $0x4] sm:$0xf]
        %v510 = vld [vmem:[%s237 + $0x8] sm:$0xf]
        %v511 = vld [vmem:[%s237 + $0xc] sm:$0xf]
        %v512 = vld [vmem:[%s237 + $0x10] sm:$0xf]
        %v513 = vld [vmem:[%s237 + $0x14] sm:$0xf]
        %v514 = vld [vmem:[%s237 + $0x18] sm:$0xf]
        %v515 = vld [vmem:[%s237 + $0x1c] sm:$0xf]
        %v516 = vld [vmem:[%s237 + $0x20] sm:$0xf]
        %v517 = vld [vmem:[%s237 + $0x24] sm:$0xf]
        %v518 = vld [vmem:[%s237 + $0x28] sm:$0xf]
        %v519 = vld [vmem:[%s237 + $0x2c] sm:$0xf]
        %v520 = vld [vmem:[%s237 + $0x30] sm:$0xf]
        %v521 = vld [vmem:[%s237 + $0x34] sm:$0xf]
        %v522 = vld [vmem:[%s237 + $0x38] sm:$0xf]
        %v523 = vld [vmem:[%s237 + $0x3c] sm:$0xf]
        %v524 = vld [vmem:[%s237 + $0x40] sm:$0xf]
        %v525 = vld [vmem:[%s237 + $0x44] sm:$0xf]
        %v526 = vld [vmem:[%s237 + $0x48] sm:$0xf]
        %v527 = vld [vmem:[%s237 + $0x4c] sm:$0xf]
        %v528 = vld [vmem:[%s237 + $0x50] sm:$0xf]
        %v529 = vld [vmem:[%s237 + $0x54] sm:$0xf]
        %v530 = vld [vmem:[%s237 + $0x58] sm:$0xf]
        %v531 = vld [vmem:[%s237 + $0x5c] sm:$0xf]
        %v532 = vld [vmem:[%s237 + $0x60] sm:$0xf]
        %v533 = vld [vmem:[%s237 + $0x64] sm:$0xf]
        %v534 = vld [vmem:[%s237 + $0x68] sm:$0xf]
        %v535 = vld [vmem:[%s237 + $0x6c] sm:$0xf]
        %v536 = vld [vmem:[%s237 + $0x70] sm:$0xf]
        %v537 = vld [vmem:[%s237 + $0x74] sm:$0xf]
        %v538 = vld [vmem:[%s237 + $0x78] sm:$0xf]
        %v539 = vld [vmem:[%s237 + $0x7c] sm:$0xf]
        %vm540 = vsmask.f32 4368
        %vm541 = vmor %vm281, %vm540
        %v543 = vshrl.u32 %v508, 16
        %v545 = vrot.slane %v543, 7
        %v546 = vshll.u32 %v508, 16
        %v548 = vor.u32 %v545, %v546
        %v549 = vrot.slane %v545, 4
        %v551 = vshrl.u32 %v509, 16
        %v553 = vrot.slane %v551, 7
        %v554 = vshll.u32 %v509, 16
        %v556 = vor.u32 %v553, %v554
        %v557 = vsel %vm541, %v549, %v556
        %v558 = vrot.slane %v553, 4
        %v560 = vshrl.u32 %v510, 16
        %v562 = vrot.slane %v560, 7
        %v563 = vshll.u32 %v510, 16
        %v565 = vor.u32 %v562, %v563
        %v566 = vrot.slane %v562, 4
        %v568 = vshrl.u32 %v511, 16
        %v570 = vrot.slane %v568, 7
        %v571 = vshll.u32 %v511, 16
        %v573 = vor.u32 %v570, %v571
        %v574 = vsel %vm541, %v566, %v573
        %v575 = vrot.slane %v570, 4
        %v577 = vshrl.u32 %v512, 16
        %v579 = vrot.slane %v577, 7
        %v580 = vshll.u32 %v512, 16
        %v582 = vor.u32 %v579, %v580
        %v583 = vrot.slane %v579, 4
        %v585 = vshrl.u32 %v513, 16
        %v587 = vrot.slane %v585, 7
        %v588 = vshll.u32 %v513, 16
        %v590 = vor.u32 %v587, %v588
        %v591 = vsel %vm541, %v583, %v590
        %v592 = vrot.slane %v587, 4
        %v594 = vshrl.u32 %v514, 16
        %v596 = vrot.slane %v594, 7
        %v597 = vshll.u32 %v514, 16
        %v599 = vor.u32 %v596, %v597
        %v600 = vrot.slane %v596, 4
        %v602 = vshrl.u32 %v515, 16
        %v604 = vrot.slane %v602, 7
        %v605 = vshll.u32 %v515, 16
        %v607 = vor.u32 %v604, %v605
        %v608 = vsel %vm541, %v600, %v607
        %v609 = vrot.slane %v604, 4
        %v611 = vshrl.u32 %v516, 16
        %v613 = vrot.slane %v611, 7
        %v614 = vshll.u32 %v516, 16
        %v616 = vor.u32 %v613, %v614
        %v617 = vrot.slane %v613, 4
        %v619 = vshrl.u32 %v517, 16
        %v621 = vrot.slane %v619, 7
        %v622 = vshll.u32 %v517, 16
        %v624 = vor.u32 %v621, %v622
        %v625 = vsel %vm541, %v617, %v624
        %v626 = vrot.slane %v621, 4
        %v628 = vshrl.u32 %v518, 16
        %v630 = vrot.slane %v628, 7
        %v631 = vshll.u32 %v518, 16
        %v633 = vor.u32 %v630, %v631
        %v634 = vrot.slane %v630, 4
        %v636 = vshrl.u32 %v519, 16
        %v638 = vrot.slane %v636, 7
        %v639 = vshll.u32 %v519, 16
        %v641 = vor.u32 %v638, %v639
        %v642 = vsel %vm541, %v634, %v641
        %v643 = vrot.slane %v638, 4
        %v645 = vshrl.u32 %v520, 16
        %v647 = vrot.slane %v645, 7
        %v648 = vshll.u32 %v520, 16
        %v650 = vor.u32 %v647, %v648
        %v651 = vrot.slane %v647, 4
        %v653 = vshrl.u32 %v521, 16
        %v655 = vrot.slane %v653, 7
        %v656 = vshll.u32 %v521, 16
        %v658 = vor.u32 %v655, %v656
        %v659 = vsel %vm541, %v651, %v658
        %v660 = vrot.slane %v655, 4
        %v662 = vshrl.u32 %v522, 16
        %v664 = vrot.slane %v662, 7
        %v665 = vshll.u32 %v522, 16
        %v667 = vor.u32 %v664, %v665
        %v668 = vrot.slane %v664, 4
        %v670 = vshrl.u32 %v523, 16
        %v672 = vrot.slane %v670, 7
        %v673 = vshll.u32 %v523, 16
        %v675 = vor.u32 %v672, %v673
        %v676 = vsel %vm541, %v668, %v675
        %v677 = vrot.slane %v672, 4
        %v679 = vshrl.u32 %v524, 16
        %v681 = vrot.slane %v679, 7
        %v682 = vshll.u32 %v524, 16
        %v684 = vor.u32 %v681, %v682
        %v685 = vrot.slane %v681, 4
        %v687 = vshrl.u32 %v525, 16
        %v689 = vrot.slane %v687, 7
        %v690 = vshll.u32 %v525, 16
        %v692 = vor.u32 %v689, %v690
        %v693 = vsel %vm541, %v685, %v692
        %v694 = vrot.slane %v689, 4
        %v696 = vshrl.u32 %v526, 16
        %v698 = vrot.slane %v696, 7
        %v699 = vshll.u32 %v526, 16
        %v701 = vor.u32 %v698, %v699
        %v702 = vrot.slane %v698, 4
        %v704 = vshrl.u32 %v527, 16
        %v706 = vrot.slane %v704, 7
        %v707 = vshll.u32 %v527, 16
        %v709 = vor.u32 %v706, %v707
        %v710 = vsel %vm541, %v702, %v709
        %v711 = vrot.slane %v706, 4
        %v713 = vshrl.u32 %v528, 16
        %v715 = vrot.slane %v713, 7
        %v716 = vshll.u32 %v528, 16
        %v718 = vor.u32 %v715, %v716
        %v719 = vrot.slane %v715, 4
        %v721 = vshrl.u32 %v529, 16
        %v723 = vrot.slane %v721, 7
        %v724 = vshll.u32 %v529, 16
        %v726 = vor.u32 %v723, %v724
        %v727 = vsel %vm541, %v719, %v726
        %v728 = vrot.slane %v723, 4
        %v730 = vshrl.u32 %v530, 16
        %v732 = vrot.slane %v730, 7
        %v733 = vshll.u32 %v530, 16
        %v735 = vor.u32 %v732, %v733
        %v736 = vrot.slane %v732, 4
        %v738 = vshrl.u32 %v531, 16
        %v740 = vrot.slane %v738, 7
        %v741 = vshll.u32 %v531, 16
        %v743 = vor.u32 %v740, %v741
        %v744 = vsel %vm541, %v736, %v743
        %v745 = vrot.slane %v740, 4
        %v747 = vshrl.u32 %v532, 16
        %v749 = vrot.slane %v747, 7
        %v750 = vshll.u32 %v532, 16
        %v752 = vor.u32 %v749, %v750
        %v753 = vrot.slane %v749, 4
        %v755 = vshrl.u32 %v533, 16
        %v757 = vrot.slane %v755, 7
        %v758 = vshll.u32 %v533, 16
        %v760 = vor.u32 %v757, %v758
        %v761 = vsel %vm541, %v753, %v760
        %v762 = vrot.slane %v757, 4
        %v764 = vshrl.u32 %v534, 16
        %v766 = vrot.slane %v764, 7
        %v767 = vshll.u32 %v534, 16
        %v769 = vor.u32 %v766, %v767
        %v770 = vrot.slane %v766, 4
        %v772 = vshrl.u32 %v535, 16
        %v774 = vrot.slane %v772, 7
        %v775 = vshll.u32 %v535, 16
        %v777 = vor.u32 %v774, %v775
        %v778 = vsel %vm541, %v770, %v777
        %v779 = vrot.slane %v774, 4
        %v781 = vshrl.u32 %v536, 16
        %v783 = vrot.slane %v781, 7
        %v784 = vshll.u32 %v536, 16
        %v786 = vor.u32 %v783, %v784
        %v787 = vrot.slane %v783, 4
        %v789 = vshrl.u32 %v537, 16
        %v791 = vrot.slane %v789, 7
        %v792 = vshll.u32 %v537, 16
        %v794 = vor.u32 %v791, %v792
        %v795 = vsel %vm541, %v787, %v794
        %v796 = vrot.slane %v791, 4
        %v798 = vshrl.u32 %v538, 16
        %v800 = vrot.slane %v798, 7
        %v801 = vshll.u32 %v538, 16
        %v803 = vor.u32 %v800, %v801
        %v804 = vrot.slane %v800, 4
        %v806 = vshrl.u32 %v539, 16
        %v808 = vrot.slane %v806, 7
        %v809 = vshll.u32 %v539, 16
        %v811 = vor.u32 %v808, %v809
        %v812 = vsel %vm541, %v804, %v811
        %v813 = vrot.slane %v808, 4
        %s862 = scalar_lea.vmem [#allocation2], 12
        %vm863 = vcmask 1043456
        %vm864 = vmand %vm863, %vm337
        %v865 = vld [vmem:[%s862] sm:$0xf]
        %v866 = vsel %vm864, %v548, %v865
        %867 = vst [vmem:[%s862] sm:$0xf] %v866
        %868 = vst [vmem:[%s862 + $0x4] sm:$0xf] %v557
        %v869 = vld [vmem:[%s862 + $0x8] sm:$0x1]
        %v870 = vsel %vm282, %v558, %v869
        %871 = vst [vmem:[%s862 + $0x8] sm:$0x1] %v870
        %v872 = vld [vmem:[%s862 + $0xc] sm:$0xf]
        %v873 = vsel %vm864, %v565, %v872
        %874 = vst [vmem:[%s862 + $0xc] sm:$0xf] %v873
        %875 = vst [vmem:[%s862 + $0x10] sm:$0xf] %v574
        %v876 = vld [vmem:[%s862 + $0x14] sm:$0x1]
        %v877 = vsel %vm282, %v575, %v876
        %878 = vst [vmem:[%s862 + $0x14] sm:$0x1] %v877
        %v879 = vld [vmem:[%s862 + $0x18] sm:$0xf]
        %v880 = vsel %vm864, %v582, %v879
        %881 = vst [vmem:[%s862 + $0x18] sm:$0xf] %v880
        %882 = vst [vmem:[%s862 + $0x1c] sm:$0xf] %v591
        %v883 = vld [vmem:[%s862 + $0x20] sm:$0x1]
        %v884 = vsel %vm282, %v592, %v883
        %885 = vst [vmem:[%s862 + $0x20] sm:$0x1] %v884
        %v886 = vld [vmem:[%s862 + $0x24] sm:$0xf]
        %v887 = vsel %vm864, %v599, %v886
        %888 = vst [vmem:[%s862 + $0x24] sm:$0xf] %v887
        %889 = vst [vmem:[%s862 + $0x28] sm:$0xf] %v608
        %v890 = vld [vmem:[%s862 + $0x2c] sm:$0x1]
        %v891 = vsel %vm282, %v609, %v890
        %892 = vst [vmem:[%s862 + $0x2c] sm:$0x1] %v891
        %v893 = vld [vmem:[%s862 + $0x30] sm:$0xf]
        %v894 = vsel %vm864, %v616, %v893
        %895 = vst [vmem:[%s862 + $0x30] sm:$0xf] %v894
        %896 = vst [vmem:[%s862 + $0x34] sm:$0xf] %v625
        %v897 = vld [vmem:[%s862 + $0x38] sm:$0x1]
        %v898 = vsel %vm282, %v626, %v897
        %899 = vst [vmem:[%s862 + $0x38] sm:$0x1] %v898
        %v900 = vld [vmem:[%s862 + $0x3c] sm:$0xf]
        %v901 = vsel %vm864, %v633, %v900
        %902 = vst [vmem:[%s862 + $0x3c] sm:$0xf] %v901
        %903 = vst [vmem:[%s862 + $0x40] sm:$0xf] %v642
        %v904 = vld [vmem:[%s862 + $0x44] sm:$0x1]
        %v905 = vsel %vm282, %v643, %v904
        %906 = vst [vmem:[%s862 + $0x44] sm:$0x1] %v905
        %v907 = vld [vmem:[%s862 + $0x48] sm:$0xf]
        %v908 = vsel %vm864, %v650, %v907
        %909 = vst [vmem:[%s862 + $0x48] sm:$0xf] %v908
        %910 = vst [vmem:[%s862 + $0x4c] sm:$0xf] %v659
        %v911 = vld [vmem:[%s862 + $0x50] sm:$0x1]
        %v912 = vsel %vm282, %v660, %v911
        %913 = vst [vmem:[%s862 + $0x50] sm:$0x1] %v912
        %v914 = vld [vmem:[%s862 + $0x54] sm:$0xf]
        %v915 = vsel %vm864, %v667, %v914
        %916 = vst [vmem:[%s862 + $0x54] sm:$0xf] %v915
        %917 = vst [vmem:[%s862 + $0x58] sm:$0xf] %v676
        %v918 = vld [vmem:[%s862 + $0x5c] sm:$0x1]
        %v919 = vsel %vm282, %v677, %v918
        %920 = vst [vmem:[%s862 + $0x5c] sm:$0x1] %v919
        %v921 = vld [vmem:[%s862 + $0x60] sm:$0xf]
        %v922 = vsel %vm864, %v684, %v921
        %923 = vst [vmem:[%s862 + $0x60] sm:$0xf] %v922
        %924 = vst [vmem:[%s862 + $0x64] sm:$0xf] %v693
        %v925 = vld [vmem:[%s862 + $0x68] sm:$0x1]
        %v926 = vsel %vm282, %v694, %v925
        %927 = vst [vmem:[%s862 + $0x68] sm:$0x1] %v926
        %v928 = vld [vmem:[%s862 + $0x6c] sm:$0xf]
        %v929 = vsel %vm864, %v701, %v928
        %930 = vst [vmem:[%s862 + $0x6c] sm:$0xf] %v929
        %931 = vst [vmem:[%s862 + $0x70] sm:$0xf] %v710
        %v932 = vld [vmem:[%s862 + $0x74] sm:$0x1]
        %v933 = vsel %vm282, %v711, %v932
        %934 = vst [vmem:[%s862 + $0x74] sm:$0x1] %v933
        %v935 = vld [vmem:[%s862 + $0x78] sm:$0xf]
        %v936 = vsel %vm864, %v718, %v935
        %937 = vst [vmem:[%s862 + $0x78] sm:$0xf] %v936
        %938 = vst [vmem:[%s862 + $0x7c] sm:$0xf] %v727
        %v939 = vld [vmem:[%s862 + $0x80] sm:$0x1]
        %v940 = vsel %vm282, %v728, %v939
        %941 = vst [vmem:[%s862 + $0x80] sm:$0x1] %v940
        %v942 = vld [vmem:[%s862 + $0x84] sm:$0xf]
        %v943 = vsel %vm864, %v735, %v942
        %944 = vst [vmem:[%s862 + $0x84] sm:$0xf] %v943
        %945 = vst [vmem:[%s862 + $0x88] sm:$0xf] %v744
        %v946 = vld [vmem:[%s862 + $0x8c] sm:$0x1]
        %v947 = vsel %vm282, %v745, %v946
        %948 = vst [vmem:[%s862 + $0x8c] sm:$0x1] %v947
        %v949 = vld [vmem:[%s862 + $0x90] sm:$0xf]
        %v950 = vsel %vm864, %v752, %v949
        %951 = vst [vmem:[%s862 + $0x90] sm:$0xf] %v950
        %952 = vst [vmem:[%s862 + $0x94] sm:$0xf] %v761
        %v953 = vld [vmem:[%s862 + $0x98] sm:$0x1]
        %v954 = vsel %vm282, %v762, %v953
        %955 = vst [vmem:[%s862 + $0x98] sm:$0x1] %v954
        %v956 = vld [vmem:[%s862 + $0x9c] sm:$0xf]
        %v957 = vsel %vm864, %v769, %v956
        %958 = vst [vmem:[%s862 + $0x9c] sm:$0xf] %v957
        %959 = vst [vmem:[%s862 + $0xa0] sm:$0xf] %v778
        %v960 = vld [vmem:[%s862 + $0xa4] sm:$0x1]
        %v961 = vsel %vm282, %v779, %v960
        %962 = vst [vmem:[%s862 + $0xa4] sm:$0x1] %v961
        %v963 = vld [vmem:[%s862 + $0xa8] sm:$0xf]
        %v964 = vsel %vm864, %v786, %v963
        %965 = vst [vmem:[%s862 + $0xa8] sm:$0xf] %v964
        %966 = vst [vmem:[%s862 + $0xac] sm:$0xf] %v795
        %v967 = vld [vmem:[%s862 + $0xb0] sm:$0x1]
        %v968 = vsel %vm282, %v796, %v967
        %969 = vst [vmem:[%s862 + $0xb0] sm:$0x1] %v968
        %v970 = vld [vmem:[%s862 + $0xb4] sm:$0xf]
        %v971 = vsel %vm864, %v803, %v970
        %972 = vst [vmem:[%s862 + $0xb4] sm:$0xf] %v971
        %973 = vst [vmem:[%s862 + $0xb8] sm:$0xf] %v812
        %v974 = vld [vmem:[%s862 + $0xbc] sm:$0x1]
        %v975 = vsel %vm282, %v813, %v974
        %976 = vst [vmem:[%s862 + $0xbc] sm:$0x1] %v975
        %v977 = vld [vmem:[#allocation2] sm:$0xf]
        %v978 = vld [vmem:[#allocation2 + $0x4] sm:$0xf]
        %v979 = vld [vmem:[#allocation2 + $0xc] sm:$0xf]
        %v980 = vld [vmem:[#allocation2 + $0x10] sm:$0xf]
        %v981 = vld [vmem:[#allocation2 + $0x18] sm:$0xf]
        %v982 = vld [vmem:[#allocation2 + $0x1c] sm:$0xf]
        %v983 = vld [vmem:[#allocation2 + $0x24] sm:$0xf]
        %v984 = vld [vmem:[#allocation2 + $0x28] sm:$0xf]
        %v985 = vld [vmem:[#allocation2 + $0x30] sm:$0xf]
        %v986 = vld [vmem:[#allocation2 + $0x34] sm:$0xf]
        %v987 = vld [vmem:[#allocation2 + $0x3c] sm:$0xf]
        %v988 = vld [vmem:[#allocation2 + $0x40] sm:$0xf]
        %v989 = vld [vmem:[#allocation2 + $0x48] sm:$0xf]
        %v990 = vld [vmem:[#allocation2 + $0x4c] sm:$0xf]
        %v991 = vld [vmem:[#allocation2 + $0x54] sm:$0xf]
        %v992 = vld [vmem:[#allocation2 + $0x58] sm:$0xf]
        %v993 = vld [vmem:[#allocation2 + $0x60] sm:$0xf]
        %v994 = vld [vmem:[#allocation2 + $0x64] sm:$0xf]
        %v995 = vld [vmem:[#allocation2 + $0x6c] sm:$0xf]
        %v996 = vld [vmem:[#allocation2 + $0x70] sm:$0xf]
        %v997 = vld [vmem:[#allocation2 + $0x78] sm:$0xf]
        %v998 = vld [vmem:[#allocation2 + $0x7c] sm:$0xf]
        %v999 = vld [vmem:[#allocation2 + $0x84] sm:$0xf]
        %v1000 = vld [vmem:[#allocation2 + $0x88] sm:$0xf]
        %v1001 = vld [vmem:[#allocation2 + $0x90] sm:$0xf]
        %v1002 = vld [vmem:[#allocation2 + $0x94] sm:$0xf]
        %v1003 = vld [vmem:[#allocation2 + $0x9c] sm:$0xf]
        %v1004 = vld [vmem:[#allocation2 + $0xa0] sm:$0xf]
        %v1005 = vld [vmem:[#allocation2 + $0xa8] sm:$0xf]
        %v1006 = vld [vmem:[#allocation2 + $0xac] sm:$0xf]
        %v1007 = vld [vmem:[#allocation2 + $0xb4] sm:$0xf]
        %v1008 = vld [vmem:[#allocation2 + $0xb8] sm:$0xf]
        %v1041 = vunpack.c.l.b16 %v977
        %v1042 = vunpack.c.l.b16 %v978
        %v1043 = vunpack.c.l.b16 %v979
        %v1044 = vunpack.c.l.b16 %v980
        %v1045 = vunpack.c.l.b16 %v981
        %v1046 = vunpack.c.l.b16 %v982
        %v1047 = vunpack.c.l.b16 %v983
        %v1048 = vunpack.c.l.b16 %v984
        %v1049 = vunpack.c.l.b16 %v985
        %v1050 = vunpack.c.l.b16 %v986
        %v1051 = vunpack.c.l.b16 %v987
        %v1052 = vunpack.c.l.b16 %v988
        %v1053 = vunpack.c.l.b16 %v989
        %v1054 = vunpack.c.l.b16 %v990
        %v1055 = vunpack.c.l.b16 %v991
        %v1056 = vunpack.c.l.b16 %v992
        %v1057 = vunpack.c.l.b16 %v993
        %v1058 = vunpack.c.l.b16 %v994
        %v1059 = vunpack.c.l.b16 %v995
        %v1060 = vunpack.c.l.b16 %v996
        %v1061 = vunpack.c.l.b16 %v997
        %v1062 = vunpack.c.l.b16 %v998
        %v1063 = vunpack.c.l.b16 %v999
        %v1064 = vunpack.c.l.b16 %v1000
        %v1065 = vunpack.c.l.b16 %v1001
        %v1066 = vunpack.c.l.b16 %v1002
        %v1067 = vunpack.c.l.b16 %v1003
        %v1068 = vunpack.c.l.b16 %v1004
        %v1069 = vunpack.c.l.b16 %v1005
        %v1070 = vunpack.c.l.b16 %v1006
        %v1071 = vunpack.c.l.b16 %v1007
        %v1072 = vunpack.c.l.b16 %v1008
        %v1073 = vpack.c.b16 %v1042, %v1041
        %v1074 = vpack.c.b16 %v1044, %v1043
        %v1075 = vpack.c.b16 %v1046, %v1045
        %v1076 = vpack.c.b16 %v1048, %v1047
        %v1077 = vpack.c.b16 %v1050, %v1049
        %v1078 = vpack.c.b16 %v1052, %v1051
        %v1079 = vpack.c.b16 %v1054, %v1053
        %v1080 = vpack.c.b16 %v1056, %v1055
        %v1081 = vpack.c.b16 %v1058, %v1057
        %v1082 = vpack.c.b16 %v1060, %v1059
        %v1083 = vpack.c.b16 %v1062, %v1061
        %v1084 = vpack.c.b16 %v1064, %v1063
        %v1085 = vpack.c.b16 %v1066, %v1065
        %v1086 = vpack.c.b16 %v1068, %v1067
        %v1087 = vpack.c.b16 %v1070, %v1069
        %v1088 = vpack.c.b16 %v1072, %v1071
        %1105 = vst [vmem:[#allocation4] sm:$0xff] %v1073
        %1106 = vst [vmem:[#allocation4 + $0x48] sm:$0xff] %v1074
        %1107 = vst [vmem:[#allocation4 + $0x90] sm:$0xff] %v1075
        %1108 = vst [vmem:[#allocation4 + $0xd8] sm:$0xff] %v1076
        %1109 = vst [vmem:[#allocation4 + $0x120] sm:$0xff] %v1077
        %1110 = vst [vmem:[#allocation4 + $0x168] sm:$0xff] %v1078
        %1111 = vst [vmem:[#allocation4 + $0x1b0] sm:$0xff] %v1079
        %1112 = vst [vmem:[#allocation4 + $0x1f8] sm:$0xff] %v1080
        %1113 = vst [vmem:[#allocation4 + $0x240] sm:$0xff] %v1081
        %1114 = vst [vmem:[#allocation4 + $0x288] sm:$0xff] %v1082
        %1115 = vst [vmem:[#allocation4 + $0x2d0] sm:$0xff] %v1083
        %1116 = vst [vmem:[#allocation4 + $0x318] sm:$0xff] %v1084
        %1117 = vst [vmem:[#allocation4 + $0x360] sm:$0xff] %v1085
        %1118 = vst [vmem:[#allocation4 + $0x3a8] sm:$0xff] %v1086
        %1119 = vst [vmem:[#allocation4 + $0x3f0] sm:$0xff] %v1087
        %1120 = vst [vmem:[#allocation4 + $0x438] sm:$0xff] %v1088
        %v1121 = vld [vmem:[#allocation2] sm:$0xf]
        %v1122 = vld [vmem:[#allocation2 + $0x4] sm:$0xf]
        %v1123 = vld [vmem:[#allocation2 + $0x8] sm:$0x1]
        %v1124 = vld [vmem:[#allocation2 + $0xc] sm:$0xf]
        %v1125 = vld [vmem:[#allocation2 + $0x10] sm:$0xf]
        %v1126 = vld [vmem:[#allocation2 + $0x14] sm:$0x1]
        %v1127 = vld [vmem:[#allocation2 + $0x18] sm:$0xf]
        %v1128 = vld [vmem:[#allocation2 + $0x1c] sm:$0xf]
        %v1129 = vld [vmem:[#allocation2 + $0x20] sm:$0x1]
        %v1130 = vld [vmem:[#allocation2 + $0x24] sm:$0xf]
        %v1131 = vld [vmem:[#allocation2 + $0x28] sm:$0xf]
        %v1132 = vld [vmem:[#allocation2 + $0x2c] sm:$0x1]
        %v1133 = vld [vmem:[#allocation2 + $0x30] sm:$0xf]
        %v1134 = vld [vmem:[#allocation2 + $0x34] sm:$0xf]
        %v1135 = vld [vmem:[#allocation2 + $0x38] sm:$0x1]
        %v1136 = vld [vmem:[#allocation2 + $0x3c] sm:$0xf]
        %v1137 = vld [vmem:[#allocation2 + $0x40] sm:$0xf]
        %v1138 = vld [vmem:[#allocation2 + $0x44] sm:$0x1]
        %v1139 = vld [vmem:[#allocation2 + $0x48] sm:$0xf]
        %v1140 = vld [vmem:[#allocation2 + $0x4c] sm:$0xf]
        %v1141 = vld [vmem:[#allocation2 + $0x50] sm:$0x1]
        %v1142 = vld [vmem:[#allocation2 + $0x54] sm:$0xf]
        %v1143 = vld [vmem:[#allocation2 + $0x58] sm:$0xf]
        %v1144 = vld [vmem:[#allocation2 + $0x5c] sm:$0x1]
        %v1145 = vld [vmem:[#allocation2 + $0x60] sm:$0xf]
        %v1146 = vld [vmem:[#allocation2 + $0x64] sm:$0xf]
        %v1147 = vld [vmem:[#allocation2 + $0x68] sm:$0x1]
        %v1148 = vld [vmem:[#allocation2 + $0x6c] sm:$0xf]
        %v1149 = vld [vmem:[#allocation2 + $0x70] sm:$0xf]
        %v1150 = vld [vmem:[#allocation2 + $0x74] sm:$0x1]
        %v1151 = vld [vmem:[#allocation2 + $0x78] sm:$0xf]
        %v1152 = vld [vmem:[#allocation2 + $0x7c] sm:$0xf]
        %v1153 = vld [vmem:[#allocation2 + $0x80] sm:$0x1]
        %v1154 = vld [vmem:[#allocation2 + $0x84] sm:$0xf]
        %v1155 = vld [vmem:[#allocation2 + $0x88] sm:$0xf]
        %v1156 = vld [vmem:[#allocation2 + $0x8c] sm:$0x1]
        %v1157 = vld [vmem:[#allocation2 + $0x90] sm:$0xf]
        %v1158 = vld [vmem:[#allocation2 + $0x94] sm:$0xf]
        %v1159 = vld [vmem:[#allocation2 + $0x98] sm:$0x1]
        %v1160 = vld [vmem:[#allocation2 + $0x9c] sm:$0xf]
        %v1161 = vld [vmem:[#allocation2 + $0xa0] sm:$0xf]
        %v1162 = vld [vmem:[#allocation2 + $0xa4] sm:$0x1]
        %v1163 = vld [vmem:[#allocation2 + $0xa8] sm:$0xf]
        %v1164 = vld [vmem:[#allocation2 + $0xac] sm:$0xf]
        %v1165 = vld [vmem:[#allocation2 + $0xb0] sm:$0x1]
        %v1166 = vld [vmem:[#allocation2 + $0xb4] sm:$0xf]
        %v1167 = vld [vmem:[#allocation2 + $0xb8] sm:$0xf]
        %v1168 = vld [vmem:[#allocation2 + $0xbc] sm:$0x1]
        %v1217 = vunpack.c.l.b16 %v1121
        %v1218 = vunpack.c.l.b16 %v1122
        %v1219 = vunpack.c.l.b16 %v1123
        %v1220 = vunpack.c.l.b16 %v1124
        %v1221 = vunpack.c.l.b16 %v1125
        %v1222 = vunpack.c.l.b16 %v1126
        %v1223 = vunpack.c.l.b16 %v1127
        %v1224 = vunpack.c.l.b16 %v1128
        %v1225 = vunpack.c.l.b16 %v1129
        %v1226 = vunpack.c.l.b16 %v1130
        %v1227 = vunpack.c.l.b16 %v1131
        %v1228 = vunpack.c.l.b16 %v1132
        %v1229 = vunpack.c.l.b16 %v1133
        %v1230 = vunpack.c.l.b16 %v1134
        %v1231 = vunpack.c.l.b16 %v1135
        %v1232 = vunpack.c.l.b16 %v1136
        %v1233 = vunpack.c.l.b16 %v1137
        %v1234 = vunpack.c.l.b16 %v1138
        %v1235 = vunpack.c.l.b16 %v1139
        %v1236 = vunpack.c.l.b16 %v1140
        %v1237 = vunpack.c.l.b16 %v1141
        %v1238 = vunpack.c.l.b16 %v1142
        %v1239 = vunpack.c.l.b16 %v1143
        %v1240 = vunpack.c.l.b16 %v1144
        %v1241 = vunpack.c.l.b16 %v1145
        %v1242 = vunpack.c.l.b16 %v1146
        %v1243 = vunpack.c.l.b16 %v1147
        %v1244 = vunpack.c.l.b16 %v1148
        %v1245 = vunpack.c.l.b16 %v1149
        %v1246 = vunpack.c.l.b16 %v1150
        %v1247 = vunpack.c.l.b16 %v1151
        %v1248 = vunpack.c.l.b16 %v1152
        %v1249 = vunpack.c.l.b16 %v1153
        %v1250 = vunpack.c.l.b16 %v1154
        %v1251 = vunpack.c.l.b16 %v1155
        %v1252 = vunpack.c.l.b16 %v1156
        %v1253 = vunpack.c.l.b16 %v1157
        %v1254 = vunpack.c.l.b16 %v1158
        %v1255 = vunpack.c.l.b16 %v1159
        %v1256 = vunpack.c.l.b16 %v1160
        %v1257 = vunpack.c.l.b16 %v1161
        %v1258 = vunpack.c.l.b16 %v1162
        %v1259 = vunpack.c.l.b16 %v1163
        %v1260 = vunpack.c.l.b16 %v1164
        %v1261 = vunpack.c.l.b16 %v1165
        %v1262 = vunpack.c.l.b16 %v1166
        %v1263 = vunpack.c.l.b16 %v1167
        %v1264 = vunpack.c.l.b16 %v1168
        %v1265 = vpack.c.b16 %v1218, %v1217
        %v1266 = vpack.c.b16 %v1219, %v1219
        %v1267 = vpack.c.b16 %v1221, %v1220
        %v1268 = vpack.c.b16 %v1222, %v1222
        %v1269 = vpack.c.b16 %v1224, %v1223
        %v1270 = vpack.c.b16 %v1225, %v1225
        %v1271 = vpack.c.b16 %v1227, %v1226
        %v1272 = vpack.c.b16 %v1228, %v1228
        %v1273 = vpack.c.b16 %v1230, %v1229
        %v1274 = vpack.c.b16 %v1231, %v1231
        %v1275 = vpack.c.b16 %v1233, %v1232
        %v1276 = vpack.c.b16 %v1234, %v1234
        %v1277 = vpack.c.b16 %v1236, %v1235
        %v1278 = vpack.c.b16 %v1237, %v1237
        %v1279 = vpack.c.b16 %v1239, %v1238
        %v1280 = vpack.c.b16 %v1240, %v1240
        %v1281 = vpack.c.b16 %v1242, %v1241
        %v1282 = vpack.c.b16 %v1243, %v1243
        %v1283 = vpack.c.b16 %v1245, %v1244
        %v1284 = vpack.c.b16 %v1246, %v1246
        %v1285 = vpack.c.b16 %v1248, %v1247
        %v1286 = vpack.c.b16 %v1249, %v1249
        %v1287 = vpack.c.b16 %v1251, %v1250
        %v1288 = vpack.c.b16 %v1252, %v1252
        %v1289 = vpack.c.b16 %v1254, %v1253
        %v1290 = vpack.c.b16 %v1255, %v1255
        %v1291 = vpack.c.b16 %v1257, %v1256
        %v1292 = vpack.c.b16 %v1258, %v1258
        %v1293 = vpack.c.b16 %v1260, %v1259
        %v1294 = vpack.c.b16 %v1261, %v1261
        %v1295 = vpack.c.b16 %v1263, %v1262
        %v1296 = vpack.c.b16 %v1264, %v1264
        %vm1297 = vsmask.f32 7424
        %v1299 = vshrl.u32 %v1265, 16
        %v1301 = vshll.u32 %v1265, 16
        %v1303 = vrot.slane %v1301, 1
        %v1304 = vor.u32 %v1299, %v1303
        %v1306 = vshll.u32 %v1266, 16
        %v1308 = vrot.slane %v1306, 1
        %v1309 = vsel %vm1297, %v1304, %v1308
        %v1311 = vshrl.u32 %v1267, 16
        %v1313 = vshll.u32 %v1267, 16
        %v1315 = vrot.slane %v1313, 1
        %v1316 = vor.u32 %v1311, %v1315
        %v1318 = vshll.u32 %v1268, 16
        %v1320 = vrot.slane %v1318, 1
        %v1321 = vsel %vm1297, %v1316, %v1320
        %v1323 = vshrl.u32 %v1269, 16
        %v1325 = vshll.u32 %v1269, 16
        %v1327 = vrot.slane %v1325, 1
        %v1328 = vor.u32 %v1323, %v1327
        %v1330 = vshll.u32 %v1270, 16
        %v1332 = vrot.slane %v1330, 1
        %v1333 = vsel %vm1297, %v1328, %v1332
        %v1335 = vshrl.u32 %v1271, 16
        %v1337 = vshll.u32 %v1271, 16
        %v1339 = vrot.slane %v1337, 1
        %v1340 = vor.u32 %v1335, %v1339
        %v1342 = vshll.u32 %v1272, 16
        %v1344 = vrot.slane %v1342, 1
        %v1345 = vsel %vm1297, %v1340, %v1344
        %v1347 = vshrl.u32 %v1273, 16
        %v1349 = vshll.u32 %v1273, 16
        %v1351 = vrot.slane %v1349, 1
        %v1352 = vor.u32 %v1347, %v1351
        %v1354 = vshll.u32 %v1274, 16
        %v1356 = vrot.slane %v1354, 1
        %v1357 = vsel %vm1297, %v1352, %v1356
        %v1359 = vshrl.u32 %v1275, 16
        %v1361 = vshll.u32 %v1275, 16
        %v1363 = vrot.slane %v1361, 1
        %v1364 = vor.u32 %v1359, %v1363
        %v1366 = vshll.u32 %v1276, 16
        %v1368 = vrot.slane %v1366, 1
        %v1369 = vsel %vm1297, %v1364, %v1368
        %v1371 = vshrl.u32 %v1277, 16
        %v1373 = vshll.u32 %v1277, 16
        %v1375 = vrot.slane %v1373, 1
        %v1376 = vor.u32 %v1371, %v1375
        %v1378 = vshll.u32 %v1278, 16
        %v1380 = vrot.slane %v1378, 1
        %v1381 = vsel %vm1297, %v1376, %v1380
        %v1383 = vshrl.u32 %v1279, 16
        %v1385 = vshll.u32 %v1279, 16
        %v1387 = vrot.slane %v1385, 1
        %v1388 = vor.u32 %v1383, %v1387
        %v1390 = vshll.u32 %v1280, 16
        %v1392 = vrot.slane %v1390, 1
        %v1393 = vsel %vm1297, %v1388, %v1392
        %v1395 = vshrl.u32 %v1281, 16
        %v1397 = vshll.u32 %v1281, 16
        %v1399 = vrot.slane %v1397, 1
        %v1400 = vor.u32 %v1395, %v1399
        %v1402 = vshll.u32 %v1282, 16
        %v1404 = vrot.slane %v1402, 1
        %v1405 = vsel %vm1297, %v1400, %v1404
        %v1407 = vshrl.u32 %v1283, 16
        %v1409 = vshll.u32 %v1283, 16
        %v1411 = vrot.slane %v1409, 1
        %v1412 = vor.u32 %v1407, %v1411
        %v1414 = vshll.u32 %v1284, 16
        %v1416 = vrot.slane %v1414, 1
        %v1417 = vsel %vm1297, %v1412, %v1416
        %v1419 = vshrl.u32 %v1285, 16
        %v1421 = vshll.u32 %v1285, 16
        %v1423 = vrot.slane %v1421, 1
        %v1424 = vor.u32 %v1419, %v1423
        %v1426 = vshll.u32 %v1286, 16
        %v1428 = vrot.slane %v1426, 1
        %v1429 = vsel %vm1297, %v1424, %v1428
        %v1431 = vshrl.u32 %v1287, 16
        %v1433 = vshll.u32 %v1287, 16
        %v1435 = vrot.slane %v1433, 1
        %v1436 = vor.u32 %v1431, %v1435
        %v1438 = vshll.u32 %v1288, 16
        %v1440 = vrot.slane %v1438, 1
        %v1441 = vsel %vm1297, %v1436, %v1440
        %v1443 = vshrl.u32 %v1289, 16
        %v1445 = vshll.u32 %v1289, 16
        %v1447 = vrot.slane %v1445, 1
        %v1448 = vor.u32 %v1443, %v1447
        %v1450 = vshll.u32 %v1290, 16
        %v1452 = vrot.slane %v1450, 1
        %v1453 = vsel %vm1297, %v1448, %v1452
        %v1455 = vshrl.u32 %v1291, 16
        %v1457 = vshll.u32 %v1291, 16
        %v1459 = vrot.slane %v1457, 1
        %v1460 = vor.u32 %v1455, %v1459
        %v1462 = vshll.u32 %v1292, 16
        %v1464 = vrot.slane %v1462, 1
        %v1465 = vsel %vm1297, %v1460, %v1464
        %v1467 = vshrl.u32 %v1293, 16
        %v1469 = vshll.u32 %v1293, 16
        %v1471 = vrot.slane %v1469, 1
        %v1472 = vor.u32 %v1467, %v1471
        %v1474 = vshll.u32 %v1294, 16
        %v1476 = vrot.slane %v1474, 1
        %v1477 = vsel %vm1297, %v1472, %v1476
        %v1479 = vshrl.u32 %v1295, 16
        %v1481 = vshll.u32 %v1295, 16
        %v1483 = vrot.slane %v1481, 1
        %v1484 = vor.u32 %v1479, %v1483
        %v1486 = vshll.u32 %v1296, 16
        %v1488 = vrot.slane %v1486, 1
        %v1489 = vsel %vm1297, %v1484, %v1488
        %1506 = vst [vmem:[#allocation4 + $0x8] sm:$0xff] %v1309
        %1507 = vst [vmem:[#allocation4 + $0x50] sm:$0xff] %v1321
        %1508 = vst [vmem:[#allocation4 + $0x98] sm:$0xff] %v1333
        %1509 = vst [vmem:[#allocation4 + $0xe0] sm:$0xff] %v1345
        %1510 = vst [vmem:[#allocation4 + $0x128] sm:$0xff] %v1357
        %1511 = vst [vmem:[#allocation4 + $0x170] sm:$0xff] %v1369
        %1512 = vst [vmem:[#allocation4 + $0x1b8] sm:$0xff] %v1381
        %1513 = vst [vmem:[#allocation4 + $0x200] sm:$0xff] %v1393
        %1514 = vst [vmem:[#allocation4 + $0x248] sm:$0xff] %v1405
        %1515 = vst [vmem:[#allocation4 + $0x290] sm:$0xff] %v1417
        %1516 = vst [vmem:[#allocation4 + $0x2d8] sm:$0xff] %v1429
        %1517 = vst [vmem:[#allocation4 + $0x320] sm:$0xff] %v1441
        %1518 = vst [vmem:[#allocation4 + $0x368] sm:$0xff] %v1453
        %1519 = vst [vmem:[#allocation4 + $0x3b0] sm:$0xff] %v1465
        %1520 = vst [vmem:[#allocation4 + $0x3f8] sm:$0xff] %v1477
        %1521 = vst [vmem:[#allocation4 + $0x440] sm:$0xff] %v1489
        %v1522 = vld [vmem:[#allocation2] sm:$0xe]
        %v1523 = vld [vmem:[#allocation2 + $0x4] sm:$0xf]
        %v1524 = vld [vmem:[#allocation2 + $0x8] sm:$0x1]
        %v1525 = vld [vmem:[#allocation2 + $0xc] sm:$0xe]
        %v1526 = vld [vmem:[#allocation2 + $0x10] sm:$0xf]
        %v1527 = vld [vmem:[#allocation2 + $0x14] sm:$0x1]
        %v1528 = vld [vmem:[#allocation2 + $0x18] sm:$0xe]
        %v1529 = vld [vmem:[#allocation2 + $0x1c] sm:$0xf]
        %v1530 = vld [vmem:[#allocation2 + $0x20] sm:$0x1]
        %v1531 = vld [vmem:[#allocation2 + $0x24] sm:$0xe]
        %v1532 = vld [vmem:[#allocation2 + $0x28] sm:$0xf]
        %v1533 = vld [vmem:[#allocation2 + $0x2c] sm:$0x1]
        %v1534 = vld [vmem:[#allocation2 + $0x30] sm:$0xe]
        %v1535 = vld [vmem:[#allocation2 + $0x34] sm:$0xf]
        %v1536 = vld [vmem:[#allocation2 + $0x38] sm:$0x1]
        %v1537 = vld [vmem:[#allocation2 + $0x3c] sm:$0xe]
        %v1538 = vld [vmem:[#allocation2 + $0x40] sm:$0xf]
        %v1539 = vld [vmem:[#allocation2 + $0x44] sm:$0x1]
        %v1540 = vld [vmem:[#allocation2 + $0x48] sm:$0xe]
        %v1541 = vld [vmem:[#allocation2 + $0x4c] sm:$0xf]
        %v1542 = vld [vmem:[#allocation2 + $0x50] sm:$0x1]
        %v1543 = vld [vmem:[#allocation2 + $0x54] sm:$0xe]
        %v1544 = vld [vmem:[#allocation2 + $0x58] sm:$0xf]
        %v1545 = vld [vmem:[#allocation2 + $0x5c] sm:$0x1]
        %v1546 = vld [vmem:[#allocation2 + $0x60] sm:$0xe]
        %v1547 = vld [vmem:[#allocation2 + $0x64] sm:$0xf]
        %v1548 = vld [vmem:[#allocation2 + $0x68] sm:$0x1]
        %v1549 = vld [vmem:[#allocation2 + $0x6c] sm:$0xe]
        %v1550 = vld [vmem:[#allocation2 + $0x70] sm:$0xf]
        %v1551 = vld [vmem:[#allocation2 + $0x74] sm:$0x1]
        %v1552 = vld [vmem:[#allocation2 + $0x78] sm:$0xe]
        %v1553 = vld [vmem:[#allocation2 + $0x7c] sm:$0xf]
        %v1554 = vld [vmem:[#allocation2 + $0x80] sm:$0x1]
        %v1555 = vld [vmem:[#allocation2 + $0x84] sm:$0xe]
        %v1556 = vld [vmem:[#allocation2 + $0x88] sm:$0xf]
        %v1557 = vld [vmem:[#allocation2 + $0x8c] sm:$0x1]
        %v1558 = vld [vmem:[#allocation2 + $0x90] sm:$0xe]
        %v1559 = vld [vmem:[#allocation2 + $0x94] sm:$0xf]
        %v1560 = vld [vmem:[#allocation2 + $0x98] sm:$0x1]
        %v1561 = vld [vmem:[#allocation2 + $0x9c] sm:$0xe]
        %v1562 = vld [vmem:[#allocation2 + $0xa0] sm:$0xf]
        %v1563 = vld [vmem:[#allocation2 + $0xa4] sm:$0x1]
        %v1564 = vld [vmem:[#allocation2 + $0xa8] sm:$0xe]
        %v1565 = vld [vmem:[#allocation2 + $0xac] sm:$0xf]
        %v1566 = vld [vmem:[#allocation2 + $0xb0] sm:$0x1]
        %v1567 = vld [vmem:[#allocation2 + $0xb4] sm:$0xe]
        %v1568 = vld [vmem:[#allocation2 + $0xb8] sm:$0xf]
        %v1569 = vld [vmem:[#allocation2 + $0xbc] sm:$0x1]
        %v1618 = vunpack.c.l.b16 %v1522
        %v1619 = vunpack.c.l.b16 %v1523
        %v1620 = vunpack.c.l.b16 %v1524
        %v1621 = vunpack.c.l.b16 %v1525
        %v1622 = vunpack.c.l.b16 %v1526
        %v1623 = vunpack.c.l.b16 %v1527
        %v1624 = vunpack.c.l.b16 %v1528
        %v1625 = vunpack.c.l.b16 %v1529
        %v1626 = vunpack.c.l.b16 %v1530
        %v1627 = vunpack.c.l.b16 %v1531
        %v1628 = vunpack.c.l.b16 %v1532
        %v1629 = vunpack.c.l.b16 %v1533
        %v1630 = vunpack.c.l.b16 %v1534
        %v1631 = vunpack.c.l.b16 %v1535
        %v1632 = vunpack.c.l.b16 %v1536
        %v1633 = vunpack.c.l.b16 %v1537
        %v1634 = vunpack.c.l.b16 %v1538
        %v1635 = vunpack.c.l.b16 %v1539
        %v1636 = vunpack.c.l.b16 %v1540
        %v1637 = vunpack.c.l.b16 %v1541
        %v1638 = vunpack.c.l.b16 %v1542
        %v1639 = vunpack.c.l.b16 %v1543
        %v1640 = vunpack.c.l.b16 %v1544
        %v1641 = vunpack.c.l.b16 %v1545
        %v1642 = vunpack.c.l.b16 %v1546
        %v1643 = vunpack.c.l.b16 %v1547
        %v1644 = vunpack.c.l.b16 %v1548
        %v1645 = vunpack.c.l.b16 %v1549
        %v1646 = vunpack.c.l.b16 %v1550
        %v1647 = vunpack.c.l.b16 %v1551
        %v1648 = vunpack.c.l.b16 %v1552
        %v1649 = vunpack.c.l.b16 %v1553
        %v1650 = vunpack.c.l.b16 %v1554
        %v1651 = vunpack.c.l.b16 %v1555
        %v1652 = vunpack.c.l.b16 %v1556
        %v1653 = vunpack.c.l.b16 %v1557
        %v1654 = vunpack.c.l.b16 %v1558
        %v1655 = vunpack.c.l.b16 %v1559
        %v1656 = vunpack.c.l.b16 %v1560
        %v1657 = vunpack.c.l.b16 %v1561
        %v1658 = vunpack.c.l.b16 %v1562
        %v1659 = vunpack.c.l.b16 %v1563
        %v1660 = vunpack.c.l.b16 %v1564
        %v1661 = vunpack.c.l.b16 %v1565
        %v1662 = vunpack.c.l.b16 %v1566
        %v1663 = vunpack.c.l.b16 %v1567
        %v1664 = vunpack.c.l.b16 %v1568
        %v1665 = vunpack.c.l.b16 %v1569
        %v1666 = vpack.c.b16 %v1619, %v1618
        %v1667 = vpack.c.b16 %v1620, %v1620
        %v1668 = vpack.c.b16 %v1622, %v1621
        %v1669 = vpack.c.b16 %v1623, %v1623
        %v1670 = vpack.c.b16 %v1625, %v1624
        %v1671 = vpack.c.b16 %v1626, %v1626
        %v1672 = vpack.c.b16 %v1628, %v1627
        %v1673 = vpack.c.b16 %v1629, %v1629
        %v1674 = vpack.c.b16 %v1631, %v1630
        %v1675 = vpack.c.b16 %v1632, %v1632
        %v1676 = vpack.c.b16 %v1634, %v1633
        %v1677 = vpack.c.b16 %v1635, %v1635
        %v1678 = vpack.c.b16 %v1637, %v1636
        %v1679 = vpack.c.b16 %v1638, %v1638
        %v1680 = vpack.c.b16 %v1640, %v1639
        %v1681 = vpack.c.b16 %v1641, %v1641
        %v1682 = vpack.c.b16 %v1643, %v1642
        %v1683 = vpack.c.b16 %v1644, %v1644
        %v1684 = vpack.c.b16 %v1646, %v1645
        %v1685 = vpack.c.b16 %v1647, %v1647
        %v1686 = vpack.c.b16 %v1649, %v1648
        %v1687 = vpack.c.b16 %v1650, %v1650
        %v1688 = vpack.c.b16 %v1652, %v1651
        %v1689 = vpack.c.b16 %v1653, %v1653
        %v1690 = vpack.c.b16 %v1655, %v1654
        %v1691 = vpack.c.b16 %v1656, %v1656
        %v1692 = vpack.c.b16 %v1658, %v1657
        %v1693 = vpack.c.b16 %v1659, %v1659
        %v1694 = vpack.c.b16 %v1661, %v1660
        %v1695 = vpack.c.b16 %v1662, %v1662
        %v1696 = vpack.c.b16 %v1664, %v1663
        %v1697 = vpack.c.b16 %v1665, %v1665
        %vm1698 = vcmask 1046528
        %v1699 = vrot.slane %v1666, 1
        %v1700 = vrot.slane %v1667, 1
        %v1701 = vsel %vm1698, %v1699, %v1700
        %v1702 = vrot.slane %v1668, 1
        %v1703 = vrot.slane %v1669, 1
        %v1704 = vsel %vm1698, %v1702, %v1703
        %v1705 = vrot.slane %v1670, 1
        %v1706 = vrot.slane %v1671, 1
        %v1707 = vsel %vm1698, %v1705, %v1706
        %v1708 = vrot.slane %v1672, 1
        %v1709 = vrot.slane %v1673, 1
        %v1710 = vsel %vm1698, %v1708, %v1709
        %v1711 = vrot.slane %v1674, 1
        %v1712 = vrot.slane %v1675, 1
        %v1713 = vsel %vm1698, %v1711, %v1712
        %v1714 = vrot.slane %v1676, 1
        %v1715 = vrot.slane %v1677, 1
        %v1716 = vsel %vm1698, %v1714, %v1715
        %v1717 = vrot.slane %v1678, 1
        %v1718 = vrot.slane %v1679, 1
        %v1719 = vsel %vm1698, %v1717, %v1718
        %v1720 = vrot.slane %v1680, 1
        %v1721 = vrot.slane %v1681, 1
        %v1722 = vsel %vm1698, %v1720, %v1721
        %v1723 = vrot.slane %v1682, 1
        %v1724 = vrot.slane %v1683, 1
        %v1725 = vsel %vm1698, %v1723, %v1724
        %v1726 = vrot.slane %v1684, 1
        %v1727 = vrot.slane %v1685, 1
        %v1728 = vsel %vm1698, %v1726, %v1727
        %v1729 = vrot.slane %v1686, 1
        %v1730 = vrot.slane %v1687, 1
        %v1731 = vsel %vm1698, %v1729, %v1730
        %v1732 = vrot.slane %v1688, 1
        %v1733 = vrot.slane %v1689, 1
        %v1734 = vsel %vm1698, %v1732, %v1733
        %v1735 = vrot.slane %v1690, 1
        %v1736 = vrot.slane %v1691, 1
        %v1737 = vsel %vm1698, %v1735, %v1736
        %v1738 = vrot.slane %v1692, 1
        %v1739 = vrot.slane %v1693, 1
        %v1740 = vsel %vm1698, %v1738, %v1739
        %v1741 = vrot.slane %v1694, 1
        %v1742 = vrot.slane %v1695, 1
        %v1743 = vsel %vm1698, %v1741, %v1742
        %v1744 = vrot.slane %v1696, 1
        %v1745 = vrot.slane %v1697, 1
        %v1746 = vsel %vm1698, %v1744, %v1745
        %1763 = vst [vmem:[#allocation4 + $0x10] sm:$0xff] %v1701
        %1764 = vst [vmem:[#allocation4 + $0x58] sm:$0xff] %v1704
        %1765 = vst [vmem:[#allocation4 + $0xa0] sm:$0xff] %v1707
        %1766 = vst [vmem:[#allocation4 + $0xe8] sm:$0xff] %v1710
        %1767 = vst [vmem:[#allocation4 + $0x130] sm:$0xff] %v1713
        %1768 = vst [vmem:[#allocation4 + $0x178] sm:$0xff] %v1716
        %1769 = vst [vmem:[#allocation4 + $0x1c0] sm:$0xff] %v1719
        %1770 = vst [vmem:[#allocation4 + $0x208] sm:$0xff] %v1722
        %1771 = vst [vmem:[#allocation4 + $0x250] sm:$0xff] %v1725
        %1772 = vst [vmem:[#allocation4 + $0x298] sm:$0xff] %v1728
        %1773 = vst [vmem:[#allocation4 + $0x2e0] sm:$0xff] %v1731
        %1774 = vst [vmem:[#allocation4 + $0x328] sm:$0xff] %v1734
        %1775 = vst [vmem:[#allocation4 + $0x370] sm:$0xff] %v1737
        %1776 = vst [vmem:[#allocation4 + $0x3b8] sm:$0xff] %v1740
        %1777 = vst [vmem:[#allocation4 + $0x400] sm:$0xff] %v1743
        %1778 = vst [vmem:[#allocation4 + $0x448] sm:$0xff] %v1746
        %v1779 = vld [vmem:[%s862] sm:$0xf]
        %v1780 = vld [vmem:[%s862 + $0x4] sm:$0xf]
        %v1781 = vld [vmem:[%s862 + $0xc] sm:$0xf]
        %v1782 = vld [vmem:[%s862 + $0x10] sm:$0xf]
        %v1783 = vld [vmem:[%s862 + $0x18] sm:$0xf]
        %v1784 = vld [vmem:[%s862 + $0x1c] sm:$0xf]
        %v1785 = vld [vmem:[%s862 + $0x24] sm:$0xf]
        %v1786 = vld [vmem:[%s862 + $0x28] sm:$0xf]
        %v1787 = vld [vmem:[%s862 + $0x30] sm:$0xf]
        %v1788 = vld [vmem:[%s862 + $0x34] sm:$0xf]
        %v1789 = vld [vmem:[%s862 + $0x3c] sm:$0xf]
        %v1790 = vld [vmem:[%s862 + $0x40] sm:$0xf]
        %v1791 = vld [vmem:[%s862 + $0x48] sm:$0xf]
        %v1792 = vld [vmem:[%s862 + $0x4c] sm:$0xf]
        %v1793 = vld [vmem:[%s862 + $0x54] sm:$0xf]
        %v1794 = vld [vmem:[%s862 + $0x58] sm:$0xf]
        %v1795 = vld [vmem:[%s862 + $0x60] sm:$0xf]
        %v1796 = vld [vmem:[%s862 + $0x64] sm:$0xf]
        %v1797 = vld [vmem:[%s862 + $0x6c] sm:$0xf]
        %v1798 = vld [vmem:[%s862 + $0x70] sm:$0xf]
        %v1799 = vld [vmem:[%s862 + $0x78] sm:$0xf]
        %v1800 = vld [vmem:[%s862 + $0x7c] sm:$0xf]
        %v1801 = vld [vmem:[%s862 + $0x84] sm:$0xf]
        %v1802 = vld [vmem:[%s862 + $0x88] sm:$0xf]
        %v1803 = vld [vmem:[%s862 + $0x90] sm:$0xf]
        %v1804 = vld [vmem:[%s862 + $0x94] sm:$0xf]
        %v1805 = vld [vmem:[%s862 + $0x9c] sm:$0xf]
        %v1806 = vld [vmem:[%s862 + $0xa0] sm:$0xf]
        %v1807 = vld [vmem:[%s862 + $0xa8] sm:$0xf]
        %v1808 = vld [vmem:[%s862 + $0xac] sm:$0xf]
        %v1809 = vld [vmem:[%s862 + $0xb4] sm:$0xf]
        %v1810 = vld [vmem:[%s862 + $0xb8] sm:$0xf]
        %v1843 = vunpack.c.l.b16 %v1779
        %v1844 = vunpack.c.l.b16 %v1780
        %v1845 = vunpack.c.l.b16 %v1781
        %v1846 = vunpack.c.l.b16 %v1782
        %v1847 = vunpack.c.l.b16 %v1783
        %v1848 = vunpack.c.l.b16 %v1784
        %v1849 = vunpack.c.l.b16 %v1785
        %v1850 = vunpack.c.l.b16 %v1786
        %v1851 = vunpack.c.l.b16 %v1787
        %v1852 = vunpack.c.l.b16 %v1788
        %v1853 = vunpack.c.l.b16 %v1789
        %v1854 = vunpack.c.l.b16 %v1790
        %v1855 = vunpack.c.l.b16 %v1791
        %v1856 = vunpack.c.l.b16 %v1792
        %v1857 = vunpack.c.l.b16 %v1793
        %v1858 = vunpack.c.l.b16 %v1794
        %v1859 = vunpack.c.l.b16 %v1795
        %v1860 = vunpack.c.l.b16 %v1796
        %v1861 = vunpack.c.l.b16 %v1797
        %v1862 = vunpack.c.l.b16 %v1798
        %v1863 = vunpack.c.l.b16 %v1799
        %v1864 = vunpack.c.l.b16 %v1800
        %v1865 = vunpack.c.l.b16 %v1801
        %v1866 = vunpack.c.l.b16 %v1802
        %v1867 = vunpack.c.l.b16 %v1803
        %v1868 = vunpack.c.l.b16 %v1804
        %v1869 = vunpack.c.l.b16 %v1805
        %v1870 = vunpack.c.l.b16 %v1806
        %v1871 = vunpack.c.l.b16 %v1807
        %v1872 = vunpack.c.l.b16 %v1808
        %v1873 = vunpack.c.l.b16 %v1809
        %v1874 = vunpack.c.l.b16 %v1810
        %v1875 = vpack.c.b16 %v1844, %v1843
        %v1876 = vpack.c.b16 %v1846, %v1845
        %v1877 = vpack.c.b16 %v1848, %v1847
        %v1878 = vpack.c.b16 %v1850, %v1849
        %v1879 = vpack.c.b16 %v1852, %v1851
        %v1880 = vpack.c.b16 %v1854, %v1853
        %v1881 = vpack.c.b16 %v1856, %v1855
        %v1882 = vpack.c.b16 %v1858, %v1857
        %v1883 = vpack.c.b16 %v1860, %v1859
        %v1884 = vpack.c.b16 %v1862, %v1861
        %v1885 = vpack.c.b16 %v1864, %v1863
        %v1886 = vpack.c.b16 %v1866, %v1865
        %v1887 = vpack.c.b16 %v1868, %v1867
        %v1888 = vpack.c.b16 %v1870, %v1869
        %v1889 = vpack.c.b16 %v1872, %v1871
        %v1890 = vpack.c.b16 %v1874, %v1873
        %1907 = vst [vmem:[#allocation4 + $0x18] sm:$0xff] %v1875
        %1908 = vst [vmem:[#allocation4 + $0x60] sm:$0xff] %v1876
        %1909 = vst [vmem:[#allocation4 + $0xa8] sm:$0xff] %v1877
        %1910 = vst [vmem:[#allocation4 + $0xf0] sm:$0xff] %v1878
        %1911 = vst [vmem:[#allocation4 + $0x138] sm:$0xff] %v1879
        %1912 = vst [vmem:[#allocation4 + $0x180] sm:$0xff] %v1880
        %1913 = vst [vmem:[#allocation4 + $0x1c8] sm:$0xff] %v1881
        %1914 = vst [vmem:[#allocation4 + $0x210] sm:$0xff] %v1882
        %1915 = vst [vmem:[#allocation4 + $0x258] sm:$0xff] %v1883
        %1916 = vst [vmem:[#allocation4 + $0x2a0] sm:$0xff] %v1884
        %1917 = vst [vmem:[#allocation4 + $0x2e8] sm:$0xff] %v1885
        %1918 = vst [vmem:[#allocation4 + $0x330] sm:$0xff] %v1886
        %1919 = vst [vmem:[#allocation4 + $0x378] sm:$0xff] %v1887
        %1920 = vst [vmem:[#allocation4 + $0x3c0] sm:$0xff] %v1888
        %1921 = vst [vmem:[#allocation4 + $0x408] sm:$0xff] %v1889
        %1922 = vst [vmem:[#allocation4 + $0x450] sm:$0xff] %v1890
        %v1923 = vld [vmem:[%s862] sm:$0xf]
        %v1924 = vld [vmem:[%s862 + $0x4] sm:$0xf]
        %v1925 = vld [vmem:[%s862 + $0x8] sm:$0x1]
        %v1926 = vld [vmem:[%s862 + $0xc] sm:$0xf]
        %v1927 = vld [vmem:[%s862 + $0x10] sm:$0xf]
        %v1928 = vld [vmem:[%s862 + $0x14] sm:$0x1]
        %v1929 = vld [vmem:[%s862 + $0x18] sm:$0xf]
        %v1930 = vld [vmem:[%s862 + $0x1c] sm:$0xf]
        %v1931 = vld [vmem:[%s862 + $0x20] sm:$0x1]
        %v1932 = vld [vmem:[%s862 + $0x24] sm:$0xf]
        %v1933 = vld [vmem:[%s862 + $0x28] sm:$0xf]
        %v1934 = vld [vmem:[%s862 + $0x2c] sm:$0x1]
        %v1935 = vld [vmem:[%s862 + $0x30] sm:$0xf]
        %v1936 = vld [vmem:[%s862 + $0x34] sm:$0xf]
        %v1937 = vld [vmem:[%s862 + $0x38] sm:$0x1]
        %v1938 = vld [vmem:[%s862 + $0x3c] sm:$0xf]
        %v1939 = vld [vmem:[%s862 + $0x40] sm:$0xf]
        %v1940 = vld [vmem:[%s862 + $0x44] sm:$0x1]
        %v1941 = vld [vmem:[%s862 + $0x48] sm:$0xf]
        %v1942 = vld [vmem:[%s862 + $0x4c] sm:$0xf]
        %v1943 = vld [vmem:[%s862 + $0x50] sm:$0x1]
        %v1944 = vld [vmem:[%s862 + $0x54] sm:$0xf]
        %v1945 = vld [vmem:[%s862 + $0x58] sm:$0xf]
        %v1946 = vld [vmem:[%s862 + $0x5c] sm:$0x1]
        %v1947 = vld [vmem:[%s862 + $0x60] sm:$0xf]
        %v1948 = vld [vmem:[%s862 + $0x64] sm:$0xf]
        %v1949 = vld [vmem:[%s862 + $0x68] sm:$0x1]
        %v1950 = vld [vmem:[%s862 + $0x6c] sm:$0xf]
        %v1951 = vld [vmem:[%s862 + $0x70] sm:$0xf]
        %v1952 = vld [vmem:[%s862 + $0x74] sm:$0x1]
        %v1953 = vld [vmem:[%s862 + $0x78] sm:$0xf]
        %v1954 = vld [vmem:[%s862 + $0x7c] sm:$0xf]
        %v1955 = vld [vmem:[%s862 + $0x80] sm:$0x1]
        %v1956 = vld [vmem:[%s862 + $0x84] sm:$0xf]
        %v1957 = vld [vmem:[%s862 + $0x88] sm:$0xf]
        %v1958 = vld [vmem:[%s862 + $0x8c] sm:$0x1]
        %v1959 = vld [vmem:[%s862 + $0x90] sm:$0xf]
        %v1960 = vld [vmem:[%s862 + $0x94] sm:$0xf]
        %v1961 = vld [vmem:[%s862 + $0x98] sm:$0x1]
        %v1962 = vld [vmem:[%s862 + $0x9c] sm:$0xf]
        %v1963 = vld [vmem:[%s862 + $0xa0] sm:$0xf]
        %v1964 = vld [vmem:[%s862 + $0xa4] sm:$0x1]
        %v1965 = vld [vmem:[%s862 + $0xa8] sm:$0xf]
        %v1966 = vld [vmem:[%s862 + $0xac] sm:$0xf]
        %v1967 = vld [vmem:[%s862 + $0xb0] sm:$0x1]
        %v1968 = vld [vmem:[%s862 + $0xb4] sm:$0xf]
        %v1969 = vld [vmem:[%s862 + $0xb8] sm:$0xf]
        %v1970 = vld [vmem:[%s862 + $0xbc] sm:$0x1]
        %v2019 = vunpack.c.l.b16 %v1923
        %v2020 = vunpack.c.l.b16 %v1924
        %v2021 = vunpack.c.l.b16 %v1925
        %v2022 = vunpack.c.l.b16 %v1926
        %v2023 = vunpack.c.l.b16 %v1927
        %v2024 = vunpack.c.l.b16 %v1928
        %v2025 = vunpack.c.l.b16 %v1929
        %v2026 = vunpack.c.l.b16 %v1930
        %v2027 = vunpack.c.l.b16 %v1931
        %v2028 = vunpack.c.l.b16 %v1932
        %v2029 = vunpack.c.l.b16 %v1933
        %v2030 = vunpack.c.l.b16 %v1934
        %v2031 = vunpack.c.l.b16 %v1935
        %v2032 = vunpack.c.l.b16 %v1936
        %v2033 = vunpack.c.l.b16 %v1937
        %v2034 = vunpack.c.l.b16 %v1938
        %v2035 = vunpack.c.l.b16 %v1939
        %v2036 = vunpack.c.l.b16 %v1940
        %v2037 = vunpack.c.l.b16 %v1941
        %v2038 = vunpack.c.l.b16 %v1942
        %v2039 = vunpack.c.l.b16 %v1943
        %v2040 = vunpack.c.l.b16 %v1944
        %v2041 = vunpack.c.l.b16 %v1945
        %v2042 = vunpack.c.l.b16 %v1946
        %v2043 = vunpack.c.l.b16 %v1947
        %v2044 = vunpack.c.l.b16 %v1948
        %v2045 = vunpack.c.l.b16 %v1949
        %v2046 = vunpack.c.l.b16 %v1950
        %v2047 = vunpack.c.l.b16 %v1951
        %v2048 = vunpack.c.l.b16 %v1952
        %v2049 = vunpack.c.l.b16 %v1953
        %v2050 = vunpack.c.l.b16 %v1954
        %v2051 = vunpack.c.l.b16 %v1955
        %v2052 = vunpack.c.l.b16 %v1956
        %v2053 = vunpack.c.l.b16 %v1957
        %v2054 = vunpack.c.l.b16 %v1958
        %v2055 = vunpack.c.l.b16 %v1959
        %v2056 = vunpack.c.l.b16 %v1960
        %v2057 = vunpack.c.l.b16 %v1961
        %v2058 = vunpack.c.l.b16 %v1962
        %v2059 = vunpack.c.l.b16 %v1963
        %v2060 = vunpack.c.l.b16 %v1964
        %v2061 = vunpack.c.l.b16 %v1965
        %v2062 = vunpack.c.l.b16 %v1966
        %v2063 = vunpack.c.l.b16 %v1967
        %v2064 = vunpack.c.l.b16 %v1968
        %v2065 = vunpack.c.l.b16 %v1969
        %v2066 = vunpack.c.l.b16 %v1970
        %v2067 = vpack.c.b16 %v2020, %v2019
        %v2068 = vpack.c.b16 %v2021, %v2021
        %v2069 = vpack.c.b16 %v2023, %v2022
        %v2070 = vpack.c.b16 %v2024, %v2024
        %v2071 = vpack.c.b16 %v2026, %v2025
        %v2072 = vpack.c.b16 %v2027, %v2027
        %v2073 = vpack.c.b16 %v2029, %v2028
        %v2074 = vpack.c.b16 %v2030, %v2030
        %v2075 = vpack.c.b16 %v2032, %v2031
        %v2076 = vpack.c.b16 %v2033, %v2033
        %v2077 = vpack.c.b16 %v2035, %v2034
        %v2078 = vpack.c.b16 %v2036, %v2036
        %v2079 = vpack.c.b16 %v2038, %v2037
        %v2080 = vpack.c.b16 %v2039, %v2039
        %v2081 = vpack.c.b16 %v2041, %v2040
        %v2082 = vpack.c.b16 %v2042, %v2042
        %v2083 = vpack.c.b16 %v2044, %v2043
        %v2084 = vpack.c.b16 %v2045, %v2045
        %v2085 = vpack.c.b16 %v2047, %v2046
        %v2086 = vpack.c.b16 %v2048, %v2048
        %v2087 = vpack.c.b16 %v2050, %v2049
        %v2088 = vpack.c.b16 %v2051, %v2051
        %v2089 = vpack.c.b16 %v2053, %v2052
        %v2090 = vpack.c.b16 %v2054, %v2054
        %v2091 = vpack.c.b16 %v2056, %v2055
        %v2092 = vpack.c.b16 %v2057, %v2057
        %v2093 = vpack.c.b16 %v2059, %v2058
        %v2094 = vpack.c.b16 %v2060, %v2060
        %v2095 = vpack.c.b16 %v2062, %v2061
        %v2096 = vpack.c.b16 %v2063, %v2063
        %v2097 = vpack.c.b16 %v2065, %v2064
        %v2098 = vpack.c.b16 %v2066, %v2066
        %v2100 = vshrl.u32 %v2067, 16
        %v2102 = vshll.u32 %v2067, 16
        %v2104 = vrot.slane %v2102, 1
        %v2105 = vor.u32 %v2100, %v2104
        %v2107 = vshll.u32 %v2068, 16
        %v2109 = vrot.slane %v2107, 1
        %v2110 = vsel %vm1297, %v2105, %v2109
        %v2112 = vshrl.u32 %v2069, 16
        %v2114 = vshll.u32 %v2069, 16
        %v2116 = vrot.slane %v2114, 1
        %v2117 = vor.u32 %v2112, %v2116
        %v2119 = vshll.u32 %v2070, 16
        %v2121 = vrot.slane %v2119, 1
        %v2122 = vsel %vm1297, %v2117, %v2121
        %v2124 = vshrl.u32 %v2071, 16
        %v2126 = vshll.u32 %v2071, 16
        %v2128 = vrot.slane %v2126, 1
        %v2129 = vor.u32 %v2124, %v2128
        %v2131 = vshll.u32 %v2072, 16
        %v2133 = vrot.slane %v2131, 1
        %v2134 = vsel %vm1297, %v2129, %v2133
        %v2136 = vshrl.u32 %v2073, 16
        %v2138 = vshll.u32 %v2073, 16
        %v2140 = vrot.slane %v2138, 1
        %v2141 = vor.u32 %v2136, %v2140
        %v2143 = vshll.u32 %v2074, 16
        %v2145 = vrot.slane %v2143, 1
        %v2146 = vsel %vm1297, %v2141, %v2145
        %v2148 = vshrl.u32 %v2075, 16
        %v2150 = vshll.u32 %v2075, 16
        %v2152 = vrot.slane %v2150, 1
        %v2153 = vor.u32 %v2148, %v2152
        %v2155 = vshll.u32 %v2076, 16
        %v2157 = vrot.slane %v2155, 1
        %v2158 = vsel %vm1297, %v2153, %v2157
        %v2160 = vshrl.u32 %v2077, 16
        %v2162 = vshll.u32 %v2077, 16
        %v2164 = vrot.slane %v2162, 1
        %v2165 = vor.u32 %v2160, %v2164
        %v2167 = vshll.u32 %v2078, 16
        %v2169 = vrot.slane %v2167, 1
        %v2170 = vsel %vm1297, %v2165, %v2169
        %v2172 = vshrl.u32 %v2079, 16
        %v2174 = vshll.u32 %v2079, 16
        %v2176 = vrot.slane %v2174, 1
        %v2177 = vor.u32 %v2172, %v2176
        %v2179 = vshll.u32 %v2080, 16
        %v2181 = vrot.slane %v2179, 1
        %v2182 = vsel %vm1297, %v2177, %v2181
        %v2184 = vshrl.u32 %v2081, 16
        %v2186 = vshll.u32 %v2081, 16
        %v2188 = vrot.slane %v2186, 1
        %v2189 = vor.u32 %v2184, %v2188
        %v2191 = vshll.u32 %v2082, 16
        %v2193 = vrot.slane %v2191, 1
        %v2194 = vsel %vm1297, %v2189, %v2193
        %v2196 = vshrl.u32 %v2083, 16
        %v2198 = vshll.u32 %v2083, 16
        %v2200 = vrot.slane %v2198, 1
        %v2201 = vor.u32 %v2196, %v2200
        %v2203 = vshll.u32 %v2084, 16
        %v2205 = vrot.slane %v2203, 1
        %v2206 = vsel %vm1297, %v2201, %v2205
        %v2208 = vshrl.u32 %v2085, 16
        %v2210 = vshll.u32 %v2085, 16
        %v2212 = vrot.slane %v2210, 1
        %v2213 = vor.u32 %v2208, %v2212
        %v2215 = vshll.u32 %v2086, 16
        %v2217 = vrot.slane %v2215, 1
        %v2218 = vsel %vm1297, %v2213, %v2217
        %v2220 = vshrl.u32 %v2087, 16
        %v2222 = vshll.u32 %v2087, 16
        %v2224 = vrot.slane %v2222, 1
        %v2225 = vor.u32 %v2220, %v2224
        %v2227 = vshll.u32 %v2088, 16
        %v2229 = vrot.slane %v2227, 1
        %v2230 = vsel %vm1297, %v2225, %v2229
        %v2232 = vshrl.u32 %v2089, 16
        %v2234 = vshll.u32 %v2089, 16
        %v2236 = vrot.slane %v2234, 1
        %v2237 = vor.u32 %v2232, %v2236
        %v2239 = vshll.u32 %v2090, 16
        %v2241 = vrot.slane %v2239, 1
        %v2242 = vsel %vm1297, %v2237, %v2241
        %v2244 = vshrl.u32 %v2091, 16
        %v2246 = vshll.u32 %v2091, 16
        %v2248 = vrot.slane %v2246, 1
        %v2249 = vor.u32 %v2244, %v2248
        %v2251 = vshll.u32 %v2092, 16
        %v2253 = vrot.slane %v2251, 1
        %v2254 = vsel %vm1297, %v2249, %v2253
        %v2256 = vshrl.u32 %v2093, 16
        %v2258 = vshll.u32 %v2093, 16
        %v2260 = vrot.slane %v2258, 1
        %v2261 = vor.u32 %v2256, %v2260
        %v2263 = vshll.u32 %v2094, 16
        %v2265 = vrot.slane %v2263, 1
        %v2266 = vsel %vm1297, %v2261, %v2265
        %v2268 = vshrl.u32 %v2095, 16
        %v2270 = vshll.u32 %v2095, 16
        %v2272 = vrot.slane %v2270, 1
        %v2273 = vor.u32 %v2268, %v2272
        %v2275 = vshll.u32 %v2096, 16
        %v2277 = vrot.slane %v2275, 1
        %v2278 = vsel %vm1297, %v2273, %v2277
        %v2280 = vshrl.u32 %v2097, 16
        %v2282 = vshll.u32 %v2097, 16
        %v2284 = vrot.slane %v2282, 1
        %v2285 = vor.u32 %v2280, %v2284
        %v2287 = vshll.u32 %v2098, 16
        %v2289 = vrot.slane %v2287, 1
        %v2290 = vsel %vm1297, %v2285, %v2289
        %2307 = vst [vmem:[#allocation4 + $0x20] sm:$0xff] %v2110
        %2308 = vst [vmem:[#allocation4 + $0x68] sm:$0xff] %v2122
        %2309 = vst [vmem:[#allocation4 + $0xb0] sm:$0xff] %v2134
        %2310 = vst [vmem:[#allocation4 + $0xf8] sm:$0xff] %v2146
        %2311 = vst [vmem:[#allocation4 + $0x140] sm:$0xff] %v2158
        %2312 = vst [vmem:[#allocation4 + $0x188] sm:$0xff] %v2170
        %2313 = vst [vmem:[#allocation4 + $0x1d0] sm:$0xff] %v2182
        %2314 = vst [vmem:[#allocation4 + $0x218] sm:$0xff] %v2194
        %2315 = vst [vmem:[#allocation4 + $0x260] sm:$0xff] %v2206
        %2316 = vst [vmem:[#allocation4 + $0x2a8] sm:$0xff] %v2218
        %2317 = vst [vmem:[#allocation4 + $0x2f0] sm:$0xff] %v2230
        %2318 = vst [vmem:[#allocation4 + $0x338] sm:$0xff] %v2242
        %2319 = vst [vmem:[#allocation4 + $0x380] sm:$0xff] %v2254
        %2320 = vst [vmem:[#allocation4 + $0x3c8] sm:$0xff] %v2266
        %2321 = vst [vmem:[#allocation4 + $0x410] sm:$0xff] %v2278
        %2322 = vst [vmem:[#allocation4 + $0x458] sm:$0xff] %v2290
        %v2323 = vld [vmem:[%s862] sm:$0xe]
        %v2324 = vld [vmem:[%s862 + $0x4] sm:$0xf]
        %v2325 = vld [vmem:[%s862 + $0x8] sm:$0x1]
        %v2326 = vld [vmem:[%s862 + $0xc] sm:$0xe]
        %v2327 = vld [vmem:[%s862 + $0x10] sm:$0xf]
        %v2328 = vld [vmem:[%s862 + $0x14] sm:$0x1]
        %v2329 = vld [vmem:[%s862 + $0x18] sm:$0xe]
        %v2330 = vld [vmem:[%s862 + $0x1c] sm:$0xf]
        %v2331 = vld [vmem:[%s862 + $0x20] sm:$0x1]
        %v2332 = vld [vmem:[%s862 + $0x24] sm:$0xe]
        %v2333 = vld [vmem:[%s862 + $0x28] sm:$0xf]
        %v2334 = vld [vmem:[%s862 + $0x2c] sm:$0x1]
        %v2335 = vld [vmem:[%s862 + $0x30] sm:$0xe]
        %v2336 = vld [vmem:[%s862 + $0x34] sm:$0xf]
        %v2337 = vld [vmem:[%s862 + $0x38] sm:$0x1]
        %v2338 = vld [vmem:[%s862 + $0x3c] sm:$0xe]
        %v2339 = vld [vmem:[%s862 + $0x40] sm:$0xf]
        %v2340 = vld [vmem:[%s862 + $0x44] sm:$0x1]
        %v2341 = vld [vmem:[%s862 + $0x48] sm:$0xe]
        %v2342 = vld [vmem:[%s862 + $0x4c] sm:$0xf]
        %v2343 = vld [vmem:[%s862 + $0x50] sm:$0x1]
        %v2344 = vld [vmem:[%s862 + $0x54] sm:$0xe]
        %v2345 = vld [vmem:[%s862 + $0x58] sm:$0xf]
        %v2346 = vld [vmem:[%s862 + $0x5c] sm:$0x1]
        %v2347 = vld [vmem:[%s862 + $0x60] sm:$0xe]
        %v2348 = vld [vmem:[%s862 + $0x64] sm:$0xf]
        %v2349 = vld [vmem:[%s862 + $0x68] sm:$0x1]
        %v2350 = vld [vmem:[%s862 + $0x6c] sm:$0xe]
        %v2351 = vld [vmem:[%s862 + $0x70] sm:$0xf]
        %v2352 = vld [vmem:[%s862 + $0x74] sm:$0x1]
        %v2353 = vld [vmem:[%s862 + $0x78] sm:$0xe]
        %v2354 = vld [vmem:[%s862 + $0x7c] sm:$0xf]
        %v2355 = vld [vmem:[%s862 + $0x80] sm:$0x1]
        %v2356 = vld [vmem:[%s862 + $0x84] sm:$0xe]
        %v2357 = vld [vmem:[%s862 + $0x88] sm:$0xf]
        %v2358 = vld [vmem:[%s862 + $0x8c] sm:$0x1]
        %v2359 = vld [vmem:[%s862 + $0x90] sm:$0xe]
        %v2360 = vld [vmem:[%s862 + $0x94] sm:$0xf]
        %v2361 = vld [vmem:[%s862 + $0x98] sm:$0x1]
        %v2362 = vld [vmem:[%s862 + $0x9c] sm:$0xe]
        %v2363 = vld [vmem:[%s862 + $0xa0] sm:$0xf]
        %v2364 = vld [vmem:[%s862 + $0xa4] sm:$0x1]
        %v2365 = vld [vmem:[%s862 + $0xa8] sm:$0xe]
        %v2366 = vld [vmem:[%s862 + $0xac] sm:$0xf]
        %v2367 = vld [vmem:[%s862 + $0xb0] sm:$0x1]
        %v2368 = vld [vmem:[%s862 + $0xb4] sm:$0xe]
        %v2369 = vld [vmem:[%s862 + $0xb8] sm:$0xf]
        %v2370 = vld [vmem:[%s862 + $0xbc] sm:$0x1]
        %v2419 = vunpack.c.l.b16 %v2323
        %v2420 = vunpack.c.l.b16 %v2324
        %v2421 = vunpack.c.l.b16 %v2325
        %v2422 = vunpack.c.l.b16 %v2326
        %v2423 = vunpack.c.l.b16 %v2327
        %v2424 = vunpack.c.l.b16 %v2328
        %v2425 = vunpack.c.l.b16 %v2329
        %v2426 = vunpack.c.l.b16 %v2330
        %v2427 = vunpack.c.l.b16 %v2331
        %v2428 = vunpack.c.l.b16 %v2332
        %v2429 = vunpack.c.l.b16 %v2333
        %v2430 = vunpack.c.l.b16 %v2334
        %v2431 = vunpack.c.l.b16 %v2335
        %v2432 = vunpack.c.l.b16 %v2336
        %v2433 = vunpack.c.l.b16 %v2337
        %v2434 = vunpack.c.l.b16 %v2338
        %v2435 = vunpack.c.l.b16 %v2339
        %v2436 = vunpack.c.l.b16 %v2340
        %v2437 = vunpack.c.l.b16 %v2341
        %v2438 = vunpack.c.l.b16 %v2342
        %v2439 = vunpack.c.l.b16 %v2343
        %v2440 = vunpack.c.l.b16 %v2344
        %v2441 = vunpack.c.l.b16 %v2345
        %v2442 = vunpack.c.l.b16 %v2346
        %v2443 = vunpack.c.l.b16 %v2347
        %v2444 = vunpack.c.l.b16 %v2348
        %v2445 = vunpack.c.l.b16 %v2349
        %v2446 = vunpack.c.l.b16 %v2350
        %v2447 = vunpack.c.l.b16 %v2351
        %v2448 = vunpack.c.l.b16 %v2352
        %v2449 = vunpack.c.l.b16 %v2353
        %v2450 = vunpack.c.l.b16 %v2354
        %v2451 = vunpack.c.l.b16 %v2355
        %v2452 = vunpack.c.l.b16 %v2356
        %v2453 = vunpack.c.l.b16 %v2357
        %v2454 = vunpack.c.l.b16 %v2358
        %v2455 = vunpack.c.l.b16 %v2359
        %v2456 = vunpack.c.l.b16 %v2360
        %v2457 = vunpack.c.l.b16 %v2361
        %v2458 = vunpack.c.l.b16 %v2362
        %v2459 = vunpack.c.l.b16 %v2363
        %v2460 = vunpack.c.l.b16 %v2364
        %v2461 = vunpack.c.l.b16 %v2365
        %v2462 = vunpack.c.l.b16 %v2366
        %v2463 = vunpack.c.l.b16 %v2367
        %v2464 = vunpack.c.l.b16 %v2368
        %v2465 = vunpack.c.l.b16 %v2369
        %v2466 = vunpack.c.l.b16 %v2370
        %v2467 = vpack.c.b16 %v2420, %v2419
        %v2468 = vpack.c.b16 %v2421, %v2421
        %v2469 = vpack.c.b16 %v2423, %v2422
        %v2470 = vpack.c.b16 %v2424, %v2424
        %v2471 = vpack.c.b16 %v2426, %v2425
        %v2472 = vpack.c.b16 %v2427, %v2427
        %v2473 = vpack.c.b16 %v2429, %v2428
        %v2474 = vpack.c.b16 %v2430, %v2430
        %v2475 = vpack.c.b16 %v2432, %v2431
        %v2476 = vpack.c.b16 %v2433, %v2433
        %v2477 = vpack.c.b16 %v2435, %v2434
        %v2478 = vpack.c.b16 %v2436, %v2436
        %v2479 = vpack.c.b16 %v2438, %v2437
        %v2480 = vpack.c.b16 %v2439, %v2439
        %v2481 = vpack.c.b16 %v2441, %v2440
        %v2482 = vpack.c.b16 %v2442, %v2442
        %v2483 = vpack.c.b16 %v2444, %v2443
        %v2484 = vpack.c.b16 %v2445, %v2445
        %v2485 = vpack.c.b16 %v2447, %v2446
        %v2486 = vpack.c.b16 %v2448, %v2448
        %v2487 = vpack.c.b16 %v2450, %v2449
        %v2488 = vpack.c.b16 %v2451, %v2451
        %v2489 = vpack.c.b16 %v2453, %v2452
        %v2490 = vpack.c.b16 %v2454, %v2454
        %v2491 = vpack.c.b16 %v2456, %v2455
        %v2492 = vpack.c.b16 %v2457, %v2457
        %v2493 = vpack.c.b16 %v2459, %v2458
        %v2494 = vpack.c.b16 %v2460, %v2460
        %v2495 = vpack.c.b16 %v2462, %v2461
        %v2496 = vpack.c.b16 %v2463, %v2463
        %v2497 = vpack.c.b16 %v2465, %v2464
        %v2498 = vpack.c.b16 %v2466, %v2466
        %v2499 = vrot.slane %v2467, 1
        %v2500 = vrot.slane %v2468, 1
        %v2501 = vsel %vm1698, %v2499, %v2500
        %v2502 = vrot.slane %v2469, 1
        %v2503 = vrot.slane %v2470, 1
        %v2504 = vsel %vm1698, %v2502, %v2503
        %v2505 = vrot.slane %v2471, 1
        %v2506 = vrot.slane %v2472, 1
        %v2507 = vsel %vm1698, %v2505, %v2506
        %v2508 = vrot.slane %v2473, 1
        %v2509 = vrot.slane %v2474, 1
        %v2510 = vsel %vm1698, %v2508, %v2509
        %v2511 = vrot.slane %v2475, 1
        %v2512 = vrot.slane %v2476, 1
        %v2513 = vsel %vm1698, %v2511, %v2512
        %v2514 = vrot.slane %v2477, 1
        %v2515 = vrot.slane %v2478, 1
        %v2516 = vsel %vm1698, %v2514, %v2515
        %v2517 = vrot.slane %v2479, 1
        %v2518 = vrot.slane %v2480, 1
        %v2519 = vsel %vm1698, %v2517, %v2518
        %v2520 = vrot.slane %v2481, 1
        %v2521 = vrot.slane %v2482, 1
        %v2522 = vsel %vm1698, %v2520, %v2521
        %v2523 = vrot.slane %v2483, 1
        %v2524 = vrot.slane %v2484, 1
        %v2525 = vsel %vm1698, %v2523, %v2524
        %v2526 = vrot.slane %v2485, 1
        %v2527 = vrot.slane %v2486, 1
        %v2528 = vsel %vm1698, %v2526, %v2527
        %v2529 = vrot.slane %v2487, 1
        %v2530 = vrot.slane %v2488, 1
        %v2531 = vsel %vm1698, %v2529, %v2530
        %v2532 = vrot.slane %v2489, 1
        %v2533 = vrot.slane %v2490, 1
        %v2534 = vsel %vm1698, %v2532, %v2533
        %v2535 = vrot.slane %v2491, 1
        %v2536 = vrot.slane %v2492, 1
        %v2537 = vsel %vm1698, %v2535, %v2536
        %v2538 = vrot.slane %v2493, 1
        %v2539 = vrot.slane %v2494, 1
        %v2540 = vsel %vm1698, %v2538, %v2539
        %v2541 = vrot.slane %v2495, 1
        %v2542 = vrot.slane %v2496, 1
        %v2543 = vsel %vm1698, %v2541, %v2542
        %v2544 = vrot.slane %v2497, 1
        %v2545 = vrot.slane %v2498, 1
        %v2546 = vsel %vm1698, %v2544, %v2545
        %2563 = vst [vmem:[#allocation4 + $0x28] sm:$0xff] %v2501
        %2564 = vst [vmem:[#allocation4 + $0x70] sm:$0xff] %v2504
        %2565 = vst [vmem:[#allocation4 + $0xb8] sm:$0xff] %v2507
        %2566 = vst [vmem:[#allocation4 + $0x100] sm:$0xff] %v2510
        %2567 = vst [vmem:[#allocation4 + $0x148] sm:$0xff] %v2513
        %2568 = vst [vmem:[#allocation4 + $0x190] sm:$0xff] %v2516
        %2569 = vst [vmem:[#allocation4 + $0x1d8] sm:$0xff] %v2519
        %2570 = vst [vmem:[#allocation4 + $0x220] sm:$0xff] %v2522
        %2571 = vst [vmem:[#allocation4 + $0x268] sm:$0xff] %v2525
        %2572 = vst [vmem:[#allocation4 + $0x2b0] sm:$0xff] %v2528
        %2573 = vst [vmem:[#allocation4 + $0x2f8] sm:$0xff] %v2531
        %2574 = vst [vmem:[#allocation4 + $0x340] sm:$0xff] %v2534
        %2575 = vst [vmem:[#allocation4 + $0x388] sm:$0xff] %v2537
        %2576 = vst [vmem:[#allocation4 + $0x3d0] sm:$0xff] %v2540
        %2577 = vst [vmem:[#allocation4 + $0x418] sm:$0xff] %v2543
        %2578 = vst [vmem:[#allocation4 + $0x460] sm:$0xff] %v2546
        %s2579 = scalar_lea.vmem [#allocation2], 24
        %v2580 = vld [vmem:[%s2579] sm:$0xf]
        %v2581 = vld [vmem:[%s2579 + $0x4] sm:$0xf]
        %v2582 = vld [vmem:[%s2579 + $0xc] sm:$0xf]
        %v2583 = vld [vmem:[%s2579 + $0x10] sm:$0xf]
        %v2584 = vld [vmem:[%s2579 + $0x18] sm:$0xf]
        %v2585 = vld [vmem:[%s2579 + $0x1c] sm:$0xf]
        %v2586 = vld [vmem:[%s2579 + $0x24] sm:$0xf]
        %v2587 = vld [vmem:[%s2579 + $0x28] sm:$0xf]
        %v2588 = vld [vmem:[%s2579 + $0x30] sm:$0xf]
        %v2589 = vld [vmem:[%s2579 + $0x34] sm:$0xf]
        %v2590 = vld [vmem:[%s2579 + $0x3c] sm:$0xf]
        %v2591 = vld [vmem:[%s2579 + $0x40] sm:$0xf]
        %v2592 = vld [vmem:[%s2579 + $0x48] sm:$0xf]
        %v2593 = vld [vmem:[%s2579 + $0x4c] sm:$0xf]
        %v2594 = vld [vmem:[%s2579 + $0x54] sm:$0xf]
        %v2595 = vld [vmem:[%s2579 + $0x58] sm:$0xf]
        %v2596 = vld [vmem:[%s2579 + $0x60] sm:$0xf]
        %v2597 = vld [vmem:[%s2579 + $0x64] sm:$0xf]
        %v2598 = vld [vmem:[%s2579 + $0x6c] sm:$0xf]
        %v2599 = vld [vmem:[%s2579 + $0x70] sm:$0xf]
        %v2600 = vld [vmem:[%s2579 + $0x78] sm:$0xf]
        %v2601 = vld [vmem:[%s2579 + $0x7c] sm:$0xf]
        %v2602 = vld [vmem:[%s2579 + $0x84] sm:$0xf]
        %v2603 = vld [vmem:[%s2579 + $0x88] sm:$0xf]
        %v2604 = vld [vmem:[%s2579 + $0x90] sm:$0xf]
        %v2605 = vld [vmem:[%s2579 + $0x94] sm:$0xf]
        %v2606 = vld [vmem:[%s2579 + $0x9c] sm:$0xf]
        %v2607 = vld [vmem:[%s2579 + $0xa0] sm:$0xf]
        %v2608 = vld [vmem:[%s2579 + $0xa8] sm:$0xf]
        %v2609 = vld [vmem:[%s2579 + $0xac] sm:$0xf]
        %v2610 = vld [vmem:[%s2579 + $0xb4] sm:$0xf]
        %v2611 = vld [vmem:[%s2579 + $0xb8] sm:$0xf]
        %v2644 = vunpack.c.l.b16 %v2580
        %v2645 = vunpack.c.l.b16 %v2581
        %v2646 = vunpack.c.l.b16 %v2582
        %v2647 = vunpack.c.l.b16 %v2583
        %v2648 = vunpack.c.l.b16 %v2584
        %v2649 = vunpack.c.l.b16 %v2585
        %v2650 = vunpack.c.l.b16 %v2586
        %v2651 = vunpack.c.l.b16 %v2587
        %v2652 = vunpack.c.l.b16 %v2588
        %v2653 = vunpack.c.l.b16 %v2589
        %v2654 = vunpack.c.l.b16 %v2590
        %v2655 = vunpack.c.l.b16 %v2591
        %v2656 = vunpack.c.l.b16 %v2592
        %v2657 = vunpack.c.l.b16 %v2593
        %v2658 = vunpack.c.l.b16 %v2594
        %v2659 = vunpack.c.l.b16 %v2595
        %v2660 = vunpack.c.l.b16 %v2596
        %v2661 = vunpack.c.l.b16 %v2597
        %v2662 = vunpack.c.l.b16 %v2598
        %v2663 = vunpack.c.l.b16 %v2599
        %v2664 = vunpack.c.l.b16 %v2600
        %v2665 = vunpack.c.l.b16 %v2601
        %v2666 = vunpack.c.l.b16 %v2602
        %v2667 = vunpack.c.l.b16 %v2603
        %v2668 = vunpack.c.l.b16 %v2604
        %v2669 = vunpack.c.l.b16 %v2605
        %v2670 = vunpack.c.l.b16 %v2606
        %v2671 = vunpack.c.l.b16 %v2607
        %v2672 = vunpack.c.l.b16 %v2608
        %v2673 = vunpack.c.l.b16 %v2609
        %v2674 = vunpack.c.l.b16 %v2610
        %v2675 = vunpack.c.l.b16 %v2611
        %v2676 = vpack.c.b16 %v2645, %v2644
        %v2677 = vpack.c.b16 %v2647, %v2646
        %v2678 = vpack.c.b16 %v2649, %v2648
        %v2679 = vpack.c.b16 %v2651, %v2650
        %v2680 = vpack.c.b16 %v2653, %v2652
        %v2681 = vpack.c.b16 %v2655, %v2654
        %v2682 = vpack.c.b16 %v2657, %v2656
        %v2683 = vpack.c.b16 %v2659, %v2658
        %v2684 = vpack.c.b16 %v2661, %v2660
        %v2685 = vpack.c.b16 %v2663, %v2662
        %v2686 = vpack.c.b16 %v2665, %v2664
        %v2687 = vpack.c.b16 %v2667, %v2666
        %v2688 = vpack.c.b16 %v2669, %v2668
        %v2689 = vpack.c.b16 %v2671, %v2670
        %v2690 = vpack.c.b16 %v2673, %v2672
        %v2691 = vpack.c.b16 %v2675, %v2674
        %2708 = vst [vmem:[#allocation4 + $0x30] sm:$0xff] %v2676
        %2709 = vst [vmem:[#allocation4 + $0x78] sm:$0xff] %v2677
        %2710 = vst [vmem:[#allocation4 + $0xc0] sm:$0xff] %v2678
        %2711 = vst [vmem:[#allocation4 + $0x108] sm:$0xff] %v2679
        %2712 = vst [vmem:[#allocation4 + $0x150] sm:$0xff] %v2680
        %2713 = vst [vmem:[#allocation4 + $0x198] sm:$0xff] %v2681
        %2714 = vst [vmem:[#allocation4 + $0x1e0] sm:$0xff] %v2682
        %2715 = vst [vmem:[#allocation4 + $0x228] sm:$0xff] %v2683
        %2716 = vst [vmem:[#allocation4 + $0x270] sm:$0xff] %v2684
        %2717 = vst [vmem:[#allocation4 + $0x2b8] sm:$0xff] %v2685
        %2718 = vst [vmem:[#allocation4 + $0x300] sm:$0xff] %v2686
        %2719 = vst [vmem:[#allocation4 + $0x348] sm:$0xff] %v2687
        %2720 = vst [vmem:[#allocation4 + $0x390] sm:$0xff] %v2688
        %2721 = vst [vmem:[#allocation4 + $0x3d8] sm:$0xff] %v2689
        %2722 = vst [vmem:[#allocation4 + $0x420] sm:$0xff] %v2690
        %2723 = vst [vmem:[#allocation4 + $0x468] sm:$0xff] %v2691
        %v2724 = vld [vmem:[%s2579] sm:$0xf]
        %v2725 = vld [vmem:[%s2579 + $0x4] sm:$0xf]
        %v2726 = vld [vmem:[%s2579 + $0x8] sm:$0x1]
        %v2727 = vld [vmem:[%s2579 + $0xc] sm:$0xf]
        %v2728 = vld [vmem:[%s2579 + $0x10] sm:$0xf]
        %v2729 = vld [vmem:[%s2579 + $0x14] sm:$0x1]
        %v2730 = vld [vmem:[%s2579 + $0x18] sm:$0xf]
        %v2731 = vld [vmem:[%s2579 + $0x1c] sm:$0xf]
        %v2732 = vld [vmem:[%s2579 + $0x20] sm:$0x1]
        %v2733 = vld [vmem:[%s2579 + $0x24] sm:$0xf]
        %v2734 = vld [vmem:[%s2579 + $0x28] sm:$0xf]
        %v2735 = vld [vmem:[%s2579 + $0x2c] sm:$0x1]
        %v2736 = vld [vmem:[%s2579 + $0x30] sm:$0xf]
        %v2737 = vld [vmem:[%s2579 + $0x34] sm:$0xf]
        %v2738 = vld [vmem:[%s2579 + $0x38] sm:$0x1]
        %v2739 = vld [vmem:[%s2579 + $0x3c] sm:$0xf]
        %v2740 = vld [vmem:[%s2579 + $0x40] sm:$0xf]
        %v2741 = vld [vmem:[%s2579 + $0x44] sm:$0x1]
        %v2742 = vld [vmem:[%s2579 + $0x48] sm:$0xf]
        %v2743 = vld [vmem:[%s2579 + $0x4c] sm:$0xf]
        %v2744 = vld [vmem:[%s2579 + $0x50] sm:$0x1]
        %v2745 = vld [vmem:[%s2579 + $0x54] sm:$0xf]
        %v2746 = vld [vmem:[%s2579 + $0x58] sm:$0xf]
        %v2747 = vld [vmem:[%s2579 + $0x5c] sm:$0x1]
        %v2748 = vld [vmem:[%s2579 + $0x60] sm:$0xf]
        %v2749 = vld [vmem:[%s2579 + $0x64] sm:$0xf]
        %v2750 = vld [vmem:[%s2579 + $0x68] sm:$0x1]
        %v2751 = vld [vmem:[%s2579 + $0x6c] sm:$0xf]
        %v2752 = vld [vmem:[%s2579 + $0x70] sm:$0xf]
        %v2753 = vld [vmem:[%s2579 + $0x74] sm:$0x1]
        %v2754 = vld [vmem:[%s2579 + $0x78] sm:$0xf]
        %v2755 = vld [vmem:[%s2579 + $0x7c] sm:$0xf]
        %v2756 = vld [vmem:[%s2579 + $0x80] sm:$0x1]
        %v2757 = vld [vmem:[%s2579 + $0x84] sm:$0xf]
        %v2758 = vld [vmem:[%s2579 + $0x88] sm:$0xf]
        %v2759 = vld [vmem:[%s2579 + $0x8c] sm:$0x1]
        %v2760 = vld [vmem:[%s2579 + $0x90] sm:$0xf]
        %v2761 = vld [vmem:[%s2579 + $0x94] sm:$0xf]
        %v2762 = vld [vmem:[%s2579 + $0x98] sm:$0x1]
        %v2763 = vld [vmem:[%s2579 + $0x9c] sm:$0xf]
        %v2764 = vld [vmem:[%s2579 + $0xa0] sm:$0xf]
        %v2765 = vld [vmem:[%s2579 + $0xa4] sm:$0x1]
        %v2766 = vld [vmem:[%s2579 + $0xa8] sm:$0xf]
        %v2767 = vld [vmem:[%s2579 + $0xac] sm:$0xf]
        %v2768 = vld [vmem:[%s2579 + $0xb0] sm:$0x1]
        %v2769 = vld [vmem:[%s2579 + $0xb4] sm:$0xf]
        %v2770 = vld [vmem:[%s2579 + $0xb8] sm:$0xf]
        %v2771 = vld [vmem:[%s2579 + $0xbc] sm:$0x1]
        %v2820 = vunpack.c.l.b16 %v2724
        %v2821 = vunpack.c.l.b16 %v2725
        %v2822 = vunpack.c.l.b16 %v2726
        %v2823 = vunpack.c.l.b16 %v2727
        %v2824 = vunpack.c.l.b16 %v2728
        %v2825 = vunpack.c.l.b16 %v2729
        %v2826 = vunpack.c.l.b16 %v2730
        %v2827 = vunpack.c.l.b16 %v2731
        %v2828 = vunpack.c.l.b16 %v2732
        %v2829 = vunpack.c.l.b16 %v2733
        %v2830 = vunpack.c.l.b16 %v2734
        %v2831 = vunpack.c.l.b16 %v2735
        %v2832 = vunpack.c.l.b16 %v2736
        %v2833 = vunpack.c.l.b16 %v2737
        %v2834 = vunpack.c.l.b16 %v2738
        %v2835 = vunpack.c.l.b16 %v2739
        %v2836 = vunpack.c.l.b16 %v2740
        %v2837 = vunpack.c.l.b16 %v2741
        %v2838 = vunpack.c.l.b16 %v2742
        %v2839 = vunpack.c.l.b16 %v2743
        %v2840 = vunpack.c.l.b16 %v2744
        %v2841 = vunpack.c.l.b16 %v2745
        %v2842 = vunpack.c.l.b16 %v2746
        %v2843 = vunpack.c.l.b16 %v2747
        %v2844 = vunpack.c.l.b16 %v2748
        %v2845 = vunpack.c.l.b16 %v2749
        %v2846 = vunpack.c.l.b16 %v2750
        %v2847 = vunpack.c.l.b16 %v2751
        %v2848 = vunpack.c.l.b16 %v2752
        %v2849 = vunpack.c.l.b16 %v2753
        %v2850 = vunpack.c.l.b16 %v2754
        %v2851 = vunpack.c.l.b16 %v2755
        %v2852 = vunpack.c.l.b16 %v2756
        %v2853 = vunpack.c.l.b16 %v2757
        %v2854 = vunpack.c.l.b16 %v2758
        %v2855 = vunpack.c.l.b16 %v2759
        %v2856 = vunpack.c.l.b16 %v2760
        %v2857 = vunpack.c.l.b16 %v2761
        %v2858 = vunpack.c.l.b16 %v2762
        %v2859 = vunpack.c.l.b16 %v2763
        %v2860 = vunpack.c.l.b16 %v2764
        %v2861 = vunpack.c.l.b16 %v2765
        %v2862 = vunpack.c.l.b16 %v2766
        %v2863 = vunpack.c.l.b16 %v2767
        %v2864 = vunpack.c.l.b16 %v2768
        %v2865 = vunpack.c.l.b16 %v2769
        %v2866 = vunpack.c.l.b16 %v2770
        %v2867 = vunpack.c.l.b16 %v2771
        %v2868 = vpack.c.b16 %v2821, %v2820
        %v2869 = vpack.c.b16 %v2822, %v2822
        %v2870 = vpack.c.b16 %v2824, %v2823
        %v2871 = vpack.c.b16 %v2825, %v2825
        %v2872 = vpack.c.b16 %v2827, %v2826
        %v2873 = vpack.c.b16 %v2828, %v2828
        %v2874 = vpack.c.b16 %v2830, %v2829
        %v2875 = vpack.c.b16 %v2831, %v2831
        %v2876 = vpack.c.b16 %v2833, %v2832
        %v2877 = vpack.c.b16 %v2834, %v2834
        %v2878 = vpack.c.b16 %v2836, %v2835
        %v2879 = vpack.c.b16 %v2837, %v2837
        %v2880 = vpack.c.b16 %v2839, %v2838
        %v2881 = vpack.c.b16 %v2840, %v2840
        %v2882 = vpack.c.b16 %v2842, %v2841
        %v2883 = vpack.c.b16 %v2843, %v2843
        %v2884 = vpack.c.b16 %v2845, %v2844
        %v2885 = vpack.c.b16 %v2846, %v2846
        %v2886 = vpack.c.b16 %v2848, %v2847
        %v2887 = vpack.c.b16 %v2849, %v2849
        %v2888 = vpack.c.b16 %v2851, %v2850
        %v2889 = vpack.c.b16 %v2852, %v2852
        %v2890 = vpack.c.b16 %v2854, %v2853
        %v2891 = vpack.c.b16 %v2855, %v2855
        %v2892 = vpack.c.b16 %v2857, %v2856
        %v2893 = vpack.c.b16 %v2858, %v2858
        %v2894 = vpack.c.b16 %v2860, %v2859
        %v2895 = vpack.c.b16 %v2861, %v2861
        %v2896 = vpack.c.b16 %v2863, %v2862
        %v2897 = vpack.c.b16 %v2864, %v2864
        %v2898 = vpack.c.b16 %v2866, %v2865
        %v2899 = vpack.c.b16 %v2867, %v2867
        %v2901 = vshrl.u32 %v2868, 16
        %v2903 = vshll.u32 %v2868, 16
        %v2905 = vrot.slane %v2903, 1
        %v2906 = vor.u32 %v2901, %v2905
        %v2908 = vshll.u32 %v2869, 16
        %v2910 = vrot.slane %v2908, 1
        %v2911 = vsel %vm1297, %v2906, %v2910
        %v2913 = vshrl.u32 %v2870, 16
        %v2915 = vshll.u32 %v2870, 16
        %v2917 = vrot.slane %v2915, 1
        %v2918 = vor.u32 %v2913, %v2917
        %v2920 = vshll.u32 %v2871, 16
        %v2922 = vrot.slane %v2920, 1
        %v2923 = vsel %vm1297, %v2918, %v2922
        %v2925 = vshrl.u32 %v2872, 16
        %v2927 = vshll.u32 %v2872, 16
        %v2929 = vrot.slane %v2927, 1
        %v2930 = vor.u32 %v2925, %v2929
        %v2932 = vshll.u32 %v2873, 16
        %v2934 = vrot.slane %v2932, 1
        %v2935 = vsel %vm1297, %v2930, %v2934
        %v2937 = vshrl.u32 %v2874, 16
        %v2939 = vshll.u32 %v2874, 16
        %v2941 = vrot.slane %v2939, 1
        %v2942 = vor.u32 %v2937, %v2941
        %v2944 = vshll.u32 %v2875, 16
        %v2946 = vrot.slane %v2944, 1
        %v2947 = vsel %vm1297, %v2942, %v2946
        %v2949 = vshrl.u32 %v2876, 16
        %v2951 = vshll.u32 %v2876, 16
        %v2953 = vrot.slane %v2951, 1
        %v2954 = vor.u32 %v2949, %v2953
        %v2956 = vshll.u32 %v2877, 16
        %v2958 = vrot.slane %v2956, 1
        %v2959 = vsel %vm1297, %v2954, %v2958
        %v2961 = vshrl.u32 %v2878, 16
        %v2963 = vshll.u32 %v2878, 16
        %v2965 = vrot.slane %v2963, 1
        %v2966 = vor.u32 %v2961, %v2965
        %v2968 = vshll.u32 %v2879, 16
        %v2970 = vrot.slane %v2968, 1
        %v2971 = vsel %vm1297, %v2966, %v2970
        %v2973 = vshrl.u32 %v2880, 16
        %v2975 = vshll.u32 %v2880, 16
        %v2977 = vrot.slane %v2975, 1
        %v2978 = vor.u32 %v2973, %v2977
        %v2980 = vshll.u32 %v2881, 16
        %v2982 = vrot.slane %v2980, 1
        %v2983 = vsel %vm1297, %v2978, %v2982
        %v2985 = vshrl.u32 %v2882, 16
        %v2987 = vshll.u32 %v2882, 16
        %v2989 = vrot.slane %v2987, 1
        %v2990 = vor.u32 %v2985, %v2989
        %v2992 = vshll.u32 %v2883, 16
        %v2994 = vrot.slane %v2992, 1
        %v2995 = vsel %vm1297, %v2990, %v2994
        %v2997 = vshrl.u32 %v2884, 16
        %v2999 = vshll.u32 %v2884, 16
        %v3001 = vrot.slane %v2999, 1
        %v3002 = vor.u32 %v2997, %v3001
        %v3004 = vshll.u32 %v2885, 16
        %v3006 = vrot.slane %v3004, 1
        %v3007 = vsel %vm1297, %v3002, %v3006
        %v3009 = vshrl.u32 %v2886, 16
        %v3011 = vshll.u32 %v2886, 16
        %v3013 = vrot.slane %v3011, 1
        %v3014 = vor.u32 %v3009, %v3013
        %v3016 = vshll.u32 %v2887, 16
        %v3018 = vrot.slane %v3016, 1
        %v3019 = vsel %vm1297, %v3014, %v3018
        %v3021 = vshrl.u32 %v2888, 16
        %v3023 = vshll.u32 %v2888, 16
        %v3025 = vrot.slane %v3023, 1
        %v3026 = vor.u32 %v3021, %v3025
        %v3028 = vshll.u32 %v2889, 16
        %v3030 = vrot.slane %v3028, 1
        %v3031 = vsel %vm1297, %v3026, %v3030
        %v3033 = vshrl.u32 %v2890, 16
        %v3035 = vshll.u32 %v2890, 16
        %v3037 = vrot.slane %v3035, 1
        %v3038 = vor.u32 %v3033, %v3037
        %v3040 = vshll.u32 %v2891, 16
        %v3042 = vrot.slane %v3040, 1
        %v3043 = vsel %vm1297, %v3038, %v3042
        %v3045 = vshrl.u32 %v2892, 16
        %v3047 = vshll.u32 %v2892, 16
        %v3049 = vrot.slane %v3047, 1
        %v3050 = vor.u32 %v3045, %v3049
        %v3052 = vshll.u32 %v2893, 16
        %v3054 = vrot.slane %v3052, 1
        %v3055 = vsel %vm1297, %v3050, %v3054
        %v3057 = vshrl.u32 %v2894, 16
        %v3059 = vshll.u32 %v2894, 16
        %v3061 = vrot.slane %v3059, 1
        %v3062 = vor.u32 %v3057, %v3061
        %v3064 = vshll.u32 %v2895, 16
        %v3066 = vrot.slane %v3064, 1
        %v3067 = vsel %vm1297, %v3062, %v3066
        %v3069 = vshrl.u32 %v2896, 16
        %v3071 = vshll.u32 %v2896, 16
        %v3073 = vrot.slane %v3071, 1
        %v3074 = vor.u32 %v3069, %v3073
        %v3076 = vshll.u32 %v2897, 16
        %v3078 = vrot.slane %v3076, 1
        %v3079 = vsel %vm1297, %v3074, %v3078
        %v3081 = vshrl.u32 %v2898, 16
        %v3083 = vshll.u32 %v2898, 16
        %v3085 = vrot.slane %v3083, 1
        %v3086 = vor.u32 %v3081, %v3085
        %v3088 = vshll.u32 %v2899, 16
        %v3090 = vrot.slane %v3088, 1
        %v3091 = vsel %vm1297, %v3086, %v3090
        %3108 = vst [vmem:[#allocation4 + $0x38] sm:$0xff] %v2911
        %3109 = vst [vmem:[#allocation4 + $0x80] sm:$0xff] %v2923
        %3110 = vst [vmem:[#allocation4 + $0xc8] sm:$0xff] %v2935
        %3111 = vst [vmem:[#allocation4 + $0x110] sm:$0xff] %v2947
        %3112 = vst [vmem:[#allocation4 + $0x158] sm:$0xff] %v2959
        %3113 = vst [vmem:[#allocation4 + $0x1a0] sm:$0xff] %v2971
        %3114 = vst [vmem:[#allocation4 + $0x1e8] sm:$0xff] %v2983
        %3115 = vst [vmem:[#allocation4 + $0x230] sm:$0xff] %v2995
        %3116 = vst [vmem:[#allocation4 + $0x278] sm:$0xff] %v3007
        %3117 = vst [vmem:[#allocation4 + $0x2c0] sm:$0xff] %v3019
        %3118 = vst [vmem:[#allocation4 + $0x308] sm:$0xff] %v3031
        %3119 = vst [vmem:[#allocation4 + $0x350] sm:$0xff] %v3043
        %3120 = vst [vmem:[#allocation4 + $0x398] sm:$0xff] %v3055
        %3121 = vst [vmem:[#allocation4 + $0x3e0] sm:$0xff] %v3067
        %3122 = vst [vmem:[#allocation4 + $0x428] sm:$0xff] %v3079
        %3123 = vst [vmem:[#allocation4 + $0x470] sm:$0xff] %v3091
        %v3124 = vld [vmem:[%s2579] sm:$0xe]
        %v3125 = vld [vmem:[%s2579 + $0x4] sm:$0xf]
        %v3126 = vld [vmem:[%s2579 + $0x8] sm:$0x1]
        %v3127 = vld [vmem:[%s2579 + $0xc] sm:$0xe]
        %v3128 = vld [vmem:[%s2579 + $0x10] sm:$0xf]
        %v3129 = vld [vmem:[%s2579 + $0x14] sm:$0x1]
        %v3130 = vld [vmem:[%s2579 + $0x18] sm:$0xe]
        %v3131 = vld [vmem:[%s2579 + $0x1c] sm:$0xf]
        %v3132 = vld [vmem:[%s2579 + $0x20] sm:$0x1]
        %v3133 = vld [vmem:[%s2579 + $0x24] sm:$0xe]
        %v3134 = vld [vmem:[%s2579 + $0x28] sm:$0xf]
        %v3135 = vld [vmem:[%s2579 + $0x2c] sm:$0x1]
        %v3136 = vld [vmem:[%s2579 + $0x30] sm:$0xe]
        %v3137 = vld [vmem:[%s2579 + $0x34] sm:$0xf]
        %v3138 = vld [vmem:[%s2579 + $0x38] sm:$0x1]
        %v3139 = vld [vmem:[%s2579 + $0x3c] sm:$0xe]
        %v3140 = vld [vmem:[%s2579 + $0x40] sm:$0xf]
        %v3141 = vld [vmem:[%s2579 + $0x44] sm:$0x1]
        %v3142 = vld [vmem:[%s2579 + $0x48] sm:$0xe]
        %v3143 = vld [vmem:[%s2579 + $0x4c] sm:$0xf]
        %v3144 = vld [vmem:[%s2579 + $0x50] sm:$0x1]
        %v3145 = vld [vmem:[%s2579 + $0x54] sm:$0xe]
        %v3146 = vld [vmem:[%s2579 + $0x58] sm:$0xf]
        %v3147 = vld [vmem:[%s2579 + $0x5c] sm:$0x1]
        %v3148 = vld [vmem:[%s2579 + $0x60] sm:$0xe]
        %v3149 = vld [vmem:[%s2579 + $0x64] sm:$0xf]
        %v3150 = vld [vmem:[%s2579 + $0x68] sm:$0x1]
        %v3151 = vld [vmem:[%s2579 + $0x6c] sm:$0xe]
        %v3152 = vld [vmem:[%s2579 + $0x70] sm:$0xf]
        %v3153 = vld [vmem:[%s2579 + $0x74] sm:$0x1]
        %v3154 = vld [vmem:[%s2579 + $0x78] sm:$0xe]
        %v3155 = vld [vmem:[%s2579 + $0x7c] sm:$0xf]
        %v3156 = vld [vmem:[%s2579 + $0x80] sm:$0x1]
        %v3157 = vld [vmem:[%s2579 + $0x84] sm:$0xe]
        %v3158 = vld [vmem:[%s2579 + $0x88] sm:$0xf]
        %v3159 = vld [vmem:[%s2579 + $0x8c] sm:$0x1]
        %v3160 = vld [vmem:[%s2579 + $0x90] sm:$0xe]
        %v3161 = vld [vmem:[%s2579 + $0x94] sm:$0xf]
        %v3162 = vld [vmem:[%s2579 + $0x98] sm:$0x1]
        %v3163 = vld [vmem:[%s2579 + $0x9c] sm:$0xe]
        %v3164 = vld [vmem:[%s2579 + $0xa0] sm:$0xf]
        %v3165 = vld [vmem:[%s2579 + $0xa4] sm:$0x1]
        %v3166 = vld [vmem:[%s2579 + $0xa8] sm:$0xe]
        %v3167 = vld [vmem:[%s2579 + $0xac] sm:$0xf]
        %v3168 = vld [vmem:[%s2579 + $0xb0] sm:$0x1]
        %v3169 = vld [vmem:[%s2579 + $0xb4] sm:$0xe]
        %v3170 = vld [vmem:[%s2579 + $0xb8] sm:$0xf]
        %v3171 = vld [vmem:[%s2579 + $0xbc] sm:$0x1]
        %v3220 = vunpack.c.l.b16 %v3124
        %v3221 = vunpack.c.l.b16 %v3125
        %v3222 = vunpack.c.l.b16 %v3126
        %v3223 = vunpack.c.l.b16 %v3127
        %v3224 = vunpack.c.l.b16 %v3128
        %v3225 = vunpack.c.l.b16 %v3129
        %v3226 = vunpack.c.l.b16 %v3130
        %v3227 = vunpack.c.l.b16 %v3131
        %v3228 = vunpack.c.l.b16 %v3132
        %v3229 = vunpack.c.l.b16 %v3133
        %v3230 = vunpack.c.l.b16 %v3134
        %v3231 = vunpack.c.l.b16 %v3135
        %v3232 = vunpack.c.l.b16 %v3136
        %v3233 = vunpack.c.l.b16 %v3137
        %v3234 = vunpack.c.l.b16 %v3138
        %v3235 = vunpack.c.l.b16 %v3139
        %v3236 = vunpack.c.l.b16 %v3140
        %v3237 = vunpack.c.l.b16 %v3141
        %v3238 = vunpack.c.l.b16 %v3142
        %v3239 = vunpack.c.l.b16 %v3143
        %v3240 = vunpack.c.l.b16 %v3144
        %v3241 = vunpack.c.l.b16 %v3145
        %v3242 = vunpack.c.l.b16 %v3146
        %v3243 = vunpack.c.l.b16 %v3147
        %v3244 = vunpack.c.l.b16 %v3148
        %v3245 = vunpack.c.l.b16 %v3149
        %v3246 = vunpack.c.l.b16 %v3150
        %v3247 = vunpack.c.l.b16 %v3151
        %v3248 = vunpack.c.l.b16 %v3152
        %v3249 = vunpack.c.l.b16 %v3153
        %v3250 = vunpack.c.l.b16 %v3154
        %v3251 = vunpack.c.l.b16 %v3155
        %v3252 = vunpack.c.l.b16 %v3156
        %v3253 = vunpack.c.l.b16 %v3157
        %v3254 = vunpack.c.l.b16 %v3158
        %v3255 = vunpack.c.l.b16 %v3159
        %v3256 = vunpack.c.l.b16 %v3160
        %v3257 = vunpack.c.l.b16 %v3161
        %v3258 = vunpack.c.l.b16 %v3162
        %v3259 = vunpack.c.l.b16 %v3163
        %v3260 = vunpack.c.l.b16 %v3164
        %v3261 = vunpack.c.l.b16 %v3165
        %v3262 = vunpack.c.l.b16 %v3166
        %v3263 = vunpack.c.l.b16 %v3167
        %v3264 = vunpack.c.l.b16 %v3168
        %v3265 = vunpack.c.l.b16 %v3169
        %v3266 = vunpack.c.l.b16 %v3170
        %v3267 = vunpack.c.l.b16 %v3171
        %v3268 = vpack.c.b16 %v3221, %v3220
        %v3269 = vpack.c.b16 %v3222, %v3222
        %v3270 = vpack.c.b16 %v3224, %v3223
        %v3271 = vpack.c.b16 %v3225, %v3225
        %v3272 = vpack.c.b16 %v3227, %v3226
        %v3273 = vpack.c.b16 %v3228, %v3228
        %v3274 = vpack.c.b16 %v3230, %v3229
        %v3275 = vpack.c.b16 %v3231, %v3231
        %v3276 = vpack.c.b16 %v3233, %v3232
        %v3277 = vpack.c.b16 %v3234, %v3234
        %v3278 = vpack.c.b16 %v3236, %v3235
        %v3279 = vpack.c.b16 %v3237, %v3237
        %v3280 = vpack.c.b16 %v3239, %v3238
        %v3281 = vpack.c.b16 %v3240, %v3240
        %v3282 = vpack.c.b16 %v3242, %v3241
        %v3283 = vpack.c.b16 %v3243, %v3243
        %v3284 = vpack.c.b16 %v3245, %v3244
        %v3285 = vpack.c.b16 %v3246, %v3246
        %v3286 = vpack.c.b16 %v3248, %v3247
        %v3287 = vpack.c.b16 %v3249, %v3249
        %v3288 = vpack.c.b16 %v3251, %v3250
        %v3289 = vpack.c.b16 %v3252, %v3252
        %v3290 = vpack.c.b16 %v3254, %v3253
        %v3291 = vpack.c.b16 %v3255, %v3255
        %v3292 = vpack.c.b16 %v3257, %v3256
        %v3293 = vpack.c.b16 %v3258, %v3258
        %v3294 = vpack.c.b16 %v3260, %v3259
        %v3295 = vpack.c.b16 %v3261, %v3261
        %v3296 = vpack.c.b16 %v3263, %v3262
        %v3297 = vpack.c.b16 %v3264, %v3264
        %v3298 = vpack.c.b16 %v3266, %v3265
        %v3299 = vpack.c.b16 %v3267, %v3267
        %v3300 = vrot.slane %v3268, 1
        %v3301 = vrot.slane %v3269, 1
        %v3302 = vsel %vm1698, %v3300, %v3301
        %v3303 = vrot.slane %v3270, 1
        %v3304 = vrot.slane %v3271, 1
        %v3305 = vsel %vm1698, %v3303, %v3304
        %v3306 = vrot.slane %v3272, 1
        %v3307 = vrot.slane %v3273, 1
        %v3308 = vsel %vm1698, %v3306, %v3307
        %v3309 = vrot.slane %v3274, 1
        %v3310 = vrot.slane %v3275, 1
        %v3311 = vsel %vm1698, %v3309, %v3310
        %v3312 = vrot.slane %v3276, 1
        %v3313 = vrot.slane %v3277, 1
        %v3314 = vsel %vm1698, %v3312, %v3313
        %v3315 = vrot.slane %v3278, 1
        %v3316 = vrot.slane %v3279, 1
        %v3317 = vsel %vm1698, %v3315, %v3316
        %v3318 = vrot.slane %v3280, 1
        %v3319 = vrot.slane %v3281, 1
        %v3320 = vsel %vm1698, %v3318, %v3319
        %v3321 = vrot.slane %v3282, 1
        %v3322 = vrot.slane %v3283, 1
        %v3323 = vsel %vm1698, %v3321, %v3322
        %v3324 = vrot.slane %v3284, 1
        %v3325 = vrot.slane %v3285, 1
        %v3326 = vsel %vm1698, %v3324, %v3325
        %v3327 = vrot.slane %v3286, 1
        %v3328 = vrot.slane %v3287, 1
        %v3329 = vsel %vm1698, %v3327, %v3328
        %v3330 = vrot.slane %v3288, 1
        %v3331 = vrot.slane %v3289, 1
        %v3332 = vsel %vm1698, %v3330, %v3331
        %v3333 = vrot.slane %v3290, 1
        %v3334 = vrot.slane %v3291, 1
        %v3335 = vsel %vm1698, %v3333, %v3334
        %v3336 = vrot.slane %v3292, 1
        %v3337 = vrot.slane %v3293, 1
        %v3338 = vsel %vm1698, %v3336, %v3337
        %v3339 = vrot.slane %v3294, 1
        %v3340 = vrot.slane %v3295, 1
        %v3341 = vsel %vm1698, %v3339, %v3340
        %v3342 = vrot.slane %v3296, 1
        %v3343 = vrot.slane %v3297, 1
        %v3344 = vsel %vm1698, %v3342, %v3343
        %v3345 = vrot.slane %v3298, 1
        %v3346 = vrot.slane %v3299, 1
        %v3347 = vsel %vm1698, %v3345, %v3346
        %3364 = vst [vmem:[#allocation4 + $0x40] sm:$0xff] %v3302
        %3365 = vst [vmem:[#allocation4 + $0x88] sm:$0xff] %v3305
        %3366 = vst [vmem:[#allocation4 + $0xd0] sm:$0xff] %v3308
        %3367 = vst [vmem:[#allocation4 + $0x118] sm:$0xff] %v3311
        %3368 = vst [vmem:[#allocation4 + $0x160] sm:$0xff] %v3314
        %3369 = vst [vmem:[#allocation4 + $0x1a8] sm:$0xff] %v3317
        %3370 = vst [vmem:[#allocation4 + $0x1f0] sm:$0xff] %v3320
        %3371 = vst [vmem:[#allocation4 + $0x238] sm:$0xff] %v3323
        %3372 = vst [vmem:[#allocation4 + $0x280] sm:$0xff] %v3326
        %3373 = vst [vmem:[#allocation4 + $0x2c8] sm:$0xff] %v3329
        %3374 = vst [vmem:[#allocation4 + $0x310] sm:$0xff] %v3332
        %3375 = vst [vmem:[#allocation4 + $0x358] sm:$0xff] %v3335
        %3376 = vst [vmem:[#allocation4 + $0x3a0] sm:$0xff] %v3338
        %3377 = vst [vmem:[#allocation4 + $0x3e8] sm:$0xff] %v3341
        %3378 = vst [vmem:[#allocation4 + $0x430] sm:$0xff] %v3344
        %3379 = vst [vmem:[#allocation4 + $0x478] sm:$0xff] %v3347
        %v3380 = vld [vmem:[#allocation4] sm:$0xff]
        %v3381 = vld [vmem:[#allocation4 + $0x8] sm:$0xff]
        %v3382 = vld [vmem:[#allocation4 + $0x10] sm:$0xff]
        %v3383 = vld [vmem:[#allocation4 + $0x18] sm:$0xff]
        %v3384 = vld [vmem:[#allocation4 + $0x20] sm:$0xff]
        %v3385 = vld [vmem:[#allocation4 + $0x28] sm:$0xff]
        %v3386 = vld [vmem:[#allocation4 + $0x30] sm:$0xff]
        %v3387 = vld [vmem:[#allocation4 + $0x38] sm:$0xff]
        %v3388 = vld [vmem:[#allocation4 + $0x40] sm:$0xff]
        %v3389 = vld [vmem:[#allocation4 + $0x48] sm:$0xff]
        %v3390 = vld [vmem:[#allocation4 + $0x50] sm:$0xff]
        %v3391 = vld [vmem:[#allocation4 + $0x58] sm:$0xff]
        %v3392 = vld [vmem:[#allocation4 + $0x60] sm:$0xff]
        %v3393 = vld [vmem:[#allocation4 + $0x68] sm:$0xff]
        %v3394 = vld [vmem:[#allocation4 + $0x70] sm:$0xff]
        %v3395 = vld [vmem:[#allocation4 + $0x78] sm:$0xff]
        %v3396 = vld [vmem:[#allocation4 + $0x80] sm:$0xff]
        %v3397 = vld [vmem:[#allocation4 + $0x88] sm:$0xff]
        %v3398 = vld [vmem:[#allocation4 + $0x90] sm:$0xff]
        %v3399 = vld [vmem:[#allocation4 + $0x98] sm:$0xff]
        %v3400 = vld [vmem:[#allocation4 + $0xa0] sm:$0xff]
        %v3401 = vld [vmem:[#allocation4 + $0xa8] sm:$0xff]
        %v3402 = vld [vmem:[#allocation4 + $0xb0] sm:$0xff]
        %v3403 = vld [vmem:[#allocation4 + $0xb8] sm:$0xff]
        %v3404 = vld [vmem:[#allocation4 + $0xc0] sm:$0xff]
        %v3405 = vld [vmem:[#allocation4 + $0xc8] sm:$0xff]
        %v3406 = vld [vmem:[#allocation4 + $0xd0] sm:$0xff]
        %v3407 = vld [vmem:[#allocation4 + $0xd8] sm:$0xff]
        %v3408 = vld [vmem:[#allocation4 + $0xe0] sm:$0xff]
        %v3409 = vld [vmem:[#allocation4 + $0xe8] sm:$0xff]
        %v3410 = vld [vmem:[#allocation4 + $0xf0] sm:$0xff]
        %v3411 = vld [vmem:[#allocation4 + $0xf8] sm:$0xff]
        %v3412 = vld [vmem:[#allocation4 + $0x100] sm:$0xff]
        %v3413 = vld [vmem:[#allocation4 + $0x108] sm:$0xff]
        %v3414 = vld [vmem:[#allocation4 + $0x110] sm:$0xff]
        %v3415 = vld [vmem:[#allocation4 + $0x118] sm:$0xff]
        %v3416 = vld [vmem:[#allocation4 + $0x120] sm:$0xff]
        %v3417 = vld [vmem:[#allocation4 + $0x128] sm:$0xff]
        %v3418 = vld [vmem:[#allocation4 + $0x130] sm:$0xff]
        %v3419 = vld [vmem:[#allocation4 + $0x138] sm:$0xff]
        %v3420 = vld [vmem:[#allocation4 + $0x140] sm:$0xff]
        %v3421 = vld [vmem:[#allocation4 + $0x148] sm:$0xff]
        %v3422 = vld [vmem:[#allocation4 + $0x150] sm:$0xff]
        %v3423 = vld [vmem:[#allocation4 + $0x158] sm:$0xff]
        %v3424 = vld [vmem:[#allocation4 + $0x160] sm:$0xff]
        %v3425 = vld [vmem:[#allocation4 + $0x168] sm:$0xff]
        %v3426 = vld [vmem:[#allocation4 + $0x170] sm:$0xff]
        %v3427 = vld [vmem:[#allocation4 + $0x178] sm:$0xff]
        %v3428 = vld [vmem:[#allocation4 + $0x180] sm:$0xff]
        %v3429 = vld [vmem:[#allocation4 + $0x188] sm:$0xff]
        %v3430 = vld [vmem:[#allocation4 + $0x190] sm:$0xff]
        %v3431 = vld [vmem:[#allocation4 + $0x198] sm:$0xff]
        %v3432 = vld [vmem:[#allocation4 + $0x1a0] sm:$0xff]
        %v3433 = vld [vmem:[#allocation4 + $0x1a8] sm:$0xff]
        %v3434 = vld [vmem:[#allocation4 + $0x1b0] sm:$0xff]
        %v3435 = vld [vmem:[#allocation4 + $0x1b8] sm:$0xff]
        %v3436 = vld [vmem:[#allocation4 + $0x1c0] sm:$0xff]
        %v3437 = vld [vmem:[#allocation4 + $0x1c8] sm:$0xff]
        %v3438 = vld [vmem:[#allocation4 + $0x1d0] sm:$0xff]
        %v3439 = vld [vmem:[#allocation4 + $0x1d8] sm:$0xff]
        %v3440 = vld [vmem:[#allocation4 + $0x1e0] sm:$0xff]
        %v3441 = vld [vmem:[#allocation4 + $0x1e8] sm:$0xff]
        %v3442 = vld [vmem:[#allocation4 + $0x1f0] sm:$0xff]
        %v3443 = vld [vmem:[#allocation4 + $0x1f8] sm:$0xff]
        %v3444 = vld [vmem:[#allocation4 + $0x200] sm:$0xff]
        %v3445 = vld [vmem:[#allocation4 + $0x208] sm:$0xff]
        %v3446 = vld [vmem:[#allocation4 + $0x210] sm:$0xff]
        %v3447 = vld [vmem:[#allocation4 + $0x218] sm:$0xff]
        %v3448 = vld [vmem:[#allocation4 + $0x220] sm:$0xff]
        %v3449 = vld [vmem:[#allocation4 + $0x228] sm:$0xff]
        %v3450 = vld [vmem:[#allocation4 + $0x230] sm:$0xff]
        %v3451 = vld [vmem:[#allocation4 + $0x238] sm:$0xff]
        %v3452 = vld [vmem:[#allocation4 + $0x240] sm:$0xff]
        %v3453 = vld [vmem:[#allocation4 + $0x248] sm:$0xff]
        %v3454 = vld [vmem:[#allocation4 + $0x250] sm:$0xff]
        %v3455 = vld [vmem:[#allocation4 + $0x258] sm:$0xff]
        %v3456 = vld [vmem:[#allocation4 + $0x260] sm:$0xff]
        %v3457 = vld [vmem:[#allocation4 + $0x268] sm:$0xff]
        %v3458 = vld [vmem:[#allocation4 + $0x270] sm:$0xff]
        %v3459 = vld [vmem:[#allocation4 + $0x278] sm:$0xff]
        %v3460 = vld [vmem:[#allocation4 + $0x280] sm:$0xff]
        %v3461 = vld [vmem:[#allocation4 + $0x288] sm:$0xff]
        %v3462 = vld [vmem:[#allocation4 + $0x290] sm:$0xff]
        %v3463 = vld [vmem:[#allocation4 + $0x298] sm:$0xff]
        %v3464 = vld [vmem:[#allocation4 + $0x2a0] sm:$0xff]
        %v3465 = vld [vmem:[#allocation4 + $0x2a8] sm:$0xff]
        %v3466 = vld [vmem:[#allocation4 + $0x2b0] sm:$0xff]
        %v3467 = vld [vmem:[#allocation4 + $0x2b8] sm:$0xff]
        %v3468 = vld [vmem:[#allocation4 + $0x2c0] sm:$0xff]
        %v3469 = vld [vmem:[#allocation4 + $0x2c8] sm:$0xff]
        %v3470 = vld [vmem:[#allocation4 + $0x2d0] sm:$0xff]
        %v3471 = vld [vmem:[#allocation4 + $0x2d8] sm:$0xff]
        %v3472 = vld [vmem:[#allocation4 + $0x2e0] sm:$0xff]
        %v3473 = vld [vmem:[#allocation4 + $0x2e8] sm:$0xff]
        %v3474 = vld [vmem:[#allocation4 + $0x2f0] sm:$0xff]
        %v3475 = vld [vmem:[#allocation4 + $0x2f8] sm:$0xff]
        %v3476 = vld [vmem:[#allocation4 + $0x300] sm:$0xff]
        %v3477 = vld [vmem:[#allocation4 + $0x308] sm:$0xff]
        %v3478 = vld [vmem:[#allocation4 + $0x310] sm:$0xff]
        %v3479 = vld [vmem:[#allocation4 + $0x318] sm:$0xff]
        %v3480 = vld [vmem:[#allocation4 + $0x320] sm:$0xff]
        %v3481 = vld [vmem:[#allocation4 + $0x328] sm:$0xff]
        %v3482 = vld [vmem:[#allocation4 + $0x330] sm:$0xff]
        %v3483 = vld [vmem:[#allocation4 + $0x338] sm:$0xff]
        %v3484 = vld [vmem:[#allocation4 + $0x340] sm:$0xff]
        %v3485 = vld [vmem:[#allocation4 + $0x348] sm:$0xff]
        %v3486 = vld [vmem:[#allocation4 + $0x350] sm:$0xff]
        %v3487 = vld [vmem:[#allocation4 + $0x358] sm:$0xff]
        %v3488 = vld [vmem:[#allocation4 + $0x360] sm:$0xff]
        %v3489 = vld [vmem:[#allocation4 + $0x368] sm:$0xff]
        %v3490 = vld [vmem:[#allocation4 + $0x370] sm:$0xff]
        %v3491 = vld [vmem:[#allocation4 + $0x378] sm:$0xff]
        %v3492 = vld [vmem:[#allocation4 + $0x380] sm:$0xff]
        %v3493 = vld [vmem:[#allocation4 + $0x388] sm:$0xff]
        %v3494 = vld [vmem:[#allocation4 + $0x390] sm:$0xff]
        %v3495 = vld [vmem:[#allocation4 + $0x398] sm:$0xff]
        %v3496 = vld [vmem:[#allocation4 + $0x3a0] sm:$0xff]
        %v3497 = vld [vmem:[#allocation4 + $0x3a8] sm:$0xff]
        %v3498 = vld [vmem:[#allocation4 + $0x3b0] sm:$0xff]
        %v3499 = vld [vmem:[#allocation4 + $0x3b8] sm:$0xff]
        %v3500 = vld [vmem:[#allocation4 + $0x3c0] sm:$0xff]
        %v3501 = vld [vmem:[#allocation4 + $0x3c8] sm:$0xff]
        %v3502 = vld [vmem:[#allocation4 + $0x3d0] sm:$0xff]
        %v3503 = vld [vmem:[#allocation4 + $0x3d8] sm:$0xff]
        %v3504 = vld [vmem:[#allocation4 + $0x3e0] sm:$0xff]
        %v3505 = vld [vmem:[#allocation4 + $0x3e8] sm:$0xff]
        %v3506 = vld [vmem:[#allocation4 + $0x3f0] sm:$0xff]
        %v3507 = vld [vmem:[#allocation4 + $0x3f8] sm:$0xff]
        %v3508 = vld [vmem:[#allocation4 + $0x400] sm:$0xff]
        %v3509 = vld [vmem:[#allocation4 + $0x408] sm:$0xff]
        %v3510 = vld [vmem:[#allocation4 + $0x410] sm:$0xff]
        %v3511 = vld [vmem:[#allocation4 + $0x418] sm:$0xff]
        %v3512 = vld [vmem:[#allocation4 + $0x420] sm:$0xff]
        %v3513 = vld [vmem:[#allocation4 + $0x428] sm:$0xff]
        %v3514 = vld [vmem:[#allocation4 + $0x430] sm:$0xff]
        %v3515 = vld [vmem:[#allocation4 + $0x438] sm:$0xff]
        %v3516 = vld [vmem:[#allocation4 + $0x440] sm:$0xff]
        %v3517 = vld [vmem:[#allocation4 + $0x448] sm:$0xff]
        %v3518 = vld [vmem:[#allocation4 + $0x450] sm:$0xff]
        %v3519 = vld [vmem:[#allocation4 + $0x458] sm:$0xff]
        %v3520 = vld [vmem:[#allocation4 + $0x460] sm:$0xff]
        %v3521 = vld [vmem:[#allocation4 + $0x468] sm:$0xff]
        %v3522 = vld [vmem:[#allocation4 + $0x470] sm:$0xff]
        %v3523 = vld [vmem:[#allocation4 + $0x478] sm:$0xff]
        %v3524 = vld [vmem:[#allocation8] sm:$0xf]
        %v3525 = vld [vmem:[#allocation8 + $0x4] sm:$0xf]
        %v3526 = vld [vmem:[#allocation8 + $0x8] sm:$0xf]
        %v3527 = vld [vmem:[#allocation8 + $0xc] sm:$0xf]
        %v3528 = vld [vmem:[#allocation8 + $0x10] sm:$0xf]
        %v3529 = vld [vmem:[#allocation8 + $0x14] sm:$0xf]
        %v3530 = vld [vmem:[#allocation8 + $0x18] sm:$0xf]
        %v3531 = vld [vmem:[#allocation8 + $0x1c] sm:$0xf]
        %v3532 = vld [vmem:[#allocation8 + $0x20] sm:$0xf]
        %v3533 = vld [vmem:[#allocation8 + $0x24] sm:$0xf]
        %v3534 = vld [vmem:[#allocation8 + $0x28] sm:$0xf]
        %v3535 = vld [vmem:[#allocation8 + $0x2c] sm:$0xf]
        %v3536 = vld [vmem:[#allocation8 + $0x30] sm:$0xf]
        %v3537 = vld [vmem:[#allocation8 + $0x34] sm:$0xf]
        %v3538 = vld [vmem:[#allocation8 + $0x38] sm:$0xf]
        %v3539 = vld [vmem:[#allocation8 + $0x3c] sm:$0xf]
        %v3540 = vld [vmem:[#allocation8 + $0x40] sm:$0xf]
        %v3541 = vld [vmem:[#allocation8 + $0x44] sm:$0xf]
        %v3542 = vld [vmem:[#allocation8 + $0x48] sm:$0xf]
        %v3543 = vld [vmem:[#allocation8 + $0x4c] sm:$0xf]
        %v3544 = vld [vmem:[#allocation8 + $0x50] sm:$0xf]
        %v3545 = vld [vmem:[#allocation8 + $0x54] sm:$0xf]
        %v3546 = vld [vmem:[#allocation8 + $0x58] sm:$0xf]
        %v3547 = vld [vmem:[#allocation8 + $0x5c] sm:$0xf]
        %v3548 = vld [vmem:[#allocation8 + $0x60] sm:$0xf]
        %v3549 = vld [vmem:[#allocation8 + $0x64] sm:$0xf]
        %v3550 = vld [vmem:[#allocation8 + $0x68] sm:$0xf]
        %v3551 = vld [vmem:[#allocation8 + $0x6c] sm:$0xf]
        %v3552 = vld [vmem:[#allocation8 + $0x70] sm:$0xf]
        %v3553 = vld [vmem:[#allocation8 + $0x74] sm:$0xf]
        %v3554 = vld [vmem:[#allocation8 + $0x78] sm:$0xf]
        %v3555 = vld [vmem:[#allocation8 + $0x7c] sm:$0xf]
        %v3556 = vld [vmem:[#allocation8 + $0x80] sm:$0xf]
        %v3557 = vld [vmem:[#allocation8 + $0x84] sm:$0xf]
        %v3558 = vld [vmem:[#allocation8 + $0x88] sm:$0xf]
        %v3559 = vld [vmem:[#allocation8 + $0x8c] sm:$0xf]
        %v3560 = vld [vmem:[#allocation8 + $0x90] sm:$0xf]
        %v3561 = vld [vmem:[#allocation8 + $0x94] sm:$0xf]
        %v3562 = vld [vmem:[#allocation8 + $0x98] sm:$0xf]
        %v3563 = vld [vmem:[#allocation8 + $0x9c] sm:$0xf]
        %v3564 = vld [vmem:[#allocation8 + $0xa0] sm:$0xf]
        %v3565 = vld [vmem:[#allocation8 + $0xa4] sm:$0xf]
        %v3566 = vld [vmem:[#allocation8 + $0xa8] sm:$0xf]
        %v3567 = vld [vmem:[#allocation8 + $0xac] sm:$0xf]
        %v3568 = vld [vmem:[#allocation8 + $0xb0] sm:$0xf]
        %v3569 = vld [vmem:[#allocation8 + $0xb4] sm:$0xf]
        %v3570 = vld [vmem:[#allocation8 + $0xb8] sm:$0xf]
        %v3571 = vld [vmem:[#allocation8 + $0xbc] sm:$0xf]
        %v3572 = vld [vmem:[#allocation8 + $0xc0] sm:$0xf]
        %v3573 = vld [vmem:[#allocation8 + $0xc4] sm:$0xf]
        %v3574 = vld [vmem:[#allocation8 + $0xc8] sm:$0xf]
        %v3575 = vld [vmem:[#allocation8 + $0xcc] sm:$0xf]
        %v3576 = vld [vmem:[#allocation8 + $0xd0] sm:$0xf]
        %v3577 = vld [vmem:[#allocation8 + $0xd4] sm:$0xf]
        %v3578 = vld [vmem:[#allocation8 + $0xd8] sm:$0xf]
        %v3579 = vld [vmem:[#allocation8 + $0xdc] sm:$0xf]
        %v3580 = vld [vmem:[#allocation8 + $0xe0] sm:$0xf]
        %v3581 = vld [vmem:[#allocation8 + $0xe4] sm:$0xf]
        %v3582 = vld [vmem:[#allocation8 + $0xe8] sm:$0xf]
        %v3583 = vld [vmem:[#allocation8 + $0xec] sm:$0xf]
        %v3584 = vld [vmem:[#allocation8 + $0xf0] sm:$0xf]
        %v3585 = vld [vmem:[#allocation8 + $0xf4] sm:$0xf]
        %v3586 = vld [vmem:[#allocation8 + $0xf8] sm:$0xf]
        %v3587 = vld [vmem:[#allocation8 + $0xfc] sm:$0xf]
        %v3588 = vld [vmem:[#allocation8 + $0x100] sm:$0xf]
        %v3589 = vld [vmem:[#allocation8 + $0x104] sm:$0xf]
        %v3590 = vld [vmem:[#allocation8 + $0x108] sm:$0xf]
        %v3591 = vld [vmem:[#allocation8 + $0x10c] sm:$0xf]
        %v3592 = vld [vmem:[#allocation8 + $0x110] sm:$0xf]
        %v3593 = vld [vmem:[#allocation8 + $0x114] sm:$0xf]
        %v3594 = vld [vmem:[#allocation8 + $0x118] sm:$0xf]
        %v3595 = vld [vmem:[#allocation8 + $0x11c] sm:$0xf]
        %v3596 = vld [vmem:[#allocation8 + $0x120] sm:$0xf]
        %v3597 = vld [vmem:[#allocation8 + $0x124] sm:$0xf]
        %v3598 = vld [vmem:[#allocation8 + $0x128] sm:$0xf]
        %v3599 = vld [vmem:[#allocation8 + $0x12c] sm:$0xf]
        %v3600 = vld [vmem:[#allocation8 + $0x130] sm:$0xf]
        %v3601 = vld [vmem:[#allocation8 + $0x134] sm:$0xf]
        %v3602 = vld [vmem:[#allocation8 + $0x138] sm:$0xf]
        %v3603 = vld [vmem:[#allocation8 + $0x13c] sm:$0xf]
        %v3604 = vld [vmem:[#allocation8 + $0x140] sm:$0xf]
        %v3605 = vld [vmem:[#allocation8 + $0x144] sm:$0xf]
        %v3606 = vld [vmem:[#allocation8 + $0x148] sm:$0xf]
        %v3607 = vld [vmem:[#allocation8 + $0x14c] sm:$0xf]
        %v3608 = vld [vmem:[#allocation8 + $0x150] sm:$0xf]
        %v3609 = vld [vmem:[#allocation8 + $0x154] sm:$0xf]
        %v3610 = vld [vmem:[#allocation8 + $0x158] sm:$0xf]
        %v3611 = vld [vmem:[#allocation8 + $0x15c] sm:$0xf]
        %v3612 = vld [vmem:[#allocation8 + $0x160] sm:$0xf]
        %v3613 = vld [vmem:[#allocation8 + $0x164] sm:$0xf]
        %v3614 = vld [vmem:[#allocation8 + $0x168] sm:$0xf]
        %v3615 = vld [vmem:[#allocation8 + $0x16c] sm:$0xf]
        %v3616 = vld [vmem:[#allocation8 + $0x170] sm:$0xf]
        %v3617 = vld [vmem:[#allocation8 + $0x174] sm:$0xf]
        %v3618 = vld [vmem:[#allocation8 + $0x178] sm:$0xf]
        %v3619 = vld [vmem:[#allocation8 + $0x17c] sm:$0xf]
        %v3620 = vld [vmem:[#allocation8 + $0x180] sm:$0xf]
        %v3621 = vld [vmem:[#allocation8 + $0x184] sm:$0xf]
        %v3622 = vld [vmem:[#allocation8 + $0x188] sm:$0xf]
        %v3623 = vld [vmem:[#allocation8 + $0x18c] sm:$0xf]
        %v3624 = vld [vmem:[#allocation8 + $0x190] sm:$0xf]
        %v3625 = vld [vmem:[#allocation8 + $0x194] sm:$0xf]
        %v3626 = vld [vmem:[#allocation8 + $0x198] sm:$0xf]
        %v3627 = vld [vmem:[#allocation8 + $0x19c] sm:$0xf]
        %v3628 = vld [vmem:[#allocation8 + $0x1a0] sm:$0xf]
        %v3629 = vld [vmem:[#allocation8 + $0x1a4] sm:$0xf]
        %v3630 = vld [vmem:[#allocation8 + $0x1a8] sm:$0xf]
        %v3631 = vld [vmem:[#allocation8 + $0x1ac] sm:$0xf]
        %v3632 = vld [vmem:[#allocation8 + $0x1b0] sm:$0xf]
        %v3633 = vld [vmem:[#allocation8 + $0x1b4] sm:$0xf]
        %v3634 = vld [vmem:[#allocation8 + $0x1b8] sm:$0xf]
        %v3635 = vld [vmem:[#allocation8 + $0x1bc] sm:$0xf]
        %v3636 = vld [vmem:[#allocation8 + $0x1c0] sm:$0xf]
        %v3637 = vld [vmem:[#allocation8 + $0x1c4] sm:$0xf]
        %v3638 = vld [vmem:[#allocation8 + $0x1c8] sm:$0xf]
        %v3639 = vld [vmem:[#allocation8 + $0x1cc] sm:$0xf]
        %v3640 = vld [vmem:[#allocation8 + $0x1d0] sm:$0xf]
        %v3641 = vld [vmem:[#allocation8 + $0x1d4] sm:$0xf]
        %v3642 = vld [vmem:[#allocation8 + $0x1d8] sm:$0xf]
        %v3643 = vld [vmem:[#allocation8 + $0x1dc] sm:$0xf]
        %v3644 = vld [vmem:[#allocation8 + $0x1e0] sm:$0xf]
        %v3645 = vld [vmem:[#allocation8 + $0x1e4] sm:$0xf]
        %v3646 = vld [vmem:[#allocation8 + $0x1e8] sm:$0xf]
        %v3647 = vld [vmem:[#allocation8 + $0x1ec] sm:$0xf]
        %v3648 = vld [vmem:[#allocation8 + $0x1f0] sm:$0xf]
        %v3649 = vld [vmem:[#allocation8 + $0x1f4] sm:$0xf]
        %v3650 = vld [vmem:[#allocation8 + $0x1f8] sm:$0xf]
        %v3651 = vld [vmem:[#allocation8 + $0x1fc] sm:$0xf]
        %v3652 = vld [vmem:[#allocation8 + $0x200] sm:$0xf]
        %v3653 = vld [vmem:[#allocation8 + $0x204] sm:$0xf]
        %v3654 = vld [vmem:[#allocation8 + $0x208] sm:$0xf]
        %v3655 = vld [vmem:[#allocation8 + $0x20c] sm:$0xf]
        %v3656 = vld [vmem:[#allocation8 + $0x210] sm:$0xf]
        %v3657 = vld [vmem:[#allocation8 + $0x214] sm:$0xf]
        %v3658 = vld [vmem:[#allocation8 + $0x218] sm:$0xf]
        %v3659 = vld [vmem:[#allocation8 + $0x21c] sm:$0xf]
        %v3660 = vld [vmem:[#allocation8 + $0x220] sm:$0xf]
        %v3661 = vld [vmem:[#allocation8 + $0x224] sm:$0xf]
        %v3662 = vld [vmem:[#allocation8 + $0x228] sm:$0xf]
        %v3663 = vld [vmem:[#allocation8 + $0x22c] sm:$0xf]
        %v3664 = vld [vmem:[#allocation8 + $0x230] sm:$0xf]
        %v3665 = vld [vmem:[#allocation8 + $0x234] sm:$0xf]
        %v3666 = vld [vmem:[#allocation8 + $0x238] sm:$0xf]
        %v3667 = vld [vmem:[#allocation8 + $0x23c] sm:$0xf]
        %v3668 = vld [vmem:[%s2] sm:$0x1]
        %v3670 = vlaneseq
        %v3671 = vshrl.u32 %v3670, 7
        %v3672 = vsub.s32 0, %v3671
        %v3673 = vrot.slane %v3668, %v3672
        %v3819 = vunpack.c.l.b16 %v3524
        %v3820 = vunpack.c.l.b16 %v3525
        %v3821 = vunpack.c.l.b16 %v3526
        %v3822 = vunpack.c.l.b16 %v3527
        %v3823 = vunpack.c.l.b16 %v3528
        %v3824 = vunpack.c.l.b16 %v3529
        %v3825 = vunpack.c.l.b16 %v3530
        %v3826 = vunpack.c.l.b16 %v3531
        %v3827 = vunpack.c.l.b16 %v3532
        %v3828 = vunpack.c.l.b16 %v3533
        %v3829 = vunpack.c.l.b16 %v3534
        %v3830 = vunpack.c.l.b16 %v3535
        %v3831 = vunpack.c.l.b16 %v3536
        %v3832 = vunpack.c.l.b16 %v3537
        %v3833 = vunpack.c.l.b16 %v3538
        %v3834 = vunpack.c.l.b16 %v3539
        %v3835 = vunpack.c.l.b16 %v3540
        %v3836 = vunpack.c.l.b16 %v3541
        %v3837 = vunpack.c.l.b16 %v3542
        %v3838 = vunpack.c.l.b16 %v3543
        %v3839 = vunpack.c.l.b16 %v3544
        %v3840 = vunpack.c.l.b16 %v3545
        %v3841 = vunpack.c.l.b16 %v3546
        %v3842 = vunpack.c.l.b16 %v3547
        %v3843 = vunpack.c.l.b16 %v3548
        %v3844 = vunpack.c.l.b16 %v3549
        %v3845 = vunpack.c.l.b16 %v3550
        %v3846 = vunpack.c.l.b16 %v3551
        %v3847 = vunpack.c.l.b16 %v3552
        %v3848 = vunpack.c.l.b16 %v3553
        %v3849 = vunpack.c.l.b16 %v3554
        %v3850 = vunpack.c.l.b16 %v3555
        %v3851 = vunpack.c.l.b16 %v3556
        %v3852 = vunpack.c.l.b16 %v3557
        %v3853 = vunpack.c.l.b16 %v3558
        %v3854 = vunpack.c.l.b16 %v3559
        %v3855 = vunpack.c.l.b16 %v3560
        %v3856 = vunpack.c.l.b16 %v3561
        %v3857 = vunpack.c.l.b16 %v3562
        %v3858 = vunpack.c.l.b16 %v3563
        %v3859 = vunpack.c.l.b16 %v3564
        %v3860 = vunpack.c.l.b16 %v3565
        %v3861 = vunpack.c.l.b16 %v3566
        %v3862 = vunpack.c.l.b16 %v3567
        %v3863 = vunpack.c.l.b16 %v3568
        %v3864 = vunpack.c.l.b16 %v3569
        %v3865 = vunpack.c.l.b16 %v3570
        %v3866 = vunpack.c.l.b16 %v3571
        %v3867 = vunpack.c.l.b16 %v3572
        %v3868 = vunpack.c.l.b16 %v3573
        %v3869 = vunpack.c.l.b16 %v3574
        %v3870 = vunpack.c.l.b16 %v3575
        %v3871 = vunpack.c.l.b16 %v3576
        %v3872 = vunpack.c.l.b16 %v3577
        %v3873 = vunpack.c.l.b16 %v3578
        %v3874 = vunpack.c.l.b16 %v3579
        %v3875 = vunpack.c.l.b16 %v3580
        %v3876 = vunpack.c.l.b16 %v3581
        %v3877 = vunpack.c.l.b16 %v3582
        %v3878 = vunpack.c.l.b16 %v3583
        %v3879 = vunpack.c.l.b16 %v3584
        %v3880 = vunpack.c.l.b16 %v3585
        %v3881 = vunpack.c.l.b16 %v3586
        %v3882 = vunpack.c.l.b16 %v3587
        %v3883 = vunpack.c.l.b16 %v3588
        %v3884 = vunpack.c.l.b16 %v3589
        %v3885 = vunpack.c.l.b16 %v3590
        %v3886 = vunpack.c.l.b16 %v3591
        %v3887 = vunpack.c.l.b16 %v3592
        %v3888 = vunpack.c.l.b16 %v3593
        %v3889 = vunpack.c.l.b16 %v3594
        %v3890 = vunpack.c.l.b16 %v3595
        %v3891 = vunpack.c.l.b16 %v3596
        %v3892 = vunpack.c.l.b16 %v3597
        %v3893 = vunpack.c.l.b16 %v3598
        %v3894 = vunpack.c.l.b16 %v3599
        %v3895 = vunpack.c.l.b16 %v3600
        %v3896 = vunpack.c.l.b16 %v3601
        %v3897 = vunpack.c.l.b16 %v3602
        %v3898 = vunpack.c.l.b16 %v3603
        %v3899 = vunpack.c.l.b16 %v3604
        %v3900 = vunpack.c.l.b16 %v3605
        %v3901 = vunpack.c.l.b16 %v3606
        %v3902 = vunpack.c.l.b16 %v3607
        %v3903 = vunpack.c.l.b16 %v3608
        %v3904 = vunpack.c.l.b16 %v3609
        %v3905 = vunpack.c.l.b16 %v3610
        %v3906 = vunpack.c.l.b16 %v3611
        %v3907 = vunpack.c.l.b16 %v3612
        %v3908 = vunpack.c.l.b16 %v3613
        %v3909 = vunpack.c.l.b16 %v3614
        %v3910 = vunpack.c.l.b16 %v3615
        %v3911 = vunpack.c.l.b16 %v3616
        %v3912 = vunpack.c.l.b16 %v3617
        %v3913 = vunpack.c.l.b16 %v3618
        %v3914 = vunpack.c.l.b16 %v3619
        %v3915 = vunpack.c.l.b16 %v3620
        %v3916 = vunpack.c.l.b16 %v3621
        %v3917 = vunpack.c.l.b16 %v3622
        %v3918 = vunpack.c.l.b16 %v3623
        %v3919 = vunpack.c.l.b16 %v3624
        %v3920 = vunpack.c.l.b16 %v3625
        %v3921 = vunpack.c.l.b16 %v3626
        %v3922 = vunpack.c.l.b16 %v3627
        %v3923 = vunpack.c.l.b16 %v3628
        %v3924 = vunpack.c.l.b16 %v3629
        %v3925 = vunpack.c.l.b16 %v3630
        %v3926 = vunpack.c.l.b16 %v3631
        %v3927 = vunpack.c.l.b16 %v3632
        %v3928 = vunpack.c.l.b16 %v3633
        %v3929 = vunpack.c.l.b16 %v3634
        %v3930 = vunpack.c.l.b16 %v3635
        %v3931 = vunpack.c.l.b16 %v3636
        %v3932 = vunpack.c.l.b16 %v3637
        %v3933 = vunpack.c.l.b16 %v3638
        %v3934 = vunpack.c.l.b16 %v3639
        %v3935 = vunpack.c.l.b16 %v3640
        %v3936 = vunpack.c.l.b16 %v3641
        %v3937 = vunpack.c.l.b16 %v3642
        %v3938 = vunpack.c.l.b16 %v3643
        %v3939 = vunpack.c.l.b16 %v3644
        %v3940 = vunpack.c.l.b16 %v3645
        %v3941 = vunpack.c.l.b16 %v3646
        %v3942 = vunpack.c.l.b16 %v3647
        %v3943 = vunpack.c.l.b16 %v3648
        %v3944 = vunpack.c.l.b16 %v3649
        %v3945 = vunpack.c.l.b16 %v3650
        %v3946 = vunpack.c.l.b16 %v3651
        %v3947 = vunpack.c.l.b16 %v3652
        %v3948 = vunpack.c.l.b16 %v3653
        %v3949 = vunpack.c.l.b16 %v3654
        %v3950 = vunpack.c.l.b16 %v3655
        %v3951 = vunpack.c.l.b16 %v3656
        %v3952 = vunpack.c.l.b16 %v3657
        %v3953 = vunpack.c.l.b16 %v3658
        %v3954 = vunpack.c.l.b16 %v3659
        %v3955 = vunpack.c.l.b16 %v3660
        %v3956 = vunpack.c.l.b16 %v3661
        %v3957 = vunpack.c.l.b16 %v3662
        %v3958 = vunpack.c.l.b16 %v3663
        %v3959 = vunpack.c.l.b16 %v3664
        %v3960 = vunpack.c.l.b16 %v3665
        %v3961 = vunpack.c.l.b16 %v3666
        %v3962 = vunpack.c.l.b16 %v3667
        %v3963 = vpack.c.b16 %v3820, %v3819
        %v3964 = vpack.c.b16 %v3822, %v3821
        %v3965 = vpack.c.b16 %v3824, %v3823
        %v3966 = vpack.c.b16 %v3826, %v3825
        %v3967 = vpack.c.b16 %v3828, %v3827
        %v3968 = vpack.c.b16 %v3830, %v3829
        %v3969 = vpack.c.b16 %v3832, %v3831
        %v3970 = vpack.c.b16 %v3834, %v3833
        %v3971 = vpack.c.b16 %v3836, %v3835
        %v3972 = vpack.c.b16 %v3838, %v3837
        %v3973 = vpack.c.b16 %v3840, %v3839
        %v3974 = vpack.c.b16 %v3842, %v3841
        %v3975 = vpack.c.b16 %v3844, %v3843
        %v3976 = vpack.c.b16 %v3846, %v3845
        %v3977 = vpack.c.b16 %v3848, %v3847
        %v3978 = vpack.c.b16 %v3850, %v3849
        %v3979 = vpack.c.b16 %v3852, %v3851
        %v3980 = vpack.c.b16 %v3854, %v3853
        %v3981 = vpack.c.b16 %v3856, %v3855
        %v3982 = vpack.c.b16 %v3858, %v3857
        %v3983 = vpack.c.b16 %v3860, %v3859
        %v3984 = vpack.c.b16 %v3862, %v3861
        %v3985 = vpack.c.b16 %v3864, %v3863
        %v3986 = vpack.c.b16 %v3866, %v3865
        %v3987 = vpack.c.b16 %v3868, %v3867
        %v3988 = vpack.c.b16 %v3870, %v3869
        %v3989 = vpack.c.b16 %v3872, %v3871
        %v3990 = vpack.c.b16 %v3874, %v3873
        %v3991 = vpack.c.b16 %v3876, %v3875
        %v3992 = vpack.c.b16 %v3878, %v3877
        %v3993 = vpack.c.b16 %v3880, %v3879
        %v3994 = vpack.c.b16 %v3882, %v3881
        %v3995 = vpack.c.b16 %v3884, %v3883
        %v3996 = vpack.c.b16 %v3886, %v3885
        %v3997 = vpack.c.b16 %v3888, %v3887
        %v3998 = vpack.c.b16 %v3890, %v3889
        %v3999 = vpack.c.b16 %v3892, %v3891
        %v4000 = vpack.c.b16 %v3894, %v3893
        %v4001 = vpack.c.b16 %v3896, %v3895
        %v4002 = vpack.c.b16 %v3898, %v3897
        %v4003 = vpack.c.b16 %v3900, %v3899
        %v4004 = vpack.c.b16 %v3902, %v3901
        %v4005 = vpack.c.b16 %v3904, %v3903
        %v4006 = vpack.c.b16 %v3906, %v3905
        %v4007 = vpack.c.b16 %v3908, %v3907
        %v4008 = vpack.c.b16 %v3910, %v3909
        %v4009 = vpack.c.b16 %v3912, %v3911
        %v4010 = vpack.c.b16 %v3914, %v3913
        %v4011 = vpack.c.b16 %v3916, %v3915
        %v4012 = vpack.c.b16 %v3918, %v3917
        %v4013 = vpack.c.b16 %v3920, %v3919
        %v4014 = vpack.c.b16 %v3922, %v3921
        %v4015 = vpack.c.b16 %v3924, %v3923
        %v4016 = vpack.c.b16 %v3926, %v3925
        %v4017 = vpack.c.b16 %v3928, %v3927
        %v4018 = vpack.c.b16 %v3930, %v3929
        %v4019 = vpack.c.b16 %v3932, %v3931
        %v4020 = vpack.c.b16 %v3934, %v3933
        %v4021 = vpack.c.b16 %v3936, %v3935
        %v4022 = vpack.c.b16 %v3938, %v3937
        %v4023 = vpack.c.b16 %v3940, %v3939
        %v4024 = vpack.c.b16 %v3942, %v3941
        %v4025 = vpack.c.b16 %v3944, %v3943
        %v4026 = vpack.c.b16 %v3946, %v3945
        %v4027 = vpack.c.b16 %v3948, %v3947
        %v4028 = vpack.c.b16 %v3950, %v3949
        %v4029 = vpack.c.b16 %v3952, %v3951
        %v4030 = vpack.c.b16 %v3954, %v3953
        %v4031 = vpack.c.b16 %v3956, %v3955
        %v4032 = vpack.c.b16 %v3958, %v3957
        %v4033 = vpack.c.b16 %v3960, %v3959
        %v4034 = vpack.c.b16 %v3962, %v3961
        %4107 = vmatprep.subr.bf16.mxu0 0
        %4108 = vmatpush1.bf16.msra.mxu0 %v3963
        %4109 = vmatprep.subr.bf16.mxu0 0
        %4110 = vmatpush1.bf16.msra.mxu0 %v3964
        %4111 = vmatprep.subr.bf16.mxu0 0
        %4112 = vmatpush1.bf16.msra.mxu0 %v3965
        %4113 = vmatprep.subr.bf16.mxu0 0
        %4114 = vmatpush1.bf16.msra.mxu0 %v3966
        %4115 = vmatprep.subr.bf16.mxu0 0
        %4116 = vmatpush1.bf16.msra.mxu0 %v3967
        %4117 = vmatprep.subr.bf16.mxu0 0
        %4118 = vmatpush1.bf16.msra.mxu0 %v3968
        %4119 = vmatprep.subr.bf16.mxu0 0
        %4120 = vmatpush1.bf16.msra.mxu0 %v3969
        %4121 = vmatprep.subr.bf16.mxu0 0
        %4122 = vmatpush1.bf16.msra.mxu0 %v3970
        %4123 = vmatprep.subr.bf16.mxu0 0
        %4124 = vmatpush1.bf16.msra.mxu0 %v3971
        %4125 = vmatprep.subr.bf16.mxu0 0
        %4126 = vmatpush1.bf16.msra.mxu0 %v3972
        %4127 = vmatprep.subr.bf16.mxu0 0
        %4128 = vmatpush1.bf16.msra.mxu0 %v3973
        %4129 = vmatprep.subr.bf16.mxu0 0
        %4130 = vmatpush1.bf16.msra.mxu0 %v3974
        %4131 = vmatprep.subr.bf16.mxu0 0
        %4132 = vmatpush1.bf16.msra.mxu0 %v3975
        %4133 = vmatprep.subr.bf16.mxu0 0
        %4134 = vmatpush1.bf16.msra.mxu0 %v3976
        %4135 = vmatprep.subr.bf16.mxu0 0
        %4136 = vmatpush1.bf16.msra.mxu0 %v3977
        %4137 = vmatprep.subr.bf16.mxu0 0
        %4138 = vmatpush1.bf16.msra.mxu0 %v3978
        %4139 = vmatprep.mubr.bf16.mxu0 %v3381
        %4140 = vmatmul.mubr.bf16.gmra.mrb[0].mxu0 %v3380
        %v4141 = vpop.f32.mrb[0].mxu0
        %v4142 = vadd.f32 %v3673, %v4141
        %v4143 = vpop.f32.mrb[0].mxu0
        %v4144 = vpop.f32.mrb[0].mxu0
        %v4145 = vadd.f32 %v3673, %v4144
        %v4146 = vpop.f32.mrb[0].mxu0
        %4147 = vmatprep.mubr.bf16.mxu0 %v3390
        %4148 = vmatmul.mubr.bf16.gmra.mrb[0].mxu0 %v3389
        %v4149 = vpop.f32.mrb[0].mxu0
        %v4150 = vadd.f32 %v3673, %v4149
        %v4151 = vpop.f32.mrb[0].mxu0
        %v4152 = vpop.f32.mrb[0].mxu0
        %v4153 = vadd.f32 %v3673, %v4152
        %v4154 = vpop.f32.mrb[0].mxu0
        %4155 = vmatprep.mubr.bf16.mxu0 %v3399
        %4156 = vmatmul.mubr.bf16.gmra.mrb[0].mxu0 %v3398
        %v4157 = vpop.f32.mrb[0].mxu0
        %v4158 = vadd.f32 %v3673, %v4157
        %v4159 = vpop.f32.mrb[0].mxu0
        %v4160 = vpop.f32.mrb[0].mxu0
        %v4161 = vadd.f32 %v3673, %v4160
        %v4162 = vpop.f32.mrb[0].mxu0
        %4163 = vmatprep.mubr.bf16.mxu0 %v3408
        %4164 = vmatmul.mubr.bf16.gmra.mrb[0].mxu0 %v3407
        %v4165 = vpop.f32.mrb[0].mxu0
        %v4166 = vadd.f32 %v3673, %v4165
        %v4167 = vpop.f32.mrb[0].mxu0
        %v4168 = vpop.f32.mrb[0].mxu0
        %v4169 = vadd.f32 %v3673, %v4168
        %v4170 = vpop.f32.mrb[0].mxu0
        %4171 = vmatprep.mubr.bf16.mxu0 %v3417
        %4172 = vmatmul.mubr.bf16.gmra.mrb[0].mxu0 %v3416
        %v4173 = vpop.f32.mrb[0].mxu0
        %v4174 = vadd.f32 %v3673, %v4173
        %v4175 = vpop.f32.mrb[0].mxu0
        %v4176 = vpop.f32.mrb[0].mxu0
        %v4177 = vadd.f32 %v3673, %v4176
        %v4178 = vpop.f32.mrb[0].mxu0
        %4179 = vmatprep.mubr.bf16.mxu0 %v3426
        %4180 = vmatmul.mubr.bf16.gmra.mrb[0].mxu0 %v3425
        %v4181 = vpop.f32.mrb[0].mxu0
        %v4182 = vadd.f32 %v3673, %v4181
        %v4183 = vpop.f32.mrb[0].mxu0
        %v4184 = vpop.f32.mrb[0].mxu0
        %v4185 = vadd.f32 %v3673, %v4184
        %v4186 = vpop.f32.mrb[0].mxu0
        %4187 = vmatprep.mubr.bf16.mxu0 %v3435
        %4188 = vmatmul.mubr.bf16.gmra.mrb[0].mxu0 %v3434
        %v4189 = vpop.f32.mrb[0].mxu0
        %v4190 = vadd.f32 %v3673, %v4189
        %v4191 = vpop.f32.mrb[0].mxu0
        %v4192 = vpop.f32.mrb[0].mxu0
        %v4193 = vadd.f32 %v3673, %v4192
        %v4194 = vpop.f32.mrb[0].mxu0
        %4195 = vmatprep.mubr.bf16.mxu0 %v3444
        %4196 = vmatmul.mubr.bf16.gmra.mrb[0].mxu0 %v3443
        %v4197 = vpop.f32.mrb[0].mxu0
        %v4198 = vadd.f32 %v3673, %v4197
        %v4199 = vpop.f32.mrb[0].mxu0
        %v4200 = vpop.f32.mrb[0].mxu0
        %v4201 = vadd.f32 %v3673, %v4200
        %v4202 = vpop.f32.mrb[0].mxu0
        %4203 = vmatprep.mubr.bf16.mxu0 %v3453
        %4204 = vmatmul.mubr.bf16.gmra.mrb[0].mxu0 %v3452
        %v4205 = vpop.f32.mrb[0].mxu0
        %v4206 = vadd.f32 %v3673, %v4205
        %v4207 = vpop.f32.mrb[0].mxu0
        %v4208 = vpop.f32.mrb[0].mxu0
        %v4209 = vadd.f32 %v3673, %v4208
        %v4210 = vpop.f32.mrb[0].mxu0
        %4211 = vmatprep.mubr.bf16.mxu0 %v3462
        %4212 = vmatmul.mubr.bf16.gmra.mrb[0].mxu0 %v3461
        %v4213 = vpop.f32.mrb[0].mxu0
        %v4214 = vadd.f32 %v3673, %v4213
        %v4215 = vpop.f32.mrb[0].mxu0
        %v4216 = vpop.f32.mrb[0].mxu0
        %v4217 = vadd.f32 %v3673, %v4216
        %v4218 = vpop.f32.mrb[0].mxu0
        %4219 = vmatprep.mubr.bf16.mxu0 %v3471
        %4220 = vmatmul.mubr.bf16.gmra.mrb[0].mxu0 %v3470
        %v4221 = vpop.f32.mrb[0].mxu0
        %v4222 = vadd.f32 %v3673, %v4221
        %v4223 = vpop.f32.mrb[0].mxu0
        %v4224 = vpop.f32.mrb[0].mxu0
        %v4225 = vadd.f32 %v3673, %v4224
        %v4226 = vpop.f32.mrb[0].mxu0
        %4227 = vmatprep.mubr.bf16.mxu0 %v3480
        %4228 = vmatmul.mubr.bf16.gmra.mrb[0].mxu0 %v3479
        %v4229 = vpop.f32.mrb[0].mxu0
        %v4230 = vadd.f32 %v3673, %v4229
        %v4231 = vpop.f32.mrb[0].mxu0
        %v4232 = vpop.f32.mrb[0].mxu0
        %v4233 = vadd.f32 %v3673, %v4232
        %v4234 = vpop.f32.mrb[0].mxu0
        %4235 = vmatprep.mubr.bf16.mxu0 %v3489
        %4236 = vmatmul.mubr.bf16.gmra.mrb[0].mxu0 %v3488
        %v4237 = vpop.f32.mrb[0].mxu0
        %v4238 = vadd.f32 %v3673, %v4237
        %v4239 = vpop.f32.mrb[0].mxu0
        %v4240 = vpop.f32.mrb[0].mxu0
        %v4241 = vadd.f32 %v3673, %v4240
        %v4242 = vpop.f32.mrb[0].mxu0
        %4243 = vmatprep.mubr.bf16.mxu0 %v3498
        %4244 = vmatmul.mubr.bf16.gmra.mrb[0].mxu0 %v3497
        %v4245 = vpop.f32.mrb[0].mxu0
        %v4246 = vadd.f32 %v3673, %v4245
        %v4247 = vpop.f32.mrb[0].mxu0
        %v4248 = vpop.f32.mrb[0].mxu0
        %v4249 = vadd.f32 %v3673, %v4248
        %v4250 = vpop.f32.mrb[0].mxu0
        %4251 = vmatprep.mubr.bf16.mxu0 %v3507
        %4252 = vmatmul.mubr.bf16.gmra.mrb[0].mxu0 %v3506
        %v4253 = vpop.f32.mrb[0].mxu0
        %v4254 = vadd.f32 %v3673, %v4253
        %v4255 = vpop.f32.mrb[0].mxu0
        %v4256 = vpop.f32.mrb[0].mxu0
        %v4257 = vadd.f32 %v3673, %v4256
        %v4258 = vpop.f32.mrb[0].mxu0
        %4259 = vmatprep.mubr.bf16.mxu0 %v3516
        %4260 = vmatmul.mubr.bf16.gmra.mrb[0].mxu0 %v3515
        %v4261 = vpop.f32.mrb[0].mxu0
        %v4262 = vadd.f32 %v3673, %v4261
        %v4263 = vpop.f32.mrb[0].mxu0
        %v4264 = vpop.f32.mrb[0].mxu0
        %v4265 = vadd.f32 %v3673, %v4264
        %v4266 = vpop.f32.mrb[0].mxu0
        %4267 = vdwg.mxu0
        %4268 = vmatprep.subr.bf16.mxu0 0
        %4269 = vmatpush1.bf16.msra.mxu0 %v3979
        %4270 = vmatprep.subr.bf16.mxu0 0
        %4271 = vmatpush1.bf16.msra.mxu0 %v3980
        %4272 = vmatprep.subr.bf16.mxu0 0
        %4273 = vmatpush1.bf16.msra.mxu0 %v3981
        %4274 = vmatprep.subr.bf16.mxu0 0
        %4275 = vmatpush1.bf16.msra.mxu0 %v3982
        %4276 = vmatprep.subr.bf16.mxu0 0
        %4277 = vmatpush1.bf16.msra.mxu0 %v3983
        %4278 = vmatprep.subr.bf16.mxu0 0
        %4279 = vmatpush1.bf16.msra.mxu0 %v3984
        %4280 = vmatprep.subr.bf16.mxu0 0
        %4281 = vmatpush1.bf16.msra.mxu0 %v3985
        %4282 = vmatprep.subr.bf16.mxu0 0
        %4283 = vmatpush1.bf16.msra.mxu0 %v3986
        %4284 = vmatprep.subr.bf16.mxu0 0
        %4285 = vmatpush1.bf16.msra.mxu0 %v3987
        %4286 = vmatprep.subr.bf16.mxu0 0
        %4287 = vmatpush1.bf16.msra.mxu0 %v3988
        %4288 = vmatprep.subr.bf16.mxu0 0
        %4289 = vmatpush1.bf16.msra.mxu0 %v3989
        %4290 = vmatprep.subr.bf16.mxu0 0
        %4291 = vmatpush1.bf16.msra.mxu0 %v3990
        %4292 = vmatprep.subr.bf16.mxu0 0
        %4293 = vmatpush1.bf16.msra.mxu0 %v3991
        %4294 = vmatprep.subr.bf16.mxu0 0
        %4295 = vmatpush1.bf16.msra.mxu0 %v3992
        %4296 = vmatprep.subr.bf16.mxu0 0
        %4297 = vmatpush1.bf16.msra.mxu0 %v3993
        %4298 = vmatprep.subr.bf16.mxu0 0
        %4299 = vmatpush1.bf16.msra.mxu0 %v3994
        %4300 = vmatprep.mubr.bf16.mxu0 %v3383
        %4301 = vmatmul.mubr.bf16.gmra.mrb[0].mxu0 %v3382
        %v4302 = vpop.f32.mrb[0].mxu0
        %v4303 = vadd.f32 %v4142, %v4302
        %v4304 = vpop.f32.mrb[0].mxu0
        %v4305 = vpop.f32.mrb[0].mxu0
        %v4306 = vadd.f32 %v4145, %v4305
        %v4307 = vpop.f32.mrb[0].mxu0
        %4308 = vmatprep.mubr.bf16.mxu0 %v3392
        %4309 = vmatmul.mubr.bf16.gmra.mrb[0].mxu0 %v3391
        %v4310 = vpop.f32.mrb[0].mxu0
        %v4311 = vadd.f32 %v4150, %v4310
        %v4312 = vpop.f32.mrb[0].mxu0
        %v4313 = vpop.f32.mrb[0].mxu0
        %v4314 = vadd.f32 %v4153, %v4313
        %v4315 = vpop.f32.mrb[0].mxu0
        %4316 = vmatprep.mubr.bf16.mxu0 %v3401
        %4317 = vmatmul.mubr.bf16.gmra.mrb[0].mxu0 %v3400
        %v4318 = vpop.f32.mrb[0].mxu0
        %v4319 = vadd.f32 %v4158, %v4318
        %v4320 = vpop.f32.mrb[0].mxu0
        %v4321 = vpop.f32.mrb[0].mxu0
        %v4322 = vadd.f32 %v4161, %v4321
        %v4323 = vpop.f32.mrb[0].mxu0
        %4324 = vmatprep.mubr.bf16.mxu0 %v3410
        %4325 = vmatmul.mubr.bf16.gmra.mrb[0].mxu0 %v3409
        %v4326 = vpop.f32.mrb[0].mxu0
        %v4327 = vadd.f32 %v4166, %v4326
        %v4328 = vpop.f32.mrb[0].mxu0
        %v4329 = vpop.f32.mrb[0].mxu0
        %v4330 = vadd.f32 %v4169, %v4329
        %v4331 = vpop.f32.mrb[0].mxu0
        %4332 = vmatprep.mubr.bf16.mxu0 %v3419
        %4333 = vmatmul.mubr.bf16.gmra.mrb[0].mxu0 %v3418
        %v4334 = vpop.f32.mrb[0].mxu0
        %v4335 = vadd.f32 %v4174, %v4334
        %v4336 = vpop.f32.mrb[0].mxu0
        %v4337 = vpop.f32.mrb[0].mxu0
        %v4338 = vadd.f32 %v4177, %v4337
        %v4339 = vpop.f32.mrb[0].mxu0
        %4340 = vmatprep.mubr.bf16.mxu0 %v3428
        %4341 = vmatmul.mubr.bf16.gmra.mrb[0].mxu0 %v3427
        %v4342 = vpop.f32.mrb[0].mxu0
        %v4343 = vadd.f32 %v4182, %v4342
        %v4344 = vpop.f32.mrb[0].mxu0
        %v4345 = vpop.f32.mrb[0].mxu0
        %v4346 = vadd.f32 %v4185, %v4345
        %v4347 = vpop.f32.mrb[0].mxu0
        %4348 = vmatprep.mubr.bf16.mxu0 %v3437
        %4349 = vmatmul.mubr.bf16.gmra.mrb[0].mxu0 %v3436
        %v4350 = vpop.f32.mrb[0].mxu0
        %v4351 = vadd.f32 %v4190, %v4350
        %v4352 = vpop.f32.mrb[0].mxu0
        %v4353 = vpop.f32.mrb[0].mxu0
        %v4354 = vadd.f32 %v4193, %v4353
        %v4355 = vpop.f32.mrb[0].mxu0
        %4356 = vmatprep.mubr.bf16.mxu0 %v3446
        %4357 = vmatmul.mubr.bf16.gmra.mrb[0].mxu0 %v3445
        %v4358 = vpop.f32.mrb[0].mxu0
        %v4359 = vadd.f32 %v4198, %v4358
        %v4360 = vpop.f32.mrb[0].mxu0
        %v4361 = vpop.f32.mrb[0].mxu0
        %v4362 = vadd.f32 %v4201, %v4361
        %v4363 = vpop.f32.mrb[0].mxu0
        %4364 = vmatprep.mubr.bf16.mxu0 %v3455
        %4365 = vmatmul.mubr.bf16.gmra.mrb[0].mxu0 %v3454
        %v4366 = vpop.f32.mrb[0].mxu0
        %v4367 = vadd.f32 %v4206, %v4366
        %v4368 = vpop.f32.mrb[0].mxu0
        %v4369 = vpop.f32.mrb[0].mxu0
        %v4370 = vadd.f32 %v4209, %v4369
        %v4371 = vpop.f32.mrb[0].mxu0
        %4372 = vmatprep.mubr.bf16.mxu0 %v3464
        %4373 = vmatmul.mubr.bf16.gmra.mrb[0].mxu0 %v3463
        %v4374 = vpop.f32.mrb[0].mxu0
        %v4375 = vadd.f32 %v4214, %v4374
        %v4376 = vpop.f32.mrb[0].mxu0
        %v4377 = vpop.f32.mrb[0].mxu0
        %v4378 = vadd.f32 %v4217, %v4377
        %v4379 = vpop.f32.mrb[0].mxu0
        %4380 = vmatprep.mubr.bf16.mxu0 %v3473
        %4381 = vmatmul.mubr.bf16.gmra.mrb[0].mxu0 %v3472
        %v4382 = vpop.f32.mrb[0].mxu0
        %v4383 = vadd.f32 %v4222, %v4382
        %v4384 = vpop.f32.mrb[0].mxu0
        %v4385 = vpop.f32.mrb[0].mxu0
        %v4386 = vadd.f32 %v4225, %v4385
        %v4387 = vpop.f32.mrb[0].mxu0
        %4388 = vmatprep.mubr.bf16.mxu0 %v3482
        %4389 = vmatmul.mubr.bf16.gmra.mrb[0].mxu0 %v3481
        %v4390 = vpop.f32.mrb[0].mxu0
        %v4391 = vadd.f32 %v4230, %v4390
        %v4392 = vpop.f32.mrb[0].mxu0
        %v4393 = vpop.f32.mrb[0].mxu0
        %v4394 = vadd.f32 %v4233, %v4393
        %v4395 = vpop.f32.mrb[0].mxu0
        %4396 = vmatprep.mubr.bf16.mxu0 %v3491
        %4397 = vmatmul.mubr.bf16.gmra.mrb[0].mxu0 %v3490
        %v4398 = vpop.f32.mrb[0].mxu0
        %v4399 = vadd.f32 %v4238, %v4398
        %v4400 = vpop.f32.mrb[0].mxu0
        %v4401 = vpop.f32.mrb[0].mxu0
        %v4402 = vadd.f32 %v4241, %v4401
        %v4403 = vpop.f32.mrb[0].mxu0
        %4404 = vmatprep.mubr.bf16.mxu0 %v3500
        %4405 = vmatmul.mubr.bf16.gmra.mrb[0].mxu0 %v3499
        %v4406 = vpop.f32.mrb[0].mxu0
        %v4407 = vadd.f32 %v4246, %v4406
        %v4408 = vpop.f32.mrb[0].mxu0
        %v4409 = vpop.f32.mrb[0].mxu0
        %v4410 = vadd.f32 %v4249, %v4409
        %v4411 = vpop.f32.mrb[0].mxu0
        %4412 = vmatprep.mubr.bf16.mxu0 %v3509
        %4413 = vmatmul.mubr.bf16.gmra.mrb[0].mxu0 %v3508
        %v4414 = vpop.f32.mrb[0].mxu0
        %v4415 = vadd.f32 %v4254, %v4414
        %v4416 = vpop.f32.mrb[0].mxu0
        %v4417 = vpop.f32.mrb[0].mxu0
        %v4418 = vadd.f32 %v4257, %v4417
        %v4419 = vpop.f32.mrb[0].mxu0
        %4420 = vmatprep.mubr.bf16.mxu0 %v3518
        %4421 = vmatmul.mubr.bf16.gmra.mrb[0].mxu0 %v3517
        %v4422 = vpop.f32.mrb[0].mxu0
        %v4423 = vadd.f32 %v4262, %v4422
        %v4424 = vpop.f32.mrb[0].mxu0
        %v4425 = vpop.f32.mrb[0].mxu0
        %v4426 = vadd.f32 %v4265, %v4425
        %v4427 = vpop.f32.mrb[0].mxu0
        %4428 = vdwg.mxu0
        %4429 = vmatprep.subr.bf16.mxu0 0
        %4430 = vmatpush1.bf16.msra.mxu0 %v3995
        %4431 = vmatprep.subr.bf16.mxu0 0
        %4432 = vmatpush1.bf16.msra.mxu0 %v3996
        %4433 = vmatprep.subr.bf16.mxu0 0
        %4434 = vmatpush1.bf16.msra.mxu0 %v3997
        %4435 = vmatprep.subr.bf16.mxu0 0
        %4436 = vmatpush1.bf16.msra.mxu0 %v3998
        %4437 = vmatprep.subr.bf16.mxu0 0
        %4438 = vmatpush1.bf16.msra.mxu0 %v3999
        %4439 = vmatprep.subr.bf16.mxu0 0
        %4440 = vmatpush1.bf16.msra.mxu0 %v4000
        %4441 = vmatprep.subr.bf16.mxu0 0
        %4442 = vmatpush1.bf16.msra.mxu0 %v4001
        %4443 = vmatprep.subr.bf16.mxu0 0
        %4444 = vmatpush1.bf16.msra.mxu0 %v4002
        %4445 = vmatprep.subr.bf16.mxu0 0
        %4446 = vmatpush1.bf16.msra.mxu0 %v4003
        %4447 = vmatprep.subr.bf16.mxu0 0
        %4448 = vmatpush1.bf16.msra.mxu0 %v4004
        %4449 = vmatprep.subr.bf16.mxu0 0
        %4450 = vmatpush1.bf16.msra.mxu0 %v4005
        %4451 = vmatprep.subr.bf16.mxu0 0
        %4452 = vmatpush1.bf16.msra.mxu0 %v4006
        %4453 = vmatprep.subr.bf16.mxu0 0
        %4454 = vmatpush1.bf16.msra.mxu0 %v4007
        %4455 = vmatprep.subr.bf16.mxu0 0
        %4456 = vmatpush1.bf16.msra.mxu0 %v4008
        %4457 = vmatprep.subr.bf16.mxu0 0
        %4458 = vmatpush1.bf16.msra.mxu0 %v4009
        %4459 = vmatprep.subr.bf16.mxu0 0
        %4460 = vmatpush1.bf16.msra.mxu0 %v4010
        %4461 = vmatprep.mubr.bf16.mxu0 %v3385
        %4462 = vmatmul.mubr.bf16.gmra.mrb[0].mxu0 %v3384
        %v4463 = vpop.f32.mrb[0].mxu0
        %v4464 = vadd.f32 %v4303, %v4463
        %v4465 = vpop.f32.mrb[0].mxu0
        %v4466 = vpop.f32.mrb[0].mxu0
        %v4467 = vadd.f32 %v4306, %v4466
        %v4468 = vpop.f32.mrb[0].mxu0
        %4469 = vmatprep.mubr.bf16.mxu0 %v3394
        %4470 = vmatmul.mubr.bf16.gmra.mrb[0].mxu0 %v3393
        %v4471 = vpop.f32.mrb[0].mxu0
        %v4472 = vadd.f32 %v4311, %v4471
        %v4473 = vpop.f32.mrb[0].mxu0
        %v4474 = vpop.f32.mrb[0].mxu0
        %v4475 = vadd.f32 %v4314, %v4474
        %v4476 = vpop.f32.mrb[0].mxu0
        %4477 = vmatprep.mubr.bf16.mxu0 %v3403
        %4478 = vmatmul.mubr.bf16.gmra.mrb[0].mxu0 %v3402
        %v4479 = vpop.f32.mrb[0].mxu0
        %v4480 = vadd.f32 %v4319, %v4479
        %v4481 = vpop.f32.mrb[0].mxu0
        %v4482 = vpop.f32.mrb[0].mxu0
        %v4483 = vadd.f32 %v4322, %v4482
        %v4484 = vpop.f32.mrb[0].mxu0
        %4485 = vmatprep.mubr.bf16.mxu0 %v3412
        %4486 = vmatmul.mubr.bf16.gmra.mrb[0].mxu0 %v3411
        %v4487 = vpop.f32.mrb[0].mxu0
        %v4488 = vadd.f32 %v4327, %v4487
        %v4489 = vpop.f32.mrb[0].mxu0
        %v4490 = vpop.f32.mrb[0].mxu0
        %v4491 = vadd.f32 %v4330, %v4490
        %v4492 = vpop.f32.mrb[0].mxu0
        %4493 = vmatprep.mubr.bf16.mxu0 %v3421
        %4494 = vmatmul.mubr.bf16.gmra.mrb[0].mxu0 %v3420
        %v4495 = vpop.f32.mrb[0].mxu0
        %v4496 = vadd.f32 %v4335, %v4495
        %v4497 = vpop.f32.mrb[0].mxu0
        %v4498 = vpop.f32.mrb[0].mxu0
        %v4499 = vadd.f32 %v4338, %v4498
        %v4500 = vpop.f32.mrb[0].mxu0
        %4501 = vmatprep.mubr.bf16.mxu0 %v3430
        %4502 = vmatmul.mubr.bf16.gmra.mrb[0].mxu0 %v3429
        %v4503 = vpop.f32.mrb[0].mxu0
        %v4504 = vadd.f32 %v4343, %v4503
        %v4505 = vpop.f32.mrb[0].mxu0
        %v4506 = vpop.f32.mrb[0].mxu0
        %v4507 = vadd.f32 %v4346, %v4506
        %v4508 = vpop.f32.mrb[0].mxu0
        %4509 = vmatprep.mubr.bf16.mxu0 %v3439
        %4510 = vmatmul.mubr.bf16.gmra.mrb[0].mxu0 %v3438
        %v4511 = vpop.f32.mrb[0].mxu0
        %v4512 = vadd.f32 %v4351, %v4511
        %v4513 = vpop.f32.mrb[0].mxu0
        %v4514 = vpop.f32.mrb[0].mxu0
        %v4515 = vadd.f32 %v4354, %v4514
        %v4516 = vpop.f32.mrb[0].mxu0
        %4517 = vmatprep.mubr.bf16.mxu0 %v3448
        %4518 = vmatmul.mubr.bf16.gmra.mrb[0].mxu0 %v3447
        %v4519 = vpop.f32.mrb[0].mxu0
        %v4520 = vadd.f32 %v4359, %v4519
        %v4521 = vpop.f32.mrb[0].mxu0
        %v4522 = vpop.f32.mrb[0].mxu0
        %v4523 = vadd.f32 %v4362, %v4522
        %v4524 = vpop.f32.mrb[0].mxu0
        %4525 = vmatprep.mubr.bf16.mxu0 %v3457
        %4526 = vmatmul.mubr.bf16.gmra.mrb[0].mxu0 %v3456
        %v4527 = vpop.f32.mrb[0].mxu0
        %v4528 = vadd.f32 %v4367, %v4527
        %v4529 = vpop.f32.mrb[0].mxu0
        %v4530 = vpop.f32.mrb[0].mxu0
        %v4531 = vadd.f32 %v4370, %v4530
        %v4532 = vpop.f32.mrb[0].mxu0
        %4533 = vmatprep.mubr.bf16.mxu0 %v3466
        %4534 = vmatmul.mubr.bf16.gmra.mrb[0].mxu0 %v3465
        %v4535 = vpop.f32.mrb[0].mxu0
        %v4536 = vadd.f32 %v4375, %v4535
        %v4537 = vpop.f32.mrb[0].mxu0
        %v4538 = vpop.f32.mrb[0].mxu0
        %v4539 = vadd.f32 %v4378, %v4538
        %v4540 = vpop.f32.mrb[0].mxu0
        %4541 = vmatprep.mubr.bf16.mxu0 %v3475
        %4542 = vmatmul.mubr.bf16.gmra.mrb[0].mxu0 %v3474
        %v4543 = vpop.f32.mrb[0].mxu0
        %v4544 = vadd.f32 %v4383, %v4543
        %v4545 = vpop.f32.mrb[0].mxu0
        %v4546 = vpop.f32.mrb[0].mxu0
        %v4547 = vadd.f32 %v4386, %v4546
        %v4548 = vpop.f32.mrb[0].mxu0
        %4549 = vmatprep.mubr.bf16.mxu0 %v3484
        %4550 = vmatmul.mubr.bf16.gmra.mrb[0].mxu0 %v3483
        %v4551 = vpop.f32.mrb[0].mxu0
        %v4552 = vadd.f32 %v4391, %v4551
        %v4553 = vpop.f32.mrb[0].mxu0
        %v4554 = vpop.f32.mrb[0].mxu0
        %v4555 = vadd.f32 %v4394, %v4554
        %v4556 = vpop.f32.mrb[0].mxu0
        %4557 = vmatprep.mubr.bf16.mxu0 %v3493
        %4558 = vmatmul.mubr.bf16.gmra.mrb[0].mxu0 %v3492
        %v4559 = vpop.f32.mrb[0].mxu0
        %v4560 = vadd.f32 %v4399, %v4559
        %v4561 = vpop.f32.mrb[0].mxu0
        %v4562 = vpop.f32.mrb[0].mxu0
        %v4563 = vadd.f32 %v4402, %v4562
        %v4564 = vpop.f32.mrb[0].mxu0
        %4565 = vmatprep.mubr.bf16.mxu0 %v3502
        %4566 = vmatmul.mubr.bf16.gmra.mrb[0].mxu0 %v3501
        %v4567 = vpop.f32.mrb[0].mxu0
        %v4568 = vadd.f32 %v4407, %v4567
        %v4569 = vpop.f32.mrb[0].mxu0
        %v4570 = vpop.f32.mrb[0].mxu0
        %v4571 = vadd.f32 %v4410, %v4570
        %v4572 = vpop.f32.mrb[0].mxu0
        %4573 = vmatprep.mubr.bf16.mxu0 %v3511
        %4574 = vmatmul.mubr.bf16.gmra.mrb[0].mxu0 %v3510
        %v4575 = vpop.f32.mrb[0].mxu0
        %v4576 = vadd.f32 %v4415, %v4575
        %v4577 = vpop.f32.mrb[0].mxu0
        %v4578 = vpop.f32.mrb[0].mxu0
        %v4579 = vadd.f32 %v4418, %v4578
        %v4580 = vpop.f32.mrb[0].mxu0
        %4581 = vmatprep.mubr.bf16.mxu0 %v3520
        %4582 = vmatmul.mubr.bf16.gmra.mrb[0].mxu0 %v3519
        %v4583 = vpop.f32.mrb[0].mxu0
        %v4584 = vadd.f32 %v4423, %v4583
        %v4585 = vpop.f32.mrb[0].mxu0
        %v4586 = vpop.f32.mrb[0].mxu0
        %v4587 = vadd.f32 %v4426, %v4586
        %v4588 = vpop.f32.mrb[0].mxu0
        %4589 = vdwg.mxu0
        %4590 = vmatprep.subr.bf16.mxu0 0
        %4591 = vmatpush1.bf16.msra.mxu0 %v4011
        %4592 = vmatprep.subr.bf16.mxu0 0
        %4593 = vmatpush1.bf16.msra.mxu0 %v4012
        %4594 = vmatprep.subr.bf16.mxu0 0
        %4595 = vmatpush1.bf16.msra.mxu0 %v4013
        %4596 = vmatprep.subr.bf16.mxu0 0
        %4597 = vmatpush1.bf16.msra.mxu0 %v4014
        %4598 = vmatprep.subr.bf16.mxu0 0
        %4599 = vmatpush1.bf16.msra.mxu0 %v4015
        %4600 = vmatprep.subr.bf16.mxu0 0
        %4601 = vmatpush1.bf16.msra.mxu0 %v4016
        %4602 = vmatprep.subr.bf16.mxu0 0
        %4603 = vmatpush1.bf16.msra.mxu0 %v4017
        %4604 = vmatprep.subr.bf16.mxu0 0
        %4605 = vmatpush1.bf16.msra.mxu0 %v4018
        %4606 = vmatprep.subr.bf16.mxu0 0
        %4607 = vmatpush1.bf16.msra.mxu0 %v4019
        %4608 = vmatprep.subr.bf16.mxu0 0
        %4609 = vmatpush1.bf16.msra.mxu0 %v4020
        %4610 = vmatprep.subr.bf16.mxu0 0
        %4611 = vmatpush1.bf16.msra.mxu0 %v4021
        %4612 = vmatprep.subr.bf16.mxu0 0
        %4613 = vmatpush1.bf16.msra.mxu0 %v4022
        %4614 = vmatprep.subr.bf16.mxu0 0
        %4615 = vmatpush1.bf16.msra.mxu0 %v4023
        %4616 = vmatprep.subr.bf16.mxu0 0
        %4617 = vmatpush1.bf16.msra.mxu0 %v4024
        %4618 = vmatprep.subr.bf16.mxu0 0
        %4619 = vmatpush1.bf16.msra.mxu0 %v4025
        %4620 = vmatprep.subr.bf16.mxu0 0
        %4621 = vmatpush1.bf16.msra.mxu0 %v4026
        %4622 = vmatprep.mubr.bf16.mxu0 %v3387
        %4623 = vmatmul.mubr.bf16.gmra.mrb[0].mxu0 %v3386
        %v4624 = vpop.f32.mrb[0].mxu0
        %v4625 = vadd.f32 %v4464, %v4624
        %v4626 = vpop.f32.mrb[0].mxu0
        %v4627 = vpop.f32.mrb[0].mxu0
        %v4628 = vadd.f32 %v4467, %v4627
        %v4629 = vpop.f32.mrb[0].mxu0
        %4630 = vmatprep.mubr.bf16.mxu0 %v3396
        %4631 = vmatmul.mubr.bf16.gmra.mrb[0].mxu0 %v3395
        %v4632 = vpop.f32.mrb[0].mxu0
        %v4633 = vadd.f32 %v4472, %v4632
        %v4634 = vpop.f32.mrb[0].mxu0
        %v4635 = vpop.f32.mrb[0].mxu0
        %v4636 = vadd.f32 %v4475, %v4635
        %v4637 = vpop.f32.mrb[0].mxu0
        %4638 = vmatprep.mubr.bf16.mxu0 %v3405
        %4639 = vmatmul.mubr.bf16.gmra.mrb[0].mxu0 %v3404
        %v4640 = vpop.f32.mrb[0].mxu0
        %v4641 = vadd.f32 %v4480, %v4640
        %v4642 = vpop.f32.mrb[0].mxu0
        %v4643 = vpop.f32.mrb[0].mxu0
        %v4644 = vadd.f32 %v4483, %v4643
        %v4645 = vpop.f32.mrb[0].mxu0
        %4646 = vmatprep.mubr.bf16.mxu0 %v3414
        %4647 = vmatmul.mubr.bf16.gmra.mrb[0].mxu0 %v3413
        %v4648 = vpop.f32.mrb[0].mxu0
        %v4649 = vadd.f32 %v4488, %v4648
        %v4650 = vpop.f32.mrb[0].mxu0
        %v4651 = vpop.f32.mrb[0].mxu0
        %v4652 = vadd.f32 %v4491, %v4651
        %v4653 = vpop.f32.mrb[0].mxu0
        %4654 = vmatprep.mubr.bf16.mxu0 %v3423
        %4655 = vmatmul.mubr.bf16.gmra.mrb[0].mxu0 %v3422
        %v4656 = vpop.f32.mrb[0].mxu0
        %v4657 = vadd.f32 %v4496, %v4656
        %v4658 = vpop.f32.mrb[0].mxu0
        %v4659 = vpop.f32.mrb[0].mxu0
        %v4660 = vadd.f32 %v4499, %v4659
        %v4661 = vpop.f32.mrb[0].mxu0
        %4662 = vmatprep.mubr.bf16.mxu0 %v3432
        %4663 = vmatmul.mubr.bf16.gmra.mrb[0].mxu0 %v3431
        %v4664 = vpop.f32.mrb[0].mxu0
        %v4665 = vadd.f32 %v4504, %v4664
        %v4666 = vpop.f32.mrb[0].mxu0
        %v4667 = vpop.f32.mrb[0].mxu0
        %v4668 = vadd.f32 %v4507, %v4667
        %v4669 = vpop.f32.mrb[0].mxu0
        %4670 = vmatprep.mubr.bf16.mxu0 %v3441
        %4671 = vmatmul.mubr.bf16.gmra.mrb[0].mxu0 %v3440
        %v4672 = vpop.f32.mrb[0].mxu0
        %v4673 = vadd.f32 %v4512, %v4672
        %v4674 = vpop.f32.mrb[0].mxu0
        %v4675 = vpop.f32.mrb[0].mxu0
        %v4676 = vadd.f32 %v4515, %v4675
        %v4677 = vpop.f32.mrb[0].mxu0
        %4678 = vmatprep.mubr.bf16.mxu0 %v3450
        %4679 = vmatmul.mubr.bf16.gmra.mrb[0].mxu0 %v3449
        %v4680 = vpop.f32.mrb[0].mxu0
        %v4681 = vadd.f32 %v4520, %v4680
        %v4682 = vpop.f32.mrb[0].mxu0
        %v4683 = vpop.f32.mrb[0].mxu0
        %v4684 = vadd.f32 %v4523, %v4683
        %v4685 = vpop.f32.mrb[0].mxu0
        %4686 = vmatprep.mubr.bf16.mxu0 %v3459
        %4687 = vmatmul.mubr.bf16.gmra.mrb[0].mxu0 %v3458
        %v4688 = vpop.f32.mrb[0].mxu0
        %v4689 = vadd.f32 %v4528, %v4688
        %v4690 = vpop.f32.mrb[0].mxu0
        %v4691 = vpop.f32.mrb[0].mxu0
        %v4692 = vadd.f32 %v4531, %v4691
        %v4693 = vpop.f32.mrb[0].mxu0
        %4694 = vmatprep.mubr.bf16.mxu0 %v3468
        %4695 = vmatmul.mubr.bf16.gmra.mrb[0].mxu0 %v3467
        %v4696 = vpop.f32.mrb[0].mxu0
        %v4697 = vadd.f32 %v4536, %v4696
        %v4698 = vpop.f32.mrb[0].mxu0
        %v4699 = vpop.f32.mrb[0].mxu0
        %v4700 = vadd.f32 %v4539, %v4699
        %v4701 = vpop.f32.mrb[0].mxu0
        %4702 = vmatprep.mubr.bf16.mxu0 %v3477
        %4703 = vmatmul.mubr.bf16.gmra.mrb[0].mxu0 %v3476
        %v4704 = vpop.f32.mrb[0].mxu0
        %v4705 = vadd.f32 %v4544, %v4704
        %v4706 = vpop.f32.mrb[0].mxu0
        %v4707 = vpop.f32.mrb[0].mxu0
        %v4708 = vadd.f32 %v4547, %v4707
        %v4709 = vpop.f32.mrb[0].mxu0
        %4710 = vmatprep.mubr.bf16.mxu0 %v3486
        %4711 = vmatmul.mubr.bf16.gmra.mrb[0].mxu0 %v3485
        %v4712 = vpop.f32.mrb[0].mxu0
        %v4713 = vadd.f32 %v4552, %v4712
        %v4714 = vpop.f32.mrb[0].mxu0
        %v4715 = vpop.f32.mrb[0].mxu0
        %v4716 = vadd.f32 %v4555, %v4715
        %v4717 = vpop.f32.mrb[0].mxu0
        %4718 = vmatprep.mubr.bf16.mxu0 %v3495
        %4719 = vmatmul.mubr.bf16.gmra.mrb[0].mxu0 %v3494
        %v4720 = vpop.f32.mrb[0].mxu0
        %v4721 = vadd.f32 %v4560, %v4720
        %v4722 = vpop.f32.mrb[0].mxu0
        %v4723 = vpop.f32.mrb[0].mxu0
        %v4724 = vadd.f32 %v4563, %v4723
        %v4725 = vpop.f32.mrb[0].mxu0
        %4726 = vmatprep.mubr.bf16.mxu0 %v3504
        %4727 = vmatmul.mubr.bf16.gmra.mrb[0].mxu0 %v3503
        %v4728 = vpop.f32.mrb[0].mxu0
        %v4729 = vadd.f32 %v4568, %v4728
        %v4730 = vpop.f32.mrb[0].mxu0
        %v4731 = vpop.f32.mrb[0].mxu0
        %v4732 = vadd.f32 %v4571, %v4731
        %v4733 = vpop.f32.mrb[0].mxu0
        %4734 = vmatprep.mubr.bf16.mxu0 %v3513
        %4735 = vmatmul.mubr.bf16.gmra.mrb[0].mxu0 %v3512
        %v4736 = vpop.f32.mrb[0].mxu0
        %v4737 = vadd.f32 %v4576, %v4736
        %v4738 = vpop.f32.mrb[0].mxu0
        %v4739 = vpop.f32.mrb[0].mxu0
        %v4740 = vadd.f32 %v4579, %v4739
        %v4741 = vpop.f32.mrb[0].mxu0
        %4742 = vmatprep.mubr.bf16.mxu0 %v3522
        %4743 = vmatmul.mubr.bf16.gmra.mrb[0].mxu0 %v3521
        %v4744 = vpop.f32.mrb[0].mxu0
        %v4745 = vadd.f32 %v4584, %v4744
        %v4746 = vpop.f32.mrb[0].mxu0
        %v4747 = vpop.f32.mrb[0].mxu0
        %v4748 = vadd.f32 %v4587, %v4747
        %v4749 = vpop.f32.mrb[0].mxu0
        %4750 = vdwg.mxu0
        %4751 = vmatprep.subr.bf16.mxu0 0
        %4752 = vmatpush1.bf16.msra.mxu0 %v4027
        %4753 = vmatprep.subr.bf16.mxu0 0
        %4754 = vmatpush1.bf16.msra.mxu0 %v4028
        %4755 = vmatprep.subr.bf16.mxu0 0
        %4756 = vmatpush1.bf16.msra.mxu0 %v4029
        %4757 = vmatprep.subr.bf16.mxu0 0
        %4758 = vmatpush1.bf16.msra.mxu0 %v4030
        %4759 = vmatprep.subr.bf16.mxu0 0
        %4760 = vmatpush1.bf16.msra.mxu0 %v4031
        %4761 = vmatprep.subr.bf16.mxu0 0
        %4762 = vmatpush1.bf16.msra.mxu0 %v4032
        %4763 = vmatprep.subr.bf16.mxu0 0
        %4764 = vmatpush1.bf16.msra.mxu0 %v4033
        %4765 = vmatprep.subr.bf16.mxu0 0
        %4766 = vmatpush1.bf16.msra.mxu0 %v4034
        %4767 = vmatprep.subr.bf16.mxu0 0
        %4768 = vmatpush1.bf16.msra.mxu0 0
        %4769 = vmatprep.subr.bf16.mxu0 0
        %4770 = vmatpush1.bf16.msra.mxu0 0
        %4771 = vmatprep.subr.bf16.mxu0 0
        %4772 = vmatpush1.bf16.msra.mxu0 0
        %4773 = vmatprep.subr.bf16.mxu0 0
        %4774 = vmatpush1.bf16.msra.mxu0 0
        %4775 = vmatprep.subr.bf16.mxu0 0
        %4776 = vmatpush1.bf16.msra.mxu0 0
        %4777 = vmatprep.subr.bf16.mxu0 0
        %4778 = vmatpush1.bf16.msra.mxu0 0
        %4779 = vmatprep.subr.bf16.mxu0 0
        %4780 = vmatpush1.bf16.msra.mxu0 0
        %4781 = vmatprep.subr.bf16.mxu0 0
        %4782 = vmatpush1.bf16.msra.mxu0 0
        %4783 = vmatprep.mubr.bf16.mxu0 0
        %4784 = vmatmul.mubr.bf16.gmra.mrb[0].mxu0 %v3388
        %v4785 = vpop.f32.mrb[0].mxu0
        %v4786 = vadd.f32 %v4625, %v4785
        %v4787 = vpop.f32.mrb[0].mxu0
        %v4788 = vpop.f32.mrb[0].mxu0
        %v4789 = vadd.f32 %v4628, %v4788
        %v4790 = vpop.f32.mrb[0].mxu0
        %4791 = vmatprep.mubr.bf16.mxu0 0
        %4792 = vmatmul.mubr.bf16.gmra.mrb[0].mxu0 %v3397
        %v4793 = vpop.f32.mrb[0].mxu0
        %v4794 = vadd.f32 %v4633, %v4793
        %v4795 = vpop.f32.mrb[0].mxu0
        %v4796 = vpop.f32.mrb[0].mxu0
        %v4797 = vadd.f32 %v4636, %v4796
        %v4798 = vpop.f32.mrb[0].mxu0
        %4799 = vmatprep.mubr.bf16.mxu0 0
        %4800 = vmatmul.mubr.bf16.gmra.mrb[0].mxu0 %v3406
        %v4801 = vpop.f32.mrb[0].mxu0
        %v4802 = vadd.f32 %v4641, %v4801
        %v4803 = vpop.f32.mrb[0].mxu0
        %v4804 = vpop.f32.mrb[0].mxu0
        %v4805 = vadd.f32 %v4644, %v4804
        %v4806 = vpop.f32.mrb[0].mxu0
        %4807 = vmatprep.mubr.bf16.mxu0 0
        %4808 = vmatmul.mubr.bf16.gmra.mrb[0].mxu0 %v3415
        %v4809 = vpop.f32.mrb[0].mxu0
        %v4810 = vadd.f32 %v4649, %v4809
        %v4811 = vpop.f32.mrb[0].mxu0
        %v4812 = vpop.f32.mrb[0].mxu0
        %v4813 = vadd.f32 %v4652, %v4812
        %v4814 = vpop.f32.mrb[0].mxu0
        %4815 = vmatprep.mubr.bf16.mxu0 0
        %4816 = vmatmul.mubr.bf16.gmra.mrb[0].mxu0 %v3424
        %v4817 = vpop.f32.mrb[0].mxu0
        %v4818 = vadd.f32 %v4657, %v4817
        %v4819 = vpop.f32.mrb[0].mxu0
        %v4820 = vpop.f32.mrb[0].mxu0
        %v4821 = vadd.f32 %v4660, %v4820
        %v4822 = vpop.f32.mrb[0].mxu0
        %4823 = vmatprep.mubr.bf16.mxu0 0
        %4824 = vmatmul.mubr.bf16.gmra.mrb[0].mxu0 %v3433
        %v4825 = vpop.f32.mrb[0].mxu0
        %v4826 = vadd.f32 %v4665, %v4825
        %v4827 = vpop.f32.mrb[0].mxu0
        %v4828 = vpop.f32.mrb[0].mxu0
        %v4829 = vadd.f32 %v4668, %v4828
        %v4830 = vpop.f32.mrb[0].mxu0
        %4831 = vmatprep.mubr.bf16.mxu0 0
        %4832 = vmatmul.mubr.bf16.gmra.mrb[0].mxu0 %v3442
        %v4833 = vpop.f32.mrb[0].mxu0
        %v4834 = vadd.f32 %v4673, %v4833
        %v4835 = vpop.f32.mrb[0].mxu0
        %v4836 = vpop.f32.mrb[0].mxu0
        %v4837 = vadd.f32 %v4676, %v4836
        %v4838 = vpop.f32.mrb[0].mxu0
        %4839 = vmatprep.mubr.bf16.mxu0 0
        %4840 = vmatmul.mubr.bf16.gmra.mrb[0].mxu0 %v3451
        %v4841 = vpop.f32.mrb[0].mxu0
        %v4842 = vadd.f32 %v4681, %v4841
        %v4843 = vpop.f32.mrb[0].mxu0
        %v4844 = vpop.f32.mrb[0].mxu0
        %v4845 = vadd.f32 %v4684, %v4844
        %v4846 = vpop.f32.mrb[0].mxu0
        %4847 = vmatprep.mubr.bf16.mxu0 0
        %4848 = vmatmul.mubr.bf16.gmra.mrb[0].mxu0 %v3460
        %v4849 = vpop.f32.mrb[0].mxu0
        %v4850 = vadd.f32 %v4689, %v4849
        %v4851 = vpop.f32.mrb[0].mxu0
        %v4852 = vpop.f32.mrb[0].mxu0
        %v4853 = vadd.f32 %v4692, %v4852
        %v4854 = vpop.f32.mrb[0].mxu0
        %4855 = vmatprep.mubr.bf16.mxu0 0
        %4856 = vmatmul.mubr.bf16.gmra.mrb[0].mxu0 %v3469
        %v4857 = vpop.f32.mrb[0].mxu0
        %v4858 = vadd.f32 %v4697, %v4857
        %v4859 = vpop.f32.mrb[0].mxu0
        %v4860 = vpop.f32.mrb[0].mxu0
        %v4861 = vadd.f32 %v4700, %v4860
        %v4862 = vpop.f32.mrb[0].mxu0
        %4863 = vmatprep.mubr.bf16.mxu0 0
        %4864 = vmatmul.mubr.bf16.gmra.mrb[0].mxu0 %v3478
        %v4865 = vpop.f32.mrb[0].mxu0
        %v4866 = vadd.f32 %v4705, %v4865
        %v4867 = vpop.f32.mrb[0].mxu0
        %v4868 = vpop.f32.mrb[0].mxu0
        %v4869 = vadd.f32 %v4708, %v4868
        %v4870 = vpop.f32.mrb[0].mxu0
        %4871 = vmatprep.mubr.bf16.mxu0 0
        %4872 = vmatmul.mubr.bf16.gmra.mrb[0].mxu0 %v3487
        %v4873 = vpop.f32.mrb[0].mxu0
        %v4874 = vadd.f32 %v4713, %v4873
        %v4875 = vpop.f32.mrb[0].mxu0
        %v4876 = vpop.f32.mrb[0].mxu0
        %v4877 = vadd.f32 %v4716, %v4876
        %v4878 = vpop.f32.mrb[0].mxu0
        %4879 = vmatprep.mubr.bf16.mxu0 0
        %4880 = vmatmul.mubr.bf16.gmra.mrb[0].mxu0 %v3496
        %v4881 = vpop.f32.mrb[0].mxu0
        %v4882 = vadd.f32 %v4721, %v4881
        %v4883 = vpop.f32.mrb[0].mxu0
        %v4884 = vpop.f32.mrb[0].mxu0
        %v4885 = vadd.f32 %v4724, %v4884
        %v4886 = vpop.f32.mrb[0].mxu0
        %4887 = vmatprep.mubr.bf16.mxu0 0
        %4888 = vmatmul.mubr.bf16.gmra.mrb[0].mxu0 %v3505
        %v4889 = vpop.f32.mrb[0].mxu0
        %v4890 = vadd.f32 %v4729, %v4889
        %v4891 = vpop.f32.mrb[0].mxu0
        %v4892 = vpop.f32.mrb[0].mxu0
        %v4893 = vadd.f32 %v4732, %v4892
        %v4894 = vpop.f32.mrb[0].mxu0
        %4895 = vmatprep.mubr.bf16.mxu0 0
        %4896 = vmatmul.mubr.bf16.gmra.mrb[0].mxu0 %v3514
        %v4897 = vpop.f32.mrb[0].mxu0
        %v4898 = vadd.f32 %v4737, %v4897
        %v4899 = vpop.f32.mrb[0].mxu0
        %v4900 = vpop.f32.mrb[0].mxu0
        %v4901 = vadd.f32 %v4740, %v4900
        %v4902 = vpop.f32.mrb[0].mxu0
        %4903 = vmatprep.mubr.bf16.mxu0 0
        %4904 = vmatmul.mubr.bf16.gmra.mrb[0].mxu0 %v3523
        %v4905 = vpop.f32.mrb[0].mxu0
        %v4906 = vadd.f32 %v4745, %v4905
        %v4907 = vpop.f32.mrb[0].mxu0
        %v4908 = vpop.f32.mrb[0].mxu0
        %v4909 = vadd.f32 %v4748, %v4908
        %v4910 = vpop.f32.mrb[0].mxu0
        %4911 = vdwg.mxu0
        %v4912 = vmax.f32 %v4786, 0.0
        %v4913 = vmax.f32 %v4789, 0.0
        %v4914 = vmax.f32 %v4794, 0.0
        %v4915 = vmax.f32 %v4797, 0.0
        %v4916 = vmax.f32 %v4802, 0.0
        %v4917 = vmax.f32 %v4805, 0.0
        %v4918 = vmax.f32 %v4810, 0.0
        %v4919 = vmax.f32 %v4813, 0.0
        %v4920 = vmax.f32 %v4818, 0.0
        %v4921 = vmax.f32 %v4821, 0.0
        %v4922 = vmax.f32 %v4826, 0.0
        %v4923 = vmax.f32 %v4829, 0.0
        %v4924 = vmax.f32 %v4834, 0.0
        %v4925 = vmax.f32 %v4837, 0.0
        %v4926 = vmax.f32 %v4842, 0.0
        %v4927 = vmax.f32 %v4845, 0.0
        %v4928 = vmax.f32 %v4850, 0.0
        %v4929 = vmax.f32 %v4853, 0.0
        %v4930 = vmax.f32 %v4858, 0.0
        %v4931 = vmax.f32 %v4861, 0.0
        %v4932 = vmax.f32 %v4866, 0.0
        %v4933 = vmax.f32 %v4869, 0.0
        %v4934 = vmax.f32 %v4874, 0.0
        %v4935 = vmax.f32 %v4877, 0.0
        %v4936 = vmax.f32 %v4882, 0.0
        %v4937 = vmax.f32 %v4885, 0.0
        %v4938 = vmax.f32 %v4890, 0.0
        %v4939 = vmax.f32 %v4893, 0.0
        %v4940 = vmax.f32 %v4898, 0.0
        %v4941 = vmax.f32 %v4901, 0.0
        %v4942 = vmax.f32 %v4906, 0.0
        %v4943 = vmax.f32 %v4909, 0.0
        %v4944 = vpack.c.bf16 %v4913, %v4912
        %v4945 = vpack.c.bf16 %v4915, %v4914
        %v4946 = vpack.c.bf16 %v4917, %v4916
        %v4947 = vpack.c.bf16 %v4919, %v4918
        %v4948 = vpack.c.bf16 %v4921, %v4920
        %v4949 = vpack.c.bf16 %v4923, %v4922
        %v4950 = vpack.c.bf16 %v4925, %v4924
        %v4951 = vpack.c.bf16 %v4927, %v4926
        %v4952 = vpack.c.bf16 %v4929, %v4928
        %v4953 = vpack.c.bf16 %v4931, %v4930
        %v4954 = vpack.c.bf16 %v4933, %v4932
        %v4955 = vpack.c.bf16 %v4935, %v4934
        %v4956 = vpack.c.bf16 %v4937, %v4936
        %v4957 = vpack.c.bf16 %v4939, %v4938
        %v4958 = vpack.c.bf16 %v4941, %v4940
        %v4959 = vpack.c.bf16 %v4943, %v4942
        %v4976 = vunpack.c.l.b16 %v4944
        %v4977 = vunpack.c.h.b16 %v4944
        %v4978 = vunpack.c.l.b16 %v4945
        %v4979 = vunpack.c.h.b16 %v4945
        %v4980 = vunpack.c.l.b16 %v4946
        %v4981 = vunpack.c.h.b16 %v4946
        %v4982 = vunpack.c.l.b16 %v4947
        %v4983 = vunpack.c.h.b16 %v4947
        %v4984 = vunpack.c.l.b16 %v4948
        %v4985 = vunpack.c.h.b16 %v4948
        %v4986 = vunpack.c.l.b16 %v4949
        %v4987 = vunpack.c.h.b16 %v4949
        %v4988 = vunpack.c.l.b16 %v4950
        %v4989 = vunpack.c.h.b16 %v4950
        %v4990 = vunpack.c.l.b16 %v4951
        %v4991 = vunpack.c.h.b16 %v4951
        %v4992 = vunpack.c.l.b16 %v4952
        %v4993 = vunpack.c.h.b16 %v4952
        %v4994 = vunpack.c.l.b16 %v4953
        %v4995 = vunpack.c.h.b16 %v4953
        %v4996 = vunpack.c.l.b16 %v4954
        %v4997 = vunpack.c.h.b16 %v4954
        %v4998 = vunpack.c.l.b16 %v4955
        %v4999 = vunpack.c.h.b16 %v4955
        %v5000 = vunpack.c.l.b16 %v4956
        %v5001 = vunpack.c.h.b16 %v4956
        %v5002 = vunpack.c.l.b16 %v4957
        %v5003 = vunpack.c.h.b16 %v4957
        %v5004 = vunpack.c.l.b16 %v4958
        %v5005 = vunpack.c.h.b16 %v4958
        %v5006 = vunpack.c.l.b16 %v4959
        %v5007 = vunpack.c.h.b16 %v4959
        %v5008 = vpack.c.b16 %v4976, %v4976
        %v5009 = vpack.c.b16 %v4977, %v4977
        %v5010 = vpack.c.b16 %v4978, %v4978
        %v5011 = vpack.c.b16 %v4979, %v4979
        %v5012 = vpack.c.b16 %v4980, %v4980
        %v5013 = vpack.c.b16 %v4981, %v4981
        %v5014 = vpack.c.b16 %v4982, %v4982
        %v5015 = vpack.c.b16 %v4983, %v4983
        %v5016 = vpack.c.b16 %v4984, %v4984
        %v5017 = vpack.c.b16 %v4985, %v4985
        %v5018 = vpack.c.b16 %v4986, %v4986
        %v5019 = vpack.c.b16 %v4987, %v4987
        %v5020 = vpack.c.b16 %v4988, %v4988
        %v5021 = vpack.c.b16 %v4989, %v4989
        %v5022 = vpack.c.b16 %v4990, %v4990
        %v5023 = vpack.c.b16 %v4991, %v4991
        %v5024 = vpack.c.b16 %v4992, %v4992
        %v5025 = vpack.c.b16 %v4993, %v4993
        %v5026 = vpack.c.b16 %v4994, %v4994
        %v5027 = vpack.c.b16 %v4995, %v4995
        %v5028 = vpack.c.b16 %v4996, %v4996
        %v5029 = vpack.c.b16 %v4997, %v4997
        %v5030 = vpack.c.b16 %v4998, %v4998
        %v5031 = vpack.c.b16 %v4999, %v4999
        %v5032 = vpack.c.b16 %v5000, %v5000
        %v5033 = vpack.c.b16 %v5001, %v5001
        %v5034 = vpack.c.b16 %v5002, %v5002
        %v5035 = vpack.c.b16 %v5003, %v5003
        %v5036 = vpack.c.b16 %v5004, %v5004
        %v5037 = vpack.c.b16 %v5005, %v5005
        %v5038 = vpack.c.b16 %v5006, %v5006
        %v5039 = vpack.c.b16 %v5007, %v5007
        %v5041 = vshrl.u32 %v5008, 16
        %v5043 = vrot.slane %v5041, 7
        %v5044 = vshll.u32 %v5008, 16
        %v5046 = vor.u32 %v5043, %v5044
        %v5047 = vrot.slane %v5043, 4
        %v5049 = vshrl.u32 %v5009, 16
        %v5051 = vrot.slane %v5049, 7
        %v5052 = vshll.u32 %v5009, 16
        %v5054 = vor.u32 %v5051, %v5052
        %v5055 = vsel %vm541, %v5047, %v5054
        %v5056 = vrot.slane %v5051, 4
        %v5058 = vshrl.u32 %v5010, 16
        %v5060 = vrot.slane %v5058, 7
        %v5061 = vshll.u32 %v5010, 16
        %v5063 = vor.u32 %v5060, %v5061
        %v5064 = vrot.slane %v5060, 4
        %v5066 = vshrl.u32 %v5011, 16
        %v5068 = vrot.slane %v5066, 7
        %v5069 = vshll.u32 %v5011, 16
        %v5071 = vor.u32 %v5068, %v5069
        %v5072 = vsel %vm541, %v5064, %v5071
        %v5073 = vrot.slane %v5068, 4
        %v5075 = vshrl.u32 %v5012, 16
        %v5077 = vrot.slane %v5075, 7
        %v5078 = vshll.u32 %v5012, 16
        %v5080 = vor.u32 %v5077, %v5078
        %v5081 = vrot.slane %v5077, 4
        %v5083 = vshrl.u32 %v5013, 16
        %v5085 = vrot.slane %v5083, 7
        %v5086 = vshll.u32 %v5013, 16
        %v5088 = vor.u32 %v5085, %v5086
        %v5089 = vsel %vm541, %v5081, %v5088
        %v5090 = vrot.slane %v5085, 4
        %v5092 = vshrl.u32 %v5014, 16
        %v5094 = vrot.slane %v5092, 7
        %v5095 = vshll.u32 %v5014, 16
        %v5097 = vor.u32 %v5094, %v5095
        %v5098 = vrot.slane %v5094, 4
        %v5100 = vshrl.u32 %v5015, 16
        %v5102 = vrot.slane %v5100, 7
        %v5103 = vshll.u32 %v5015, 16
        %v5105 = vor.u32 %v5102, %v5103
        %v5106 = vsel %vm541, %v5098, %v5105
        %v5107 = vrot.slane %v5102, 4
        %v5109 = vshrl.u32 %v5016, 16
        %v5111 = vrot.slane %v5109, 7
        %v5112 = vshll.u32 %v5016, 16
        %v5114 = vor.u32 %v5111, %v5112
        %v5115 = vrot.slane %v5111, 4
        %v5117 = vshrl.u32 %v5017, 16
        %v5119 = vrot.slane %v5117, 7
        %v5120 = vshll.u32 %v5017, 16
        %v5122 = vor.u32 %v5119, %v5120
        %v5123 = vsel %vm541, %v5115, %v5122
        %v5124 = vrot.slane %v5119, 4
        %v5126 = vshrl.u32 %v5018, 16
        %v5128 = vrot.slane %v5126, 7
        %v5129 = vshll.u32 %v5018, 16
        %v5131 = vor.u32 %v5128, %v5129
        %v5132 = vrot.slane %v5128, 4
        %v5134 = vshrl.u32 %v5019, 16
        %v5136 = vrot.slane %v5134, 7
        %v5137 = vshll.u32 %v5019, 16
        %v5139 = vor.u32 %v5136, %v5137
        %v5140 = vsel %vm541, %v5132, %v5139
        %v5141 = vrot.slane %v5136, 4
        %v5143 = vshrl.u32 %v5020, 16
        %v5145 = vrot.slane %v5143, 7
        %v5146 = vshll.u32 %v5020, 16
        %v5148 = vor.u32 %v5145, %v5146
        %v5149 = vrot.slane %v5145, 4
        %v5151 = vshrl.u32 %v5021, 16
        %v5153 = vrot.slane %v5151, 7
        %v5154 = vshll.u32 %v5021, 16
        %v5156 = vor.u32 %v5153, %v5154
        %v5157 = vsel %vm541, %v5149, %v5156
        %v5158 = vrot.slane %v5153, 4
        %v5160 = vshrl.u32 %v5022, 16
        %v5162 = vrot.slane %v5160, 7
        %v5163 = vshll.u32 %v5022, 16
        %v5165 = vor.u32 %v5162, %v5163
        %v5166 = vrot.slane %v5162, 4
        %v5168 = vshrl.u32 %v5023, 16
        %v5170 = vrot.slane %v5168, 7
        %v5171 = vshll.u32 %v5023, 16
        %v5173 = vor.u32 %v5170, %v5171
        %v5174 = vsel %vm541, %v5166, %v5173
        %v5175 = vrot.slane %v5170, 4
        %v5177 = vshrl.u32 %v5024, 16
        %v5179 = vrot.slane %v5177, 7
        %v5180 = vshll.u32 %v5024, 16
        %v5182 = vor.u32 %v5179, %v5180
        %v5183 = vrot.slane %v5179, 4
        %v5185 = vshrl.u32 %v5025, 16
        %v5187 = vrot.slane %v5185, 7
        %v5188 = vshll.u32 %v5025, 16
        %v5190 = vor.u32 %v5187, %v5188
        %v5191 = vsel %vm541, %v5183, %v5190
        %v5192 = vrot.slane %v5187, 4
        %v5194 = vshrl.u32 %v5026, 16
        %v5196 = vrot.slane %v5194, 7
        %v5197 = vshll.u32 %v5026, 16
        %v5199 = vor.u32 %v5196, %v5197
        %v5200 = vrot.slane %v5196, 4
        %v5202 = vshrl.u32 %v5027, 16
        %v5204 = vrot.slane %v5202, 7
        %v5205 = vshll.u32 %v5027, 16
        %v5207 = vor.u32 %v5204, %v5205
        %v5208 = vsel %vm541, %v5200, %v5207
        %v5209 = vrot.slane %v5204, 4
        %v5211 = vshrl.u32 %v5028, 16
        %v5213 = vrot.slane %v5211, 7
        %v5214 = vshll.u32 %v5028, 16
        %v5216 = vor.u32 %v5213, %v5214
        %v5217 = vrot.slane %v5213, 4
        %v5219 = vshrl.u32 %v5029, 16
        %v5221 = vrot.slane %v5219, 7
        %v5222 = vshll.u32 %v5029, 16
        %v5224 = vor.u32 %v5221, %v5222
        %v5225 = vsel %vm541, %v5217, %v5224
        %v5226 = vrot.slane %v5221, 4
        %v5228 = vshrl.u32 %v5030, 16
        %v5230 = vrot.slane %v5228, 7
        %v5231 = vshll.u32 %v5030, 16
        %v5233 = vor.u32 %v5230, %v5231
        %v5234 = vrot.slane %v5230, 4
        %v5236 = vshrl.u32 %v5031, 16
        %v5238 = vrot.slane %v5236, 7
        %v5239 = vshll.u32 %v5031, 16
        %v5241 = vor.u32 %v5238, %v5239
        %v5242 = vsel %vm541, %v5234, %v5241
        %v5243 = vrot.slane %v5238, 4
        %v5245 = vshrl.u32 %v5032, 16
        %v5247 = vrot.slane %v5245, 7
        %v5248 = vshll.u32 %v5032, 16
        %v5250 = vor.u32 %v5247, %v5248
        %v5251 = vrot.slane %v5247, 4
        %v5253 = vshrl.u32 %v5033, 16
        %v5255 = vrot.slane %v5253, 7
        %v5256 = vshll.u32 %v5033, 16
        %v5258 = vor.u32 %v5255, %v5256
        %v5259 = vsel %vm541, %v5251, %v5258
        %v5260 = vrot.slane %v5255, 4
        %v5262 = vshrl.u32 %v5034, 16
        %v5264 = vrot.slane %v5262, 7
        %v5265 = vshll.u32 %v5034, 16
        %v5267 = vor.u32 %v5264, %v5265
        %v5268 = vrot.slane %v5264, 4
        %v5270 = vshrl.u32 %v5035, 16
        %v5272 = vrot.slane %v5270, 7
        %v5273 = vshll.u32 %v5035, 16
        %v5275 = vor.u32 %v5272, %v5273
        %v5276 = vsel %vm541, %v5268, %v5275
        %v5277 = vrot.slane %v5272, 4
        %v5279 = vshrl.u32 %v5036, 16
        %v5281 = vrot.slane %v5279, 7
        %v5282 = vshll.u32 %v5036, 16
        %v5284 = vor.u32 %v5281, %v5282
        %v5285 = vrot.slane %v5281, 4
        %v5287 = vshrl.u32 %v5037, 16
        %v5289 = vrot.slane %v5287, 7
        %v5290 = vshll.u32 %v5037, 16
        %v5292 = vor.u32 %v5289, %v5290
        %v5293 = vsel %vm541, %v5285, %v5292
        %v5294 = vrot.slane %v5289, 4
        %v5296 = vshrl.u32 %v5038, 16
        %v5298 = vrot.slane %v5296, 7
        %v5299 = vshll.u32 %v5038, 16
        %v5301 = vor.u32 %v5298, %v5299
        %v5302 = vrot.slane %v5298, 4
        %v5304 = vshrl.u32 %v5039, 16
        %v5306 = vrot.slane %v5304, 7
        %v5307 = vshll.u32 %v5039, 16
        %v5309 = vor.u32 %v5306, %v5307
        %v5310 = vsel %vm541, %v5302, %v5309
        %v5311 = vrot.slane %v5306, 4
        %s5360 = scalar_lea.vmem [#allocation3], 12
        %v5361 = vld [vmem:[%s5360] sm:$0xf]
        %v5362 = vsel %vm864, %v5046, %v5361
        %5363 = vst [vmem:[%s5360] sm:$0xf] %v5362
        %5364 = vst [vmem:[%s5360 + $0x4] sm:$0xf] %v5055
        %v5365 = vld [vmem:[%s5360 + $0x8] sm:$0x1]
        %v5366 = vsel %vm282, %v5056, %v5365
        %5367 = vst [vmem:[%s5360 + $0x8] sm:$0x1] %v5366
        %v5368 = vld [vmem:[%s5360 + $0xc] sm:$0xf]
        %v5369 = vsel %vm864, %v5063, %v5368
        %5370 = vst [vmem:[%s5360 + $0xc] sm:$0xf] %v5369
        %5371 = vst [vmem:[%s5360 + $0x10] sm:$0xf] %v5072
        %v5372 = vld [vmem:[%s5360 + $0x14] sm:$0x1]
        %v5373 = vsel %vm282, %v5073, %v5372
        %5374 = vst [vmem:[%s5360 + $0x14] sm:$0x1] %v5373
        %v5375 = vld [vmem:[%s5360 + $0x18] sm:$0xf]
        %v5376 = vsel %vm864, %v5080, %v5375
        %5377 = vst [vmem:[%s5360 + $0x18] sm:$0xf] %v5376
        %5378 = vst [vmem:[%s5360 + $0x1c] sm:$0xf] %v5089
        %v5379 = vld [vmem:[%s5360 + $0x20] sm:$0x1]
        %v5380 = vsel %vm282, %v5090, %v5379
        %5381 = vst [vmem:[%s5360 + $0x20] sm:$0x1] %v5380
        %v5382 = vld [vmem:[%s5360 + $0x24] sm:$0xf]
        %v5383 = vsel %vm864, %v5097, %v5382
        %5384 = vst [vmem:[%s5360 + $0x24] sm:$0xf] %v5383
        %5385 = vst [vmem:[%s5360 + $0x28] sm:$0xf] %v5106
        %v5386 = vld [vmem:[%s5360 + $0x2c] sm:$0x1]
        %v5387 = vsel %vm282, %v5107, %v5386
        %5388 = vst [vmem:[%s5360 + $0x2c] sm:$0x1] %v5387
        %v5389 = vld [vmem:[%s5360 + $0x30] sm:$0xf]
        %v5390 = vsel %vm864, %v5114, %v5389
        %5391 = vst [vmem:[%s5360 + $0x30] sm:$0xf] %v5390
        %5392 = vst [vmem:[%s5360 + $0x34] sm:$0xf] %v5123
        %v5393 = vld [vmem:[%s5360 + $0x38] sm:$0x1]
        %v5394 = vsel %vm282, %v5124, %v5393
        %5395 = vst [vmem:[%s5360 + $0x38] sm:$0x1] %v5394
        %v5396 = vld [vmem:[%s5360 + $0x3c] sm:$0xf]
        %v5397 = vsel %vm864, %v5131, %v5396
        %5398 = vst [vmem:[%s5360 + $0x3c] sm:$0xf] %v5397
        %5399 = vst [vmem:[%s5360 + $0x40] sm:$0xf] %v5140
        %v5400 = vld [vmem:[%s5360 + $0x44] sm:$0x1]
        %v5401 = vsel %vm282, %v5141, %v5400
        %5402 = vst [vmem:[%s5360 + $0x44] sm:$0x1] %v5401
        %v5403 = vld [vmem:[%s5360 + $0x48] sm:$0xf]
        %v5404 = vsel %vm864, %v5148, %v5403
        %5405 = vst [vmem:[%s5360 + $0x48] sm:$0xf] %v5404
        %5406 = vst [vmem:[%s5360 + $0x4c] sm:$0xf] %v5157
        %v5407 = vld [vmem:[%s5360 + $0x50] sm:$0x1]
        %v5408 = vsel %vm282, %v5158, %v5407
        %5409 = vst [vmem:[%s5360 + $0x50] sm:$0x1] %v5408
        %v5410 = vld [vmem:[%s5360 + $0x54] sm:$0xf]
        %v5411 = vsel %vm864, %v5165, %v5410
        %5412 = vst [vmem:[%s5360 + $0x54] sm:$0xf] %v5411
        %5413 = vst [vmem:[%s5360 + $0x58] sm:$0xf] %v5174
        %v5414 = vld [vmem:[%s5360 + $0x5c] sm:$0x1]
        %v5415 = vsel %vm282, %v5175, %v5414
        %5416 = vst [vmem:[%s5360 + $0x5c] sm:$0x1] %v5415
        %v5417 = vld [vmem:[%s5360 + $0x60] sm:$0xf]
        %v5418 = vsel %vm864, %v5182, %v5417
        %5419 = vst [vmem:[%s5360 + $0x60] sm:$0xf] %v5418
        %5420 = vst [vmem:[%s5360 + $0x64] sm:$0xf] %v5191
        %v5421 = vld [vmem:[%s5360 + $0x68] sm:$0x1]
        %v5422 = vsel %vm282, %v5192, %v5421
        %5423 = vst [vmem:[%s5360 + $0x68] sm:$0x1] %v5422
        %v5424 = vld [vmem:[%s5360 + $0x6c] sm:$0xf]
        %v5425 = vsel %vm864, %v5199, %v5424
        %5426 = vst [vmem:[%s5360 + $0x6c] sm:$0xf] %v5425
        %5427 = vst [vmem:[%s5360 + $0x70] sm:$0xf] %v5208
        %v5428 = vld [vmem:[%s5360 + $0x74] sm:$0x1]
        %v5429 = vsel %vm282, %v5209, %v5428
        %5430 = vst [vmem:[%s5360 + $0x74] sm:$0x1] %v5429
        %v5431 = vld [vmem:[%s5360 + $0x78] sm:$0xf]
        %v5432 = vsel %vm864, %v5216, %v5431
        %5433 = vst [vmem:[%s5360 + $0x78] sm:$0xf] %v5432
        %5434 = vst [vmem:[%s5360 + $0x7c] sm:$0xf] %v5225
        %v5435 = vld [vmem:[%s5360 + $0x80] sm:$0x1]
        %v5436 = vsel %vm282, %v5226, %v5435
        %5437 = vst [vmem:[%s5360 + $0x80] sm:$0x1] %v5436
        %v5438 = vld [vmem:[%s5360 + $0x84] sm:$0xf]
        %v5439 = vsel %vm864, %v5233, %v5438
        %5440 = vst [vmem:[%s5360 + $0x84] sm:$0xf] %v5439
        %5441 = vst [vmem:[%s5360 + $0x88] sm:$0xf] %v5242
        %v5442 = vld [vmem:[%s5360 + $0x8c] sm:$0x1]
        %v5443 = vsel %vm282, %v5243, %v5442
        %5444 = vst [vmem:[%s5360 + $0x8c] sm:$0x1] %v5443
        %v5445 = vld [vmem:[%s5360 + $0x90] sm:$0xf]
        %v5446 = vsel %vm864, %v5250, %v5445
        %5447 = vst [vmem:[%s5360 + $0x90] sm:$0xf] %v5446
        %5448 = vst [vmem:[%s5360 + $0x94] sm:$0xf] %v5259
        %v5449 = vld [vmem:[%s5360 + $0x98] sm:$0x1]
        %v5450 = vsel %vm282, %v5260, %v5449
        %5451 = vst [vmem:[%s5360 + $0x98] sm:$0x1] %v5450
        %v5452 = vld [vmem:[%s5360 + $0x9c] sm:$0xf]
        %v5453 = vsel %vm864, %v5267, %v5452
        %5454 = vst [vmem:[%s5360 + $0x9c] sm:$0xf] %v5453
        %5455 = vst [vmem:[%s5360 + $0xa0] sm:$0xf] %v5276
        %v5456 = vld [vmem:[%s5360 + $0xa4] sm:$0x1]
        %v5457 = vsel %vm282, %v5277, %v5456
        %5458 = vst [vmem:[%s5360 + $0xa4] sm:$0x1] %v5457
        %v5459 = vld [vmem:[%s5360 + $0xa8] sm:$0xf]
        %v5460 = vsel %vm864, %v5284, %v5459
        %5461 = vst [vmem:[%s5360 + $0xa8] sm:$0xf] %v5460
        %5462 = vst [vmem:[%s5360 + $0xac] sm:$0xf] %v5293
        %v5463 = vld [vmem:[%s5360 + $0xb0] sm:$0x1]
        %v5464 = vsel %vm282, %v5294, %v5463
        %5465 = vst [vmem:[%s5360 + $0xb0] sm:$0x1] %v5464
        %v5466 = vld [vmem:[%s5360 + $0xb4] sm:$0xf]
        %v5467 = vsel %vm864, %v5301, %v5466
        %5468 = vst [vmem:[%s5360 + $0xb4] sm:$0xf] %v5467
        %5469 = vst [vmem:[%s5360 + $0xb8] sm:$0xf] %v5310
        %v5470 = vld [vmem:[%s5360 + $0xbc] sm:$0x1]
        %v5471 = vsel %vm282, %v5311, %v5470
        %5472 = vst [vmem:[%s5360 + $0xbc] sm:$0x1] %v5471
        %v5473 = vld [vmem:[#allocation3] sm:$0xf]
        %v5474 = vld [vmem:[#allocation3 + $0x4] sm:$0xf]
        %v5475 = vld [vmem:[#allocation3 + $0xc] sm:$0xf]
        %v5476 = vld [vmem:[#allocation3 + $0x10] sm:$0xf]
        %v5477 = vld [vmem:[#allocation3 + $0x18] sm:$0xf]
        %v5478 = vld [vmem:[#allocation3 + $0x1c] sm:$0xf]
        %v5479 = vld [vmem:[#allocation3 + $0x24] sm:$0xf]
        %v5480 = vld [vmem:[#allocation3 + $0x28] sm:$0xf]
        %v5481 = vld [vmem:[#allocation3 + $0x30] sm:$0xf]
        %v5482 = vld [vmem:[#allocation3 + $0x34] sm:$0xf]
        %v5483 = vld [vmem:[#allocation3 + $0x3c] sm:$0xf]
        %v5484 = vld [vmem:[#allocation3 + $0x40] sm:$0xf]
        %v5485 = vld [vmem:[#allocation3 + $0x48] sm:$0xf]
        %v5486 = vld [vmem:[#allocation3 + $0x4c] sm:$0xf]
        %v5487 = vld [vmem:[#allocation3 + $0x54] sm:$0xf]
        %v5488 = vld [vmem:[#allocation3 + $0x58] sm:$0xf]
        %v5489 = vld [vmem:[#allocation3 + $0x60] sm:$0xf]
        %v5490 = vld [vmem:[#allocation3 + $0x64] sm:$0xf]
        %v5491 = vld [vmem:[#allocation3 + $0x6c] sm:$0xf]
        %v5492 = vld [vmem:[#allocation3 + $0x70] sm:$0xf]
        %v5493 = vld [vmem:[#allocation3 + $0x78] sm:$0xf]
        %v5494 = vld [vmem:[#allocation3 + $0x7c] sm:$0xf]
        %v5495 = vld [vmem:[#allocation3 + $0x84] sm:$0xf]
        %v5496 = vld [vmem:[#allocation3 + $0x88] sm:$0xf]
        %v5497 = vld [vmem:[#allocation3 + $0x90] sm:$0xf]
        %v5498 = vld [vmem:[#allocation3 + $0x94] sm:$0xf]
        %v5499 = vld [vmem:[#allocation3 + $0x9c] sm:$0xf]
        %v5500 = vld [vmem:[#allocation3 + $0xa0] sm:$0xf]
        %v5501 = vld [vmem:[#allocation3 + $0xa8] sm:$0xf]
        %v5502 = vld [vmem:[#allocation3 + $0xac] sm:$0xf]
        %v5503 = vld [vmem:[#allocation3 + $0xb4] sm:$0xf]
        %v5504 = vld [vmem:[#allocation3 + $0xb8] sm:$0xf]
        %v5537 = vunpack.c.l.b16 %v5473
        %v5538 = vunpack.c.l.b16 %v5474
        %v5539 = vunpack.c.l.b16 %v5475
        %v5540 = vunpack.c.l.b16 %v5476
        %v5541 = vunpack.c.l.b16 %v5477
        %v5542 = vunpack.c.l.b16 %v5478
        %v5543 = vunpack.c.l.b16 %v5479
        %v5544 = vunpack.c.l.b16 %v5480
        %v5545 = vunpack.c.l.b16 %v5481
        %v5546 = vunpack.c.l.b16 %v5482
        %v5547 = vunpack.c.l.b16 %v5483
        %v5548 = vunpack.c.l.b16 %v5484
        %v5549 = vunpack.c.l.b16 %v5485
        %v5550 = vunpack.c.l.b16 %v5486
        %v5551 = vunpack.c.l.b16 %v5487
        %v5552 = vunpack.c.l.b16 %v5488
        %v5553 = vunpack.c.l.b16 %v5489
        %v5554 = vunpack.c.l.b16 %v5490
        %v5555 = vunpack.c.l.b16 %v5491
        %v5556 = vunpack.c.l.b16 %v5492
        %v5557 = vunpack.c.l.b16 %v5493
        %v5558 = vunpack.c.l.b16 %v5494
        %v5559 = vunpack.c.l.b16 %v5495
        %v5560 = vunpack.c.l.b16 %v5496
        %v5561 = vunpack.c.l.b16 %v5497
        %v5562 = vunpack.c.l.b16 %v5498
        %v5563 = vunpack.c.l.b16 %v5499
        %v5564 = vunpack.c.l.b16 %v5500
        %v5565 = vunpack.c.l.b16 %v5501
        %v5566 = vunpack.c.l.b16 %v5502
        %v5567 = vunpack.c.l.b16 %v5503
        %v5568 = vunpack.c.l.b16 %v5504
        %v5569 = vpack.c.b16 %v5538, %v5537
        %v5570 = vpack.c.b16 %v5540, %v5539
        %v5571 = vpack.c.b16 %v5542, %v5541
        %v5572 = vpack.c.b16 %v5544, %v5543
        %v5573 = vpack.c.b16 %v5546, %v5545
        %v5574 = vpack.c.b16 %v5548, %v5547
        %v5575 = vpack.c.b16 %v5550, %v5549
        %v5576 = vpack.c.b16 %v5552, %v5551
        %v5577 = vpack.c.b16 %v5554, %v5553
        %v5578 = vpack.c.b16 %v5556, %v5555
        %v5579 = vpack.c.b16 %v5558, %v5557
        %v5580 = vpack.c.b16 %v5560, %v5559
        %v5581 = vpack.c.b16 %v5562, %v5561
        %v5582 = vpack.c.b16 %v5564, %v5563
        %v5583 = vpack.c.b16 %v5566, %v5565
        %v5584 = vpack.c.b16 %v5568, %v5567
        %5601 = vst [vmem:[#allocation4] sm:$0xff] %v5569
        %5602 = vst [vmem:[#allocation4 + $0x48] sm:$0xff] %v5570
        %5603 = vst [vmem:[#allocation4 + $0x90] sm:$0xff] %v5571
        %5604 = vst [vmem:[#allocation4 + $0xd8] sm:$0xff] %v5572
        %5605 = vst [vmem:[#allocation4 + $0x120] sm:$0xff] %v5573
        %5606 = vst [vmem:[#allocation4 + $0x168] sm:$0xff] %v5574
        %5607 = vst [vmem:[#allocation4 + $0x1b0] sm:$0xff] %v5575
        %5608 = vst [vmem:[#allocation4 + $0x1f8] sm:$0xff] %v5576
        %5609 = vst [vmem:[#allocation4 + $0x240] sm:$0xff] %v5577
        %5610 = vst [vmem:[#allocation4 + $0x288] sm:$0xff] %v5578
        %5611 = vst [vmem:[#allocation4 + $0x2d0] sm:$0xff] %v5579
        %5612 = vst [vmem:[#allocation4 + $0x318] sm:$0xff] %v5580
        %5613 = vst [vmem:[#allocation4 + $0x360] sm:$0xff] %v5581
        %5614 = vst [vmem:[#allocation4 + $0x3a8] sm:$0xff] %v5582
        %5615 = vst [vmem:[#allocation4 + $0x3f0] sm:$0xff] %v5583
        %5616 = vst [vmem:[#allocation4 + $0x438] sm:$0xff] %v5584
        %v5617 = vld [vmem:[#allocation3] sm:$0xf]
        %v5618 = vld [vmem:[#allocation3 + $0x4] sm:$0xf]
        %v5619 = vld [vmem:[#allocation3 + $0x8] sm:$0x1]
        %v5620 = vld [vmem:[#allocation3 + $0xc] sm:$0xf]
        %v5621 = vld [vmem:[#allocation3 + $0x10] sm:$0xf]
        %v5622 = vld [vmem:[#allocation3 + $0x14] sm:$0x1]
        %v5623 = vld [vmem:[#allocation3 + $0x18] sm:$0xf]
        %v5624 = vld [vmem:[#allocation3 + $0x1c] sm:$0xf]
        %v5625 = vld [vmem:[#allocation3 + $0x20] sm:$0x1]
        %v5626 = vld [vmem:[#allocation3 + $0x24] sm:$0xf]
        %v5627 = vld [vmem:[#allocation3 + $0x28] sm:$0xf]
        %v5628 = vld [vmem:[#allocation3 + $0x2c] sm:$0x1]
        %v5629 = vld [vmem:[#allocation3 + $0x30] sm:$0xf]
        %v5630 = vld [vmem:[#allocation3 + $0x34] sm:$0xf]
        %v5631 = vld [vmem:[#allocation3 + $0x38] sm:$0x1]
        %v5632 = vld [vmem:[#allocation3 + $0x3c] sm:$0xf]
        %v5633 = vld [vmem:[#allocation3 + $0x40] sm:$0xf]
        %v5634 = vld [vmem:[#allocation3 + $0x44] sm:$0x1]
        %v5635 = vld [vmem:[#allocation3 + $0x48] sm:$0xf]
        %v5636 = vld [vmem:[#allocation3 + $0x4c] sm:$0xf]
        %v5637 = vld [vmem:[#allocation3 + $0x50] sm:$0x1]
        %v5638 = vld [vmem:[#allocation3 + $0x54] sm:$0xf]
        %v5639 = vld [vmem:[#allocation3 + $0x58] sm:$0xf]
        %v5640 = vld [vmem:[#allocation3 + $0x5c] sm:$0x1]
        %v5641 = vld [vmem:[#allocation3 + $0x60] sm:$0xf]
        %v5642 = vld [vmem:[#allocation3 + $0x64] sm:$0xf]
        %v5643 = vld [vmem:[#allocation3 + $0x68] sm:$0x1]
        %v5644 = vld [vmem:[#allocation3 + $0x6c] sm:$0xf]
        %v5645 = vld [vmem:[#allocation3 + $0x70] sm:$0xf]
        %v5646 = vld [vmem:[#allocation3 + $0x74] sm:$0x1]
        %v5647 = vld [vmem:[#allocation3 + $0x78] sm:$0xf]
        %v5648 = vld [vmem:[#allocation3 + $0x7c] sm:$0xf]
        %v5649 = vld [vmem:[#allocation3 + $0x80] sm:$0x1]
        %v5650 = vld [vmem:[#allocation3 + $0x84] sm:$0xf]
        %v5651 = vld [vmem:[#allocation3 + $0x88] sm:$0xf]
        %v5652 = vld [vmem:[#allocation3 + $0x8c] sm:$0x1]
        %v5653 = vld [vmem:[#allocation3 + $0x90] sm:$0xf]
        %v5654 = vld [vmem:[#allocation3 + $0x94] sm:$0xf]
        %v5655 = vld [vmem:[#allocation3 + $0x98] sm:$0x1]
        %v5656 = vld [vmem:[#allocation3 + $0x9c] sm:$0xf]
        %v5657 = vld [vmem:[#allocation3 + $0xa0] sm:$0xf]
        %v5658 = vld [vmem:[#allocation3 + $0xa4] sm:$0x1]
        %v5659 = vld [vmem:[#allocation3 + $0xa8] sm:$0xf]
        %v5660 = vld [vmem:[#allocation3 + $0xac] sm:$0xf]
        %v5661 = vld [vmem:[#allocation3 + $0xb0] sm:$0x1]
        %v5662 = vld [vmem:[#allocation3 + $0xb4] sm:$0xf]
        %v5663 = vld [vmem:[#allocation3 + $0xb8] sm:$0xf]
        %v5664 = vld [vmem:[#allocation3 + $0xbc] sm:$0x1]
        %v5713 = vunpack.c.l.b16 %v5617
        %v5714 = vunpack.c.l.b16 %v5618
        %v5715 = vunpack.c.l.b16 %v5619
        %v5716 = vunpack.c.l.b16 %v5620
        %v5717 = vunpack.c.l.b16 %v5621
        %v5718 = vunpack.c.l.b16 %v5622
        %v5719 = vunpack.c.l.b16 %v5623
        %v5720 = vunpack.c.l.b16 %v5624
        %v5721 = vunpack.c.l.b16 %v5625
        %v5722 = vunpack.c.l.b16 %v5626
        %v5723 = vunpack.c.l.b16 %v5627
        %v5724 = vunpack.c.l.b16 %v5628
        %v5725 = vunpack.c.l.b16 %v5629
        %v5726 = vunpack.c.l.b16 %v5630
        %v5727 = vunpack.c.l.b16 %v5631
        %v5728 = vunpack.c.l.b16 %v5632
        %v5729 = vunpack.c.l.b16 %v5633
        %v5730 = vunpack.c.l.b16 %v5634
        %v5731 = vunpack.c.l.b16 %v5635
        %v5732 = vunpack.c.l.b16 %v5636
        %v5733 = vunpack.c.l.b16 %v5637
        %v5734 = vunpack.c.l.b16 %v5638
        %v5735 = vunpack.c.l.b16 %v5639
        %v5736 = vunpack.c.l.b16 %v5640
        %v5737 = vunpack.c.l.b16 %v5641
        %v5738 = vunpack.c.l.b16 %v5642
        %v5739 = vunpack.c.l.b16 %v5643
        %v5740 = vunpack.c.l.b16 %v5644
        %v5741 = vunpack.c.l.b16 %v5645
        %v5742 = vunpack.c.l.b16 %v5646
        %v5743 = vunpack.c.l.b16 %v5647
        %v5744 = vunpack.c.l.b16 %v5648
        %v5745 = vunpack.c.l.b16 %v5649
        %v5746 = vunpack.c.l.b16 %v5650
        %v5747 = vunpack.c.l.b16 %v5651
        %v5748 = vunpack.c.l.b16 %v5652
        %v5749 = vunpack.c.l.b16 %v5653
        %v5750 = vunpack.c.l.b16 %v5654
        %v5751 = vunpack.c.l.b16 %v5655
        %v5752 = vunpack.c.l.b16 %v5656
        %v5753 = vunpack.c.l.b16 %v5657
        %v5754 = vunpack.c.l.b16 %v5658
        %v5755 = vunpack.c.l.b16 %v5659
        %v5756 = vunpack.c.l.b16 %v5660
        %v5757 = vunpack.c.l.b16 %v5661
        %v5758 = vunpack.c.l.b16 %v5662
        %v5759 = vunpack.c.l.b16 %v5663
        %v5760 = vunpack.c.l.b16 %v5664
        %v5761 = vpack.c.b16 %v5714, %v5713
        %v5762 = vpack.c.b16 %v5715, %v5715
        %v5763 = vpack.c.b16 %v5717, %v5716
        %v5764 = vpack.c.b16 %v5718, %v5718
        %v5765 = vpack.c.b16 %v5720, %v5719
        %v5766 = vpack.c.b16 %v5721, %v5721
        %v5767 = vpack.c.b16 %v5723, %v5722
        %v5768 = vpack.c.b16 %v5724, %v5724
        %v5769 = vpack.c.b16 %v5726, %v5725
        %v5770 = vpack.c.b16 %v5727, %v5727
        %v5771 = vpack.c.b16 %v5729, %v5728
        %v5772 = vpack.c.b16 %v5730, %v5730
        %v5773 = vpack.c.b16 %v5732, %v5731
        %v5774 = vpack.c.b16 %v5733, %v5733
        %v5775 = vpack.c.b16 %v5735, %v5734
        %v5776 = vpack.c.b16 %v5736, %v5736
        %v5777 = vpack.c.b16 %v5738, %v5737
        %v5778 = vpack.c.b16 %v5739, %v5739
        %v5779 = vpack.c.b16 %v5741, %v5740
        %v5780 = vpack.c.b16 %v5742, %v5742
        %v5781 = vpack.c.b16 %v5744, %v5743
        %v5782 = vpack.c.b16 %v5745, %v5745
        %v5783 = vpack.c.b16 %v5747, %v5746
        %v5784 = vpack.c.b16 %v5748, %v5748
        %v5785 = vpack.c.b16 %v5750, %v5749
        %v5786 = vpack.c.b16 %v5751, %v5751
        %v5787 = vpack.c.b16 %v5753, %v5752
        %v5788 = vpack.c.b16 %v5754, %v5754
        %v5789 = vpack.c.b16 %v5756, %v5755
        %v5790 = vpack.c.b16 %v5757, %v5757
        %v5791 = vpack.c.b16 %v5759, %v5758
        %v5792 = vpack.c.b16 %v5760, %v5760
        %v5794 = vshrl.u32 %v5761, 16
        %v5796 = vshll.u32 %v5761, 16
        %v5798 = vrot.slane %v5796, 1
        %v5799 = vor.u32 %v5794, %v5798
        %v5801 = vshll.u32 %v5762, 16
        %v5803 = vrot.slane %v5801, 1
        %v5804 = vsel %vm1297, %v5799, %v5803
        %v5806 = vshrl.u32 %v5763, 16
        %v5808 = vshll.u32 %v5763, 16
        %v5810 = vrot.slane %v5808, 1
        %v5811 = vor.u32 %v5806, %v5810
        %v5813 = vshll.u32 %v5764, 16
        %v5815 = vrot.slane %v5813, 1
        %v5816 = vsel %vm1297, %v5811, %v5815
        %v5818 = vshrl.u32 %v5765, 16
        %v5820 = vshll.u32 %v5765, 16
        %v5822 = vrot.slane %v5820, 1
        %v5823 = vor.u32 %v5818, %v5822
        %v5825 = vshll.u32 %v5766, 16
        %v5827 = vrot.slane %v5825, 1
        %v5828 = vsel %vm1297, %v5823, %v5827
        %v5830 = vshrl.u32 %v5767, 16
        %v5832 = vshll.u32 %v5767, 16
        %v5834 = vrot.slane %v5832, 1
        %v5835 = vor.u32 %v5830, %v5834
        %v5837 = vshll.u32 %v5768, 16
        %v5839 = vrot.slane %v5837, 1
        %v5840 = vsel %vm1297, %v5835, %v5839
        %v5842 = vshrl.u32 %v5769, 16
        %v5844 = vshll.u32 %v5769, 16
        %v5846 = vrot.slane %v5844, 1
        %v5847 = vor.u32 %v5842, %v5846
        %v5849 = vshll.u32 %v5770, 16
        %v5851 = vrot.slane %v5849, 1
        %v5852 = vsel %vm1297, %v5847, %v5851
        %v5854 = vshrl.u32 %v5771, 16
        %v5856 = vshll.u32 %v5771, 16
        %v5858 = vrot.slane %v5856, 1
        %v5859 = vor.u32 %v5854, %v5858
        %v5861 = vshll.u32 %v5772, 16
        %v5863 = vrot.slane %v5861, 1
        %v5864 = vsel %vm1297, %v5859, %v5863
        %v5866 = vshrl.u32 %v5773, 16
        %v5868 = vshll.u32 %v5773, 16
        %v5870 = vrot.slane %v5868, 1
        %v5871 = vor.u32 %v5866, %v5870
        %v5873 = vshll.u32 %v5774, 16
        %v5875 = vrot.slane %v5873, 1
        %v5876 = vsel %vm1297, %v5871, %v5875
        %v5878 = vshrl.u32 %v5775, 16
        %v5880 = vshll.u32 %v5775, 16
        %v5882 = vrot.slane %v5880, 1
        %v5883 = vor.u32 %v5878, %v5882
        %v5885 = vshll.u32 %v5776, 16
        %v5887 = vrot.slane %v5885, 1
        %v5888 = vsel %vm1297, %v5883, %v5887
        %v5890 = vshrl.u32 %v5777, 16
        %v5892 = vshll.u32 %v5777, 16
        %v5894 = vrot.slane %v5892, 1
        %v5895 = vor.u32 %v5890, %v5894
        %v5897 = vshll.u32 %v5778, 16
        %v5899 = vrot.slane %v5897, 1
        %v5900 = vsel %vm1297, %v5895, %v5899
        %v5902 = vshrl.u32 %v5779, 16
        %v5904 = vshll.u32 %v5779, 16
        %v5906 = vrot.slane %v5904, 1
        %v5907 = vor.u32 %v5902, %v5906
        %v5909 = vshll.u32 %v5780, 16
        %v5911 = vrot.slane %v5909, 1
        %v5912 = vsel %vm1297, %v5907, %v5911
        %v5914 = vshrl.u32 %v5781, 16
        %v5916 = vshll.u32 %v5781, 16
        %v5918 = vrot.slane %v5916, 1
        %v5919 = vor.u32 %v5914, %v5918
        %v5921 = vshll.u32 %v5782, 16
        %v5923 = vrot.slane %v5921, 1
        %v5924 = vsel %vm1297, %v5919, %v5923
        %v5926 = vshrl.u32 %v5783, 16
        %v5928 = vshll.u32 %v5783, 16
        %v5930 = vrot.slane %v5928, 1
        %v5931 = vor.u32 %v5926, %v5930
        %v5933 = vshll.u32 %v5784, 16
        %v5935 = vrot.slane %v5933, 1
        %v5936 = vsel %vm1297, %v5931, %v5935
        %v5938 = vshrl.u32 %v5785, 16
        %v5940 = vshll.u32 %v5785, 16
        %v5942 = vrot.slane %v5940, 1
        %v5943 = vor.u32 %v5938, %v5942
        %v5945 = vshll.u32 %v5786, 16
        %v5947 = vrot.slane %v5945, 1
        %v5948 = vsel %vm1297, %v5943, %v5947
        %v5950 = vshrl.u32 %v5787, 16
        %v5952 = vshll.u32 %v5787, 16
        %v5954 = vrot.slane %v5952, 1
        %v5955 = vor.u32 %v5950, %v5954
        %v5957 = vshll.u32 %v5788, 16
        %v5959 = vrot.slane %v5957, 1
        %v5960 = vsel %vm1297, %v5955, %v5959
        %v5962 = vshrl.u32 %v5789, 16
        %v5964 = vshll.u32 %v5789, 16
        %v5966 = vrot.slane %v5964, 1
        %v5967 = vor.u32 %v5962, %v5966
        %v5969 = vshll.u32 %v5790, 16
        %v5971 = vrot.slane %v5969, 1
        %v5972 = vsel %vm1297, %v5967, %v5971
        %v5974 = vshrl.u32 %v5791, 16
        %v5976 = vshll.u32 %v5791, 16
        %v5978 = vrot.slane %v5976, 1
        %v5979 = vor.u32 %v5974, %v5978
        %v5981 = vshll.u32 %v5792, 16
        %v5983 = vrot.slane %v5981, 1
        %v5984 = vsel %vm1297, %v5979, %v5983
        %6001 = vst [vmem:[#allocation4 + $0x8] sm:$0xff] %v5804
        %6002 = vst [vmem:[#allocation4 + $0x50] sm:$0xff] %v5816
        %6003 = vst [vmem:[#allocation4 + $0x98] sm:$0xff] %v5828
        %6004 = vst [vmem:[#allocation4 + $0xe0] sm:$0xff] %v5840
        %6005 = vst [vmem:[#allocation4 + $0x128] sm:$0xff] %v5852
        %6006 = vst [vmem:[#allocation4 + $0x170] sm:$0xff] %v5864
        %6007 = vst [vmem:[#allocation4 + $0x1b8] sm:$0xff] %v5876
        %6008 = vst [vmem:[#allocation4 + $0x200] sm:$0xff] %v5888
        %6009 = vst [vmem:[#allocation4 + $0x248] sm:$0xff] %v5900
        %6010 = vst [vmem:[#allocation4 + $0x290] sm:$0xff] %v5912
        %6011 = vst [vmem:[#allocation4 + $0x2d8] sm:$0xff] %v5924
        %6012 = vst [vmem:[#allocation4 + $0x320] sm:$0xff] %v5936
        %6013 = vst [vmem:[#allocation4 + $0x368] sm:$0xff] %v5948
        %6014 = vst [vmem:[#allocation4 + $0x3b0] sm:$0xff] %v5960
        %6015 = vst [vmem:[#allocation4 + $0x3f8] sm:$0xff] %v5972
        %6016 = vst [vmem:[#allocation4 + $0x440] sm:$0xff] %v5984
        %v6017 = vld [vmem:[#allocation3] sm:$0xe]
        %v6018 = vld [vmem:[#allocation3 + $0x4] sm:$0xf]
        %v6019 = vld [vmem:[#allocation3 + $0x8] sm:$0x1]
        %v6020 = vld [vmem:[#allocation3 + $0xc] sm:$0xe]
        %v6021 = vld [vmem:[#allocation3 + $0x10] sm:$0xf]
        %v6022 = vld [vmem:[#allocation3 + $0x14] sm:$0x1]
        %v6023 = vld [vmem:[#allocation3 + $0x18] sm:$0xe]
        %v6024 = vld [vmem:[#allocation3 + $0x1c] sm:$0xf]
        %v6025 = vld [vmem:[#allocation3 + $0x20] sm:$0x1]
        %v6026 = vld [vmem:[#allocation3 + $0x24] sm:$0xe]
        %v6027 = vld [vmem:[#allocation3 + $0x28] sm:$0xf]
        %v6028 = vld [vmem:[#allocation3 + $0x2c] sm:$0x1]
        %v6029 = vld [vmem:[#allocation3 + $0x30] sm:$0xe]
        %v6030 = vld [vmem:[#allocation3 + $0x34] sm:$0xf]
        %v6031 = vld [vmem:[#allocation3 + $0x38] sm:$0x1]
        %v6032 = vld [vmem:[#allocation3 + $0x3c] sm:$0xe]
        %v6033 = vld [vmem:[#allocation3 + $0x40] sm:$0xf]
        %v6034 = vld [vmem:[#allocation3 + $0x44] sm:$0x1]
        %v6035 = vld [vmem:[#allocation3 + $0x48] sm:$0xe]
        %v6036 = vld [vmem:[#allocation3 + $0x4c] sm:$0xf]
        %v6037 = vld [vmem:[#allocation3 + $0x50] sm:$0x1]
        %v6038 = vld [vmem:[#allocation3 + $0x54] sm:$0xe]
        %v6039 = vld [vmem:[#allocation3 + $0x58] sm:$0xf]
        %v6040 = vld [vmem:[#allocation3 + $0x5c] sm:$0x1]
        %v6041 = vld [vmem:[#allocation3 + $0x60] sm:$0xe]
        %v6042 = vld [vmem:[#allocation3 + $0x64] sm:$0xf]
        %v6043 = vld [vmem:[#allocation3 + $0x68] sm:$0x1]
        %v6044 = vld [vmem:[#allocation3 + $0x6c] sm:$0xe]
        %v6045 = vld [vmem:[#allocation3 + $0x70] sm:$0xf]
        %v6046 = vld [vmem:[#allocation3 + $0x74] sm:$0x1]
        %v6047 = vld [vmem:[#allocation3 + $0x78] sm:$0xe]
        %v6048 = vld [vmem:[#allocation3 + $0x7c] sm:$0xf]
        %v6049 = vld [vmem:[#allocation3 + $0x80] sm:$0x1]
        %v6050 = vld [vmem:[#allocation3 + $0x84] sm:$0xe]
        %v6051 = vld [vmem:[#allocation3 + $0x88] sm:$0xf]
        %v6052 = vld [vmem:[#allocation3 + $0x8c] sm:$0x1]
        %v6053 = vld [vmem:[#allocation3 + $0x90] sm:$0xe]
        %v6054 = vld [vmem:[#allocation3 + $0x94] sm:$0xf]
        %v6055 = vld [vmem:[#allocation3 + $0x98] sm:$0x1]
        %v6056 = vld [vmem:[#allocation3 + $0x9c] sm:$0xe]
        %v6057 = vld [vmem:[#allocation3 + $0xa0] sm:$0xf]
        %v6058 = vld [vmem:[#allocation3 + $0xa4] sm:$0x1]
        %v6059 = vld [vmem:[#allocation3 + $0xa8] sm:$0xe]
        %v6060 = vld [vmem:[#allocation3 + $0xac] sm:$0xf]
        %v6061 = vld [vmem:[#allocation3 + $0xb0] sm:$0x1]
        %v6062 = vld [vmem:[#allocation3 + $0xb4] sm:$0xe]
        %v6063 = vld [vmem:[#allocation3 + $0xb8] sm:$0xf]
        %v6064 = vld [vmem:[#allocation3 + $0xbc] sm:$0x1]
        %v6113 = vunpack.c.l.b16 %v6017
        %v6114 = vunpack.c.l.b16 %v6018
        %v6115 = vunpack.c.l.b16 %v6019
        %v6116 = vunpack.c.l.b16 %v6020
        %v6117 = vunpack.c.l.b16 %v6021
        %v6118 = vunpack.c.l.b16 %v6022
        %v6119 = vunpack.c.l.b16 %v6023
        %v6120 = vunpack.c.l.b16 %v6024
        %v6121 = vunpack.c.l.b16 %v6025
        %v6122 = vunpack.c.l.b16 %v6026
        %v6123 = vunpack.c.l.b16 %v6027
        %v6124 = vunpack.c.l.b16 %v6028
        %v6125 = vunpack.c.l.b16 %v6029
        %v6126 = vunpack.c.l.b16 %v6030
        %v6127 = vunpack.c.l.b16 %v6031
        %v6128 = vunpack.c.l.b16 %v6032
        %v6129 = vunpack.c.l.b16 %v6033
        %v6130 = vunpack.c.l.b16 %v6034
        %v6131 = vunpack.c.l.b16 %v6035
        %v6132 = vunpack.c.l.b16 %v6036
        %v6133 = vunpack.c.l.b16 %v6037
        %v6134 = vunpack.c.l.b16 %v6038
        %v6135 = vunpack.c.l.b16 %v6039
        %v6136 = vunpack.c.l.b16 %v6040
        %v6137 = vunpack.c.l.b16 %v6041
        %v6138 = vunpack.c.l.b16 %v6042
        %v6139 = vunpack.c.l.b16 %v6043
        %v6140 = vunpack.c.l.b16 %v6044
        %v6141 = vunpack.c.l.b16 %v6045
        %v6142 = vunpack.c.l.b16 %v6046
        %v6143 = vunpack.c.l.b16 %v6047
        %v6144 = vunpack.c.l.b16 %v6048
        %v6145 = vunpack.c.l.b16 %v6049
        %v6146 = vunpack.c.l.b16 %v6050
        %v6147 = vunpack.c.l.b16 %v6051
        %v6148 = vunpack.c.l.b16 %v6052
        %v6149 = vunpack.c.l.b16 %v6053
        %v6150 = vunpack.c.l.b16 %v6054
        %v6151 = vunpack.c.l.b16 %v6055
        %v6152 = vunpack.c.l.b16 %v6056
        %v6153 = vunpack.c.l.b16 %v6057
        %v6154 = vunpack.c.l.b16 %v6058
        %v6155 = vunpack.c.l.b16 %v6059
        %v6156 = vunpack.c.l.b16 %v6060
        %v6157 = vunpack.c.l.b16 %v6061
        %v6158 = vunpack.c.l.b16 %v6062
        %v6159 = vunpack.c.l.b16 %v6063
        %v6160 = vunpack.c.l.b16 %v6064
        %v6161 = vpack.c.b16 %v6114, %v6113
        %v6162 = vpack.c.b16 %v6115, %v6115
        %v6163 = vpack.c.b16 %v6117, %v6116
        %v6164 = vpack.c.b16 %v6118, %v6118
        %v6165 = vpack.c.b16 %v6120, %v6119
        %v6166 = vpack.c.b16 %v6121, %v6121
        %v6167 = vpack.c.b16 %v6123, %v6122
        %v6168 = vpack.c.b16 %v6124, %v6124
        %v6169 = vpack.c.b16 %v6126, %v6125
        %v6170 = vpack.c.b16 %v6127, %v6127
        %v6171 = vpack.c.b16 %v6129, %v6128
        %v6172 = vpack.c.b16 %v6130, %v6130
        %v6173 = vpack.c.b16 %v6132, %v6131
        %v6174 = vpack.c.b16 %v6133, %v6133
        %v6175 = vpack.c.b16 %v6135, %v6134
        %v6176 = vpack.c.b16 %v6136, %v6136
        %v6177 = vpack.c.b16 %v6138, %v6137
        %v6178 = vpack.c.b16 %v6139, %v6139
        %v6179 = vpack.c.b16 %v6141, %v6140
        %v6180 = vpack.c.b16 %v6142, %v6142
        %v6181 = vpack.c.b16 %v6144, %v6143
        %v6182 = vpack.c.b16 %v6145, %v6145
        %v6183 = vpack.c.b16 %v6147, %v6146
        %v6184 = vpack.c.b16 %v6148, %v6148
        %v6185 = vpack.c.b16 %v6150, %v6149
        %v6186 = vpack.c.b16 %v6151, %v6151
        %v6187 = vpack.c.b16 %v6153, %v6152
        %v6188 = vpack.c.b16 %v6154, %v6154
        %v6189 = vpack.c.b16 %v6156, %v6155
        %v6190 = vpack.c.b16 %v6157, %v6157
        %v6191 = vpack.c.b16 %v6159, %v6158
        %v6192 = vpack.c.b16 %v6160, %v6160
        %v6193 = vrot.slane %v6161, 1
        %v6194 = vrot.slane %v6162, 1
        %v6195 = vsel %vm1698, %v6193, %v6194
        %v6196 = vrot.slane %v6163, 1
        %v6197 = vrot.slane %v6164, 1
        %v6198 = vsel %vm1698, %v6196, %v6197
        %v6199 = vrot.slane %v6165, 1
        %v6200 = vrot.slane %v6166, 1
        %v6201 = vsel %vm1698, %v6199, %v6200
        %v6202 = vrot.slane %v6167, 1
        %v6203 = vrot.slane %v6168, 1
        %v6204 = vsel %vm1698, %v6202, %v6203
        %v6205 = vrot.slane %v6169, 1
        %v6206 = vrot.slane %v6170, 1
        %v6207 = vsel %vm1698, %v6205, %v6206
        %v6208 = vrot.slane %v6171, 1
        %v6209 = vrot.slane %v6172, 1
        %v6210 = vsel %vm1698, %v6208, %v6209
        %v6211 = vrot.slane %v6173, 1
        %v6212 = vrot.slane %v6174, 1
        %v6213 = vsel %vm1698, %v6211, %v6212
        %v6214 = vrot.slane %v6175, 1
        %v6215 = vrot.slane %v6176, 1
        %v6216 = vsel %vm1698, %v6214, %v6215
        %v6217 = vrot.slane %v6177, 1
        %v6218 = vrot.slane %v6178, 1
        %v6219 = vsel %vm1698, %v6217, %v6218
        %v6220 = vrot.slane %v6179, 1
        %v6221 = vrot.slane %v6180, 1
        %v6222 = vsel %vm1698, %v6220, %v6221
        %v6223 = vrot.slane %v6181, 1
        %v6224 = vrot.slane %v6182, 1
        %v6225 = vsel %vm1698, %v6223, %v6224
        %v6226 = vrot.slane %v6183, 1
        %v6227 = vrot.slane %v6184, 1
        %v6228 = vsel %vm1698, %v6226, %v6227
        %v6229 = vrot.slane %v6185, 1
        %v6230 = vrot.slane %v6186, 1
        %v6231 = vsel %vm1698, %v6229, %v6230
        %v6232 = vrot.slane %v6187, 1
        %v6233 = vrot.slane %v6188, 1
        %v6234 = vsel %vm1698, %v6232, %v6233
        %v6235 = vrot.slane %v6189, 1
        %v6236 = vrot.slane %v6190, 1
        %v6237 = vsel %vm1698, %v6235, %v6236
        %v6238 = vrot.slane %v6191, 1
        %v6239 = vrot.slane %v6192, 1
        %v6240 = vsel %vm1698, %v6238, %v6239
        %6257 = vst [vmem:[#allocation4 + $0x10] sm:$0xff] %v6195
        %6258 = vst [vmem:[#allocation4 + $0x58] sm:$0xff] %v6198
        %6259 = vst [vmem:[#allocation4 + $0xa0] sm:$0xff] %v6201
        %6260 = vst [vmem:[#allocation4 + $0xe8] sm:$0xff] %v6204
        %6261 = vst [vmem:[#allocation4 + $0x130] sm:$0xff] %v6207
        %6262 = vst [vmem:[#allocation4 + $0x178] sm:$0xff] %v6210
        %6263 = vst [vmem:[#allocation4 + $0x1c0] sm:$0xff] %v6213
        %6264 = vst [vmem:[#allocation4 + $0x208] sm:$0xff] %v6216
        %6265 = vst [vmem:[#allocation4 + $0x250] sm:$0xff] %v6219
        %6266 = vst [vmem:[#allocation4 + $0x298] sm:$0xff] %v6222
        %6267 = vst [vmem:[#allocation4 + $0x2e0] sm:$0xff] %v6225
        %6268 = vst [vmem:[#allocation4 + $0x328] sm:$0xff] %v6228
        %6269 = vst [vmem:[#allocation4 + $0x370] sm:$0xff] %v6231
        %6270 = vst [vmem:[#allocation4 + $0x3b8] sm:$0xff] %v6234
        %6271 = vst [vmem:[#allocation4 + $0x400] sm:$0xff] %v6237
        %6272 = vst [vmem:[#allocation4 + $0x448] sm:$0xff] %v6240
        %v6273 = vld [vmem:[%s5360] sm:$0xf]
        %v6274 = vld [vmem:[%s5360 + $0x4] sm:$0xf]
        %v6275 = vld [vmem:[%s5360 + $0xc] sm:$0xf]
        %v6276 = vld [vmem:[%s5360 + $0x10] sm:$0xf]
        %v6277 = vld [vmem:[%s5360 + $0x18] sm:$0xf]
        %v6278 = vld [vmem:[%s5360 + $0x1c] sm:$0xf]
        %v6279 = vld [vmem:[%s5360 + $0x24] sm:$0xf]
        %v6280 = vld [vmem:[%s5360 + $0x28] sm:$0xf]
        %v6281 = vld [vmem:[%s5360 + $0x30] sm:$0xf]
        %v6282 = vld [vmem:[%s5360 + $0x34] sm:$0xf]
        %v6283 = vld [vmem:[%s5360 + $0x3c] sm:$0xf]
        %v6284 = vld [vmem:[%s5360 + $0x40] sm:$0xf]
        %v6285 = vld [vmem:[%s5360 + $0x48] sm:$0xf]
        %v6286 = vld [vmem:[%s5360 + $0x4c] sm:$0xf]
        %v6287 = vld [vmem:[%s5360 + $0x54] sm:$0xf]
        %v6288 = vld [vmem:[%s5360 + $0x58] sm:$0xf]
        %v6289 = vld [vmem:[%s5360 + $0x60] sm:$0xf]
        %v6290 = vld [vmem:[%s5360 + $0x64] sm:$0xf]
        %v6291 = vld [vmem:[%s5360 + $0x6c] sm:$0xf]
        %v6292 = vld [vmem:[%s5360 + $0x70] sm:$0xf]
        %v6293 = vld [vmem:[%s5360 + $0x78] sm:$0xf]
        %v6294 = vld [vmem:[%s5360 + $0x7c] sm:$0xf]
        %v6295 = vld [vmem:[%s5360 + $0x84] sm:$0xf]
        %v6296 = vld [vmem:[%s5360 + $0x88] sm:$0xf]
        %v6297 = vld [vmem:[%s5360 + $0x90] sm:$0xf]
        %v6298 = vld [vmem:[%s5360 + $0x94] sm:$0xf]
        %v6299 = vld [vmem:[%s5360 + $0x9c] sm:$0xf]
        %v6300 = vld [vmem:[%s5360 + $0xa0] sm:$0xf]
        %v6301 = vld [vmem:[%s5360 + $0xa8] sm:$0xf]
        %v6302 = vld [vmem:[%s5360 + $0xac] sm:$0xf]
        %v6303 = vld [vmem:[%s5360 + $0xb4] sm:$0xf]
        %v6304 = vld [vmem:[%s5360 + $0xb8] sm:$0xf]
        %v6337 = vunpack.c.l.b16 %v6273
        %v6338 = vunpack.c.l.b16 %v6274
        %v6339 = vunpack.c.l.b16 %v6275
        %v6340 = vunpack.c.l.b16 %v6276
        %v6341 = vunpack.c.l.b16 %v6277
        %v6342 = vunpack.c.l.b16 %v6278
        %v6343 = vunpack.c.l.b16 %v6279
        %v6344 = vunpack.c.l.b16 %v6280
        %v6345 = vunpack.c.l.b16 %v6281
        %v6346 = vunpack.c.l.b16 %v6282
        %v6347 = vunpack.c.l.b16 %v6283
        %v6348 = vunpack.c.l.b16 %v6284
        %v6349 = vunpack.c.l.b16 %v6285
        %v6350 = vunpack.c.l.b16 %v6286
        %v6351 = vunpack.c.l.b16 %v6287
        %v6352 = vunpack.c.l.b16 %v6288
        %v6353 = vunpack.c.l.b16 %v6289
        %v6354 = vunpack.c.l.b16 %v6290
        %v6355 = vunpack.c.l.b16 %v6291
        %v6356 = vunpack.c.l.b16 %v6292
        %v6357 = vunpack.c.l.b16 %v6293
        %v6358 = vunpack.c.l.b16 %v6294
        %v6359 = vunpack.c.l.b16 %v6295
        %v6360 = vunpack.c.l.b16 %v6296
        %v6361 = vunpack.c.l.b16 %v6297
        %v6362 = vunpack.c.l.b16 %v6298
        %v6363 = vunpack.c.l.b16 %v6299
        %v6364 = vunpack.c.l.b16 %v6300
        %v6365 = vunpack.c.l.b16 %v6301
        %v6366 = vunpack.c.l.b16 %v6302
        %v6367 = vunpack.c.l.b16 %v6303
        %v6368 = vunpack.c.l.b16 %v6304
        %v6369 = vpack.c.b16 %v6338, %v6337
        %v6370 = vpack.c.b16 %v6340, %v6339
        %v6371 = vpack.c.b16 %v6342, %v6341
        %v6372 = vpack.c.b16 %v6344, %v6343
        %v6373 = vpack.c.b16 %v6346, %v6345
        %v6374 = vpack.c.b16 %v6348, %v6347
        %v6375 = vpack.c.b16 %v6350, %v6349
        %v6376 = vpack.c.b16 %v6352, %v6351
        %v6377 = vpack.c.b16 %v6354, %v6353
        %v6378 = vpack.c.b16 %v6356, %v6355
        %v6379 = vpack.c.b16 %v6358, %v6357
        %v6380 = vpack.c.b16 %v6360, %v6359
        %v6381 = vpack.c.b16 %v6362, %v6361
        %v6382 = vpack.c.b16 %v6364, %v6363
        %v6383 = vpack.c.b16 %v6366, %v6365
        %v6384 = vpack.c.b16 %v6368, %v6367
        %6401 = vst [vmem:[#allocation4 + $0x18] sm:$0xff] %v6369
        %6402 = vst [vmem:[#allocation4 + $0x60] sm:$0xff] %v6370
        %6403 = vst [vmem:[#allocation4 + $0xa8] sm:$0xff] %v6371
        %6404 = vst [vmem:[#allocation4 + $0xf0] sm:$0xff] %v6372
        %6405 = vst [vmem:[#allocation4 + $0x138] sm:$0xff] %v6373
        %6406 = vst [vmem:[#allocation4 + $0x180] sm:$0xff] %v6374
        %6407 = vst [vmem:[#allocation4 + $0x1c8] sm:$0xff] %v6375
        %6408 = vst [vmem:[#allocation4 + $0x210] sm:$0xff] %v6376
        %6409 = vst [vmem:[#allocation4 + $0x258] sm:$0xff] %v6377
        %6410 = vst [vmem:[#allocation4 + $0x2a0] sm:$0xff] %v6378
        %6411 = vst [vmem:[#allocation4 + $0x2e8] sm:$0xff] %v6379
        %6412 = vst [vmem:[#allocation4 + $0x330] sm:$0xff] %v6380
        %6413 = vst [vmem:[#allocation4 + $0x378] sm:$0xff] %v6381
        %6414 = vst [vmem:[#allocation4 + $0x3c0] sm:$0xff] %v6382
        %6415 = vst [vmem:[#allocation4 + $0x408] sm:$0xff] %v6383
        %6416 = vst [vmem:[#allocation4 + $0x450] sm:$0xff] %v6384
        %v6417 = vld [vmem:[%s5360] sm:$0xf]
        %v6418 = vld [vmem:[%s5360 + $0x4] sm:$0xf]
        %v6419 = vld [vmem:[%s5360 + $0x8] sm:$0x1]
        %v6420 = vld [vmem:[%s5360 + $0xc] sm:$0xf]
        %v6421 = vld [vmem:[%s5360 + $0x10] sm:$0xf]
        %v6422 = vld [vmem:[%s5360 + $0x14] sm:$0x1]
        %v6423 = vld [vmem:[%s5360 + $0x18] sm:$0xf]
        %v6424 = vld [vmem:[%s5360 + $0x1c] sm:$0xf]
        %v6425 = vld [vmem:[%s5360 + $0x20] sm:$0x1]
        %v6426 = vld [vmem:[%s5360 + $0x24] sm:$0xf]
        %v6427 = vld [vmem:[%s5360 + $0x28] sm:$0xf]
        %v6428 = vld [vmem:[%s5360 + $0x2c] sm:$0x1]
        %v6429 = vld [vmem:[%s5360 + $0x30] sm:$0xf]
        %v6430 = vld [vmem:[%s5360 + $0x34] sm:$0xf]
        %v6431 = vld [vmem:[%s5360 + $0x38] sm:$0x1]
        %v6432 = vld [vmem:[%s5360 + $0x3c] sm:$0xf]
        %v6433 = vld [vmem:[%s5360 + $0x40] sm:$0xf]
        %v6434 = vld [vmem:[%s5360 + $0x44] sm:$0x1]
        %v6435 = vld [vmem:[%s5360 + $0x48] sm:$0xf]
        %v6436 = vld [vmem:[%s5360 + $0x4c] sm:$0xf]
        %v6437 = vld [vmem:[%s5360 + $0x50] sm:$0x1]
        %v6438 = vld [vmem:[%s5360 + $0x54] sm:$0xf]
        %v6439 = vld [vmem:[%s5360 + $0x58] sm:$0xf]
        %v6440 = vld [vmem:[%s5360 + $0x5c] sm:$0x1]
        %v6441 = vld [vmem:[%s5360 + $0x60] sm:$0xf]
        %v6442 = vld [vmem:[%s5360 + $0x64] sm:$0xf]
        %v6443 = vld [vmem:[%s5360 + $0x68] sm:$0x1]
        %v6444 = vld [vmem:[%s5360 + $0x6c] sm:$0xf]
        %v6445 = vld [vmem:[%s5360 + $0x70] sm:$0xf]
        %v6446 = vld [vmem:[%s5360 + $0x74] sm:$0x1]
        %v6447 = vld [vmem:[%s5360 + $0x78] sm:$0xf]
        %v6448 = vld [vmem:[%s5360 + $0x7c] sm:$0xf]
        %v6449 = vld [vmem:[%s5360 + $0x80] sm:$0x1]
        %v6450 = vld [vmem:[%s5360 + $0x84] sm:$0xf]
        %v6451 = vld [vmem:[%s5360 + $0x88] sm:$0xf]
        %v6452 = vld [vmem:[%s5360 + $0x8c] sm:$0x1]
        %v6453 = vld [vmem:[%s5360 + $0x90] sm:$0xf]
        %v6454 = vld [vmem:[%s5360 + $0x94] sm:$0xf]
        %v6455 = vld [vmem:[%s5360 + $0x98] sm:$0x1]
        %v6456 = vld [vmem:[%s5360 + $0x9c] sm:$0xf]
        %v6457 = vld [vmem:[%s5360 + $0xa0] sm:$0xf]
        %v6458 = vld [vmem:[%s5360 + $0xa4] sm:$0x1]
        %v6459 = vld [vmem:[%s5360 + $0xa8] sm:$0xf]
        %v6460 = vld [vmem:[%s5360 + $0xac] sm:$0xf]
        %v6461 = vld [vmem:[%s5360 + $0xb0] sm:$0x1]
        %v6462 = vld [vmem:[%s5360 + $0xb4] sm:$0xf]
        %v6463 = vld [vmem:[%s5360 + $0xb8] sm:$0xf]
        %v6464 = vld [vmem:[%s5360 + $0xbc] sm:$0x1]
        %v6513 = vunpack.c.l.b16 %v6417
        %v6514 = vunpack.c.l.b16 %v6418
        %v6515 = vunpack.c.l.b16 %v6419
        %v6516 = vunpack.c.l.b16 %v6420
        %v6517 = vunpack.c.l.b16 %v6421
        %v6518 = vunpack.c.l.b16 %v6422
        %v6519 = vunpack.c.l.b16 %v6423
        %v6520 = vunpack.c.l.b16 %v6424
        %v6521 = vunpack.c.l.b16 %v6425
        %v6522 = vunpack.c.l.b16 %v6426
        %v6523 = vunpack.c.l.b16 %v6427
        %v6524 = vunpack.c.l.b16 %v6428
        %v6525 = vunpack.c.l.b16 %v6429
        %v6526 = vunpack.c.l.b16 %v6430
        %v6527 = vunpack.c.l.b16 %v6431
        %v6528 = vunpack.c.l.b16 %v6432
        %v6529 = vunpack.c.l.b16 %v6433
        %v6530 = vunpack.c.l.b16 %v6434
        %v6531 = vunpack.c.l.b16 %v6435
        %v6532 = vunpack.c.l.b16 %v6436
        %v6533 = vunpack.c.l.b16 %v6437
        %v6534 = vunpack.c.l.b16 %v6438
        %v6535 = vunpack.c.l.b16 %v6439
        %v6536 = vunpack.c.l.b16 %v6440
        %v6537 = vunpack.c.l.b16 %v6441
        %v6538 = vunpack.c.l.b16 %v6442
        %v6539 = vunpack.c.l.b16 %v6443
        %v6540 = vunpack.c.l.b16 %v6444
        %v6541 = vunpack.c.l.b16 %v6445
        %v6542 = vunpack.c.l.b16 %v6446
        %v6543 = vunpack.c.l.b16 %v6447
        %v6544 = vunpack.c.l.b16 %v6448
        %v6545 = vunpack.c.l.b16 %v6449
        %v6546 = vunpack.c.l.b16 %v6450
        %v6547 = vunpack.c.l.b16 %v6451
        %v6548 = vunpack.c.l.b16 %v6452
        %v6549 = vunpack.c.l.b16 %v6453
        %v6550 = vunpack.c.l.b16 %v6454
        %v6551 = vunpack.c.l.b16 %v6455
        %v6552 = vunpack.c.l.b16 %v6456
        %v6553 = vunpack.c.l.b16 %v6457
        %v6554 = vunpack.c.l.b16 %v6458
        %v6555 = vunpack.c.l.b16 %v6459
        %v6556 = vunpack.c.l.b16 %v6460
        %v6557 = vunpack.c.l.b16 %v6461
        %v6558 = vunpack.c.l.b16 %v6462
        %v6559 = vunpack.c.l.b16 %v6463
        %v6560 = vunpack.c.l.b16 %v6464
        %v6561 = vpack.c.b16 %v6514, %v6513
        %v6562 = vpack.c.b16 %v6515, %v6515
        %v6563 = vpack.c.b16 %v6517, %v6516
        %v6564 = vpack.c.b16 %v6518, %v6518
        %v6565 = vpack.c.b16 %v6520, %v6519
        %v6566 = vpack.c.b16 %v6521, %v6521
        %v6567 = vpack.c.b16 %v6523, %v6522
        %v6568 = vpack.c.b16 %v6524, %v6524
        %v6569 = vpack.c.b16 %v6526, %v6525
        %v6570 = vpack.c.b16 %v6527, %v6527
        %v6571 = vpack.c.b16 %v6529, %v6528
        %v6572 = vpack.c.b16 %v6530, %v6530
        %v6573 = vpack.c.b16 %v6532, %v6531
        %v6574 = vpack.c.b16 %v6533, %v6533
        %v6575 = vpack.c.b16 %v6535, %v6534
        %v6576 = vpack.c.b16 %v6536, %v6536
        %v6577 = vpack.c.b16 %v6538, %v6537
        %v6578 = vpack.c.b16 %v6539, %v6539
        %v6579 = vpack.c.b16 %v6541, %v6540
        %v6580 = vpack.c.b16 %v6542, %v6542
        %v6581 = vpack.c.b16 %v6544, %v6543
        %v6582 = vpack.c.b16 %v6545, %v6545
        %v6583 = vpack.c.b16 %v6547, %v6546
        %v6584 = vpack.c.b16 %v6548, %v6548
        %v6585 = vpack.c.b16 %v6550, %v6549
        %v6586 = vpack.c.b16 %v6551, %v6551
        %v6587 = vpack.c.b16 %v6553, %v6552
        %v6588 = vpack.c.b16 %v6554, %v6554
        %v6589 = vpack.c.b16 %v6556, %v6555
        %v6590 = vpack.c.b16 %v6557, %v6557
        %v6591 = vpack.c.b16 %v6559, %v6558
        %v6592 = vpack.c.b16 %v6560, %v6560
        %v6594 = vshrl.u32 %v6561, 16
        %v6596 = vshll.u32 %v6561, 16
        %v6598 = vrot.slane %v6596, 1
        %v6599 = vor.u32 %v6594, %v6598
        %v6601 = vshll.u32 %v6562, 16
        %v6603 = vrot.slane %v6601, 1
        %v6604 = vsel %vm1297, %v6599, %v6603
        %v6606 = vshrl.u32 %v6563, 16
        %v6608 = vshll.u32 %v6563, 16
        %v6610 = vrot.slane %v6608, 1
        %v6611 = vor.u32 %v6606, %v6610
        %v6613 = vshll.u32 %v6564, 16
        %v6615 = vrot.slane %v6613, 1
        %v6616 = vsel %vm1297, %v6611, %v6615
        %v6618 = vshrl.u32 %v6565, 16
        %v6620 = vshll.u32 %v6565, 16
        %v6622 = vrot.slane %v6620, 1
        %v6623 = vor.u32 %v6618, %v6622
        %v6625 = vshll.u32 %v6566, 16
        %v6627 = vrot.slane %v6625, 1
        %v6628 = vsel %vm1297, %v6623, %v6627
        %v6630 = vshrl.u32 %v6567, 16
        %v6632 = vshll.u32 %v6567, 16
        %v6634 = vrot.slane %v6632, 1
        %v6635 = vor.u32 %v6630, %v6634
        %v6637 = vshll.u32 %v6568, 16
        %v6639 = vrot.slane %v6637, 1
        %v6640 = vsel %vm1297, %v6635, %v6639
        %v6642 = vshrl.u32 %v6569, 16
        %v6644 = vshll.u32 %v6569, 16
        %v6646 = vrot.slane %v6644, 1
        %v6647 = vor.u32 %v6642, %v6646
        %v6649 = vshll.u32 %v6570, 16
        %v6651 = vrot.slane %v6649, 1
        %v6652 = vsel %vm1297, %v6647, %v6651
        %v6654 = vshrl.u32 %v6571, 16
        %v6656 = vshll.u32 %v6571, 16
        %v6658 = vrot.slane %v6656, 1
        %v6659 = vor.u32 %v6654, %v6658
        %v6661 = vshll.u32 %v6572, 16
        %v6663 = vrot.slane %v6661, 1
        %v6664 = vsel %vm1297, %v6659, %v6663
        %v6666 = vshrl.u32 %v6573, 16
        %v6668 = vshll.u32 %v6573, 16
        %v6670 = vrot.slane %v6668, 1
        %v6671 = vor.u32 %v6666, %v6670
        %v6673 = vshll.u32 %v6574, 16
        %v6675 = vrot.slane %v6673, 1
        %v6676 = vsel %vm1297, %v6671, %v6675
        %v6678 = vshrl.u32 %v6575, 16
        %v6680 = vshll.u32 %v6575, 16
        %v6682 = vrot.slane %v6680, 1
        %v6683 = vor.u32 %v6678, %v6682
        %v6685 = vshll.u32 %v6576, 16
        %v6687 = vrot.slane %v6685, 1
        %v6688 = vsel %vm1297, %v6683, %v6687
        %v6690 = vshrl.u32 %v6577, 16
        %v6692 = vshll.u32 %v6577, 16
        %v6694 = vrot.slane %v6692, 1
        %v6695 = vor.u32 %v6690, %v6694
        %v6697 = vshll.u32 %v6578, 16
        %v6699 = vrot.slane %v6697, 1
        %v6700 = vsel %vm1297, %v6695, %v6699
        %v6702 = vshrl.u32 %v6579, 16
        %v6704 = vshll.u32 %v6579, 16
        %v6706 = vrot.slane %v6704, 1
        %v6707 = vor.u32 %v6702, %v6706
        %v6709 = vshll.u32 %v6580, 16
        %v6711 = vrot.slane %v6709, 1
        %v6712 = vsel %vm1297, %v6707, %v6711
        %v6714 = vshrl.u32 %v6581, 16
        %v6716 = vshll.u32 %v6581, 16
        %v6718 = vrot.slane %v6716, 1
        %v6719 = vor.u32 %v6714, %v6718
        %v6721 = vshll.u32 %v6582, 16
        %v6723 = vrot.slane %v6721, 1
        %v6724 = vsel %vm1297, %v6719, %v6723
        %v6726 = vshrl.u32 %v6583, 16
        %v6728 = vshll.u32 %v6583, 16
        %v6730 = vrot.slane %v6728, 1
        %v6731 = vor.u32 %v6726, %v6730
        %v6733 = vshll.u32 %v6584, 16
        %v6735 = vrot.slane %v6733, 1
        %v6736 = vsel %vm1297, %v6731, %v6735
        %v6738 = vshrl.u32 %v6585, 16
        %v6740 = vshll.u32 %v6585, 16
        %v6742 = vrot.slane %v6740, 1
        %v6743 = vor.u32 %v6738, %v6742
        %v6745 = vshll.u32 %v6586, 16
        %v6747 = vrot.slane %v6745, 1
        %v6748 = vsel %vm1297, %v6743, %v6747
        %v6750 = vshrl.u32 %v6587, 16
        %v6752 = vshll.u32 %v6587, 16
        %v6754 = vrot.slane %v6752, 1
        %v6755 = vor.u32 %v6750, %v6754
        %v6757 = vshll.u32 %v6588, 16
        %v6759 = vrot.slane %v6757, 1
        %v6760 = vsel %vm1297, %v6755, %v6759
        %v6762 = vshrl.u32 %v6589, 16
        %v6764 = vshll.u32 %v6589, 16
        %v6766 = vrot.slane %v6764, 1
        %v6767 = vor.u32 %v6762, %v6766
        %v6769 = vshll.u32 %v6590, 16
        %v6771 = vrot.slane %v6769, 1
        %v6772 = vsel %vm1297, %v6767, %v6771
        %v6774 = vshrl.u32 %v6591, 16
        %v6776 = vshll.u32 %v6591, 16
        %v6778 = vrot.slane %v6776, 1
        %v6779 = vor.u32 %v6774, %v6778
        %v6781 = vshll.u32 %v6592, 16
        %v6783 = vrot.slane %v6781, 1
        %v6784 = vsel %vm1297, %v6779, %v6783
        %6801 = vst [vmem:[#allocation4 + $0x20] sm:$0xff] %v6604
        %6802 = vst [vmem:[#allocation4 + $0x68] sm:$0xff] %v6616
        %6803 = vst [vmem:[#allocation4 + $0xb0] sm:$0xff] %v6628
        %6804 = vst [vmem:[#allocation4 + $0xf8] sm:$0xff] %v6640
        %6805 = vst [vmem:[#allocation4 + $0x140] sm:$0xff] %v6652
        %6806 = vst [vmem:[#allocation4 + $0x188] sm:$0xff] %v6664
        %6807 = vst [vmem:[#allocation4 + $0x1d0] sm:$0xff] %v6676
        %6808 = vst [vmem:[#allocation4 + $0x218] sm:$0xff] %v6688
        %6809 = vst [vmem:[#allocation4 + $0x260] sm:$0xff] %v6700
        %6810 = vst [vmem:[#allocation4 + $0x2a8] sm:$0xff] %v6712
        %6811 = vst [vmem:[#allocation4 + $0x2f0] sm:$0xff] %v6724
        %6812 = vst [vmem:[#allocation4 + $0x338] sm:$0xff] %v6736
        %6813 = vst [vmem:[#allocation4 + $0x380] sm:$0xff] %v6748
        %6814 = vst [vmem:[#allocation4 + $0x3c8] sm:$0xff] %v6760
        %6815 = vst [vmem:[#allocation4 + $0x410] sm:$0xff] %v6772
        %6816 = vst [vmem:[#allocation4 + $0x458] sm:$0xff] %v6784
        %v6817 = vld [vmem:[%s5360] sm:$0xe]
        %v6818 = vld [vmem:[%s5360 + $0x4] sm:$0xf]
        %v6819 = vld [vmem:[%s5360 + $0x8] sm:$0x1]
        %v6820 = vld [vmem:[%s5360 + $0xc] sm:$0xe]
        %v6821 = vld [vmem:[%s5360 + $0x10] sm:$0xf]
        %v6822 = vld [vmem:[%s5360 + $0x14] sm:$0x1]
        %v6823 = vld [vmem:[%s5360 + $0x18] sm:$0xe]
        %v6824 = vld [vmem:[%s5360 + $0x1c] sm:$0xf]
        %v6825 = vld [vmem:[%s5360 + $0x20] sm:$0x1]
        %v6826 = vld [vmem:[%s5360 + $0x24] sm:$0xe]
        %v6827 = vld [vmem:[%s5360 + $0x28] sm:$0xf]
        %v6828 = vld [vmem:[%s5360 + $0x2c] sm:$0x1]
        %v6829 = vld [vmem:[%s5360 + $0x30] sm:$0xe]
        %v6830 = vld [vmem:[%s5360 + $0x34] sm:$0xf]
        %v6831 = vld [vmem:[%s5360 + $0x38] sm:$0x1]
        %v6832 = vld [vmem:[%s5360 + $0x3c] sm:$0xe]
        %v6833 = vld [vmem:[%s5360 + $0x40] sm:$0xf]
        %v6834 = vld [vmem:[%s5360 + $0x44] sm:$0x1]
        %v6835 = vld [vmem:[%s5360 + $0x48] sm:$0xe]
        %v6836 = vld [vmem:[%s5360 + $0x4c] sm:$0xf]
        %v6837 = vld [vmem:[%s5360 + $0x50] sm:$0x1]
        %v6838 = vld [vmem:[%s5360 + $0x54] sm:$0xe]
        %v6839 = vld [vmem:[%s5360 + $0x58] sm:$0xf]
        %v6840 = vld [vmem:[%s5360 + $0x5c] sm:$0x1]
        %v6841 = vld [vmem:[%s5360 + $0x60] sm:$0xe]
        %v6842 = vld [vmem:[%s5360 + $0x64] sm:$0xf]
        %v6843 = vld [vmem:[%s5360 + $0x68] sm:$0x1]
        %v6844 = vld [vmem:[%s5360 + $0x6c] sm:$0xe]
        %v6845 = vld [vmem:[%s5360 + $0x70] sm:$0xf]
        %v6846 = vld [vmem:[%s5360 + $0x74] sm:$0x1]
        %v6847 = vld [vmem:[%s5360 + $0x78] sm:$0xe]
        %v6848 = vld [vmem:[%s5360 + $0x7c] sm:$0xf]
        %v6849 = vld [vmem:[%s5360 + $0x80] sm:$0x1]
        %v6850 = vld [vmem:[%s5360 + $0x84] sm:$0xe]
        %v6851 = vld [vmem:[%s5360 + $0x88] sm:$0xf]
        %v6852 = vld [vmem:[%s5360 + $0x8c] sm:$0x1]
        %v6853 = vld [vmem:[%s5360 + $0x90] sm:$0xe]
        %v6854 = vld [vmem:[%s5360 + $0x94] sm:$0xf]
        %v6855 = vld [vmem:[%s5360 + $0x98] sm:$0x1]
        %v6856 = vld [vmem:[%s5360 + $0x9c] sm:$0xe]
        %v6857 = vld [vmem:[%s5360 + $0xa0] sm:$0xf]
        %v6858 = vld [vmem:[%s5360 + $0xa4] sm:$0x1]
        %v6859 = vld [vmem:[%s5360 + $0xa8] sm:$0xe]
        %v6860 = vld [vmem:[%s5360 + $0xac] sm:$0xf]
        %v6861 = vld [vmem:[%s5360 + $0xb0] sm:$0x1]
        %v6862 = vld [vmem:[%s5360 + $0xb4] sm:$0xe]
        %v6863 = vld [vmem:[%s5360 + $0xb8] sm:$0xf]
        %v6864 = vld [vmem:[%s5360 + $0xbc] sm:$0x1]
        %v6913 = vunpack.c.l.b16 %v6817
        %v6914 = vunpack.c.l.b16 %v6818
        %v6915 = vunpack.c.l.b16 %v6819
        %v6916 = vunpack.c.l.b16 %v6820
        %v6917 = vunpack.c.l.b16 %v6821
        %v6918 = vunpack.c.l.b16 %v6822
        %v6919 = vunpack.c.l.b16 %v6823
        %v6920 = vunpack.c.l.b16 %v6824
        %v6921 = vunpack.c.l.b16 %v6825
        %v6922 = vunpack.c.l.b16 %v6826
        %v6923 = vunpack.c.l.b16 %v6827
        %v6924 = vunpack.c.l.b16 %v6828
        %v6925 = vunpack.c.l.b16 %v6829
        %v6926 = vunpack.c.l.b16 %v6830
        %v6927 = vunpack.c.l.b16 %v6831
        %v6928 = vunpack.c.l.b16 %v6832
        %v6929 = vunpack.c.l.b16 %v6833
        %v6930 = vunpack.c.l.b16 %v6834
        %v6931 = vunpack.c.l.b16 %v6835
        %v6932 = vunpack.c.l.b16 %v6836
        %v6933 = vunpack.c.l.b16 %v6837
        %v6934 = vunpack.c.l.b16 %v6838
        %v6935 = vunpack.c.l.b16 %v6839
        %v6936 = vunpack.c.l.b16 %v6840
        %v6937 = vunpack.c.l.b16 %v6841
        %v6938 = vunpack.c.l.b16 %v6842
        %v6939 = vunpack.c.l.b16 %v6843
        %v6940 = vunpack.c.l.b16 %v6844
        %v6941 = vunpack.c.l.b16 %v6845
        %v6942 = vunpack.c.l.b16 %v6846
        %v6943 = vunpack.c.l.b16 %v6847
        %v6944 = vunpack.c.l.b16 %v6848
        %v6945 = vunpack.c.l.b16 %v6849
        %v6946 = vunpack.c.l.b16 %v6850
        %v6947 = vunpack.c.l.b16 %v6851
        %v6948 = vunpack.c.l.b16 %v6852
        %v6949 = vunpack.c.l.b16 %v6853
        %v6950 = vunpack.c.l.b16 %v6854
        %v6951 = vunpack.c.l.b16 %v6855
        %v6952 = vunpack.c.l.b16 %v6856
        %v6953 = vunpack.c.l.b16 %v6857
        %v6954 = vunpack.c.l.b16 %v6858
        %v6955 = vunpack.c.l.b16 %v6859
        %v6956 = vunpack.c.l.b16 %v6860
        %v6957 = vunpack.c.l.b16 %v6861
        %v6958 = vunpack.c.l.b16 %v6862
        %v6959 = vunpack.c.l.b16 %v6863
        %v6960 = vunpack.c.l.b16 %v6864
        %v6961 = vpack.c.b16 %v6914, %v6913
        %v6962 = vpack.c.b16 %v6915, %v6915
        %v6963 = vpack.c.b16 %v6917, %v6916
        %v6964 = vpack.c.b16 %v6918, %v6918
        %v6965 = vpack.c.b16 %v6920, %v6919
        %v6966 = vpack.c.b16 %v6921, %v6921
        %v6967 = vpack.c.b16 %v6923, %v6922
        %v6968 = vpack.c.b16 %v6924, %v6924
        %v6969 = vpack.c.b16 %v6926, %v6925
        %v6970 = vpack.c.b16 %v6927, %v6927
        %v6971 = vpack.c.b16 %v6929, %v6928
        %v6972 = vpack.c.b16 %v6930, %v6930
        %v6973 = vpack.c.b16 %v6932, %v6931
        %v6974 = vpack.c.b16 %v6933, %v6933
        %v6975 = vpack.c.b16 %v6935, %v6934
        %v6976 = vpack.c.b16 %v6936, %v6936
        %v6977 = vpack.c.b16 %v6938, %v6937
        %v6978 = vpack.c.b16 %v6939, %v6939
        %v6979 = vpack.c.b16 %v6941, %v6940
        %v6980 = vpack.c.b16 %v6942, %v6942
        %v6981 = vpack.c.b16 %v6944, %v6943
        %v6982 = vpack.c.b16 %v6945, %v6945
        %v6983 = vpack.c.b16 %v6947, %v6946
        %v6984 = vpack.c.b16 %v6948, %v6948
        %v6985 = vpack.c.b16 %v6950, %v6949
        %v6986 = vpack.c.b16 %v6951, %v6951
        %v6987 = vpack.c.b16 %v6953, %v6952
        %v6988 = vpack.c.b16 %v6954, %v6954
        %v6989 = vpack.c.b16 %v6956, %v6955
        %v6990 = vpack.c.b16 %v6957, %v6957
        %v6991 = vpack.c.b16 %v6959, %v6958
        %v6992 = vpack.c.b16 %v6960, %v6960
        %v6993 = vrot.slane %v6961, 1
        %v6994 = vrot.slane %v6962, 1
        %v6995 = vsel %vm1698, %v6993, %v6994
        %v6996 = vrot.slane %v6963, 1
        %v6997 = vrot.slane %v6964, 1
        %v6998 = vsel %vm1698, %v6996, %v6997
        %v6999 = vrot.slane %v6965, 1
        %v7000 = vrot.slane %v6966, 1
        %v7001 = vsel %vm1698, %v6999, %v7000
        %v7002 = vrot.slane %v6967, 1
        %v7003 = vrot.slane %v6968, 1
        %v7004 = vsel %vm1698, %v7002, %v7003
        %v7005 = vrot.slane %v6969, 1
        %v7006 = vrot.slane %v6970, 1
        %v7007 = vsel %vm1698, %v7005, %v7006
        %v7008 = vrot.slane %v6971, 1
        %v7009 = vrot.slane %v6972, 1
        %v7010 = vsel %vm1698, %v7008, %v7009
        %v7011 = vrot.slane %v6973, 1
        %v7012 = vrot.slane %v6974, 1
        %v7013 = vsel %vm1698, %v7011, %v7012
        %v7014 = vrot.slane %v6975, 1
        %v7015 = vrot.slane %v6976, 1
        %v7016 = vsel %vm1698, %v7014, %v7015
        %v7017 = vrot.slane %v6977, 1
        %v7018 = vrot.slane %v6978, 1
        %v7019 = vsel %vm1698, %v7017, %v7018
        %v7020 = vrot.slane %v6979, 1
        %v7021 = vrot.slane %v6980, 1
        %v7022 = vsel %vm1698, %v7020, %v7021
        %v7023 = vrot.slane %v6981, 1
        %v7024 = vrot.slane %v6982, 1
        %v7025 = vsel %vm1698, %v7023, %v7024
        %v7026 = vrot.slane %v6983, 1
        %v7027 = vrot.slane %v6984, 1
        %v7028 = vsel %vm1698, %v7026, %v7027
        %v7029 = vrot.slane %v6985, 1
        %v7030 = vrot.slane %v6986, 1
        %v7031 = vsel %vm1698, %v7029, %v7030
        %v7032 = vrot.slane %v6987, 1
        %v7033 = vrot.slane %v6988, 1
        %v7034 = vsel %vm1698, %v7032, %v7033
        %v7035 = vrot.slane %v6989, 1
        %v7036 = vrot.slane %v6990, 1
        %v7037 = vsel %vm1698, %v7035, %v7036
        %v7038 = vrot.slane %v6991, 1
        %v7039 = vrot.slane %v6992, 1
        %v7040 = vsel %vm1698, %v7038, %v7039
        %7057 = vst [vmem:[#allocation4 + $0x28] sm:$0xff] %v6995
        %7058 = vst [vmem:[#allocation4 + $0x70] sm:$0xff] %v6998
        %7059 = vst [vmem:[#allocation4 + $0xb8] sm:$0xff] %v7001
        %7060 = vst [vmem:[#allocation4 + $0x100] sm:$0xff] %v7004
        %7061 = vst [vmem:[#allocation4 + $0x148] sm:$0xff] %v7007
        %7062 = vst [vmem:[#allocation4 + $0x190] sm:$0xff] %v7010
        %7063 = vst [vmem:[#allocation4 + $0x1d8] sm:$0xff] %v7013
        %7064 = vst [vmem:[#allocation4 + $0x220] sm:$0xff] %v7016
        %7065 = vst [vmem:[#allocation4 + $0x268] sm:$0xff] %v7019
        %7066 = vst [vmem:[#allocation4 + $0x2b0] sm:$0xff] %v7022
        %7067 = vst [vmem:[#allocation4 + $0x2f8] sm:$0xff] %v7025
        %7068 = vst [vmem:[#allocation4 + $0x340] sm:$0xff] %v7028
        %7069 = vst [vmem:[#allocation4 + $0x388] sm:$0xff] %v7031
        %7070 = vst [vmem:[#allocation4 + $0x3d0] sm:$0xff] %v7034
        %7071 = vst [vmem:[#allocation4 + $0x418] sm:$0xff] %v7037
        %7072 = vst [vmem:[#allocation4 + $0x460] sm:$0xff] %v7040
        %s7073 = scalar_lea.vmem [#allocation3], 24
        %v7074 = vld [vmem:[%s7073] sm:$0xf]
        %v7075 = vld [vmem:[%s7073 + $0x4] sm:$0xf]
        %v7076 = vld [vmem:[%s7073 + $0xc] sm:$0xf]
        %v7077 = vld [vmem:[%s7073 + $0x10] sm:$0xf]
        %v7078 = vld [vmem:[%s7073 + $0x18] sm:$0xf]
        %v7079 = vld [vmem:[%s7073 + $0x1c] sm:$0xf]
        %v7080 = vld [vmem:[%s7073 + $0x24] sm:$0xf]
        %v7081 = vld [vmem:[%s7073 + $0x28] sm:$0xf]
        %v7082 = vld [vmem:[%s7073 + $0x30] sm:$0xf]
        %v7083 = vld [vmem:[%s7073 + $0x34] sm:$0xf]
        %v7084 = vld [vmem:[%s7073 + $0x3c] sm:$0xf]
        %v7085 = vld [vmem:[%s7073 + $0x40] sm:$0xf]
        %v7086 = vld [vmem:[%s7073 + $0x48] sm:$0xf]
        %v7087 = vld [vmem:[%s7073 + $0x4c] sm:$0xf]
        %v7088 = vld [vmem:[%s7073 + $0x54] sm:$0xf]
        %v7089 = vld [vmem:[%s7073 + $0x58] sm:$0xf]
        %v7090 = vld [vmem:[%s7073 + $0x60] sm:$0xf]
        %v7091 = vld [vmem:[%s7073 + $0x64] sm:$0xf]
        %v7092 = vld [vmem:[%s7073 + $0x6c] sm:$0xf]
        %v7093 = vld [vmem:[%s7073 + $0x70] sm:$0xf]
        %v7094 = vld [vmem:[%s7073 + $0x78] sm:$0xf]
        %v7095 = vld [vmem:[%s7073 + $0x7c] sm:$0xf]
        %v7096 = vld [vmem:[%s7073 + $0x84] sm:$0xf]
        %v7097 = vld [vmem:[%s7073 + $0x88] sm:$0xf]
        %v7098 = vld [vmem:[%s7073 + $0x90] sm:$0xf]
        %v7099 = vld [vmem:[%s7073 + $0x94] sm:$0xf]
        %v7100 = vld [vmem:[%s7073 + $0x9c] sm:$0xf]
        %v7101 = vld [vmem:[%s7073 + $0xa0] sm:$0xf]
        %v7102 = vld [vmem:[%s7073 + $0xa8] sm:$0xf]
        %v7103 = vld [vmem:[%s7073 + $0xac] sm:$0xf]
        %v7104 = vld [vmem:[%s7073 + $0xb4] sm:$0xf]
        %v7105 = vld [vmem:[%s7073 + $0xb8] sm:$0xf]
        %v7138 = vunpack.c.l.b16 %v7074
        %v7139 = vunpack.c.l.b16 %v7075
        %v7140 = vunpack.c.l.b16 %v7076
        %v7141 = vunpack.c.l.b16 %v7077
        %v7142 = vunpack.c.l.b16 %v7078
        %v7143 = vunpack.c.l.b16 %v7079
        %v7144 = vunpack.c.l.b16 %v7080
        %v7145 = vunpack.c.l.b16 %v7081
        %v7146 = vunpack.c.l.b16 %v7082
        %v7147 = vunpack.c.l.b16 %v7083
        %v7148 = vunpack.c.l.b16 %v7084
        %v7149 = vunpack.c.l.b16 %v7085
        %v7150 = vunpack.c.l.b16 %v7086
        %v7151 = vunpack.c.l.b16 %v7087
        %v7152 = vunpack.c.l.b16 %v7088
        %v7153 = vunpack.c.l.b16 %v7089
        %v7154 = vunpack.c.l.b16 %v7090
        %v7155 = vunpack.c.l.b16 %v7091
        %v7156 = vunpack.c.l.b16 %v7092
        %v7157 = vunpack.c.l.b16 %v7093
        %v7158 = vunpack.c.l.b16 %v7094
        %v7159 = vunpack.c.l.b16 %v7095
        %v7160 = vunpack.c.l.b16 %v7096
        %v7161 = vunpack.c.l.b16 %v7097
        %v7162 = vunpack.c.l.b16 %v7098
        %v7163 = vunpack.c.l.b16 %v7099
        %v7164 = vunpack.c.l.b16 %v7100
        %v7165 = vunpack.c.l.b16 %v7101
        %v7166 = vunpack.c.l.b16 %v7102
        %v7167 = vunpack.c.l.b16 %v7103
        %v7168 = vunpack.c.l.b16 %v7104
        %v7169 = vunpack.c.l.b16 %v7105
        %v7170 = vpack.c.b16 %v7139, %v7138
        %v7171 = vpack.c.b16 %v7141, %v7140
        %v7172 = vpack.c.b16 %v7143, %v7142
        %v7173 = vpack.c.b16 %v7145, %v7144
        %v7174 = vpack.c.b16 %v7147, %v7146
        %v7175 = vpack.c.b16 %v7149, %v7148
        %v7176 = vpack.c.b16 %v7151, %v7150
        %v7177 = vpack.c.b16 %v7153, %v7152
        %v7178 = vpack.c.b16 %v7155, %v7154
        %v7179 = vpack.c.b16 %v7157, %v7156
        %v7180 = vpack.c.b16 %v7159, %v7158
        %v7181 = vpack.c.b16 %v7161, %v7160
        %v7182 = vpack.c.b16 %v7163, %v7162
        %v7183 = vpack.c.b16 %v7165, %v7164
        %v7184 = vpack.c.b16 %v7167, %v7166
        %v7185 = vpack.c.b16 %v7169, %v7168
        %7202 = vst [vmem:[#allocation4 + $0x30] sm:$0xff] %v7170
        %7203 = vst [vmem:[#allocation4 + $0x78] sm:$0xff] %v7171
        %7204 = vst [vmem:[#allocation4 + $0xc0] sm:$0xff] %v7172
        %7205 = vst [vmem:[#allocation4 + $0x108] sm:$0xff] %v7173
        %7206 = vst [vmem:[#allocation4 + $0x150] sm:$0xff] %v7174
        %7207 = vst [vmem:[#allocation4 + $0x198] sm:$0xff] %v7175
        %7208 = vst [vmem:[#allocation4 + $0x1e0] sm:$0xff] %v7176
        %7209 = vst [vmem:[#allocation4 + $0x228] sm:$0xff] %v7177
        %7210 = vst [vmem:[#allocation4 + $0x270] sm:$0xff] %v7178
        %7211 = vst [vmem:[#allocation4 + $0x2b8] sm:$0xff] %v7179
        %7212 = vst [vmem:[#allocation4 + $0x300] sm:$0xff] %v7180
        %7213 = vst [vmem:[#allocation4 + $0x348] sm:$0xff] %v7181
        %7214 = vst [vmem:[#allocation4 + $0x390] sm:$0xff] %v7182
        %7215 = vst [vmem:[#allocation4 + $0x3d8] sm:$0xff] %v7183
        %7216 = vst [vmem:[#allocation4 + $0x420] sm:$0xff] %v7184
        %7217 = vst [vmem:[#allocation4 + $0x468] sm:$0xff] %v7185
        %v7218 = vld [vmem:[%s7073] sm:$0xf]
        %v7219 = vld [vmem:[%s7073 + $0x4] sm:$0xf]
        %v7220 = vld [vmem:[%s7073 + $0x8] sm:$0x1]
        %v7221 = vld [vmem:[%s7073 + $0xc] sm:$0xf]
        %v7222 = vld [vmem:[%s7073 + $0x10] sm:$0xf]
        %v7223 = vld [vmem:[%s7073 + $0x14] sm:$0x1]
        %v7224 = vld [vmem:[%s7073 + $0x18] sm:$0xf]
        %v7225 = vld [vmem:[%s7073 + $0x1c] sm:$0xf]
        %v7226 = vld [vmem:[%s7073 + $0x20] sm:$0x1]
        %v7227 = vld [vmem:[%s7073 + $0x24] sm:$0xf]
        %v7228 = vld [vmem:[%s7073 + $0x28] sm:$0xf]
        %v7229 = vld [vmem:[%s7073 + $0x2c] sm:$0x1]
        %v7230 = vld [vmem:[%s7073 + $0x30] sm:$0xf]
        %v7231 = vld [vmem:[%s7073 + $0x34] sm:$0xf]
        %v7232 = vld [vmem:[%s7073 + $0x38] sm:$0x1]
        %v7233 = vld [vmem:[%s7073 + $0x3c] sm:$0xf]
        %v7234 = vld [vmem:[%s7073 + $0x40] sm:$0xf]
        %v7235 = vld [vmem:[%s7073 + $0x44] sm:$0x1]
        %v7236 = vld [vmem:[%s7073 + $0x48] sm:$0xf]
        %v7237 = vld [vmem:[%s7073 + $0x4c] sm:$0xf]
        %v7238 = vld [vmem:[%s7073 + $0x50] sm:$0x1]
        %v7239 = vld [vmem:[%s7073 + $0x54] sm:$0xf]
        %v7240 = vld [vmem:[%s7073 + $0x58] sm:$0xf]
        %v7241 = vld [vmem:[%s7073 + $0x5c] sm:$0x1]
        %v7242 = vld [vmem:[%s7073 + $0x60] sm:$0xf]
        %v7243 = vld [vmem:[%s7073 + $0x64] sm:$0xf]
        %v7244 = vld [vmem:[%s7073 + $0x68] sm:$0x1]
        %v7245 = vld [vmem:[%s7073 + $0x6c] sm:$0xf]
        %v7246 = vld [vmem:[%s7073 + $0x70] sm:$0xf]
        %v7247 = vld [vmem:[%s7073 + $0x74] sm:$0x1]
        %v7248 = vld [vmem:[%s7073 + $0x78] sm:$0xf]
        %v7249 = vld [vmem:[%s7073 + $0x7c] sm:$0xf]
        %v7250 = vld [vmem:[%s7073 + $0x80] sm:$0x1]
        %v7251 = vld [vmem:[%s7073 + $0x84] sm:$0xf]
        %v7252 = vld [vmem:[%s7073 + $0x88] sm:$0xf]
        %v7253 = vld [vmem:[%s7073 + $0x8c] sm:$0x1]
        %v7254 = vld [vmem:[%s7073 + $0x90] sm:$0xf]
        %v7255 = vld [vmem:[%s7073 + $0x94] sm:$0xf]
        %v7256 = vld [vmem:[%s7073 + $0x98] sm:$0x1]
        %v7257 = vld [vmem:[%s7073 + $0x9c] sm:$0xf]
        %v7258 = vld [vmem:[%s7073 + $0xa0] sm:$0xf]
        %v7259 = vld [vmem:[%s7073 + $0xa4] sm:$0x1]
        %v7260 = vld [vmem:[%s7073 + $0xa8] sm:$0xf]
        %v7261 = vld [vmem:[%s7073 + $0xac] sm:$0xf]
        %v7262 = vld [vmem:[%s7073 + $0xb0] sm:$0x1]
        %v7263 = vld [vmem:[%s7073 + $0xb4] sm:$0xf]
        %v7264 = vld [vmem:[%s7073 + $0xb8] sm:$0xf]
        %v7265 = vld [vmem:[%s7073 + $0xbc] sm:$0x1]
        %v7314 = vunpack.c.l.b16 %v7218
        %v7315 = vunpack.c.l.b16 %v7219
        %v7316 = vunpack.c.l.b16 %v7220
        %v7317 = vunpack.c.l.b16 %v7221
        %v7318 = vunpack.c.l.b16 %v7222
        %v7319 = vunpack.c.l.b16 %v7223
        %v7320 = vunpack.c.l.b16 %v7224
        %v7321 = vunpack.c.l.b16 %v7225
        %v7322 = vunpack.c.l.b16 %v7226
        %v7323 = vunpack.c.l.b16 %v7227
        %v7324 = vunpack.c.l.b16 %v7228
        %v7325 = vunpack.c.l.b16 %v7229
        %v7326 = vunpack.c.l.b16 %v7230
        %v7327 = vunpack.c.l.b16 %v7231
        %v7328 = vunpack.c.l.b16 %v7232
        %v7329 = vunpack.c.l.b16 %v7233
        %v7330 = vunpack.c.l.b16 %v7234
        %v7331 = vunpack.c.l.b16 %v7235
        %v7332 = vunpack.c.l.b16 %v7236
        %v7333 = vunpack.c.l.b16 %v7237
        %v7334 = vunpack.c.l.b16 %v7238
        %v7335 = vunpack.c.l.b16 %v7239
        %v7336 = vunpack.c.l.b16 %v7240
        %v7337 = vunpack.c.l.b16 %v7241
        %v7338 = vunpack.c.l.b16 %v7242
        %v7339 = vunpack.c.l.b16 %v7243
        %v7340 = vunpack.c.l.b16 %v7244
        %v7341 = vunpack.c.l.b16 %v7245
        %v7342 = vunpack.c.l.b16 %v7246
        %v7343 = vunpack.c.l.b16 %v7247
        %v7344 = vunpack.c.l.b16 %v7248
        %v7345 = vunpack.c.l.b16 %v7249
        %v7346 = vunpack.c.l.b16 %v7250
        %v7347 = vunpack.c.l.b16 %v7251
        %v7348 = vunpack.c.l.b16 %v7252
        %v7349 = vunpack.c.l.b16 %v7253
        %v7350 = vunpack.c.l.b16 %v7254
        %v7351 = vunpack.c.l.b16 %v7255
        %v7352 = vunpack.c.l.b16 %v7256
        %v7353 = vunpack.c.l.b16 %v7257
        %v7354 = vunpack.c.l.b16 %v7258
        %v7355 = vunpack.c.l.b16 %v7259
        %v7356 = vunpack.c.l.b16 %v7260
        %v7357 = vunpack.c.l.b16 %v7261
        %v7358 = vunpack.c.l.b16 %v7262
        %v7359 = vunpack.c.l.b16 %v7263
        %v7360 = vunpack.c.l.b16 %v7264
        %v7361 = vunpack.c.l.b16 %v7265
        %v7362 = vpack.c.b16 %v7315, %v7314
        %v7363 = vpack.c.b16 %v7316, %v7316
        %v7364 = vpack.c.b16 %v7318, %v7317
        %v7365 = vpack.c.b16 %v7319, %v7319
        %v7366 = vpack.c.b16 %v7321, %v7320
        %v7367 = vpack.c.b16 %v7322, %v7322
        %v7368 = vpack.c.b16 %v7324, %v7323
        %v7369 = vpack.c.b16 %v7325, %v7325
        %v7370 = vpack.c.b16 %v7327, %v7326
        %v7371 = vpack.c.b16 %v7328, %v7328
        %v7372 = vpack.c.b16 %v7330, %v7329
        %v7373 = vpack.c.b16 %v7331, %v7331
        %v7374 = vpack.c.b16 %v7333, %v7332
        %v7375 = vpack.c.b16 %v7334, %v7334
        %v7376 = vpack.c.b16 %v7336, %v7335
        %v7377 = vpack.c.b16 %v7337, %v7337
        %v7378 = vpack.c.b16 %v7339, %v7338
        %v7379 = vpack.c.b16 %v7340, %v7340
        %v7380 = vpack.c.b16 %v7342, %v7341
        %v7381 = vpack.c.b16 %v7343, %v7343
        %v7382 = vpack.c.b16 %v7345, %v7344
        %v7383 = vpack.c.b16 %v7346, %v7346
        %v7384 = vpack.c.b16 %v7348, %v7347
        %v7385 = vpack.c.b16 %v7349, %v7349
        %v7386 = vpack.c.b16 %v7351, %v7350
        %v7387 = vpack.c.b16 %v7352, %v7352
        %v7388 = vpack.c.b16 %v7354, %v7353
        %v7389 = vpack.c.b16 %v7355, %v7355
        %v7390 = vpack.c.b16 %v7357, %v7356
        %v7391 = vpack.c.b16 %v7358, %v7358
        %v7392 = vpack.c.b16 %v7360, %v7359
        %v7393 = vpack.c.b16 %v7361, %v7361
        %v7395 = vshrl.u32 %v7362, 16
        %v7397 = vshll.u32 %v7362, 16
        %v7399 = vrot.slane %v7397, 1
        %v7400 = vor.u32 %v7395, %v7399
        %v7402 = vshll.u32 %v7363, 16
        %v7404 = vrot.slane %v7402, 1
        %v7405 = vsel %vm1297, %v7400, %v7404
        %v7407 = vshrl.u32 %v7364, 16
        %v7409 = vshll.u32 %v7364, 16
        %v7411 = vrot.slane %v7409, 1
        %v7412 = vor.u32 %v7407, %v7411
        %v7414 = vshll.u32 %v7365, 16
        %v7416 = vrot.slane %v7414, 1
        %v7417 = vsel %vm1297, %v7412, %v7416
        %v7419 = vshrl.u32 %v7366, 16
        %v7421 = vshll.u32 %v7366, 16
        %v7423 = vrot.slane %v7421, 1
        %v7424 = vor.u32 %v7419, %v7423
        %v7426 = vshll.u32 %v7367, 16
        %v7428 = vrot.slane %v7426, 1
        %v7429 = vsel %vm1297, %v7424, %v7428
        %v7431 = vshrl.u32 %v7368, 16
        %v7433 = vshll.u32 %v7368, 16
        %v7435 = vrot.slane %v7433, 1
        %v7436 = vor.u32 %v7431, %v7435
        %v7438 = vshll.u32 %v7369, 16
        %v7440 = vrot.slane %v7438, 1
        %v7441 = vsel %vm1297, %v7436, %v7440
        %v7443 = vshrl.u32 %v7370, 16
        %v7445 = vshll.u32 %v7370, 16
        %v7447 = vrot.slane %v7445, 1
        %v7448 = vor.u32 %v7443, %v7447
        %v7450 = vshll.u32 %v7371, 16
        %v7452 = vrot.slane %v7450, 1
        %v7453 = vsel %vm1297, %v7448, %v7452
        %v7455 = vshrl.u32 %v7372, 16
        %v7457 = vshll.u32 %v7372, 16
        %v7459 = vrot.slane %v7457, 1
        %v7460 = vor.u32 %v7455, %v7459
        %v7462 = vshll.u32 %v7373, 16
        %v7464 = vrot.slane %v7462, 1
        %v7465 = vsel %vm1297, %v7460, %v7464
        %v7467 = vshrl.u32 %v7374, 16
        %v7469 = vshll.u32 %v7374, 16
        %v7471 = vrot.slane %v7469, 1
        %v7472 = vor.u32 %v7467, %v7471
        %v7474 = vshll.u32 %v7375, 16
        %v7476 = vrot.slane %v7474, 1
        %v7477 = vsel %vm1297, %v7472, %v7476
        %v7479 = vshrl.u32 %v7376, 16
        %v7481 = vshll.u32 %v7376, 16
        %v7483 = vrot.slane %v7481, 1
        %v7484 = vor.u32 %v7479, %v7483
        %v7486 = vshll.u32 %v7377, 16
        %v7488 = vrot.slane %v7486, 1
        %v7489 = vsel %vm1297, %v7484, %v7488
        %v7491 = vshrl.u32 %v7378, 16
        %v7493 = vshll.u32 %v7378, 16
        %v7495 = vrot.slane %v7493, 1
        %v7496 = vor.u32 %v7491, %v7495
        %v7498 = vshll.u32 %v7379, 16
        %v7500 = vrot.slane %v7498, 1
        %v7501 = vsel %vm1297, %v7496, %v7500
        %v7503 = vshrl.u32 %v7380, 16
        %v7505 = vshll.u32 %v7380, 16
        %v7507 = vrot.slane %v7505, 1
        %v7508 = vor.u32 %v7503, %v7507
        %v7510 = vshll.u32 %v7381, 16
        %v7512 = vrot.slane %v7510, 1
        %v7513 = vsel %vm1297, %v7508, %v7512
        %v7515 = vshrl.u32 %v7382, 16
        %v7517 = vshll.u32 %v7382, 16
        %v7519 = vrot.slane %v7517, 1
        %v7520 = vor.u32 %v7515, %v7519
        %v7522 = vshll.u32 %v7383, 16
        %v7524 = vrot.slane %v7522, 1
        %v7525 = vsel %vm1297, %v7520, %v7524
        %v7527 = vshrl.u32 %v7384, 16
        %v7529 = vshll.u32 %v7384, 16
        %v7531 = vrot.slane %v7529, 1
        %v7532 = vor.u32 %v7527, %v7531
        %v7534 = vshll.u32 %v7385, 16
        %v7536 = vrot.slane %v7534, 1
        %v7537 = vsel %vm1297, %v7532, %v7536
        %v7539 = vshrl.u32 %v7386, 16
        %v7541 = vshll.u32 %v7386, 16
        %v7543 = vrot.slane %v7541, 1
        %v7544 = vor.u32 %v7539, %v7543
        %v7546 = vshll.u32 %v7387, 16
        %v7548 = vrot.slane %v7546, 1
        %v7549 = vsel %vm1297, %v7544, %v7548
        %v7551 = vshrl.u32 %v7388, 16
        %v7553 = vshll.u32 %v7388, 16
        %v7555 = vrot.slane %v7553, 1
        %v7556 = vor.u32 %v7551, %v7555
        %v7558 = vshll.u32 %v7389, 16
        %v7560 = vrot.slane %v7558, 1
        %v7561 = vsel %vm1297, %v7556, %v7560
        %v7563 = vshrl.u32 %v7390, 16
        %v7565 = vshll.u32 %v7390, 16
        %v7567 = vrot.slane %v7565, 1
        %v7568 = vor.u32 %v7563, %v7567
        %v7570 = vshll.u32 %v7391, 16
        %v7572 = vrot.slane %v7570, 1
        %v7573 = vsel %vm1297, %v7568, %v7572
        %v7575 = vshrl.u32 %v7392, 16
        %v7577 = vshll.u32 %v7392, 16
        %v7579 = vrot.slane %v7577, 1
        %v7580 = vor.u32 %v7575, %v7579
        %v7582 = vshll.u32 %v7393, 16
        %v7584 = vrot.slane %v7582, 1
        %v7585 = vsel %vm1297, %v7580, %v7584
        %7602 = vst [vmem:[#allocation4 + $0x38] sm:$0xff] %v7405
        %7603 = vst [vmem:[#allocation4 + $0x80] sm:$0xff] %v7417
        %7604 = vst [vmem:[#allocation4 + $0xc8] sm:$0xff] %v7429
        %7605 = vst [vmem:[#allocation4 + $0x110] sm:$0xff] %v7441
        %7606 = vst [vmem:[#allocation4 + $0x158] sm:$0xff] %v7453
        %7607 = vst [vmem:[#allocation4 + $0x1a0] sm:$0xff] %v7465
        %7608 = vst [vmem:[#allocation4 + $0x1e8] sm:$0xff] %v7477
        %7609 = vst [vmem:[#allocation4 + $0x230] sm:$0xff] %v7489
        %7610 = vst [vmem:[#allocation4 + $0x278] sm:$0xff] %v7501
        %7611 = vst [vmem:[#allocation4 + $0x2c0] sm:$0xff] %v7513
        %7612 = vst [vmem:[#allocation4 + $0x308] sm:$0xff] %v7525
        %7613 = vst [vmem:[#allocation4 + $0x350] sm:$0xff] %v7537
        %7614 = vst [vmem:[#allocation4 + $0x398] sm:$0xff] %v7549
        %7615 = vst [vmem:[#allocation4 + $0x3e0] sm:$0xff] %v7561
        %7616 = vst [vmem:[#allocation4 + $0x428] sm:$0xff] %v7573
        %7617 = vst [vmem:[#allocation4 + $0x470] sm:$0xff] %v7585
        %v7618 = vld [vmem:[%s7073] sm:$0xe]
        %v7619 = vld [vmem:[%s7073 + $0x4] sm:$0xf]
        %v7620 = vld [vmem:[%s7073 + $0x8] sm:$0x1]
        %v7621 = vld [vmem:[%s7073 + $0xc] sm:$0xe]
        %v7622 = vld [vmem:[%s7073 + $0x10] sm:$0xf]
        %v7623 = vld [vmem:[%s7073 + $0x14] sm:$0x1]
        %v7624 = vld [vmem:[%s7073 + $0x18] sm:$0xe]
        %v7625 = vld [vmem:[%s7073 + $0x1c] sm:$0xf]
        %v7626 = vld [vmem:[%s7073 + $0x20] sm:$0x1]
        %v7627 = vld [vmem:[%s7073 + $0x24] sm:$0xe]
        %v7628 = vld [vmem:[%s7073 + $0x28] sm:$0xf]
        %v7629 = vld [vmem:[%s7073 + $0x2c] sm:$0x1]
        %v7630 = vld [vmem:[%s7073 + $0x30] sm:$0xe]
        %v7631 = vld [vmem:[%s7073 + $0x34] sm:$0xf]
        %v7632 = vld [vmem:[%s7073 + $0x38] sm:$0x1]
        %v7633 = vld [vmem:[%s7073 + $0x3c] sm:$0xe]
        %v7634 = vld [vmem:[%s7073 + $0x40] sm:$0xf]
        %v7635 = vld [vmem:[%s7073 + $0x44] sm:$0x1]
        %v7636 = vld [vmem:[%s7073 + $0x48] sm:$0xe]
        %v7637 = vld [vmem:[%s7073 + $0x4c] sm:$0xf]
        %v7638 = vld [vmem:[%s7073 + $0x50] sm:$0x1]
        %v7639 = vld [vmem:[%s7073 + $0x54] sm:$0xe]
        %v7640 = vld [vmem:[%s7073 + $0x58] sm:$0xf]
        %v7641 = vld [vmem:[%s7073 + $0x5c] sm:$0x1]
        %v7642 = vld [vmem:[%s7073 + $0x60] sm:$0xe]
        %v7643 = vld [vmem:[%s7073 + $0x64] sm:$0xf]
        %v7644 = vld [vmem:[%s7073 + $0x68] sm:$0x1]
        %v7645 = vld [vmem:[%s7073 + $0x6c] sm:$0xe]
        %v7646 = vld [vmem:[%s7073 + $0x70] sm:$0xf]
        %v7647 = vld [vmem:[%s7073 + $0x74] sm:$0x1]
        %v7648 = vld [vmem:[%s7073 + $0x78] sm:$0xe]
        %v7649 = vld [vmem:[%s7073 + $0x7c] sm:$0xf]
        %v7650 = vld [vmem:[%s7073 + $0x80] sm:$0x1]
        %v7651 = vld [vmem:[%s7073 + $0x84] sm:$0xe]
        %v7652 = vld [vmem:[%s7073 + $0x88] sm:$0xf]
        %v7653 = vld [vmem:[%s7073 + $0x8c] sm:$0x1]
        %v7654 = vld [vmem:[%s7073 + $0x90] sm:$0xe]
        %v7655 = vld [vmem:[%s7073 + $0x94] sm:$0xf]
        %v7656 = vld [vmem:[%s7073 + $0x98] sm:$0x1]
        %v7657 = vld [vmem:[%s7073 + $0x9c] sm:$0xe]
        %v7658 = vld [vmem:[%s7073 + $0xa0] sm:$0xf]
        %v7659 = vld [vmem:[%s7073 + $0xa4] sm:$0x1]
        %v7660 = vld [vmem:[%s7073 + $0xa8] sm:$0xe]
        %v7661 = vld [vmem:[%s7073 + $0xac] sm:$0xf]
        %v7662 = vld [vmem:[%s7073 + $0xb0] sm:$0x1]
        %v7663 = vld [vmem:[%s7073 + $0xb4] sm:$0xe]
        %v7664 = vld [vmem:[%s7073 + $0xb8] sm:$0xf]
        %v7665 = vld [vmem:[%s7073 + $0xbc] sm:$0x1]
        %v7714 = vunpack.c.l.b16 %v7618
        %v7715 = vunpack.c.l.b16 %v7619
        %v7716 = vunpack.c.l.b16 %v7620
        %v7717 = vunpack.c.l.b16 %v7621
        %v7718 = vunpack.c.l.b16 %v7622
        %v7719 = vunpack.c.l.b16 %v7623
        %v7720 = vunpack.c.l.b16 %v7624
        %v7721 = vunpack.c.l.b16 %v7625
        %v7722 = vunpack.c.l.b16 %v7626
        %v7723 = vunpack.c.l.b16 %v7627
        %v7724 = vunpack.c.l.b16 %v7628
        %v7725 = vunpack.c.l.b16 %v7629
        %v7726 = vunpack.c.l.b16 %v7630
        %v7727 = vunpack.c.l.b16 %v7631
        %v7728 = vunpack.c.l.b16 %v7632
        %v7729 = vunpack.c.l.b16 %v7633
        %v7730 = vunpack.c.l.b16 %v7634
        %v7731 = vunpack.c.l.b16 %v7635
        %v7732 = vunpack.c.l.b16 %v7636
        %v7733 = vunpack.c.l.b16 %v7637
        %v7734 = vunpack.c.l.b16 %v7638
        %v7735 = vunpack.c.l.b16 %v7639
        %v7736 = vunpack.c.l.b16 %v7640
        %v7737 = vunpack.c.l.b16 %v7641
        %v7738 = vunpack.c.l.b16 %v7642
        %v7739 = vunpack.c.l.b16 %v7643
        %v7740 = vunpack.c.l.b16 %v7644
        %v7741 = vunpack.c.l.b16 %v7645
        %v7742 = vunpack.c.l.b16 %v7646
        %v7743 = vunpack.c.l.b16 %v7647
        %v7744 = vunpack.c.l.b16 %v7648
        %v7745 = vunpack.c.l.b16 %v7649
        %v7746 = vunpack.c.l.b16 %v7650
        %v7747 = vunpack.c.l.b16 %v7651
        %v7748 = vunpack.c.l.b16 %v7652
        %v7749 = vunpack.c.l.b16 %v7653
        %v7750 = vunpack.c.l.b16 %v7654
        %v7751 = vunpack.c.l.b16 %v7655
        %v7752 = vunpack.c.l.b16 %v7656
        %v7753 = vunpack.c.l.b16 %v7657
        %v7754 = vunpack.c.l.b16 %v7658
        %v7755 = vunpack.c.l.b16 %v7659
        %v7756 = vunpack.c.l.b16 %v7660
        %v7757 = vunpack.c.l.b16 %v7661
        %v7758 = vunpack.c.l.b16 %v7662
        %v7759 = vunpack.c.l.b16 %v7663
        %v7760 = vunpack.c.l.b16 %v7664
        %v7761 = vunpack.c.l.b16 %v7665
        %v7762 = vpack.c.b16 %v7715, %v7714
        %v7763 = vpack.c.b16 %v7716, %v7716
        %v7764 = vpack.c.b16 %v7718, %v7717
        %v7765 = vpack.c.b16 %v7719, %v7719
        %v7766 = vpack.c.b16 %v7721, %v7720
        %v7767 = vpack.c.b16 %v7722, %v7722
        %v7768 = vpack.c.b16 %v7724, %v7723
        %v7769 = vpack.c.b16 %v7725, %v7725
        %v7770 = vpack.c.b16 %v7727, %v7726
        %v7771 = vpack.c.b16 %v7728, %v7728
        %v7772 = vpack.c.b16 %v7730, %v7729
        %v7773 = vpack.c.b16 %v7731, %v7731
        %v7774 = vpack.c.b16 %v7733, %v7732
        %v7775 = vpack.c.b16 %v7734, %v7734
        %v7776 = vpack.c.b16 %v7736, %v7735
        %v7777 = vpack.c.b16 %v7737, %v7737
        %v7778 = vpack.c.b16 %v7739, %v7738
        %v7779 = vpack.c.b16 %v7740, %v7740
        %v7780 = vpack.c.b16 %v7742, %v7741
        %v7781 = vpack.c.b16 %v7743, %v7743
        %v7782 = vpack.c.b16 %v7745, %v7744
        %v7783 = vpack.c.b16 %v7746, %v7746
        %v7784 = vpack.c.b16 %v7748, %v7747
        %v7785 = vpack.c.b16 %v7749, %v7749
        %v7786 = vpack.c.b16 %v7751, %v7750
        %v7787 = vpack.c.b16 %v7752, %v7752
        %v7788 = vpack.c.b16 %v7754, %v7753
        %v7789 = vpack.c.b16 %v7755, %v7755
        %v7790 = vpack.c.b16 %v7757, %v7756
        %v7791 = vpack.c.b16 %v7758, %v7758
        %v7792 = vpack.c.b16 %v7760, %v7759
        %v7793 = vpack.c.b16 %v7761, %v7761
        %v7794 = vrot.slane %v7762, 1
        %v7795 = vrot.slane %v7763, 1
        %v7796 = vsel %vm1698, %v7794, %v7795
        %v7797 = vrot.slane %v7764, 1
        %v7798 = vrot.slane %v7765, 1
        %v7799 = vsel %vm1698, %v7797, %v7798
        %v7800 = vrot.slane %v7766, 1
        %v7801 = vrot.slane %v7767, 1
        %v7802 = vsel %vm1698, %v7800, %v7801
        %v7803 = vrot.slane %v7768, 1
        %v7804 = vrot.slane %v7769, 1
        %v7805 = vsel %vm1698, %v7803, %v7804
        %v7806 = vrot.slane %v7770, 1
        %v7807 = vrot.slane %v7771, 1
        %v7808 = vsel %vm1698, %v7806, %v7807
        %v7809 = vrot.slane %v7772, 1
        %v7810 = vrot.slane %v7773, 1
        %v7811 = vsel %vm1698, %v7809, %v7810
        %v7812 = vrot.slane %v7774, 1
        %v7813 = vrot.slane %v7775, 1
        %v7814 = vsel %vm1698, %v7812, %v7813
        %v7815 = vrot.slane %v7776, 1
        %v7816 = vrot.slane %v7777, 1
        %v7817 = vsel %vm1698, %v7815, %v7816
        %v7818 = vrot.slane %v7778, 1
        %v7819 = vrot.slane %v7779, 1
        %v7820 = vsel %vm1698, %v7818, %v7819
        %v7821 = vrot.slane %v7780, 1
        %v7822 = vrot.slane %v7781, 1
        %v7823 = vsel %vm1698, %v7821, %v7822
        %v7824 = vrot.slane %v7782, 1
        %v7825 = vrot.slane %v7783, 1
        %v7826 = vsel %vm1698, %v7824, %v7825
        %v7827 = vrot.slane %v7784, 1
        %v7828 = vrot.slane %v7785, 1
        %v7829 = vsel %vm1698, %v7827, %v7828
        %v7830 = vrot.slane %v7786, 1
        %v7831 = vrot.slane %v7787, 1
        %v7832 = vsel %vm1698, %v7830, %v7831
        %v7833 = vrot.slane %v7788, 1
        %v7834 = vrot.slane %v7789, 1
        %v7835 = vsel %vm1698, %v7833, %v7834
        %v7836 = vrot.slane %v7790, 1
        %v7837 = vrot.slane %v7791, 1
        %v7838 = vsel %vm1698, %v7836, %v7837
        %v7839 = vrot.slane %v7792, 1
        %v7840 = vrot.slane %v7793, 1
        %v7841 = vsel %vm1698, %v7839, %v7840
        %7858 = vst [vmem:[#allocation4 + $0x40] sm:$0xff] %v7796
        %7859 = vst [vmem:[#allocation4 + $0x88] sm:$0xff] %v7799
        %7860 = vst [vmem:[#allocation4 + $0xd0] sm:$0xff] %v7802
        %7861 = vst [vmem:[#allocation4 + $0x118] sm:$0xff] %v7805
        %7862 = vst [vmem:[#allocation4 + $0x160] sm:$0xff] %v7808
        %7863 = vst [vmem:[#allocation4 + $0x1a8] sm:$0xff] %v7811
        %7864 = vst [vmem:[#allocation4 + $0x1f0] sm:$0xff] %v7814
        %7865 = vst [vmem:[#allocation4 + $0x238] sm:$0xff] %v7817
        %7866 = vst [vmem:[#allocation4 + $0x280] sm:$0xff] %v7820
        %7867 = vst [vmem:[#allocation4 + $0x2c8] sm:$0xff] %v7823
        %7868 = vst [vmem:[#allocation4 + $0x310] sm:$0xff] %v7826
        %7869 = vst [vmem:[#allocation4 + $0x358] sm:$0xff] %v7829
        %7870 = vst [vmem:[#allocation4 + $0x3a0] sm:$0xff] %v7832
        %7871 = vst [vmem:[#allocation4 + $0x3e8] sm:$0xff] %v7835
        %7872 = vst [vmem:[#allocation4 + $0x430] sm:$0xff] %v7838
        %7873 = vst [vmem:[#allocation4 + $0x478] sm:$0xff] %v7841
        %v7874 = vld [vmem:[#allocation4] sm:$0xff]
        %v7875 = vld [vmem:[#allocation4 + $0x8] sm:$0xff]
        %v7876 = vld [vmem:[#allocation4 + $0x10] sm:$0xff]
        %v7877 = vld [vmem:[#allocation4 + $0x18] sm:$0xff]
        %v7878 = vld [vmem:[#allocation4 + $0x20] sm:$0xff]
        %v7879 = vld [vmem:[#allocation4 + $0x28] sm:$0xff]
        %v7880 = vld [vmem:[#allocation4 + $0x30] sm:$0xff]
        %v7881 = vld [vmem:[#allocation4 + $0x38] sm:$0xff]
        %v7882 = vld [vmem:[#allocation4 + $0x40] sm:$0xff]
        %v7883 = vld [vmem:[#allocation4 + $0x48] sm:$0xff]
        %v7884 = vld [vmem:[#allocation4 + $0x50] sm:$0xff]
        %v7885 = vld [vmem:[#allocation4 + $0x58] sm:$0xff]
        %v7886 = vld [vmem:[#allocation4 + $0x60] sm:$0xff]
        %v7887 = vld [vmem:[#allocation4 + $0x68] sm:$0xff]
        %v7888 = vld [vmem:[#allocation4 + $0x70] sm:$0xff]
        %v7889 = vld [vmem:[#allocation4 + $0x78] sm:$0xff]
        %v7890 = vld [vmem:[#allocation4 + $0x80] sm:$0xff]
        %v7891 = vld [vmem:[#allocation4 + $0x88] sm:$0xff]
        %v7892 = vld [vmem:[#allocation4 + $0x90] sm:$0xff]
        %v7893 = vld [vmem:[#allocation4 + $0x98] sm:$0xff]
        %v7894 = vld [vmem:[#allocation4 + $0xa0] sm:$0xff]
        %v7895 = vld [vmem:[#allocation4 + $0xa8] sm:$0xff]
        %v7896 = vld [vmem:[#allocation4 + $0xb0] sm:$0xff]
        %v7897 = vld [vmem:[#allocation4 + $0xb8] sm:$0xff]
        %v7898 = vld [vmem:[#allocation4 + $0xc0] sm:$0xff]
        %v7899 = vld [vmem:[#allocation4 + $0xc8] sm:$0xff]
        %v7900 = vld [vmem:[#allocation4 + $0xd0] sm:$0xff]
        %v7901 = vld [vmem:[#allocation4 + $0xd8] sm:$0xff]
        %v7902 = vld [vmem:[#allocation4 + $0xe0] sm:$0xff]
        %v7903 = vld [vmem:[#allocation4 + $0xe8] sm:$0xff]
        %v7904 = vld [vmem:[#allocation4 + $0xf0] sm:$0xff]
        %v7905 = vld [vmem:[#allocation4 + $0xf8] sm:$0xff]
        %v7906 = vld [vmem:[#allocation4 + $0x100] sm:$0xff]
        %v7907 = vld [vmem:[#allocation4 + $0x108] sm:$0xff]
        %v7908 = vld [vmem:[#allocation4 + $0x110] sm:$0xff]
        %v7909 = vld [vmem:[#allocation4 + $0x118] sm:$0xff]
        %v7910 = vld [vmem:[#allocation4 + $0x120] sm:$0xff]
        %v7911 = vld [vmem:[#allocation4 + $0x128] sm:$0xff]
        %v7912 = vld [vmem:[#allocation4 + $0x130] sm:$0xff]
        %v7913 = vld [vmem:[#allocation4 + $0x138] sm:$0xff]
        %v7914 = vld [vmem:[#allocation4 + $0x140] sm:$0xff]
        %v7915 = vld [vmem:[#allocation4 + $0x148] sm:$0xff]
        %v7916 = vld [vmem:[#allocation4 + $0x150] sm:$0xff]
        %v7917 = vld [vmem:[#allocation4 + $0x158] sm:$0xff]
        %v7918 = vld [vmem:[#allocation4 + $0x160] sm:$0xff]
        %v7919 = vld [vmem:[#allocation4 + $0x168] sm:$0xff]
        %v7920 = vld [vmem:[#allocation4 + $0x170] sm:$0xff]
        %v7921 = vld [vmem:[#allocation4 + $0x178] sm:$0xff]
        %v7922 = vld [vmem:[#allocation4 + $0x180] sm:$0xff]
        %v7923 = vld [vmem:[#allocation4 + $0x188] sm:$0xff]
        %v7924 = vld [vmem:[#allocation4 + $0x190] sm:$0xff]
        %v7925 = vld [vmem:[#allocation4 + $0x198] sm:$0xff]
        %v7926 = vld [vmem:[#allocation4 + $0x1a0] sm:$0xff]
        %v7927 = vld [vmem:[#allocation4 + $0x1a8] sm:$0xff]
        %v7928 = vld [vmem:[#allocation4 + $0x1b0] sm:$0xff]
        %v7929 = vld [vmem:[#allocation4 + $0x1b8] sm:$0xff]
        %v7930 = vld [vmem:[#allocation4 + $0x1c0] sm:$0xff]
        %v7931 = vld [vmem:[#allocation4 + $0x1c8] sm:$0xff]
        %v7932 = vld [vmem:[#allocation4 + $0x1d0] sm:$0xff]
        %v7933 = vld [vmem:[#allocation4 + $0x1d8] sm:$0xff]
        %v7934 = vld [vmem:[#allocation4 + $0x1e0] sm:$0xff]
        %v7935 = vld [vmem:[#allocation4 + $0x1e8] sm:$0xff]
        %v7936 = vld [vmem:[#allocation4 + $0x1f0] sm:$0xff]
        %v7937 = vld [vmem:[#allocation4 + $0x1f8] sm:$0xff]
        %v7938 = vld [vmem:[#allocation4 + $0x200] sm:$0xff]
        %v7939 = vld [vmem:[#allocation4 + $0x208] sm:$0xff]
        %v7940 = vld [vmem:[#allocation4 + $0x210] sm:$0xff]
        %v7941 = vld [vmem:[#allocation4 + $0x218] sm:$0xff]
        %v7942 = vld [vmem:[#allocation4 + $0x220] sm:$0xff]
        %v7943 = vld [vmem:[#allocation4 + $0x228] sm:$0xff]
        %v7944 = vld [vmem:[#allocation4 + $0x230] sm:$0xff]
        %v7945 = vld [vmem:[#allocation4 + $0x238] sm:$0xff]
        %v7946 = vld [vmem:[#allocation4 + $0x240] sm:$0xff]
        %v7947 = vld [vmem:[#allocation4 + $0x248] sm:$0xff]
        %v7948 = vld [vmem:[#allocation4 + $0x250] sm:$0xff]
        %v7949 = vld [vmem:[#allocation4 + $0x258] sm:$0xff]
        %v7950 = vld [vmem:[#allocation4 + $0x260] sm:$0xff]
        %v7951 = vld [vmem:[#allocation4 + $0x268] sm:$0xff]
        %v7952 = vld [vmem:[#allocation4 + $0x270] sm:$0xff]
        %v7953 = vld [vmem:[#allocation4 + $0x278] sm:$0xff]
        %v7954 = vld [vmem:[#allocation4 + $0x280] sm:$0xff]
        %v7955 = vld [vmem:[#allocation4 + $0x288] sm:$0xff]
        %v7956 = vld [vmem:[#allocation4 + $0x290] sm:$0xff]
        %v7957 = vld [vmem:[#allocation4 + $0x298] sm:$0xff]
        %v7958 = vld [vmem:[#allocation4 + $0x2a0] sm:$0xff]
        %v7959 = vld [vmem:[#allocation4 + $0x2a8] sm:$0xff]
        %v7960 = vld [vmem:[#allocation4 + $0x2b0] sm:$0xff]
        %v7961 = vld [vmem:[#allocation4 + $0x2b8] sm:$0xff]
        %v7962 = vld [vmem:[#allocation4 + $0x2c0] sm:$0xff]
        %v7963 = vld [vmem:[#allocation4 + $0x2c8] sm:$0xff]
        %v7964 = vld [vmem:[#allocation4 + $0x2d0] sm:$0xff]
        %v7965 = vld [vmem:[#allocation4 + $0x2d8] sm:$0xff]
        %v7966 = vld [vmem:[#allocation4 + $0x2e0] sm:$0xff]
        %v7967 = vld [vmem:[#allocation4 + $0x2e8] sm:$0xff]
        %v7968 = vld [vmem:[#allocation4 + $0x2f0] sm:$0xff]
        %v7969 = vld [vmem:[#allocation4 + $0x2f8] sm:$0xff]
        %v7970 = vld [vmem:[#allocation4 + $0x300] sm:$0xff]
        %v7971 = vld [vmem:[#allocation4 + $0x308] sm:$0xff]
        %v7972 = vld [vmem:[#allocation4 + $0x310] sm:$0xff]
        %v7973 = vld [vmem:[#allocation4 + $0x318] sm:$0xff]
        %v7974 = vld [vmem:[#allocation4 + $0x320] sm:$0xff]
        %v7975 = vld [vmem:[#allocation4 + $0x328] sm:$0xff]
        %v7976 = vld [vmem:[#allocation4 + $0x330] sm:$0xff]
        %v7977 = vld [vmem:[#allocation4 + $0x338] sm:$0xff]
        %v7978 = vld [vmem:[#allocation4 + $0x340] sm:$0xff]
        %v7979 = vld [vmem:[#allocation4 + $0x348] sm:$0xff]
        %v7980 = vld [vmem:[#allocation4 + $0x350] sm:$0xff]
        %v7981 = vld [vmem:[#allocation4 + $0x358] sm:$0xff]
        %v7982 = vld [vmem:[#allocation4 + $0x360] sm:$0xff]
        %v7983 = vld [vmem:[#allocation4 + $0x368] sm:$0xff]
        %v7984 = vld [vmem:[#allocation4 + $0x370] sm:$0xff]
        %v7985 = vld [vmem:[#allocation4 + $0x378] sm:$0xff]
        %v7986 = vld [vmem:[#allocation4 + $0x380] sm:$0xff]
        %v7987 = vld [vmem:[#allocation4 + $0x388] sm:$0xff]
        %v7988 = vld [vmem:[#allocation4 + $0x390] sm:$0xff]
        %v7989 = vld [vmem:[#allocation4 + $0x398] sm:$0xff]
        %v7990 = vld [vmem:[#allocation4 + $0x3a0] sm:$0xff]
        %v7991 = vld [vmem:[#allocation4 + $0x3a8] sm:$0xff]
        %v7992 = vld [vmem:[#allocation4 + $0x3b0] sm:$0xff]
        %v7993 = vld [vmem:[#allocation4 + $0x3b8] sm:$0xff]
        %v7994 = vld [vmem:[#allocation4 + $0x3c0] sm:$0xff]
        %v7995 = vld [vmem:[#allocation4 + $0x3c8] sm:$0xff]
        %v7996 = vld [vmem:[#allocation4 + $0x3d0] sm:$0xff]
        %v7997 = vld [vmem:[#allocation4 + $0x3d8] sm:$0xff]
        %v7998 = vld [vmem:[#allocation4 + $0x3e0] sm:$0xff]
        %v7999 = vld [vmem:[#allocation4 + $0x3e8] sm:$0xff]
        %v8000 = vld [vmem:[#allocation4 + $0x3f0] sm:$0xff]
        %v8001 = vld [vmem:[#allocation4 + $0x3f8] sm:$0xff]
        %v8002 = vld [vmem:[#allocation4 + $0x400] sm:$0xff]
        %v8003 = vld [vmem:[#allocation4 + $0x408] sm:$0xff]
        %v8004 = vld [vmem:[#allocation4 + $0x410] sm:$0xff]
        %v8005 = vld [vmem:[#allocation4 + $0x418] sm:$0xff]
        %v8006 = vld [vmem:[#allocation4 + $0x420] sm:$0xff]
        %v8007 = vld [vmem:[#allocation4 + $0x428] sm:$0xff]
        %v8008 = vld [vmem:[#allocation4 + $0x430] sm:$0xff]
        %v8009 = vld [vmem:[#allocation4 + $0x438] sm:$0xff]
        %v8010 = vld [vmem:[#allocation4 + $0x440] sm:$0xff]
        %v8011 = vld [vmem:[#allocation4 + $0x448] sm:$0xff]
        %v8012 = vld [vmem:[#allocation4 + $0x450] sm:$0xff]
        %v8013 = vld [vmem:[#allocation4 + $0x458] sm:$0xff]
        %v8014 = vld [vmem:[#allocation4 + $0x460] sm:$0xff]
        %v8015 = vld [vmem:[#allocation4 + $0x468] sm:$0xff]
        %v8016 = vld [vmem:[#allocation4 + $0x470] sm:$0xff]
        %v8017 = vld [vmem:[#allocation4 + $0x478] sm:$0xff]
        %v8018 = vld [vmem:[#allocation10] sm:$0xf]
        %v8019 = vld [vmem:[#allocation10 + $0x4] sm:$0xf]
        %v8020 = vld [vmem:[#allocation10 + $0x8] sm:$0xf]
        %v8021 = vld [vmem:[#allocation10 + $0xc] sm:$0xf]
        %v8022 = vld [vmem:[#allocation10 + $0x10] sm:$0xf]
        %v8023 = vld [vmem:[#allocation10 + $0x14] sm:$0xf]
        %v8024 = vld [vmem:[#allocation10 + $0x18] sm:$0xf]
        %v8025 = vld [vmem:[#allocation10 + $0x1c] sm:$0xf]
        %v8026 = vld [vmem:[#allocation10 + $0x20] sm:$0xf]
        %v8027 = vld [vmem:[#allocation10 + $0x24] sm:$0xf]
        %v8028 = vld [vmem:[#allocation10 + $0x28] sm:$0xf]
        %v8029 = vld [vmem:[#allocation10 + $0x2c] sm:$0xf]
        %v8030 = vld [vmem:[#allocation10 + $0x30] sm:$0xf]
        %v8031 = vld [vmem:[#allocation10 + $0x34] sm:$0xf]
        %v8032 = vld [vmem:[#allocation10 + $0x38] sm:$0xf]
        %v8033 = vld [vmem:[#allocation10 + $0x3c] sm:$0xf]
        %v8034 = vld [vmem:[#allocation10 + $0x40] sm:$0xf]
        %v8035 = vld [vmem:[#allocation10 + $0x44] sm:$0xf]
        %v8036 = vld [vmem:[#allocation10 + $0x48] sm:$0xf]
        %v8037 = vld [vmem:[#allocation10 + $0x4c] sm:$0xf]
        %v8038 = vld [vmem:[#allocation10 + $0x50] sm:$0xf]
        %v8039 = vld [vmem:[#allocation10 + $0x54] sm:$0xf]
        %v8040 = vld [vmem:[#allocation10 + $0x58] sm:$0xf]
        %v8041 = vld [vmem:[#allocation10 + $0x5c] sm:$0xf]
        %v8042 = vld [vmem:[#allocation10 + $0x60] sm:$0xf]
        %v8043 = vld [vmem:[#allocation10 + $0x64] sm:$0xf]
        %v8044 = vld [vmem:[#allocation10 + $0x68] sm:$0xf]
        %v8045 = vld [vmem:[#allocation10 + $0x6c] sm:$0xf]
        %v8046 = vld [vmem:[#allocation10 + $0x70] sm:$0xf]
        %v8047 = vld [vmem:[#allocation10 + $0x74] sm:$0xf]
        %v8048 = vld [vmem:[#allocation10 + $0x78] sm:$0xf]
        %v8049 = vld [vmem:[#allocation10 + $0x7c] sm:$0xf]
        %v8050 = vld [vmem:[#allocation10 + $0x80] sm:$0xf]
        %v8051 = vld [vmem:[#allocation10 + $0x84] sm:$0xf]
        %v8052 = vld [vmem:[#allocation10 + $0x88] sm:$0xf]
        %v8053 = vld [vmem:[#allocation10 + $0x8c] sm:$0xf]
        %v8054 = vld [vmem:[#allocation10 + $0x90] sm:$0xf]
        %v8055 = vld [vmem:[#allocation10 + $0x94] sm:$0xf]
        %v8056 = vld [vmem:[#allocation10 + $0x98] sm:$0xf]
        %v8057 = vld [vmem:[#allocation10 + $0x9c] sm:$0xf]
        %v8058 = vld [vmem:[#allocation10 + $0xa0] sm:$0xf]
        %v8059 = vld [vmem:[#allocation10 + $0xa4] sm:$0xf]
        %v8060 = vld [vmem:[#allocation10 + $0xa8] sm:$0xf]
        %v8061 = vld [vmem:[#allocation10 + $0xac] sm:$0xf]
        %v8062 = vld [vmem:[#allocation10 + $0xb0] sm:$0xf]
        %v8063 = vld [vmem:[#allocation10 + $0xb4] sm:$0xf]
        %v8064 = vld [vmem:[#allocation10 + $0xb8] sm:$0xf]
        %v8065 = vld [vmem:[#allocation10 + $0xbc] sm:$0xf]
        %v8066 = vld [vmem:[#allocation10 + $0xc0] sm:$0xf]
        %v8067 = vld [vmem:[#allocation10 + $0xc4] sm:$0xf]
        %v8068 = vld [vmem:[#allocation10 + $0xc8] sm:$0xf]
        %v8069 = vld [vmem:[#allocation10 + $0xcc] sm:$0xf]
        %v8070 = vld [vmem:[#allocation10 + $0xd0] sm:$0xf]
        %v8071 = vld [vmem:[#allocation10 + $0xd4] sm:$0xf]
        %v8072 = vld [vmem:[#allocation10 + $0xd8] sm:$0xf]
        %v8073 = vld [vmem:[#allocation10 + $0xdc] sm:$0xf]
        %v8074 = vld [vmem:[#allocation10 + $0xe0] sm:$0xf]
        %v8075 = vld [vmem:[#allocation10 + $0xe4] sm:$0xf]
        %v8076 = vld [vmem:[#allocation10 + $0xe8] sm:$0xf]
        %v8077 = vld [vmem:[#allocation10 + $0xec] sm:$0xf]
        %v8078 = vld [vmem:[#allocation10 + $0xf0] sm:$0xf]
        %v8079 = vld [vmem:[#allocation10 + $0xf4] sm:$0xf]
        %v8080 = vld [vmem:[#allocation10 + $0xf8] sm:$0xf]
        %v8081 = vld [vmem:[#allocation10 + $0xfc] sm:$0xf]
        %v8082 = vld [vmem:[#allocation10 + $0x100] sm:$0xf]
        %v8083 = vld [vmem:[#allocation10 + $0x104] sm:$0xf]
        %v8084 = vld [vmem:[#allocation10 + $0x108] sm:$0xf]
        %v8085 = vld [vmem:[#allocation10 + $0x10c] sm:$0xf]
        %v8086 = vld [vmem:[#allocation10 + $0x110] sm:$0xf]
        %v8087 = vld [vmem:[#allocation10 + $0x114] sm:$0xf]
        %v8088 = vld [vmem:[#allocation10 + $0x118] sm:$0xf]
        %v8089 = vld [vmem:[#allocation10 + $0x11c] sm:$0xf]
        %v8090 = vld [vmem:[#allocation10 + $0x120] sm:$0xf]
        %v8091 = vld [vmem:[#allocation10 + $0x124] sm:$0xf]
        %v8092 = vld [vmem:[#allocation10 + $0x128] sm:$0xf]
        %v8093 = vld [vmem:[#allocation10 + $0x12c] sm:$0xf]
        %v8094 = vld [vmem:[#allocation10 + $0x130] sm:$0xf]
        %v8095 = vld [vmem:[#allocation10 + $0x134] sm:$0xf]
        %v8096 = vld [vmem:[#allocation10 + $0x138] sm:$0xf]
        %v8097 = vld [vmem:[#allocation10 + $0x13c] sm:$0xf]
        %v8098 = vld [vmem:[#allocation10 + $0x140] sm:$0xf]
        %v8099 = vld [vmem:[#allocation10 + $0x144] sm:$0xf]
        %v8100 = vld [vmem:[#allocation10 + $0x148] sm:$0xf]
        %v8101 = vld [vmem:[#allocation10 + $0x14c] sm:$0xf]
        %v8102 = vld [vmem:[#allocation10 + $0x150] sm:$0xf]
        %v8103 = vld [vmem:[#allocation10 + $0x154] sm:$0xf]
        %v8104 = vld [vmem:[#allocation10 + $0x158] sm:$0xf]
        %v8105 = vld [vmem:[#allocation10 + $0x15c] sm:$0xf]
        %v8106 = vld [vmem:[#allocation10 + $0x160] sm:$0xf]
        %v8107 = vld [vmem:[#allocation10 + $0x164] sm:$0xf]
        %v8108 = vld [vmem:[#allocation10 + $0x168] sm:$0xf]
        %v8109 = vld [vmem:[#allocation10 + $0x16c] sm:$0xf]
        %v8110 = vld [vmem:[#allocation10 + $0x170] sm:$0xf]
        %v8111 = vld [vmem:[#allocation10 + $0x174] sm:$0xf]
        %v8112 = vld [vmem:[#allocation10 + $0x178] sm:$0xf]
        %v8113 = vld [vmem:[#allocation10 + $0x17c] sm:$0xf]
        %v8114 = vld [vmem:[#allocation10 + $0x180] sm:$0xf]
        %v8115 = vld [vmem:[#allocation10 + $0x184] sm:$0xf]
        %v8116 = vld [vmem:[#allocation10 + $0x188] sm:$0xf]
        %v8117 = vld [vmem:[#allocation10 + $0x18c] sm:$0xf]
        %v8118 = vld [vmem:[#allocation10 + $0x190] sm:$0xf]
        %v8119 = vld [vmem:[#allocation10 + $0x194] sm:$0xf]
        %v8120 = vld [vmem:[#allocation10 + $0x198] sm:$0xf]
        %v8121 = vld [vmem:[#allocation10 + $0x19c] sm:$0xf]
        %v8122 = vld [vmem:[#allocation10 + $0x1a0] sm:$0xf]
        %v8123 = vld [vmem:[#allocation10 + $0x1a4] sm:$0xf]
        %v8124 = vld [vmem:[#allocation10 + $0x1a8] sm:$0xf]
        %v8125 = vld [vmem:[#allocation10 + $0x1ac] sm:$0xf]
        %v8126 = vld [vmem:[#allocation10 + $0x1b0] sm:$0xf]
        %v8127 = vld [vmem:[#allocation10 + $0x1b4] sm:$0xf]
        %v8128 = vld [vmem:[#allocation10 + $0x1b8] sm:$0xf]
        %v8129 = vld [vmem:[#allocation10 + $0x1bc] sm:$0xf]
        %v8130 = vld [vmem:[#allocation10 + $0x1c0] sm:$0xf]
        %v8131 = vld [vmem:[#allocation10 + $0x1c4] sm:$0xf]
        %v8132 = vld [vmem:[#allocation10 + $0x1c8] sm:$0xf]
        %v8133 = vld [vmem:[#allocation10 + $0x1cc] sm:$0xf]
        %v8134 = vld [vmem:[#allocation10 + $0x1d0] sm:$0xf]
        %v8135 = vld [vmem:[#allocation10 + $0x1d4] sm:$0xf]
        %v8136 = vld [vmem:[#allocation10 + $0x1d8] sm:$0xf]
        %v8137 = vld [vmem:[#allocation10 + $0x1dc] sm:$0xf]
        %v8138 = vld [vmem:[#allocation10 + $0x1e0] sm:$0xf]
        %v8139 = vld [vmem:[#allocation10 + $0x1e4] sm:$0xf]
        %v8140 = vld [vmem:[#allocation10 + $0x1e8] sm:$0xf]
        %v8141 = vld [vmem:[#allocation10 + $0x1ec] sm:$0xf]
        %v8142 = vld [vmem:[#allocation10 + $0x1f0] sm:$0xf]
        %v8143 = vld [vmem:[#allocation10 + $0x1f4] sm:$0xf]
        %v8144 = vld [vmem:[#allocation10 + $0x1f8] sm:$0xf]
        %v8145 = vld [vmem:[#allocation10 + $0x1fc] sm:$0xf]
        %v8146 = vld [vmem:[#allocation10 + $0x200] sm:$0xf]
        %v8147 = vld [vmem:[#allocation10 + $0x204] sm:$0xf]
        %v8148 = vld [vmem:[#allocation10 + $0x208] sm:$0xf]
        %v8149 = vld [vmem:[#allocation10 + $0x20c] sm:$0xf]
        %v8150 = vld [vmem:[#allocation10 + $0x210] sm:$0xf]
        %v8151 = vld [vmem:[#allocation10 + $0x214] sm:$0xf]
        %v8152 = vld [vmem:[#allocation10 + $0x218] sm:$0xf]
        %v8153 = vld [vmem:[#allocation10 + $0x21c] sm:$0xf]
        %v8154 = vld [vmem:[#allocation10 + $0x220] sm:$0xf]
        %v8155 = vld [vmem:[#allocation10 + $0x224] sm:$0xf]
        %v8156 = vld [vmem:[#allocation10 + $0x228] sm:$0xf]
        %v8157 = vld [vmem:[#allocation10 + $0x22c] sm:$0xf]
        %v8158 = vld [vmem:[#allocation10 + $0x230] sm:$0xf]
        %v8159 = vld [vmem:[#allocation10 + $0x234] sm:$0xf]
        %v8160 = vld [vmem:[#allocation10 + $0x238] sm:$0xf]
        %v8161 = vld [vmem:[#allocation10 + $0x23c] sm:$0xf]
        %v8162 = vld [vmem:[%s237] sm:$0xf]
        %v8163 = vld [vmem:[%s237 + $0x4] sm:$0xf]
        %v8164 = vld [vmem:[%s237 + $0x8] sm:$0xf]
        %v8165 = vld [vmem:[%s237 + $0xc] sm:$0xf]
        %v8166 = vld [vmem:[%s237 + $0x10] sm:$0xf]
        %v8167 = vld [vmem:[%s237 + $0x14] sm:$0xf]
        %v8168 = vld [vmem:[%s237 + $0x18] sm:$0xf]
        %v8169 = vld [vmem:[%s237 + $0x1c] sm:$0xf]
        %v8170 = vld [vmem:[%s237 + $0x20] sm:$0xf]
        %v8171 = vld [vmem:[%s237 + $0x24] sm:$0xf]
        %v8172 = vld [vmem:[%s237 + $0x28] sm:$0xf]
        %v8173 = vld [vmem:[%s237 + $0x2c] sm:$0xf]
        %v8174 = vld [vmem:[%s237 + $0x30] sm:$0xf]
        %v8175 = vld [vmem:[%s237 + $0x34] sm:$0xf]
        %v8176 = vld [vmem:[%s237 + $0x38] sm:$0xf]
        %v8177 = vld [vmem:[%s237 + $0x3c] sm:$0xf]
        %v8178 = vld [vmem:[%s237 + $0x40] sm:$0xf]
        %v8179 = vld [vmem:[%s237 + $0x44] sm:$0xf]
        %v8180 = vld [vmem:[%s237 + $0x48] sm:$0xf]
        %v8181 = vld [vmem:[%s237 + $0x4c] sm:$0xf]
        %v8182 = vld [vmem:[%s237 + $0x50] sm:$0xf]
        %v8183 = vld [vmem:[%s237 + $0x54] sm:$0xf]
        %v8184 = vld [vmem:[%s237 + $0x58] sm:$0xf]
        %v8185 = vld [vmem:[%s237 + $0x5c] sm:$0xf]
        %v8186 = vld [vmem:[%s237 + $0x60] sm:$0xf]
        %v8187 = vld [vmem:[%s237 + $0x64] sm:$0xf]
        %v8188 = vld [vmem:[%s237 + $0x68] sm:$0xf]
        %v8189 = vld [vmem:[%s237 + $0x6c] sm:$0xf]
        %v8190 = vld [vmem:[%s237 + $0x70] sm:$0xf]
        %v8191 = vld [vmem:[%s237 + $0x74] sm:$0xf]
        %v8192 = vld [vmem:[%s237 + $0x78] sm:$0xf]
        %v8193 = vld [vmem:[%s237 + $0x7c] sm:$0xf]
        %v8194 = vunpack.c.l.bf16 %v8162
        %v8195 = vunpack.c.l.bf16 %v8163
        %v8196 = vunpack.c.l.bf16 %v8164
        %v8197 = vunpack.c.l.bf16 %v8165
        %v8198 = vunpack.c.l.bf16 %v8166
        %v8199 = vunpack.c.l.bf16 %v8167
        %v8200 = vunpack.c.l.bf16 %v8168
        %v8201 = vunpack.c.l.bf16 %v8169
        %v8202 = vunpack.c.l.bf16 %v8170
        %v8203 = vunpack.c.l.bf16 %v8171
        %v8204 = vunpack.c.l.bf16 %v8172
        %v8205 = vunpack.c.l.bf16 %v8173
        %v8206 = vunpack.c.l.bf16 %v8174
        %v8207 = vunpack.c.l.bf16 %v8175
        %v8208 = vunpack.c.l.bf16 %v8176
        %v8209 = vunpack.c.l.bf16 %v8177
        %v8210 = vunpack.c.l.bf16 %v8178
        %v8211 = vunpack.c.l.bf16 %v8179
        %v8212 = vunpack.c.l.bf16 %v8180
        %v8213 = vunpack.c.l.bf16 %v8181
        %v8214 = vunpack.c.l.bf16 %v8182
        %v8215 = vunpack.c.l.bf16 %v8183
        %v8216 = vunpack.c.l.bf16 %v8184
        %v8217 = vunpack.c.l.bf16 %v8185
        %v8218 = vunpack.c.l.bf16 %v8186
        %v8219 = vunpack.c.l.bf16 %v8187
        %v8220 = vunpack.c.l.bf16 %v8188
        %v8221 = vunpack.c.l.bf16 %v8189
        %v8222 = vunpack.c.l.bf16 %v8190
        %v8223 = vunpack.c.l.bf16 %v8191
        %v8224 = vunpack.c.l.bf16 %v8192
        %v8225 = vunpack.c.l.bf16 %v8193
        %v8226 = vld [vmem:[%s4] sm:$0x1]
        %v8228 = vlaneseq
        %v8229 = vshrl.u32 %v8228, 7
        %v8230 = vsub.s32 0, %v8229
        %v8231 = vrot.slane %v8226, %v8230
        %v8377 = vunpack.c.l.b16 %v8018
        %v8378 = vunpack.c.l.b16 %v8019
        %v8379 = vunpack.c.l.b16 %v8020
        %v8380 = vunpack.c.l.b16 %v8021
        %v8381 = vunpack.c.l.b16 %v8022
        %v8382 = vunpack.c.l.b16 %v8023
        %v8383 = vunpack.c.l.b16 %v8024
        %v8384 = vunpack.c.l.b16 %v8025
        %v8385 = vunpack.c.l.b16 %v8026
        %v8386 = vunpack.c.l.b16 %v8027
        %v8387 = vunpack.c.l.b16 %v8028
        %v8388 = vunpack.c.l.b16 %v8029
        %v8389 = vunpack.c.l.b16 %v8030
        %v8390 = vunpack.c.l.b16 %v8031
        %v8391 = vunpack.c.l.b16 %v8032
        %v8392 = vunpack.c.l.b16 %v8033
        %v8393 = vunpack.c.l.b16 %v8034
        %v8394 = vunpack.c.l.b16 %v8035
        %v8395 = vunpack.c.l.b16 %v8036
        %v8396 = vunpack.c.l.b16 %v8037
        %v8397 = vunpack.c.l.b16 %v8038
        %v8398 = vunpack.c.l.b16 %v8039
        %v8399 = vunpack.c.l.b16 %v8040
        %v8400 = vunpack.c.l.b16 %v8041
        %v8401 = vunpack.c.l.b16 %v8042
        %v8402 = vunpack.c.l.b16 %v8043
        %v8403 = vunpack.c.l.b16 %v8044
        %v8404 = vunpack.c.l.b16 %v8045
        %v8405 = vunpack.c.l.b16 %v8046
        %v8406 = vunpack.c.l.b16 %v8047
        %v8407 = vunpack.c.l.b16 %v8048
        %v8408 = vunpack.c.l.b16 %v8049
        %v8409 = vunpack.c.l.b16 %v8050
        %v8410 = vunpack.c.l.b16 %v8051
        %v8411 = vunpack.c.l.b16 %v8052
        %v8412 = vunpack.c.l.b16 %v8053
        %v8413 = vunpack.c.l.b16 %v8054
        %v8414 = vunpack.c.l.b16 %v8055
        %v8415 = vunpack.c.l.b16 %v8056
        %v8416 = vunpack.c.l.b16 %v8057
        %v8417 = vunpack.c.l.b16 %v8058
        %v8418 = vunpack.c.l.b16 %v8059
        %v8419 = vunpack.c.l.b16 %v8060
        %v8420 = vunpack.c.l.b16 %v8061
        %v8421 = vunpack.c.l.b16 %v8062
        %v8422 = vunpack.c.l.b16 %v8063
        %v8423 = vunpack.c.l.b16 %v8064
        %v8424 = vunpack.c.l.b16 %v8065
        %v8425 = vunpack.c.l.b16 %v8066
        %v8426 = vunpack.c.l.b16 %v8067
        %v8427 = vunpack.c.l.b16 %v8068
        %v8428 = vunpack.c.l.b16 %v8069
        %v8429 = vunpack.c.l.b16 %v8070
        %v8430 = vunpack.c.l.b16 %v8071
        %v8431 = vunpack.c.l.b16 %v8072
        %v8432 = vunpack.c.l.b16 %v8073
        %v8433 = vunpack.c.l.b16 %v8074
        %v8434 = vunpack.c.l.b16 %v8075
        %v8435 = vunpack.c.l.b16 %v8076
        %v8436 = vunpack.c.l.b16 %v8077
        %v8437 = vunpack.c.l.b16 %v8078
        %v8438 = vunpack.c.l.b16 %v8079
        %v8439 = vunpack.c.l.b16 %v8080
        %v8440 = vunpack.c.l.b16 %v8081
        %v8441 = vunpack.c.l.b16 %v8082
        %v8442 = vunpack.c.l.b16 %v8083
        %v8443 = vunpack.c.l.b16 %v8084
        %v8444 = vunpack.c.l.b16 %v8085
        %v8445 = vunpack.c.l.b16 %v8086
        %v8446 = vunpack.c.l.b16 %v8087
        %v8447 = vunpack.c.l.b16 %v8088
        %v8448 = vunpack.c.l.b16 %v8089
        %v8449 = vunpack.c.l.b16 %v8090
        %v8450 = vunpack.c.l.b16 %v8091
        %v8451 = vunpack.c.l.b16 %v8092
        %v8452 = vunpack.c.l.b16 %v8093
        %v8453 = vunpack.c.l.b16 %v8094
        %v8454 = vunpack.c.l.b16 %v8095
        %v8455 = vunpack.c.l.b16 %v8096
        %v8456 = vunpack.c.l.b16 %v8097
        %v8457 = vunpack.c.l.b16 %v8098
        %v8458 = vunpack.c.l.b16 %v8099
        %v8459 = vunpack.c.l.b16 %v8100
        %v8460 = vunpack.c.l.b16 %v8101
        %v8461 = vunpack.c.l.b16 %v8102
        %v8462 = vunpack.c.l.b16 %v8103
        %v8463 = vunpack.c.l.b16 %v8104
        %v8464 = vunpack.c.l.b16 %v8105
        %v8465 = vunpack.c.l.b16 %v8106
        %v8466 = vunpack.c.l.b16 %v8107
        %v8467 = vunpack.c.l.b16 %v8108
        %v8468 = vunpack.c.l.b16 %v8109
        %v8469 = vunpack.c.l.b16 %v8110
        %v8470 = vunpack.c.l.b16 %v8111
        %v8471 = vunpack.c.l.b16 %v8112
        %v8472 = vunpack.c.l.b16 %v8113
        %v8473 = vunpack.c.l.b16 %v8114
        %v8474 = vunpack.c.l.b16 %v8115
        %v8475 = vunpack.c.l.b16 %v8116
        %v8476 = vunpack.c.l.b16 %v8117
        %v8477 = vunpack.c.l.b16 %v8118
        %v8478 = vunpack.c.l.b16 %v8119
        %v8479 = vunpack.c.l.b16 %v8120
        %v8480 = vunpack.c.l.b16 %v8121
        %v8481 = vunpack.c.l.b16 %v8122
        %v8482 = vunpack.c.l.b16 %v8123
        %v8483 = vunpack.c.l.b16 %v8124
        %v8484 = vunpack.c.l.b16 %v8125
        %v8485 = vunpack.c.l.b16 %v8126
        %v8486 = vunpack.c.l.b16 %v8127
        %v8487 = vunpack.c.l.b16 %v8128
        %v8488 = vunpack.c.l.b16 %v8129
        %v8489 = vunpack.c.l.b16 %v8130
        %v8490 = vunpack.c.l.b16 %v8131
        %v8491 = vunpack.c.l.b16 %v8132
        %v8492 = vunpack.c.l.b16 %v8133
        %v8493 = vunpack.c.l.b16 %v8134
        %v8494 = vunpack.c.l.b16 %v8135
        %v8495 = vunpack.c.l.b16 %v8136
        %v8496 = vunpack.c.l.b16 %v8137
        %v8497 = vunpack.c.l.b16 %v8138
        %v8498 = vunpack.c.l.b16 %v8139
        %v8499 = vunpack.c.l.b16 %v8140
        %v8500 = vunpack.c.l.b16 %v8141
        %v8501 = vunpack.c.l.b16 %v8142
        %v8502 = vunpack.c.l.b16 %v8143
        %v8503 = vunpack.c.l.b16 %v8144
        %v8504 = vunpack.c.l.b16 %v8145
        %v8505 = vunpack.c.l.b16 %v8146
        %v8506 = vunpack.c.l.b16 %v8147
        %v8507 = vunpack.c.l.b16 %v8148
        %v8508 = vunpack.c.l.b16 %v8149
        %v8509 = vunpack.c.l.b16 %v8150
        %v8510 = vunpack.c.l.b16 %v8151
        %v8511 = vunpack.c.l.b16 %v8152
        %v8512 = vunpack.c.l.b16 %v8153
        %v8513 = vunpack.c.l.b16 %v8154
        %v8514 = vunpack.c.l.b16 %v8155
        %v8515 = vunpack.c.l.b16 %v8156
        %v8516 = vunpack.c.l.b16 %v8157
        %v8517 = vunpack.c.l.b16 %v8158
        %v8518 = vunpack.c.l.b16 %v8159
        %v8519 = vunpack.c.l.b16 %v8160
        %v8520 = vunpack.c.l.b16 %v8161
        %v8521 = vpack.c.b16 %v8378, %v8377
        %v8522 = vpack.c.b16 %v8380, %v8379
        %v8523 = vpack.c.b16 %v8382, %v8381
        %v8524 = vpack.c.b16 %v8384, %v8383
        %v8525 = vpack.c.b16 %v8386, %v8385
        %v8526 = vpack.c.b16 %v8388, %v8387
        %v8527 = vpack.c.b16 %v8390, %v8389
        %v8528 = vpack.c.b16 %v8392, %v8391
        %v8529 = vpack.c.b16 %v8394, %v8393
        %v8530 = vpack.c.b16 %v8396, %v8395
        %v8531 = vpack.c.b16 %v8398, %v8397
        %v8532 = vpack.c.b16 %v8400, %v8399
        %v8533 = vpack.c.b16 %v8402, %v8401
        %v8534 = vpack.c.b16 %v8404, %v8403
        %v8535 = vpack.c.b16 %v8406, %v8405
        %v8536 = vpack.c.b16 %v8408, %v8407
        %v8537 = vpack.c.b16 %v8410, %v8409
        %v8538 = vpack.c.b16 %v8412, %v8411
        %v8539 = vpack.c.b16 %v8414, %v8413
        %v8540 = vpack.c.b16 %v8416, %v8415
        %v8541 = vpack.c.b16 %v8418, %v8417
        %v8542 = vpack.c.b16 %v8420, %v8419
        %v8543 = vpack.c.b16 %v8422, %v8421
        %v8544 = vpack.c.b16 %v8424, %v8423
        %v8545 = vpack.c.b16 %v8426, %v8425
        %v8546 = vpack.c.b16 %v8428, %v8427
        %v8547 = vpack.c.b16 %v8430, %v8429
        %v8548 = vpack.c.b16 %v8432, %v8431
        %v8549 = vpack.c.b16 %v8434, %v8433
        %v8550 = vpack.c.b16 %v8436, %v8435
        %v8551 = vpack.c.b16 %v8438, %v8437
        %v8552 = vpack.c.b16 %v8440, %v8439
        %v8553 = vpack.c.b16 %v8442, %v8441
        %v8554 = vpack.c.b16 %v8444, %v8443
        %v8555 = vpack.c.b16 %v8446, %v8445
        %v8556 = vpack.c.b16 %v8448, %v8447
        %v8557 = vpack.c.b16 %v8450, %v8449
        %v8558 = vpack.c.b16 %v8452, %v8451
        %v8559 = vpack.c.b16 %v8454, %v8453
        %v8560 = vpack.c.b16 %v8456, %v8455
        %v8561 = vpack.c.b16 %v8458, %v8457
        %v8562 = vpack.c.b16 %v8460, %v8459
        %v8563 = vpack.c.b16 %v8462, %v8461
        %v8564 = vpack.c.b16 %v8464, %v8463
        %v8565 = vpack.c.b16 %v8466, %v8465
        %v8566 = vpack.c.b16 %v8468, %v8467
        %v8567 = vpack.c.b16 %v8470, %v8469
        %v8568 = vpack.c.b16 %v8472, %v8471
        %v8569 = vpack.c.b16 %v8474, %v8473
        %v8570 = vpack.c.b16 %v8476, %v8475
        %v8571 = vpack.c.b16 %v8478, %v8477
        %v8572 = vpack.c.b16 %v8480, %v8479
        %v8573 = vpack.c.b16 %v8482, %v8481
        %v8574 = vpack.c.b16 %v8484, %v8483
        %v8575 = vpack.c.b16 %v8486, %v8485
        %v8576 = vpack.c.b16 %v8488, %v8487
        %v8577 = vpack.c.b16 %v8490, %v8489
        %v8578 = vpack.c.b16 %v8492, %v8491
        %v8579 = vpack.c.b16 %v8494, %v8493
        %v8580 = vpack.c.b16 %v8496, %v8495
        %v8581 = vpack.c.b16 %v8498, %v8497
        %v8582 = vpack.c.b16 %v8500, %v8499
        %v8583 = vpack.c.b16 %v8502, %v8501
        %v8584 = vpack.c.b16 %v8504, %v8503
        %v8585 = vpack.c.b16 %v8506, %v8505
        %v8586 = vpack.c.b16 %v8508, %v8507
        %v8587 = vpack.c.b16 %v8510, %v8509
        %v8588 = vpack.c.b16 %v8512, %v8511
        %v8589 = vpack.c.b16 %v8514, %v8513
        %v8590 = vpack.c.b16 %v8516, %v8515
        %v8591 = vpack.c.b16 %v8518, %v8517
        %v8592 = vpack.c.b16 %v8520, %v8519
        %8665 = vmatprep.subr.bf16.mxu0 0
        %8666 = vmatpush1.bf16.msra.mxu0 %v8521
        %8667 = vmatprep.subr.bf16.mxu0 0
        %8668 = vmatpush1.bf16.msra.mxu0 %v8522
        %8669 = vmatprep.subr.bf16.mxu0 0
        %8670 = vmatpush1.bf16.msra.mxu0 %v8523
        %8671 = vmatprep.subr.bf16.mxu0 0
        %8672 = vmatpush1.bf16.msra.mxu0 %v8524
        %8673 = vmatprep.subr.bf16.mxu0 0
        %8674 = vmatpush1.bf16.msra.mxu0 %v8525
        %8675 = vmatprep.subr.bf16.mxu0 0
        %8676 = vmatpush1.bf16.msra.mxu0 %v8526
        %8677 = vmatprep.subr.bf16.mxu0 0
        %8678 = vmatpush1.bf16.msra.mxu0 %v8527
        %8679 = vmatprep.subr.bf16.mxu0 0
        %8680 = vmatpush1.bf16.msra.mxu0 %v8528
        %8681 = vmatprep.subr.bf16.mxu0 0
        %8682 = vmatpush1.bf16.msra.mxu0 %v8529
        %8683 = vmatprep.subr.bf16.mxu0 0
        %8684 = vmatpush1.bf16.msra.mxu0 %v8530
        %8685 = vmatprep.subr.bf16.mxu0 0
        %8686 = vmatpush1.bf16.msra.mxu0 %v8531
        %8687 = vmatprep.subr.bf16.mxu0 0
        %8688 = vmatpush1.bf16.msra.mxu0 %v8532
        %8689 = vmatprep.subr.bf16.mxu0 0
        %8690 = vmatpush1.bf16.msra.mxu0 %v8533
        %8691 = vmatprep.subr.bf16.mxu0 0
        %8692 = vmatpush1.bf16.msra.mxu0 %v8534
        %8693 = vmatprep.subr.bf16.mxu0 0
        %8694 = vmatpush1.bf16.msra.mxu0 %v8535
        %8695 = vmatprep.subr.bf16.mxu0 0
        %8696 = vmatpush1.bf16.msra.mxu0 %v8536
        %8697 = vmatprep.mubr.bf16.mxu0 %v7875
        %8698 = vmatmul.mubr.bf16.gmra.mrb[0].mxu0 %v7874
        %v8699 = vpop.f32.mrb[0].mxu0
        %v8700 = vadd.f32 %v8231, %v8699
        %v8701 = vpop.f32.mrb[0].mxu0
        %v8702 = vpop.f32.mrb[0].mxu0
        %v8703 = vadd.f32 %v8231, %v8702
        %v8704 = vpop.f32.mrb[0].mxu0
        %8705 = vmatprep.mubr.bf16.mxu0 %v7884
        %8706 = vmatmul.mubr.bf16.gmra.mrb[0].mxu0 %v7883
        %v8707 = vpop.f32.mrb[0].mxu0
        %v8708 = vadd.f32 %v8231, %v8707
        %v8709 = vpop.f32.mrb[0].mxu0
        %v8710 = vpop.f32.mrb[0].mxu0
        %v8711 = vadd.f32 %v8231, %v8710
        %v8712 = vpop.f32.mrb[0].mxu0
        %8713 = vmatprep.mubr.bf16.mxu0 %v7893
        %8714 = vmatmul.mubr.bf16.gmra.mrb[0].mxu0 %v7892
        %v8715 = vpop.f32.mrb[0].mxu0
        %v8716 = vadd.f32 %v8231, %v8715
        %v8717 = vpop.f32.mrb[0].mxu0
        %v8718 = vpop.f32.mrb[0].mxu0
        %v8719 = vadd.f32 %v8231, %v8718
        %v8720 = vpop.f32.mrb[0].mxu0
        %8721 = vmatprep.mubr.bf16.mxu0 %v7902
        %8722 = vmatmul.mubr.bf16.gmra.mrb[0].mxu0 %v7901
        %v8723 = vpop.f32.mrb[0].mxu0
        %v8724 = vadd.f32 %v8231, %v8723
        %v8725 = vpop.f32.mrb[0].mxu0
        %v8726 = vpop.f32.mrb[0].mxu0
        %v8727 = vadd.f32 %v8231, %v8726
        %v8728 = vpop.f32.mrb[0].mxu0
        %8729 = vmatprep.mubr.bf16.mxu0 %v7911
        %8730 = vmatmul.mubr.bf16.gmra.mrb[0].mxu0 %v7910
        %v8731 = vpop.f32.mrb[0].mxu0
        %v8732 = vadd.f32 %v8231, %v8731
        %v8733 = vpop.f32.mrb[0].mxu0
        %v8734 = vpop.f32.mrb[0].mxu0
        %v8735 = vadd.f32 %v8231, %v8734
        %v8736 = vpop.f32.mrb[0].mxu0
        %8737 = vmatprep.mubr.bf16.mxu0 %v7920
        %8738 = vmatmul.mubr.bf16.gmra.mrb[0].mxu0 %v7919
        %v8739 = vpop.f32.mrb[0].mxu0
        %v8740 = vadd.f32 %v8231, %v8739
        %v8741 = vpop.f32.mrb[0].mxu0
        %v8742 = vpop.f32.mrb[0].mxu0
        %v8743 = vadd.f32 %v8231, %v8742
        %v8744 = vpop.f32.mrb[0].mxu0
        %8745 = vmatprep.mubr.bf16.mxu0 %v7929
        %8746 = vmatmul.mubr.bf16.gmra.mrb[0].mxu0 %v7928
        %v8747 = vpop.f32.mrb[0].mxu0
        %v8748 = vadd.f32 %v8231, %v8747
        %v8749 = vpop.f32.mrb[0].mxu0
        %v8750 = vpop.f32.mrb[0].mxu0
        %v8751 = vadd.f32 %v8231, %v8750
        %v8752 = vpop.f32.mrb[0].mxu0
        %8753 = vmatprep.mubr.bf16.mxu0 %v7938
        %8754 = vmatmul.mubr.bf16.gmra.mrb[0].mxu0 %v7937
        %v8755 = vpop.f32.mrb[0].mxu0
        %v8756 = vadd.f32 %v8231, %v8755
        %v8757 = vpop.f32.mrb[0].mxu0
        %v8758 = vpop.f32.mrb[0].mxu0
        %v8759 = vadd.f32 %v8231, %v8758
        %v8760 = vpop.f32.mrb[0].mxu0
        %8761 = vmatprep.mubr.bf16.mxu0 %v7947
        %8762 = vmatmul.mubr.bf16.gmra.mrb[0].mxu0 %v7946
        %v8763 = vpop.f32.mrb[0].mxu0
        %v8764 = vadd.f32 %v8231, %v8763
        %v8765 = vpop.f32.mrb[0].mxu0
        %v8766 = vpop.f32.mrb[0].mxu0
        %v8767 = vadd.f32 %v8231, %v8766
        %v8768 = vpop.f32.mrb[0].mxu0
        %8769 = vmatprep.mubr.bf16.mxu0 %v7956
        %8770 = vmatmul.mubr.bf16.gmra.mrb[0].mxu0 %v7955
        %v8771 = vpop.f32.mrb[0].mxu0
        %v8772 = vadd.f32 %v8231, %v8771
        %v8773 = vpop.f32.mrb[0].mxu0
        %v8774 = vpop.f32.mrb[0].mxu0
        %v8775 = vadd.f32 %v8231, %v8774
        %v8776 = vpop.f32.mrb[0].mxu0
        %8777 = vmatprep.mubr.bf16.mxu0 %v7965
        %8778 = vmatmul.mubr.bf16.gmra.mrb[0].mxu0 %v7964
        %v8779 = vpop.f32.mrb[0].mxu0
        %v8780 = vadd.f32 %v8231, %v8779
        %v8781 = vpop.f32.mrb[0].mxu0
        %v8782 = vpop.f32.mrb[0].mxu0
        %v8783 = vadd.f32 %v8231, %v8782
        %v8784 = vpop.f32.mrb[0].mxu0
        %8785 = vmatprep.mubr.bf16.mxu0 %v7974
        %8786 = vmatmul.mubr.bf16.gmra.mrb[0].mxu0 %v7973
        %v8787 = vpop.f32.mrb[0].mxu0
        %v8788 = vadd.f32 %v8231, %v8787
        %v8789 = vpop.f32.mrb[0].mxu0
        %v8790 = vpop.f32.mrb[0].mxu0
        %v8791 = vadd.f32 %v8231, %v8790
        %v8792 = vpop.f32.mrb[0].mxu0
        %8793 = vmatprep.mubr.bf16.mxu0 %v7983
        %8794 = vmatmul.mubr.bf16.gmra.mrb[0].mxu0 %v7982
        %v8795 = vpop.f32.mrb[0].mxu0
        %v8796 = vadd.f32 %v8231, %v8795
        %v8797 = vpop.f32.mrb[0].mxu0
        %v8798 = vpop.f32.mrb[0].mxu0
        %v8799 = vadd.f32 %v8231, %v8798
        %v8800 = vpop.f32.mrb[0].mxu0
        %8801 = vmatprep.mubr.bf16.mxu0 %v7992
        %8802 = vmatmul.mubr.bf16.gmra.mrb[0].mxu0 %v7991
        %v8803 = vpop.f32.mrb[0].mxu0
        %v8804 = vadd.f32 %v8231, %v8803
        %v8805 = vpop.f32.mrb[0].mxu0
        %v8806 = vpop.f32.mrb[0].mxu0
        %v8807 = vadd.f32 %v8231, %v8806
        %v8808 = vpop.f32.mrb[0].mxu0
        %8809 = vmatprep.mubr.bf16.mxu0 %v8001
        %8810 = vmatmul.mubr.bf16.gmra.mrb[0].mxu0 %v8000
        %v8811 = vpop.f32.mrb[0].mxu0
        %v8812 = vadd.f32 %v8231, %v8811
        %v8813 = vpop.f32.mrb[0].mxu0
        %v8814 = vpop.f32.mrb[0].mxu0
        %v8815 = vadd.f32 %v8231, %v8814
        %v8816 = vpop.f32.mrb[0].mxu0
        %8817 = vmatprep.mubr.bf16.mxu0 %v8010
        %8818 = vmatmul.mubr.bf16.gmra.mrb[0].mxu0 %v8009
        %v8819 = vpop.f32.mrb[0].mxu0
        %v8820 = vadd.f32 %v8231, %v8819
        %v8821 = vpop.f32.mrb[0].mxu0
        %v8822 = vpop.f32.mrb[0].mxu0
        %v8823 = vadd.f32 %v8231, %v8822
        %v8824 = vpop.f32.mrb[0].mxu0
        %8825 = vdwg.mxu0
        %8826 = vmatprep.subr.bf16.mxu0 0
        %8827 = vmatpush1.bf16.msra.mxu0 %v8537
        %8828 = vmatprep.subr.bf16.mxu0 0
        %8829 = vmatpush1.bf16.msra.mxu0 %v8538
        %8830 = vmatprep.subr.bf16.mxu0 0
        %8831 = vmatpush1.bf16.msra.mxu0 %v8539
        %8832 = vmatprep.subr.bf16.mxu0 0
        %8833 = vmatpush1.bf16.msra.mxu0 %v8540
        %8834 = vmatprep.subr.bf16.mxu0 0
        %8835 = vmatpush1.bf16.msra.mxu0 %v8541
        %8836 = vmatprep.subr.bf16.mxu0 0
        %8837 = vmatpush1.bf16.msra.mxu0 %v8542
        %8838 = vmatprep.subr.bf16.mxu0 0
        %8839 = vmatpush1.bf16.msra.mxu0 %v8543
        %8840 = vmatprep.subr.bf16.mxu0 0
        %8841 = vmatpush1.bf16.msra.mxu0 %v8544
        %8842 = vmatprep.subr.bf16.mxu0 0
        %8843 = vmatpush1.bf16.msra.mxu0 %v8545
        %8844 = vmatprep.subr.bf16.mxu0 0
        %8845 = vmatpush1.bf16.msra.mxu0 %v8546
        %8846 = vmatprep.subr.bf16.mxu0 0
        %8847 = vmatpush1.bf16.msra.mxu0 %v8547
        %8848 = vmatprep.subr.bf16.mxu0 0
        %8849 = vmatpush1.bf16.msra.mxu0 %v8548
        %8850 = vmatprep.subr.bf16.mxu0 0
        %8851 = vmatpush1.bf16.msra.mxu0 %v8549
        %8852 = vmatprep.subr.bf16.mxu0 0
        %8853 = vmatpush1.bf16.msra.mxu0 %v8550
        %8854 = vmatprep.subr.bf16.mxu0 0
        %8855 = vmatpush1.bf16.msra.mxu0 %v8551
        %8856 = vmatprep.subr.bf16.mxu0 0
        %8857 = vmatpush1.bf16.msra.mxu0 %v8552
        %8858 = vmatprep.mubr.bf16.mxu0 %v7877
        %8859 = vmatmul.mubr.bf16.gmra.mrb[0].mxu0 %v7876
        %v8860 = vpop.f32.mrb[0].mxu0
        %v8861 = vadd.f32 %v8700, %v8860
        %v8862 = vpop.f32.mrb[0].mxu0
        %v8863 = vpop.f32.mrb[0].mxu0
        %v8864 = vadd.f32 %v8703, %v8863
        %v8865 = vpop.f32.mrb[0].mxu0
        %8866 = vmatprep.mubr.bf16.mxu0 %v7886
        %8867 = vmatmul.mubr.bf16.gmra.mrb[0].mxu0 %v7885
        %v8868 = vpop.f32.mrb[0].mxu0
        %v8869 = vadd.f32 %v8708, %v8868
        %v8870 = vpop.f32.mrb[0].mxu0
        %v8871 = vpop.f32.mrb[0].mxu0
        %v8872 = vadd.f32 %v8711, %v8871
        %v8873 = vpop.f32.mrb[0].mxu0
        %8874 = vmatprep.mubr.bf16.mxu0 %v7895
        %8875 = vmatmul.mubr.bf16.gmra.mrb[0].mxu0 %v7894
        %v8876 = vpop.f32.mrb[0].mxu0
        %v8877 = vadd.f32 %v8716, %v8876
        %v8878 = vpop.f32.mrb[0].mxu0
        %v8879 = vpop.f32.mrb[0].mxu0
        %v8880 = vadd.f32 %v8719, %v8879
        %v8881 = vpop.f32.mrb[0].mxu0
        %8882 = vmatprep.mubr.bf16.mxu0 %v7904
        %8883 = vmatmul.mubr.bf16.gmra.mrb[0].mxu0 %v7903
        %v8884 = vpop.f32.mrb[0].mxu0
        %v8885 = vadd.f32 %v8724, %v8884
        %v8886 = vpop.f32.mrb[0].mxu0
        %v8887 = vpop.f32.mrb[0].mxu0
        %v8888 = vadd.f32 %v8727, %v8887
        %v8889 = vpop.f32.mrb[0].mxu0
        %8890 = vmatprep.mubr.bf16.mxu0 %v7913
        %8891 = vmatmul.mubr.bf16.gmra.mrb[0].mxu0 %v7912
        %v8892 = vpop.f32.mrb[0].mxu0
        %v8893 = vadd.f32 %v8732, %v8892
        %v8894 = vpop.f32.mrb[0].mxu0
        %v8895 = vpop.f32.mrb[0].mxu0
        %v8896 = vadd.f32 %v8735, %v8895
        %v8897 = vpop.f32.mrb[0].mxu0
        %8898 = vmatprep.mubr.bf16.mxu0 %v7922
        %8899 = vmatmul.mubr.bf16.gmra.mrb[0].mxu0 %v7921
        %v8900 = vpop.f32.mrb[0].mxu0
        %v8901 = vadd.f32 %v8740, %v8900
        %v8902 = vpop.f32.mrb[0].mxu0
        %v8903 = vpop.f32.mrb[0].mxu0
        %v8904 = vadd.f32 %v8743, %v8903
        %v8905 = vpop.f32.mrb[0].mxu0
        %8906 = vmatprep.mubr.bf16.mxu0 %v7931
        %8907 = vmatmul.mubr.bf16.gmra.mrb[0].mxu0 %v7930
        %v8908 = vpop.f32.mrb[0].mxu0
        %v8909 = vadd.f32 %v8748, %v8908
        %v8910 = vpop.f32.mrb[0].mxu0
        %v8911 = vpop.f32.mrb[0].mxu0
        %v8912 = vadd.f32 %v8751, %v8911
        %v8913 = vpop.f32.mrb[0].mxu0
        %8914 = vmatprep.mubr.bf16.mxu0 %v7940
        %8915 = vmatmul.mubr.bf16.gmra.mrb[0].mxu0 %v7939
        %v8916 = vpop.f32.mrb[0].mxu0
        %v8917 = vadd.f32 %v8756, %v8916
        %v8918 = vpop.f32.mrb[0].mxu0
        %v8919 = vpop.f32.mrb[0].mxu0
        %v8920 = vadd.f32 %v8759, %v8919
        %v8921 = vpop.f32.mrb[0].mxu0
        %8922 = vmatprep.mubr.bf16.mxu0 %v7949
        %8923 = vmatmul.mubr.bf16.gmra.mrb[0].mxu0 %v7948
        %v8924 = vpop.f32.mrb[0].mxu0
        %v8925 = vadd.f32 %v8764, %v8924
        %v8926 = vpop.f32.mrb[0].mxu0
        %v8927 = vpop.f32.mrb[0].mxu0
        %v8928 = vadd.f32 %v8767, %v8927
        %v8929 = vpop.f32.mrb[0].mxu0
        %8930 = vmatprep.mubr.bf16.mxu0 %v7958
        %8931 = vmatmul.mubr.bf16.gmra.mrb[0].mxu0 %v7957
        %v8932 = vpop.f32.mrb[0].mxu0
        %v8933 = vadd.f32 %v8772, %v8932
        %v8934 = vpop.f32.mrb[0].mxu0
        %v8935 = vpop.f32.mrb[0].mxu0
        %v8936 = vadd.f32 %v8775, %v8935
        %v8937 = vpop.f32.mrb[0].mxu0
        %8938 = vmatprep.mubr.bf16.mxu0 %v7967
        %8939 = vmatmul.mubr.bf16.gmra.mrb[0].mxu0 %v7966
        %v8940 = vpop.f32.mrb[0].mxu0
        %v8941 = vadd.f32 %v8780, %v8940
        %v8942 = vpop.f32.mrb[0].mxu0
        %v8943 = vpop.f32.mrb[0].mxu0
        %v8944 = vadd.f32 %v8783, %v8943
        %v8945 = vpop.f32.mrb[0].mxu0
        %8946 = vmatprep.mubr.bf16.mxu0 %v7976
        %8947 = vmatmul.mubr.bf16.gmra.mrb[0].mxu0 %v7975
        %v8948 = vpop.f32.mrb[0].mxu0
        %v8949 = vadd.f32 %v8788, %v8948
        %v8950 = vpop.f32.mrb[0].mxu0
        %v8951 = vpop.f32.mrb[0].mxu0
        %v8952 = vadd.f32 %v8791, %v8951
        %v8953 = vpop.f32.mrb[0].mxu0
        %8954 = vmatprep.mubr.bf16.mxu0 %v7985
        %8955 = vmatmul.mubr.bf16.gmra.mrb[0].mxu0 %v7984
        %v8956 = vpop.f32.mrb[0].mxu0
        %v8957 = vadd.f32 %v8796, %v8956
        %v8958 = vpop.f32.mrb[0].mxu0
        %v8959 = vpop.f32.mrb[0].mxu0
        %v8960 = vadd.f32 %v8799, %v8959
        %v8961 = vpop.f32.mrb[0].mxu0
        %8962 = vmatprep.mubr.bf16.mxu0 %v7994
        %8963 = vmatmul.mubr.bf16.gmra.mrb[0].mxu0 %v7993
        %v8964 = vpop.f32.mrb[0].mxu0
        %v8965 = vadd.f32 %v8804, %v8964
        %v8966 = vpop.f32.mrb[0].mxu0
        %v8967 = vpop.f32.mrb[0].mxu0
        %v8968 = vadd.f32 %v8807, %v8967
        %v8969 = vpop.f32.mrb[0].mxu0
        %8970 = vmatprep.mubr.bf16.mxu0 %v8003
        %8971 = vmatmul.mubr.bf16.gmra.mrb[0].mxu0 %v8002
        %v8972 = vpop.f32.mrb[0].mxu0
        %v8973 = vadd.f32 %v8812, %v8972
        %v8974 = vpop.f32.mrb[0].mxu0
        %v8975 = vpop.f32.mrb[0].mxu0
        %v8976 = vadd.f32 %v8815, %v8975
        %v8977 = vpop.f32.mrb[0].mxu0
        %8978 = vmatprep.mubr.bf16.mxu0 %v8012
        %8979 = vmatmul.mubr.bf16.gmra.mrb[0].mxu0 %v8011
        %v8980 = vpop.f32.mrb[0].mxu0
        %v8981 = vadd.f32 %v8820, %v8980
        %v8982 = vpop.f32.mrb[0].mxu0
        %v8983 = vpop.f32.mrb[0].mxu0
        %v8984 = vadd.f32 %v8823, %v8983
        %v8985 = vpop.f32.mrb[0].mxu0
        %8986 = vdwg.mxu0
        %8987 = vmatprep.subr.bf16.mxu0 0
        %8988 = vmatpush1.bf16.msra.mxu0 %v8553
        %8989 = vmatprep.subr.bf16.mxu0 0
        %8990 = vmatpush1.bf16.msra.mxu0 %v8554
        %8991 = vmatprep.subr.bf16.mxu0 0
        %8992 = vmatpush1.bf16.msra.mxu0 %v8555
        %8993 = vmatprep.subr.bf16.mxu0 0
        %8994 = vmatpush1.bf16.msra.mxu0 %v8556
        %8995 = vmatprep.subr.bf16.mxu0 0
        %8996 = vmatpush1.bf16.msra.mxu0 %v8557
        %8997 = vmatprep.subr.bf16.mxu0 0
        %8998 = vmatpush1.bf16.msra.mxu0 %v8558
        %8999 = vmatprep.subr.bf16.mxu0 0
        %9000 = vmatpush1.bf16.msra.mxu0 %v8559
        %9001 = vmatprep.subr.bf16.mxu0 0
        %9002 = vmatpush1.bf16.msra.mxu0 %v8560
        %9003 = vmatprep.subr.bf16.mxu0 0
        %9004 = vmatpush1.bf16.msra.mxu0 %v8561
        %9005 = vmatprep.subr.bf16.mxu0 0
        %9006 = vmatpush1.bf16.msra.mxu0 %v8562
        %9007 = vmatprep.subr.bf16.mxu0 0
        %9008 = vmatpush1.bf16.msra.mxu0 %v8563
        %9009 = vmatprep.subr.bf16.mxu0 0
        %9010 = vmatpush1.bf16.msra.mxu0 %v8564
        %9011 = vmatprep.subr.bf16.mxu0 0
        %9012 = vmatpush1.bf16.msra.mxu0 %v8565
        %9013 = vmatprep.subr.bf16.mxu0 0
        %9014 = vmatpush1.bf16.msra.mxu0 %v8566
        %9015 = vmatprep.subr.bf16.mxu0 0
        %9016 = vmatpush1.bf16.msra.mxu0 %v8567
        %9017 = vmatprep.subr.bf16.mxu0 0
        %9018 = vmatpush1.bf16.msra.mxu0 %v8568
        %9019 = vmatprep.mubr.bf16.mxu0 %v7879
        %9020 = vmatmul.mubr.bf16.gmra.mrb[0].mxu0 %v7878
        %v9021 = vpop.f32.mrb[0].mxu0
        %v9022 = vadd.f32 %v8861, %v9021
        %v9023 = vpop.f32.mrb[0].mxu0
        %v9024 = vpop.f32.mrb[0].mxu0
        %v9025 = vadd.f32 %v8864, %v9024
        %v9026 = vpop.f32.mrb[0].mxu0
        %9027 = vmatprep.mubr.bf16.mxu0 %v7888
        %9028 = vmatmul.mubr.bf16.gmra.mrb[0].mxu0 %v7887
        %v9029 = vpop.f32.mrb[0].mxu0
        %v9030 = vadd.f32 %v8869, %v9029
        %v9031 = vpop.f32.mrb[0].mxu0
        %v9032 = vpop.f32.mrb[0].mxu0
        %v9033 = vadd.f32 %v8872, %v9032
        %v9034 = vpop.f32.mrb[0].mxu0
        %9035 = vmatprep.mubr.bf16.mxu0 %v7897
        %9036 = vmatmul.mubr.bf16.gmra.mrb[0].mxu0 %v7896
        %v9037 = vpop.f32.mrb[0].mxu0
        %v9038 = vadd.f32 %v8877, %v9037
        %v9039 = vpop.f32.mrb[0].mxu0
        %v9040 = vpop.f32.mrb[0].mxu0
        %v9041 = vadd.f32 %v8880, %v9040
        %v9042 = vpop.f32.mrb[0].mxu0
        %9043 = vmatprep.mubr.bf16.mxu0 %v7906
        %9044 = vmatmul.mubr.bf16.gmra.mrb[0].mxu0 %v7905
        %v9045 = vpop.f32.mrb[0].mxu0
        %v9046 = vadd.f32 %v8885, %v9045
        %v9047 = vpop.f32.mrb[0].mxu0
        %v9048 = vpop.f32.mrb[0].mxu0
        %v9049 = vadd.f32 %v8888, %v9048
        %v9050 = vpop.f32.mrb[0].mxu0
        %9051 = vmatprep.mubr.bf16.mxu0 %v7915
        %9052 = vmatmul.mubr.bf16.gmra.mrb[0].mxu0 %v7914
        %v9053 = vpop.f32.mrb[0].mxu0
        %v9054 = vadd.f32 %v8893, %v9053
        %v9055 = vpop.f32.mrb[0].mxu0
        %v9056 = vpop.f32.mrb[0].mxu0
        %v9057 = vadd.f32 %v8896, %v9056
        %v9058 = vpop.f32.mrb[0].mxu0
        %9059 = vmatprep.mubr.bf16.mxu0 %v7924
        %9060 = vmatmul.mubr.bf16.gmra.mrb[0].mxu0 %v7923
        %v9061 = vpop.f32.mrb[0].mxu0
        %v9062 = vadd.f32 %v8901, %v9061
        %v9063 = vpop.f32.mrb[0].mxu0
        %v9064 = vpop.f32.mrb[0].mxu0
        %v9065 = vadd.f32 %v8904, %v9064
        %v9066 = vpop.f32.mrb[0].mxu0
        %9067 = vmatprep.mubr.bf16.mxu0 %v7933
        %9068 = vmatmul.mubr.bf16.gmra.mrb[0].mxu0 %v7932
        %v9069 = vpop.f32.mrb[0].mxu0
        %v9070 = vadd.f32 %v8909, %v9069
        %v9071 = vpop.f32.mrb[0].mxu0
        %v9072 = vpop.f32.mrb[0].mxu0
        %v9073 = vadd.f32 %v8912, %v9072
        %v9074 = vpop.f32.mrb[0].mxu0
        %9075 = vmatprep.mubr.bf16.mxu0 %v7942
        %9076 = vmatmul.mubr.bf16.gmra.mrb[0].mxu0 %v7941
        %v9077 = vpop.f32.mrb[0].mxu0
        %v9078 = vadd.f32 %v8917, %v9077
        %v9079 = vpop.f32.mrb[0].mxu0
        %v9080 = vpop.f32.mrb[0].mxu0
        %v9081 = vadd.f32 %v8920, %v9080
        %v9082 = vpop.f32.mrb[0].mxu0
        %9083 = vmatprep.mubr.bf16.mxu0 %v7951
        %9084 = vmatmul.mubr.bf16.gmra.mrb[0].mxu0 %v7950
        %v9085 = vpop.f32.mrb[0].mxu0
        %v9086 = vadd.f32 %v8925, %v9085
        %v9087 = vpop.f32.mrb[0].mxu0
        %v9088 = vpop.f32.mrb[0].mxu0
        %v9089 = vadd.f32 %v8928, %v9088
        %v9090 = vpop.f32.mrb[0].mxu0
        %9091 = vmatprep.mubr.bf16.mxu0 %v7960
        %9092 = vmatmul.mubr.bf16.gmra.mrb[0].mxu0 %v7959
        %v9093 = vpop.f32.mrb[0].mxu0
        %v9094 = vadd.f32 %v8933, %v9093
        %v9095 = vpop.f32.mrb[0].mxu0
        %v9096 = vpop.f32.mrb[0].mxu0
        %v9097 = vadd.f32 %v8936, %v9096
        %v9098 = vpop.f32.mrb[0].mxu0
        %9099 = vmatprep.mubr.bf16.mxu0 %v7969
        %9100 = vmatmul.mubr.bf16.gmra.mrb[0].mxu0 %v7968
        %v9101 = vpop.f32.mrb[0].mxu0
        %v9102 = vadd.f32 %v8941, %v9101
        %v9103 = vpop.f32.mrb[0].mxu0
        %v9104 = vpop.f32.mrb[0].mxu0
        %v9105 = vadd.f32 %v8944, %v9104
        %v9106 = vpop.f32.mrb[0].mxu0
        %9107 = vmatprep.mubr.bf16.mxu0 %v7978
        %9108 = vmatmul.mubr.bf16.gmra.mrb[0].mxu0 %v7977
        %v9109 = vpop.f32.mrb[0].mxu0
        %v9110 = vadd.f32 %v8949, %v9109
        %v9111 = vpop.f32.mrb[0].mxu0
        %v9112 = vpop.f32.mrb[0].mxu0
        %v9113 = vadd.f32 %v8952, %v9112
        %v9114 = vpop.f32.mrb[0].mxu0
        %9115 = vmatprep.mubr.bf16.mxu0 %v7987
        %9116 = vmatmul.mubr.bf16.gmra.mrb[0].mxu0 %v7986
        %v9117 = vpop.f32.mrb[0].mxu0
        %v9118 = vadd.f32 %v8957, %v9117
        %v9119 = vpop.f32.mrb[0].mxu0
        %v9120 = vpop.f32.mrb[0].mxu0
        %v9121 = vadd.f32 %v8960, %v9120
        %v9122 = vpop.f32.mrb[0].mxu0
        %9123 = vmatprep.mubr.bf16.mxu0 %v7996
        %9124 = vmatmul.mubr.bf16.gmra.mrb[0].mxu0 %v7995
        %v9125 = vpop.f32.mrb[0].mxu0
        %v9126 = vadd.f32 %v8965, %v9125
        %v9127 = vpop.f32.mrb[0].mxu0
        %v9128 = vpop.f32.mrb[0].mxu0
        %v9129 = vadd.f32 %v8968, %v9128
        %v9130 = vpop.f32.mrb[0].mxu0
        %9131 = vmatprep.mubr.bf16.mxu0 %v8005
        %9132 = vmatmul.mubr.bf16.gmra.mrb[0].mxu0 %v8004
        %v9133 = vpop.f32.mrb[0].mxu0
        %v9134 = vadd.f32 %v8973, %v9133
        %v9135 = vpop.f32.mrb[0].mxu0
        %v9136 = vpop.f32.mrb[0].mxu0
        %v9137 = vadd.f32 %v8976, %v9136
        %v9138 = vpop.f32.mrb[0].mxu0
        %9139 = vmatprep.mubr.bf16.mxu0 %v8014
        %9140 = vmatmul.mubr.bf16.gmra.mrb[0].mxu0 %v8013
        %v9141 = vpop.f32.mrb[0].mxu0
        %v9142 = vadd.f32 %v8981, %v9141
        %v9143 = vpop.f32.mrb[0].mxu0
        %v9144 = vpop.f32.mrb[0].mxu0
        %v9145 = vadd.f32 %v8984, %v9144
        %v9146 = vpop.f32.mrb[0].mxu0
        %9147 = vdwg.mxu0
        %9148 = vmatprep.subr.bf16.mxu0 0
        %9149 = vmatpush1.bf16.msra.mxu0 %v8569
        %9150 = vmatprep.subr.bf16.mxu0 0
        %9151 = vmatpush1.bf16.msra.mxu0 %v8570
        %9152 = vmatprep.subr.bf16.mxu0 0
        %9153 = vmatpush1.bf16.msra.mxu0 %v8571
        %9154 = vmatprep.subr.bf16.mxu0 0
        %9155 = vmatpush1.bf16.msra.mxu0 %v8572
        %9156 = vmatprep.subr.bf16.mxu0 0
        %9157 = vmatpush1.bf16.msra.mxu0 %v8573
        %9158 = vmatprep.subr.bf16.mxu0 0
        %9159 = vmatpush1.bf16.msra.mxu0 %v8574
        %9160 = vmatprep.subr.bf16.mxu0 0
        %9161 = vmatpush1.bf16.msra.mxu0 %v8575
        %9162 = vmatprep.subr.bf16.mxu0 0
        %9163 = vmatpush1.bf16.msra.mxu0 %v8576
        %9164 = vmatprep.subr.bf16.mxu0 0
        %9165 = vmatpush1.bf16.msra.mxu0 %v8577
        %9166 = vmatprep.subr.bf16.mxu0 0
        %9167 = vmatpush1.bf16.msra.mxu0 %v8578
        %9168 = vmatprep.subr.bf16.mxu0 0
        %9169 = vmatpush1.bf16.msra.mxu0 %v8579
        %9170 = vmatprep.subr.bf16.mxu0 0
        %9171 = vmatpush1.bf16.msra.mxu0 %v8580
        %9172 = vmatprep.subr.bf16.mxu0 0
        %9173 = vmatpush1.bf16.msra.mxu0 %v8581
        %9174 = vmatprep.subr.bf16.mxu0 0
        %9175 = vmatpush1.bf16.msra.mxu0 %v8582
        %9176 = vmatprep.subr.bf16.mxu0 0
        %9177 = vmatpush1.bf16.msra.mxu0 %v8583
        %9178 = vmatprep.subr.bf16.mxu0 0
        %9179 = vmatpush1.bf16.msra.mxu0 %v8584
        %9180 = vmatprep.mubr.bf16.mxu0 %v7881
        %9181 = vmatmul.mubr.bf16.gmra.mrb[0].mxu0 %v7880
        %v9182 = vpop.f32.mrb[0].mxu0
        %v9183 = vadd.f32 %v9022, %v9182
        %v9184 = vpop.f32.mrb[0].mxu0
        %v9185 = vpop.f32.mrb[0].mxu0
        %v9186 = vadd.f32 %v9025, %v9185
        %v9187 = vpop.f32.mrb[0].mxu0
        %9188 = vmatprep.mubr.bf16.mxu0 %v7890
        %9189 = vmatmul.mubr.bf16.gmra.mrb[0].mxu0 %v7889
        %v9190 = vpop.f32.mrb[0].mxu0
        %v9191 = vadd.f32 %v9030, %v9190
        %v9192 = vpop.f32.mrb[0].mxu0
        %v9193 = vpop.f32.mrb[0].mxu0
        %v9194 = vadd.f32 %v9033, %v9193
        %v9195 = vpop.f32.mrb[0].mxu0
        %9196 = vmatprep.mubr.bf16.mxu0 %v7899
        %9197 = vmatmul.mubr.bf16.gmra.mrb[0].mxu0 %v7898
        %v9198 = vpop.f32.mrb[0].mxu0
        %v9199 = vadd.f32 %v9038, %v9198
        %v9200 = vpop.f32.mrb[0].mxu0
        %v9201 = vpop.f32.mrb[0].mxu0
        %v9202 = vadd.f32 %v9041, %v9201
        %v9203 = vpop.f32.mrb[0].mxu0
        %9204 = vmatprep.mubr.bf16.mxu0 %v7908
        %9205 = vmatmul.mubr.bf16.gmra.mrb[0].mxu0 %v7907
        %v9206 = vpop.f32.mrb[0].mxu0
        %v9207 = vadd.f32 %v9046, %v9206
        %v9208 = vpop.f32.mrb[0].mxu0
        %v9209 = vpop.f32.mrb[0].mxu0
        %v9210 = vadd.f32 %v9049, %v9209
        %v9211 = vpop.f32.mrb[0].mxu0
        %9212 = vmatprep.mubr.bf16.mxu0 %v7917
        %9213 = vmatmul.mubr.bf16.gmra.mrb[0].mxu0 %v7916
        %v9214 = vpop.f32.mrb[0].mxu0
        %v9215 = vadd.f32 %v9054, %v9214
        %v9216 = vpop.f32.mrb[0].mxu0
        %v9217 = vpop.f32.mrb[0].mxu0
        %v9218 = vadd.f32 %v9057, %v9217
        %v9219 = vpop.f32.mrb[0].mxu0
        %9220 = vmatprep.mubr.bf16.mxu0 %v7926
        %9221 = vmatmul.mubr.bf16.gmra.mrb[0].mxu0 %v7925
        %v9222 = vpop.f32.mrb[0].mxu0
        %v9223 = vadd.f32 %v9062, %v9222
        %v9224 = vpop.f32.mrb[0].mxu0
        %v9225 = vpop.f32.mrb[0].mxu0
        %v9226 = vadd.f32 %v9065, %v9225
        %v9227 = vpop.f32.mrb[0].mxu0
        %9228 = vmatprep.mubr.bf16.mxu0 %v7935
        %9229 = vmatmul.mubr.bf16.gmra.mrb[0].mxu0 %v7934
        %v9230 = vpop.f32.mrb[0].mxu0
        %v9231 = vadd.f32 %v9070, %v9230
        %v9232 = vpop.f32.mrb[0].mxu0
        %v9233 = vpop.f32.mrb[0].mxu0
        %v9234 = vadd.f32 %v9073, %v9233
        %v9235 = vpop.f32.mrb[0].mxu0
        %9236 = vmatprep.mubr.bf16.mxu0 %v7944
        %9237 = vmatmul.mubr.bf16.gmra.mrb[0].mxu0 %v7943
        %v9238 = vpop.f32.mrb[0].mxu0
        %v9239 = vadd.f32 %v9078, %v9238
        %v9240 = vpop.f32.mrb[0].mxu0
        %v9241 = vpop.f32.mrb[0].mxu0
        %v9242 = vadd.f32 %v9081, %v9241
        %v9243 = vpop.f32.mrb[0].mxu0
        %9244 = vmatprep.mubr.bf16.mxu0 %v7953
        %9245 = vmatmul.mubr.bf16.gmra.mrb[0].mxu0 %v7952
        %v9246 = vpop.f32.mrb[0].mxu0
        %v9247 = vadd.f32 %v9086, %v9246
        %v9248 = vpop.f32.mrb[0].mxu0
        %v9249 = vpop.f32.mrb[0].mxu0
        %v9250 = vadd.f32 %v9089, %v9249
        %v9251 = vpop.f32.mrb[0].mxu0
        %9252 = vmatprep.mubr.bf16.mxu0 %v7962
        %9253 = vmatmul.mubr.bf16.gmra.mrb[0].mxu0 %v7961
        %v9254 = vpop.f32.mrb[0].mxu0
        %v9255 = vadd.f32 %v9094, %v9254
        %v9256 = vpop.f32.mrb[0].mxu0
        %v9257 = vpop.f32.mrb[0].mxu0
        %v9258 = vadd.f32 %v9097, %v9257
        %v9259 = vpop.f32.mrb[0].mxu0
        %9260 = vmatprep.mubr.bf16.mxu0 %v7971
        %9261 = vmatmul.mubr.bf16.gmra.mrb[0].mxu0 %v7970
        %v9262 = vpop.f32.mrb[0].mxu0
        %v9263 = vadd.f32 %v9102, %v9262
        %v9264 = vpop.f32.mrb[0].mxu0
        %v9265 = vpop.f32.mrb[0].mxu0
        %v9266 = vadd.f32 %v9105, %v9265
        %v9267 = vpop.f32.mrb[0].mxu0
        %9268 = vmatprep.mubr.bf16.mxu0 %v7980
        %9269 = vmatmul.mubr.bf16.gmra.mrb[0].mxu0 %v7979
        %v9270 = vpop.f32.mrb[0].mxu0
        %v9271 = vadd.f32 %v9110, %v9270
        %v9272 = vpop.f32.mrb[0].mxu0
        %v9273 = vpop.f32.mrb[0].mxu0
        %v9274 = vadd.f32 %v9113, %v9273
        %v9275 = vpop.f32.mrb[0].mxu0
        %9276 = vmatprep.mubr.bf16.mxu0 %v7989
        %9277 = vmatmul.mubr.bf16.gmra.mrb[0].mxu0 %v7988
        %v9278 = vpop.f32.mrb[0].mxu0
        %v9279 = vadd.f32 %v9118, %v9278
        %v9280 = vpop.f32.mrb[0].mxu0
        %v9281 = vpop.f32.mrb[0].mxu0
        %v9282 = vadd.f32 %v9121, %v9281
        %v9283 = vpop.f32.mrb[0].mxu0
        %9284 = vmatprep.mubr.bf16.mxu0 %v7998
        %9285 = vmatmul.mubr.bf16.gmra.mrb[0].mxu0 %v7997
        %v9286 = vpop.f32.mrb[0].mxu0
        %v9287 = vadd.f32 %v9126, %v9286
        %v9288 = vpop.f32.mrb[0].mxu0
        %v9289 = vpop.f32.mrb[0].mxu0
        %v9290 = vadd.f32 %v9129, %v9289
        %v9291 = vpop.f32.mrb[0].mxu0
        %9292 = vmatprep.mubr.bf16.mxu0 %v8007
        %9293 = vmatmul.mubr.bf16.gmra.mrb[0].mxu0 %v8006
        %v9294 = vpop.f32.mrb[0].mxu0
        %v9295 = vadd.f32 %v9134, %v9294
        %v9296 = vpop.f32.mrb[0].mxu0
        %v9297 = vpop.f32.mrb[0].mxu0
        %v9298 = vadd.f32 %v9137, %v9297
        %v9299 = vpop.f32.mrb[0].mxu0
        %9300 = vmatprep.mubr.bf16.mxu0 %v8016
        %9301 = vmatmul.mubr.bf16.gmra.mrb[0].mxu0 %v8015
        %v9302 = vpop.f32.mrb[0].mxu0
        %v9303 = vadd.f32 %v9142, %v9302
        %v9304 = vpop.f32.mrb[0].mxu0
        %v9305 = vpop.f32.mrb[0].mxu0
        %v9306 = vadd.f32 %v9145, %v9305
        %v9307 = vpop.f32.mrb[0].mxu0
        %9308 = vdwg.mxu0
        %9309 = vmatprep.subr.bf16.mxu0 0
        %9310 = vmatpush1.bf16.msra.mxu0 %v8585
        %9311 = vmatprep.subr.bf16.mxu0 0
        %9312 = vmatpush1.bf16.msra.mxu0 %v8586
        %9313 = vmatprep.subr.bf16.mxu0 0
        %9314 = vmatpush1.bf16.msra.mxu0 %v8587
        %9315 = vmatprep.subr.bf16.mxu0 0
        %9316 = vmatpush1.bf16.msra.mxu0 %v8588
        %9317 = vmatprep.subr.bf16.mxu0 0
        %9318 = vmatpush1.bf16.msra.mxu0 %v8589
        %9319 = vmatprep.subr.bf16.mxu0 0
        %9320 = vmatpush1.bf16.msra.mxu0 %v8590
        %9321 = vmatprep.subr.bf16.mxu0 0
        %9322 = vmatpush1.bf16.msra.mxu0 %v8591
        %9323 = vmatprep.subr.bf16.mxu0 0
        %9324 = vmatpush1.bf16.msra.mxu0 %v8592
        %9325 = vmatprep.subr.bf16.mxu0 0
        %9326 = vmatpush1.bf16.msra.mxu0 0
        %9327 = vmatprep.subr.bf16.mxu0 0
        %9328 = vmatpush1.bf16.msra.mxu0 0
        %9329 = vmatprep.subr.bf16.mxu0 0
        %9330 = vmatpush1.bf16.msra.mxu0 0
        %9331 = vmatprep.subr.bf16.mxu0 0
        %9332 = vmatpush1.bf16.msra.mxu0 0
        %9333 = vmatprep.subr.bf16.mxu0 0
        %9334 = vmatpush1.bf16.msra.mxu0 0
        %9335 = vmatprep.subr.bf16.mxu0 0
        %9336 = vmatpush1.bf16.msra.mxu0 0
        %9337 = vmatprep.subr.bf16.mxu0 0
        %9338 = vmatpush1.bf16.msra.mxu0 0
        %9339 = vmatprep.subr.bf16.mxu0 0
        %9340 = vmatpush1.bf16.msra.mxu0 0
        %9341 = vmatprep.mubr.bf16.mxu0 0
        %9342 = vmatmul.mubr.bf16.gmra.mrb[0].mxu0 %v7882
        %v9343 = vpop.f32.mrb[0].mxu0
        %v9344 = vadd.f32 %v9183, %v9343
        %v9345 = vpop.f32.mrb[0].mxu0
        %v9346 = vpop.f32.mrb[0].mxu0
        %v9347 = vadd.f32 %v9186, %v9346
        %v9348 = vpop.f32.mrb[0].mxu0
        %9349 = vmatprep.mubr.bf16.mxu0 0
        %9350 = vmatmul.mubr.bf16.gmra.mrb[0].mxu0 %v7891
        %v9351 = vpop.f32.mrb[0].mxu0
        %v9352 = vadd.f32 %v9191, %v9351
        %v9353 = vpop.f32.mrb[0].mxu0
        %v9354 = vpop.f32.mrb[0].mxu0
        %v9355 = vadd.f32 %v9194, %v9354
        %v9356 = vpop.f32.mrb[0].mxu0
        %9357 = vmatprep.mubr.bf16.mxu0 0
        %9358 = vmatmul.mubr.bf16.gmra.mrb[0].mxu0 %v7900
        %v9359 = vpop.f32.mrb[0].mxu0
        %v9360 = vadd.f32 %v9199, %v9359
        %v9361 = vpop.f32.mrb[0].mxu0
        %v9362 = vpop.f32.mrb[0].mxu0
        %v9363 = vadd.f32 %v9202, %v9362
        %v9364 = vpop.f32.mrb[0].mxu0
        %9365 = vmatprep.mubr.bf16.mxu0 0
        %9366 = vmatmul.mubr.bf16.gmra.mrb[0].mxu0 %v7909
        %v9367 = vpop.f32.mrb[0].mxu0
        %v9368 = vadd.f32 %v9207, %v9367
        %v9369 = vpop.f32.mrb[0].mxu0
        %v9370 = vpop.f32.mrb[0].mxu0
        %v9371 = vadd.f32 %v9210, %v9370
        %v9372 = vpop.f32.mrb[0].mxu0
        %9373 = vmatprep.mubr.bf16.mxu0 0
        %9374 = vmatmul.mubr.bf16.gmra.mrb[0].mxu0 %v7918
        %v9375 = vpop.f32.mrb[0].mxu0
        %v9376 = vadd.f32 %v9215, %v9375
        %v9377 = vpop.f32.mrb[0].mxu0
        %v9378 = vpop.f32.mrb[0].mxu0
        %v9379 = vadd.f32 %v9218, %v9378
        %v9380 = vpop.f32.mrb[0].mxu0
        %9381 = vmatprep.mubr.bf16.mxu0 0
        %9382 = vmatmul.mubr.bf16.gmra.mrb[0].mxu0 %v7927
        %v9383 = vpop.f32.mrb[0].mxu0
        %v9384 = vadd.f32 %v9223, %v9383
        %v9385 = vpop.f32.mrb[0].mxu0
        %v9386 = vpop.f32.mrb[0].mxu0
        %v9387 = vadd.f32 %v9226, %v9386
        %v9388 = vpop.f32.mrb[0].mxu0
        %9389 = vmatprep.mubr.bf16.mxu0 0
        %9390 = vmatmul.mubr.bf16.gmra.mrb[0].mxu0 %v7936
        %v9391 = vpop.f32.mrb[0].mxu0
        %v9392 = vadd.f32 %v9231, %v9391
        %v9393 = vpop.f32.mrb[0].mxu0
        %v9394 = vpop.f32.mrb[0].mxu0
        %v9395 = vadd.f32 %v9234, %v9394
        %v9396 = vpop.f32.mrb[0].mxu0
        %9397 = vmatprep.mubr.bf16.mxu0 0
        %9398 = vmatmul.mubr.bf16.gmra.mrb[0].mxu0 %v7945
        %v9399 = vpop.f32.mrb[0].mxu0
        %v9400 = vadd.f32 %v9239, %v9399
        %v9401 = vpop.f32.mrb[0].mxu0
        %v9402 = vpop.f32.mrb[0].mxu0
        %v9403 = vadd.f32 %v9242, %v9402
        %v9404 = vpop.f32.mrb[0].mxu0
        %9405 = vmatprep.mubr.bf16.mxu0 0
        %9406 = vmatmul.mubr.bf16.gmra.mrb[0].mxu0 %v7954
        %v9407 = vpop.f32.mrb[0].mxu0
        %v9408 = vadd.f32 %v9247, %v9407
        %v9409 = vpop.f32.mrb[0].mxu0
        %v9410 = vpop.f32.mrb[0].mxu0
        %v9411 = vadd.f32 %v9250, %v9410
        %v9412 = vpop.f32.mrb[0].mxu0
        %9413 = vmatprep.mubr.bf16.mxu0 0
        %9414 = vmatmul.mubr.bf16.gmra.mrb[0].mxu0 %v7963
        %v9415 = vpop.f32.mrb[0].mxu0
        %v9416 = vadd.f32 %v9255, %v9415
        %v9417 = vpop.f32.mrb[0].mxu0
        %v9418 = vpop.f32.mrb[0].mxu0
        %v9419 = vadd.f32 %v9258, %v9418
        %v9420 = vpop.f32.mrb[0].mxu0
        %9421 = vmatprep.mubr.bf16.mxu0 0
        %9422 = vmatmul.mubr.bf16.gmra.mrb[0].mxu0 %v7972
        %v9423 = vpop.f32.mrb[0].mxu0
        %v9424 = vadd.f32 %v9263, %v9423
        %v9425 = vpop.f32.mrb[0].mxu0
        %v9426 = vpop.f32.mrb[0].mxu0
        %v9427 = vadd.f32 %v9266, %v9426
        %v9428 = vpop.f32.mrb[0].mxu0
        %9429 = vmatprep.mubr.bf16.mxu0 0
        %9430 = vmatmul.mubr.bf16.gmra.mrb[0].mxu0 %v7981
        %v9431 = vpop.f32.mrb[0].mxu0
        %v9432 = vadd.f32 %v9271, %v9431
        %v9433 = vpop.f32.mrb[0].mxu0
        %v9434 = vpop.f32.mrb[0].mxu0
        %v9435 = vadd.f32 %v9274, %v9434
        %v9436 = vpop.f32.mrb[0].mxu0
        %9437 = vmatprep.mubr.bf16.mxu0 0
        %9438 = vmatmul.mubr.bf16.gmra.mrb[0].mxu0 %v7990
        %v9439 = vpop.f32.mrb[0].mxu0
        %v9440 = vadd.f32 %v9279, %v9439
        %v9441 = vpop.f32.mrb[0].mxu0
        %v9442 = vpop.f32.mrb[0].mxu0
        %v9443 = vadd.f32 %v9282, %v9442
        %v9444 = vpop.f32.mrb[0].mxu0
        %9445 = vmatprep.mubr.bf16.mxu0 0
        %9446 = vmatmul.mubr.bf16.gmra.mrb[0].mxu0 %v7999
        %v9447 = vpop.f32.mrb[0].mxu0
        %v9448 = vadd.f32 %v9287, %v9447
        %v9449 = vpop.f32.mrb[0].mxu0
        %v9450 = vpop.f32.mrb[0].mxu0
        %v9451 = vadd.f32 %v9290, %v9450
        %v9452 = vpop.f32.mrb[0].mxu0
        %9453 = vmatprep.mubr.bf16.mxu0 0
        %9454 = vmatmul.mubr.bf16.gmra.mrb[0].mxu0 %v8008
        %v9455 = vpop.f32.mrb[0].mxu0
        %v9456 = vadd.f32 %v9295, %v9455
        %v9457 = vpop.f32.mrb[0].mxu0
        %v9458 = vpop.f32.mrb[0].mxu0
        %v9459 = vadd.f32 %v9298, %v9458
        %v9460 = vpop.f32.mrb[0].mxu0
        %9461 = vmatprep.mubr.bf16.mxu0 0
        %9462 = vmatmul.mubr.bf16.gmra.mrb[0].mxu0 %v8017
        %v9463 = vpop.f32.mrb[0].mxu0
        %v9464 = vadd.f32 %v9303, %v9463
        %v9465 = vpop.f32.mrb[0].mxu0
        %v9466 = vpop.f32.mrb[0].mxu0
        %v9467 = vadd.f32 %v9306, %v9466
        %v9468 = vpop.f32.mrb[0].mxu0
        %9469 = vdwg.mxu0
        %v9470 = vadd.f32 %v9344, %v8194
        %v9471 = vadd.f32 %v9347, %v8195
        %v9472 = vadd.f32 %v9352, %v8196
        %v9473 = vadd.f32 %v9355, %v8197
        %v9474 = vadd.f32 %v9360, %v8198
        %v9475 = vadd.f32 %v9363, %v8199
        %v9476 = vadd.f32 %v9368, %v8200
        %v9477 = vadd.f32 %v9371, %v8201
        %v9478 = vadd.f32 %v9376, %v8202
        %v9479 = vadd.f32 %v9379, %v8203
        %v9480 = vadd.f32 %v9384, %v8204
        %v9481 = vadd.f32 %v9387, %v8205
        %v9482 = vadd.f32 %v9392, %v8206
        %v9483 = vadd.f32 %v9395, %v8207
        %v9484 = vadd.f32 %v9400, %v8208
        %v9485 = vadd.f32 %v9403, %v8209
        %v9486 = vadd.f32 %v9408, %v8210
        %v9487 = vadd.f32 %v9411, %v8211
        %v9488 = vadd.f32 %v9416, %v8212
        %v9489 = vadd.f32 %v9419, %v8213
        %v9490 = vadd.f32 %v9424, %v8214
        %v9491 = vadd.f32 %v9427, %v8215
        %v9492 = vadd.f32 %v9432, %v8216
        %v9493 = vadd.f32 %v9435, %v8217
        %v9494 = vadd.f32 %v9440, %v8218
        %v9495 = vadd.f32 %v9443, %v8219
        %v9496 = vadd.f32 %v9448, %v8220
        %v9497 = vadd.f32 %v9451, %v8221
        %v9498 = vadd.f32 %v9456, %v8222
        %v9499 = vadd.f32 %v9459, %v8223
        %v9500 = vadd.f32 %v9464, %v8224
        %v9501 = vadd.f32 %v9467, %v8225
        %v9502 = vmax.f32 %v9470, 0.0
        %v9503 = vmax.f32 %v9471, 0.0
        %v9504 = vmax.f32 %v9472, 0.0
        %v9505 = vmax.f32 %v9473, 0.0
        %v9506 = vmax.f32 %v9474, 0.0
        %v9507 = vmax.f32 %v9475, 0.0
        %v9508 = vmax.f32 %v9476, 0.0
        %v9509 = vmax.f32 %v9477, 0.0
        %v9510 = vmax.f32 %v9478, 0.0
        %v9511 = vmax.f32 %v9479, 0.0
        %v9512 = vmax.f32 %v9480, 0.0
        %v9513 = vmax.f32 %v9481, 0.0
        %v9514 = vmax.f32 %v9482, 0.0
        %v9515 = vmax.f32 %v9483, 0.0
        %v9516 = vmax.f32 %v9484, 0.0
        %v9517 = vmax.f32 %v9485, 0.0
        %v9518 = vmax.f32 %v9486, 0.0
        %v9519 = vmax.f32 %v9487, 0.0
        %v9520 = vmax.f32 %v9488, 0.0
        %v9521 = vmax.f32 %v9489, 0.0
        %v9522 = vmax.f32 %v9490, 0.0
        %v9523 = vmax.f32 %v9491, 0.0
        %v9524 = vmax.f32 %v9492, 0.0
        %v9525 = vmax.f32 %v9493, 0.0
        %v9526 = vmax.f32 %v9494, 0.0
        %v9527 = vmax.f32 %v9495, 0.0
        %v9528 = vmax.f32 %v9496, 0.0
        %v9529 = vmax.f32 %v9497, 0.0
        %v9530 = vmax.f32 %v9498, 0.0
        %v9531 = vmax.f32 %v9499, 0.0
        %v9532 = vmax.f32 %v9500, 0.0
        %v9533 = vmax.f32 %v9501, 0.0
        %v9534 = vpack.c.bf16 %v9503, %v9502
        %v9535 = vpack.c.bf16 %v9505, %v9504
        %v9536 = vpack.c.bf16 %v9507, %v9506
        %v9537 = vpack.c.bf16 %v9509, %v9508
        %v9538 = vpack.c.bf16 %v9511, %v9510
        %v9539 = vpack.c.bf16 %v9513, %v9512
        %v9540 = vpack.c.bf16 %v9515, %v9514
        %v9541 = vpack.c.bf16 %v9517, %v9516
        %v9542 = vpack.c.bf16 %v9519, %v9518
        %v9543 = vpack.c.bf16 %v9521, %v9520
        %v9544 = vpack.c.bf16 %v9523, %v9522
        %v9545 = vpack.c.bf16 %v9525, %v9524
        %v9546 = vpack.c.bf16 %v9527, %v9526
        %v9547 = vpack.c.bf16 %v9529, %v9528
        %v9548 = vpack.c.bf16 %v9531, %v9530
        %v9549 = vpack.c.bf16 %v9533, %v9532
        %v9566 = vunpack.c.l.b16 %v9534
        %v9567 = vunpack.c.h.b16 %v9534
        %v9568 = vunpack.c.l.b16 %v9535
        %v9569 = vunpack.c.h.b16 %v9535
        %v9570 = vunpack.c.l.b16 %v9536
        %v9571 = vunpack.c.h.b16 %v9536
        %v9572 = vunpack.c.l.b16 %v9537
        %v9573 = vunpack.c.h.b16 %v9537
        %v9574 = vunpack.c.l.b16 %v9538
        %v9575 = vunpack.c.h.b16 %v9538
        %v9576 = vunpack.c.l.b16 %v9539
        %v9577 = vunpack.c.h.b16 %v9539
        %v9578 = vunpack.c.l.b16 %v9540
        %v9579 = vunpack.c.h.b16 %v9540
        %v9580 = vunpack.c.l.b16 %v9541
        %v9581 = vunpack.c.h.b16 %v9541
        %v9582 = vunpack.c.l.b16 %v9542
        %v9583 = vunpack.c.h.b16 %v9542
        %v9584 = vunpack.c.l.b16 %v9543
        %v9585 = vunpack.c.h.b16 %v9543
        %v9586 = vunpack.c.l.b16 %v9544
        %v9587 = vunpack.c.h.b16 %v9544
        %v9588 = vunpack.c.l.b16 %v9545
        %v9589 = vunpack.c.h.b16 %v9545
        %v9590 = vunpack.c.l.b16 %v9546
        %v9591 = vunpack.c.h.b16 %v9546
        %v9592 = vunpack.c.l.b16 %v9547
        %v9593 = vunpack.c.h.b16 %v9547
        %v9594 = vunpack.c.l.b16 %v9548
        %v9595 = vunpack.c.h.b16 %v9548
        %v9596 = vunpack.c.l.b16 %v9549
        %v9597 = vunpack.c.h.b16 %v9549
        %v9598 = vpack.c.b16 %v9566, %v9566
        %v9599 = vpack.c.b16 %v9567, %v9567
        %v9600 = vpack.c.b16 %v9568, %v9568
        %v9601 = vpack.c.b16 %v9569, %v9569
        %v9602 = vpack.c.b16 %v9570, %v9570
        %v9603 = vpack.c.b16 %v9571, %v9571
        %v9604 = vpack.c.b16 %v9572, %v9572
        %v9605 = vpack.c.b16 %v9573, %v9573
        %v9606 = vpack.c.b16 %v9574, %v9574
        %v9607 = vpack.c.b16 %v9575, %v9575
        %v9608 = vpack.c.b16 %v9576, %v9576
        %v9609 = vpack.c.b16 %v9577, %v9577
        %v9610 = vpack.c.b16 %v9578, %v9578
        %v9611 = vpack.c.b16 %v9579, %v9579
        %v9612 = vpack.c.b16 %v9580, %v9580
        %v9613 = vpack.c.b16 %v9581, %v9581
        %v9614 = vpack.c.b16 %v9582, %v9582
        %v9615 = vpack.c.b16 %v9583, %v9583
        %v9616 = vpack.c.b16 %v9584, %v9584
        %v9617 = vpack.c.b16 %v9585, %v9585
        %v9618 = vpack.c.b16 %v9586, %v9586
        %v9619 = vpack.c.b16 %v9587, %v9587
        %v9620 = vpack.c.b16 %v9588, %v9588
        %v9621 = vpack.c.b16 %v9589, %v9589
        %v9622 = vpack.c.b16 %v9590, %v9590
        %v9623 = vpack.c.b16 %v9591, %v9591
        %v9624 = vpack.c.b16 %v9592, %v9592
        %v9625 = vpack.c.b16 %v9593, %v9593
        %v9626 = vpack.c.b16 %v9594, %v9594
        %v9627 = vpack.c.b16 %v9595, %v9595
        %v9628 = vpack.c.b16 %v9596, %v9596
        %v9629 = vpack.c.b16 %v9597, %v9597
        %9662 = vst [vmem:[%s271] sm:$0xf] %v9598
        %9663 = vst [vmem:[%s271 + $0x4] sm:$0xf] %v9599
        %9664 = vst [vmem:[%s271 + $0x8] sm:$0xf] %v9600
        %9665 = vst [vmem:[%s271 + $0xc] sm:$0xf] %v9601
        %9666 = vst [vmem:[%s271 + $0x10] sm:$0xf] %v9602
        %9667 = vst [vmem:[%s271 + $0x14] sm:$0xf] %v9603
        %9668 = vst [vmem:[%s271 + $0x18] sm:$0xf] %v9604
        %9669 = vst [vmem:[%s271 + $0x1c] sm:$0xf] %v9605
        %9670 = vst [vmem:[%s271 + $0x20] sm:$0xf] %v9606
        %9671 = vst [vmem:[%s271 + $0x24] sm:$0xf] %v9607
        %9672 = vst [vmem:[%s271 + $0x28] sm:$0xf] %v9608
        %9673 = vst [vmem:[%s271 + $0x2c] sm:$0xf] %v9609
        %9674 = vst [vmem:[%s271 + $0x30] sm:$0xf] %v9610
        %9675 = vst [vmem:[%s271 + $0x34] sm:$0xf] %v9611
        %9676 = vst [vmem:[%s271 + $0x38] sm:$0xf] %v9612
        %9677 = vst [vmem:[%s271 + $0x3c] sm:$0xf] %v9613
        %9678 = vst [vmem:[%s271 + $0x40] sm:$0xf] %v9614
        %9679 = vst [vmem:[%s271 + $0x44] sm:$0xf] %v9615
        %9680 = vst [vmem:[%s271 + $0x48] sm:$0xf] %v9616
        %9681 = vst [vmem:[%s271 + $0x4c] sm:$0xf] %v9617
        %9682 = vst [vmem:[%s271 + $0x50] sm:$0xf] %v9618
        %9683 = vst [vmem:[%s271 + $0x54] sm:$0xf] %v9619
        %9684 = vst [vmem:[%s271 + $0x58] sm:$0xf] %v9620
        %9685 = vst [vmem:[%s271 + $0x5c] sm:$0xf] %v9621
        %9686 = vst [vmem:[%s271 + $0x60] sm:$0xf] %v9622
        %9687 = vst [vmem:[%s271 + $0x64] sm:$0xf] %v9623
        %9688 = vst [vmem:[%s271 + $0x68] sm:$0xf] %v9624
        %9689 = vst [vmem:[%s271 + $0x6c] sm:$0xf] %v9625
        %9690 = vst [vmem:[%s271 + $0x70] sm:$0xf] %v9626
        %9691 = vst [vmem:[%s271 + $0x74] sm:$0xf] %v9627
        %9692 = vst [vmem:[%s271 + $0x78] sm:$0xf] %v9628
        %9693 = vst [vmem:[%s271 + $0x7c] sm:$0xf] %v9629
        %s9694 = sand.u32 %s141, 1
        %s9695 = scalar_lea.sflag [#allocation7], %s9694
        %s9696 = sand.u32 %s141, 1
        %s9697 = smul.addr %s9696, 128
        %s9698 = scalar_lea.vmem [#allocation11], %s9697
        // Predicated region
        $region53: #{tpu_custom_call.1} parent=39 // pred_check
          %p9699 = pneg %p151
        $region54: #{tpu_custom_call.1} parent=39 // pred_check_branch
          %9701 = sbr.rel (%p9699) target = $region56
        $region55: #{tpu_custom_call.1} parent=39 // pred_region
          %s9703 = ssub.s32 2048, 2048
          %9704 = vsyncadd %s9695, %s9703
          %s9705 = smul.addr %s23, 32
          %s9706 = smul.addr %s9705, 64
          %s9707 = scalar_lea.hbm %s5, %s9706
          %s9708 = sshll.u32 %s9698, 4
          %s9709 = int_to_ptr.vmem [resolvable:$true] %s9708
          %9714 = dma.vmem_to_hbm [thread:$0]  %s9709, 2048, %s9707, %s9695, 64, 64, 4
        $region56: #{tpu_custom_call.1} parent=39 // pred_fallthru
          _
      $region40: #{tpu_custom_call.1} parent=5 // pred_fallthru
        _
      %p9715 = scmp.le.s32.totalorder 2, %s18
      // Predicated region
      $region57: #{tpu_custom_call.1} parent=5 // pred_check
        %p9716 = pneg %p9715
      $region58: #{tpu_custom_call.1} parent=5 // pred_check_branch
        %9718 = sbr.rel (%p9716) target = $region60
      $region59: #{tpu_custom_call.1} parent=5 // pred_region
        %s9719 = ssub.s32 %s18, 2
        // Predicated region
        $region61: #{tpu_custom_call.1} parent=59 // pred_check
          %p9720 = pneg %p157
        $region62: #{tpu_custom_call.1} parent=59 // pred_check_branch
          %9722 = sbr.rel (%p9720) target = $region64
        $region63: #{tpu_custom_call.1} parent=59 // pred_region
          %s9723 = sand.u32 %s142, 1
          %s9724 = scalar_lea.sflag [#allocation7], %s9723
          %s9725 = sand.u32 %s142, 1
          %s9726 = smul.addr %s9725, 128
          %s9727 = scalar_lea.vmem [#allocation11], %s9726
          %9728 = dma.done %s9724, 2048
        $region64: #{tpu_custom_call.1} parent=59 // pred_fallthru
          _
      $region60: #{tpu_custom_call.1} parent=5 // pred_fallthru
        _
    $region6: #{tpu_custom_call.1} parent=1 // loop_footer
      %s22 = sadd.s32 1, %s18
    $region7: #{tpu_custom_call.1} parent=1 // loop_footer_branch
      %17 = sbr.rel target = $region3
    $region8: #{tpu_custom_call.1} parent=1 // loop_exit
      _
    %9729 = vsyncpa [#allocation6], 1
    %s9730 = scalar_lea.sflag [#allocation6], 1
    %9731 = vsyncpa %s9730, 1
    %9732 = vsyncpa [#allocation9], 1
    %9733 = vsyncpa [#allocation7], 1
    %s9734 = scalar_lea.sflag [#allocation7], 1
    %9735 = vsyncpa %s9734, 1

</llo_original>
